<compile_context>
chip_gen: v7x
topology: tpu7x:2x2x1
jax: 0.10.0
libtpu: 0.0.40
codegen_flags: <defaults>
</compile_context>

<pallas_src>
import jax
import jax.numpy as jnp
from jax.experimental import pallas as pl
from jax.experimental.pallas import tpu as pltpu


# ----------------------------------------------------------------------------
# Kernel 1: conv1 + ReLU + maxpool(2) + conv2 + ReLU, S samples per grid step.
# Layouts (per grid step, lane index = c*S + s):
#   x_ref   : (1, 28, 28, 32*S)   dims (W, H, lanes)
#   w1_ref  : (9, 1, 32*S)        per-tap conv1 weights (repeated over S)
#   w2_ref  : (9, 32*S, 64*S)     per-tap block-diagonal conv2 weights
#   o_ref   : (1, 144, 64*S)      "wide" conv2 rows j = h*13 + w (h<=10 valid)
# ----------------------------------------------------------------------------
def make_conv_kernel(S):
    C1, C2 = 32 * S, 64 * S

    def kernel(x_ref, w1_ref, b1_ref, w2_ref, b2_ref, o_ref,
               h1_ref, hm_ref, pool_ref, acc_ref):
        # ---- conv1 (C_in = 1): 9-tap broadcast multiply-accumulate (VPU) ----
        acc1 = jnp.zeros((26, 26, C1), jnp.float32)
        for kh in range(3):
            for kw in range(3):
                k = kh * 3 + kw
                patch = x_ref[0, kw:kw + 26, kh:kh + 26, :]        # (26,26,C1)
                acc1 = acc1 + patch * jnp.reshape(w1_ref[k], (1, 1, C1))
        b1 = jnp.reshape(b1_ref[...], (1, 1, C1))
        h1_ref[...] = jnp.maximum(acc1 + b1, 0.0)                  # (W,H,C1)

        # ---- 2x2 max-pool, pure VPU (no MXU) --------------------------------
        # W-pool: pairs along the leading (W) dim.
        for j in range(13):
            hm_ref[j] = jnp.maximum(h1_ref[2 * j], h1_ref[2 * j + 1])  # (26,C1)
        # H-pool: 2-sublane max, stored flattened h-major: row = h*13 + w.
        pool_ref[...] = jnp.zeros((176, C1), jnp.float32)          # zero padding
        for i in range(13):
            slab = hm_ref[:, 2 * i:2 * i + 2, :]                   # (13,2,C1)
            pool_ref[i * 13:(i + 1) * 13, :] = jnp.max(slab, axis=1)

        # ---- conv2: 9 matmuls of (144, C1) x (C1, C2), wide-row accumulation
        # Wide output row j = h*13 + w; tap (kh,kw) reads pool rows base + j
        # with base = kh*13 + kw, which equals (h+kh)*13 + (w+kw) for w <= 10.
        acc_ref[...] = jnp.zeros((144, C2), jnp.float32)
        for kh in range(3):
            for kw in range(3):
                k = kh * 3 + kw
                base = kh * 13 + kw
                lhs = pool_ref[base:base + 144, :]                 # (144, C1)
                acc_ref[...] += jnp.dot(lhs, w2_ref[k],
                                        preferred_element_type=jnp.float32)
        # bias + ReLU + single unmasked bulk store (144 rows, C2 lanes)
        o_ref[0] = jnp.maximum(acc_ref[...] + b2_ref[...], 0.0)

    return kernel


def conv_features(x_exp, w1e, b1e, w2e, b2e, S):
    G = x_exp.shape[0]
    C1, C2 = 32 * S, 64 * S
    return pl.pallas_call(
        make_conv_kernel(S),
        out_shape=jax.ShapeDtypeStruct((G, 144, C2), jnp.float32),
        grid=(G,),
        in_specs=[
            pl.BlockSpec((1, 28, 28, C1), lambda g: (g, 0, 0, 0)),
            pl.BlockSpec((9, 1, C1), lambda g: (0, 0, 0)),
            pl.BlockSpec((1, C1), lambda g: (0, 0)),
            pl.BlockSpec((9, C1, C2), lambda g: (0, 0, 0)),
            pl.BlockSpec((1, C2), lambda g: (0, 0)),
        ],
        out_specs=pl.BlockSpec((1, 144, C2), lambda g: (g, 0, 0)),
        scratch_shapes=[
            pltpu.VMEM((26, 26, C1), jnp.float32),   # conv1 activations (W,H,C)
            pltpu.VMEM((13, 26, C1), jnp.float32),   # W-pooled activations
            pltpu.VMEM((176, C1), jnp.float32),      # pooled, flat h*13+w rows
            pltpu.VMEM((144, C2), jnp.float32),      # conv2 accumulator
        ],
        compiler_params=pltpu.CompilerParams(
            dimension_semantics=("parallel",)),      # batch steps independent
    )(x_exp, w1e, b1e, w2e, b2e)


# ----------------------------------------------------------------------------
# Kernel 2: fc1 (bf16 weights) + dropout + fc2 + per-sample NLL, row-tiled.
# ----------------------------------------------------------------------------
def head_kernel(feat_ref, wfc1_ref, bfc1_ref, mask_ref, wfc2_ref, bfc2_ref,
                onehot_ref, logits_ref, nll_ref):
    # fc1: bf16 x bf16 on the MXU, f32 accumulate (head is HBM-bound on wfc1).
    feat_bf = feat_ref[...].astype(jnp.bfloat16)
    h = jnp.dot(feat_bf, wfc1_ref[...],
                preferred_element_type=jnp.float32) + bfc1_ref[...]   # (TB,300)
    h = h * mask_ref[...]                                             # dropout
    w2 = wfc2_ref[...].astype(jnp.float32)                            # tiny
    logits = jnp.dot(h, w2, preferred_element_type=jnp.float32) + bfc2_ref[...]
    logits_ref[...] = logits

    # per-sample cross-entropy (max-stabilized log-sum-exp)
    m = jnp.max(logits, axis=-1, keepdims=True)
    lse = m + jnp.log(jnp.sum(jnp.exp(logits - m), axis=-1, keepdims=True))
    picked = jnp.sum(logits * onehot_ref[...], axis=-1, keepdims=True)
    nll_ref[...] = lse - picked


def head(feat, wfc1, bfc1, drop_mask, wfc2, bfc2, onehot):
    B, F = feat.shape
    TB = B if B <= 128 else 128
    assert B % TB == 0
    row = lambda t: (t, 0)
    full = lambda t: (0, 0)
    return pl.pallas_call(
        head_kernel,
        out_shape=(jax.ShapeDtypeStruct((B, 10), jnp.float32),
                   jax.ShapeDtypeStruct((B, 1), jnp.float32)),
        grid=(B // TB,),
        in_specs=[
            pl.BlockSpec((TB, F), row),
            pl.BlockSpec((F, 300), full),       # resident bf16 fc1 weight
            pl.BlockSpec((1, 300), full),
            pl.BlockSpec((TB, 300), row),
            pl.BlockSpec((300, 10), full),      # resident bf16 fc2 weight
            pl.BlockSpec((1, 10), full),
            pl.BlockSpec((TB, 10), row),
        ],
        out_specs=(pl.BlockSpec((TB, 10), row),
                   pl.BlockSpec((TB, 1), row)),
        compiler_params=pltpu.CompilerParams(
            dimension_semantics=("parallel",),
            vmem_limit_bytes=32 * 1024 * 1024),
    )(feat, wfc1, bfc1, drop_mask, wfc2, bfc2, onehot)


# ----------------------------------------------------------------------------
# Full forward pass (host glue: layout relayout, weight expansion, flatten).
# ----------------------------------------------------------------------------
def model_forward(x_nchw, labels, params, drop_mask):
    B = x_nchw.shape[0]
    S = 4 if B % 4 == 0 else (2 if B % 2 == 0 else 1)   # samples per grid step
    G = B // S

    # x: NCHW (B,1,28,28) -> (G, 28(W), 28(H), 32*S) with lane = c*S + s.
    x_sq = x_nchw[:, 0].astype(jnp.float32)                       # (B, H, W)
    x_whb = jnp.transpose(x_sq, (2, 1, 0))                        # (W, H, B)
    x_g = jnp.transpose(x_whb.reshape(28, 28, G, S), (2, 0, 1, 3))  # (G,W,H,S)
    x_exp = jnp.tile(x_g, (1, 1, 1, 32))                          # (G,W,H,32S)

    # expand conv weights/biases to the lane-packed layout
    w1e = jnp.repeat(params["w1"], S, axis=1)[:, None, :]         # (9,1,32S)
    b1e = jnp.repeat(params["b1"], S, axis=1)                     # (1,32S)
    eye = jnp.eye(S, dtype=jnp.float32)
    w2e = jnp.einsum("kco,st->kcsot", params["w2"], eye).reshape(9, 32 * S, 64 * S)
    b2e = jnp.repeat(params["b2"], S, axis=1)                     # (1,64S)

    wide = conv_features(x_exp, w1e, b1e, w2e, b2e, S)            # (G,144,64S)

    # drop garbage wide rows / columns, split samples out of the lane dim,
    # flatten in (h, w, c) order to match the fc1 weight layout.
    feat = (wide[:, :143, :]
            .reshape(G, 11, 13, 64, S)[:, :, :11]
            .transpose(0, 4, 1, 2, 3)
            .reshape(B, 11 * 11 * 64))                            # (B, 7744)

    onehot = jax.nn.one_hot(labels, 10, dtype=jnp.float32)
    logits, nll = head(feat, params["wfc1"], params["bfc1"], drop_mask,
                       params["wfc2"], params["bfc2"], onehot)
    return jnp.mean(nll), logits


# ----------------------------------------------------------------------------
# Pure-JAX reference for a correctness sanity check
# ----------------------------------------------------------------------------
def reference(x_nchw, labels, params, drop_mask):
    hi = jax.lax.Precision.HIGHEST
    xh = jnp.transpose(x_nchw, (0, 2, 3, 1)).astype(jnp.float32)       # NHWC
    w1 = params["w1"].reshape(3, 3, 1, 32)
    y = jax.lax.conv_general_dilated(xh, w1, (1, 1), "VALID",
                                     dimension_numbers=("NHWC", "HWIO", "NHWC"),
                                     precision=hi)
    y = jnp.maximum(y + params["b1"].reshape(1, 1, 1, 32), 0.0)
    y = jax.lax.reduce_window(y, -jnp.inf, jax.lax.max,
                              (1, 2, 2, 1), (1, 2, 2, 1), "VALID")
    w2 = params["w2"].reshape(3, 3, 32, 64)
    y = jax.lax.conv_general_dilated(y, w2, (1, 1), "VALID",
                                     dimension_numbers=("NHWC", "HWIO", "NHWC"),
                                     precision=hi)
    y = jnp.maximum(y + params["b2"].reshape(1, 1, 1, 64), 0.0)
    f = y.reshape(y.shape[0], -1)
    h = jnp.dot(f, params["wfc1"].astype(jnp.float32), precision=hi) + params["bfc1"]
    h = h * drop_mask
    logit = jnp.dot(h, params["wfc2"].astype(jnp.float32), precision=hi) + params["bfc2"]
    lse = jax.scipy.special.logsumexp(logit, axis=-1)
    nll = lse - jnp.take_along_axis(logit, labels[:, None], axis=-1)[:, 0]
    return jnp.mean(nll), logit


if __name__ == "__main__":
    key = jax.random.PRNGKey(0)
    ks = jax.random.split(key, 8)
    B = 8

    # module input: NCHW (B, 1, 28, 28); 28x28 is forced by fc1 = 11*11*64
    x = jax.random.normal(ks[0], (B, 1, 28, 28), jnp.float32)
    labels = jax.random.randint(ks[1], (B,), 0, 10)

    # deterministic parameter init (shapes follow the module's __init__);
    # fc weights are stored in bfloat16 (the kernel's working dtype).
    params = {
        "w1": jax.random.normal(ks[2], (9, 32), jnp.float32) * 0.20,     # (3*3, 32)
        "b1": jnp.zeros((1, 32), jnp.float32),
        "w2": jax.random.normal(ks[3], (9, 32, 64), jnp.float32) * 0.06,  # (3*3, 32, 64)
        "b2": jnp.zeros((1, 64), jnp.float32),
        "wfc1": (jax.random.normal(ks[4], (7744, 300), jnp.float32) * 0.011
                 ).astype(jnp.bfloat16),
        "bfc1": jnp.zeros((1, 300), jnp.float32),
        "wfc2": (jax.random.normal(ks[5], (300, 10), jnp.float32) * 0.057
                 ).astype(jnp.bfloat16),
        "bfc2": jnp.zeros((1, 10), jnp.float32),
    }

    # dropout mask, p = 0.3 (training mode), pre-scaled by 1 / (1 - p)
    keep = jax.random.bernoulli(ks[6], 0.7, (B, 300))
    drop_mask = keep.astype(jnp.float32) / 0.7

    loss, logits = model_forward(x, labels, params, drop_mask)
    jax.block_until_ready((loss, logits))

    ref_loss, ref_logits = reference(x, labels, params, drop_mask)
    err_logits = float(jnp.max(jnp.abs(logits - ref_logits)))
    err_loss = float(jnp.abs(loss - ref_loss))
    assert err_logits < 2e-2 and err_loss < 2e-2, (err_logits, err_loss)

    print("KERNEL_OK")
</pallas_src>

<mosaic_0001>
module attributes {stable_mosaic.version = 11 : i64} {
  func.func @kernel(%arg0: i32, %arg1: memref<1x28x28x128xf32, #tpu.memory_space<vmem>>, %arg2: memref<9x1x128xf32, #tpu.memory_space<vmem>>, %arg3: memref<1x128xf32, #tpu.memory_space<vmem>>, %arg4: memref<9x128x256xf32, #tpu.memory_space<vmem>>, %arg5: memref<1x256xf32, #tpu.memory_space<vmem>>, %arg6: memref<1x144x256xf32, #tpu.memory_space<vmem>>, %arg7: memref<26x26x128xf32, #tpu.memory_space<vmem>>, %arg8: memref<13x26x128xf32, #tpu.memory_space<vmem>>, %arg9: memref<176x128xf32, #tpu.memory_space<vmem>>, %arg10: memref<144x256xf32, #tpu.memory_space<vmem>>) attributes {dimension_semantics = [#tpu.dimension_semantics<parallel>], iteration_bounds = array<i64: 2>, scalar_prefetch = 0 : i64, scratch_operands = 4 : i64, tpu.core_type = #tpu.core_type<tc>, window_params = [{transform_indices = @transform_0, window_bounds = array<i64: 1, 28, 28, 128>}, {pipeline_mode = #tpu.pipeline_mode<synchronous>, transform_indices = @transform_1, window_bounds = array<i64: 9, 1, 128>}, {pipeline_mode = #tpu.pipeline_mode<synchronous>, transform_indices = @transform_2, window_bounds = array<i64: 1, 128>}, {pipeline_mode = #tpu.pipeline_mode<synchronous>, transform_indices = @transform_3, window_bounds = array<i64: 9, 128, 256>}, {pipeline_mode = #tpu.pipeline_mode<synchronous>, transform_indices = @transform_4, window_bounds = array<i64: 1, 256>}, {transform_indices = @transform_5, window_bounds = array<i64: 1, 144, 256>}]} {
    %cst = arith.constant 0.000000e+00 : f32
    %0 = vector.broadcast %cst : f32 to vector<26x26x128xf32>
    %c0 = arith.constant 0 : index
    %c0_0 = arith.constant 0 : index
    %c0_1 = arith.constant 0 : index
    %c0_2 = arith.constant 0 : index
    %1 = vector.load %arg1[%c0, %c0_0, %c0_1, %c0_2] : memref<1x28x28x128xf32, #tpu.memory_space<vmem>>, vector<1x26x26x128xf32>
    %2 = vector.shape_cast %1 : vector<1x26x26x128xf32> to vector<26x26x128xf32>
    %c0_3 = arith.constant 0 : index
    %c0_4 = arith.constant 0 : index
    %c0_5 = arith.constant 0 : index
    %3 = vector.load %arg2[%c0_3, %c0_4, %c0_5] : memref<9x1x128xf32, #tpu.memory_space<vmem>>, vector<1x1x128xf32>
    %4 = vector.shape_cast %3 : vector<1x1x128xf32> to vector<1x128xf32>
    %5 = vector.shape_cast %4 : vector<1x128xf32> to vector<1x1x128xf32>
    %6 = vector.broadcast %5 : vector<1x1x128xf32> to vector<26x26x128xf32>
    %7 = arith.mulf %2, %6 : vector<26x26x128xf32>
    %8 = arith.addf %0, %7 : vector<26x26x128xf32>
    %c0_6 = arith.constant 0 : index
    %c1 = arith.constant 1 : index
    %c0_7 = arith.constant 0 : index
    %c0_8 = arith.constant 0 : index
    %9 = vector.load %arg1[%c0_6, %c1, %c0_7, %c0_8] : memref<1x28x28x128xf32, #tpu.memory_space<vmem>>, vector<1x26x26x128xf32>
    %10 = vector.shape_cast %9 : vector<1x26x26x128xf32> to vector<26x26x128xf32>
    %c1_9 = arith.constant 1 : index
    %c0_10 = arith.constant 0 : index
    %c0_11 = arith.constant 0 : index
    %11 = vector.load %arg2[%c1_9, %c0_10, %c0_11] : memref<9x1x128xf32, #tpu.memory_space<vmem>>, vector<1x1x128xf32>
    %12 = vector.shape_cast %11 : vector<1x1x128xf32> to vector<1x128xf32>
    %13 = vector.shape_cast %12 : vector<1x128xf32> to vector<1x1x128xf32>
    %14 = vector.broadcast %13 : vector<1x1x128xf32> to vector<26x26x128xf32>
    %15 = arith.mulf %10, %14 : vector<26x26x128xf32>
    %16 = arith.addf %8, %15 : vector<26x26x128xf32>
    %c0_12 = arith.constant 0 : index
    %c2 = arith.constant 2 : index
    %c0_13 = arith.constant 0 : index
    %c0_14 = arith.constant 0 : index
    %17 = vector.load %arg1[%c0_12, %c2, %c0_13, %c0_14] : memref<1x28x28x128xf32, #tpu.memory_space<vmem>>, vector<1x26x26x128xf32>
    %18 = vector.shape_cast %17 : vector<1x26x26x128xf32> to vector<26x26x128xf32>
    %c2_15 = arith.constant 2 : index
    %c0_16 = arith.constant 0 : index
    %c0_17 = arith.constant 0 : index
    %19 = vector.load %arg2[%c2_15, %c0_16, %c0_17] : memref<9x1x128xf32, #tpu.memory_space<vmem>>, vector<1x1x128xf32>
    %20 = vector.shape_cast %19 : vector<1x1x128xf32> to vector<1x128xf32>
    %21 = vector.shape_cast %20 : vector<1x128xf32> to vector<1x1x128xf32>
    %22 = vector.broadcast %21 : vector<1x1x128xf32> to vector<26x26x128xf32>
    %23 = arith.mulf %18, %22 : vector<26x26x128xf32>
    %24 = arith.addf %16, %23 : vector<26x26x128xf32>
    %c0_18 = arith.constant 0 : index
    %c0_19 = arith.constant 0 : index
    %c1_20 = arith.constant 1 : index
    %c0_21 = arith.constant 0 : index
    %25 = vector.load %arg1[%c0_18, %c0_19, %c1_20, %c0_21] : memref<1x28x28x128xf32, #tpu.memory_space<vmem>>, vector<1x26x26x128xf32>
    %26 = vector.shape_cast %25 : vector<1x26x26x128xf32> to vector<26x26x128xf32>
    %c3 = arith.constant 3 : index
    %c0_22 = arith.constant 0 : index
    %c0_23 = arith.constant 0 : index
    %27 = vector.load %arg2[%c3, %c0_22, %c0_23] : memref<9x1x128xf32, #tpu.memory_space<vmem>>, vector<1x1x128xf32>
    %28 = vector.shape_cast %27 : vector<1x1x128xf32> to vector<1x128xf32>
    %29 = vector.shape_cast %28 : vector<1x128xf32> to vector<1x1x128xf32>
    %30 = vector.broadcast %29 : vector<1x1x128xf32> to vector<26x26x128xf32>
    %31 = arith.mulf %26, %30 : vector<26x26x128xf32>
    %32 = arith.addf %24, %31 : vector<26x26x128xf32>
    %c0_24 = arith.constant 0 : index
    %c1_25 = arith.constant 1 : index
    %c1_26 = arith.constant 1 : index
    %c0_27 = arith.constant 0 : index
    %33 = vector.load %arg1[%c0_24, %c1_25, %c1_26, %c0_27] : memref<1x28x28x128xf32, #tpu.memory_space<vmem>>, vector<1x26x26x128xf32>
    %34 = vector.shape_cast %33 : vector<1x26x26x128xf32> to vector<26x26x128xf32>
    %c4 = arith.constant 4 : index
    %c0_28 = arith.constant 0 : index
    %c0_29 = arith.constant 0 : index
    %35 = vector.load %arg2[%c4, %c0_28, %c0_29] : memref<9x1x128xf32, #tpu.memory_space<vmem>>, vector<1x1x128xf32>
    %36 = vector.shape_cast %35 : vector<1x1x128xf32> to vector<1x128xf32>
    %37 = vector.shape_cast %36 : vector<1x128xf32> to vector<1x1x128xf32>
    %38 = vector.broadcast %37 : vector<1x1x128xf32> to vector<26x26x128xf32>
    %39 = arith.mulf %34, %38 : vector<26x26x128xf32>
    %40 = arith.addf %32, %39 : vector<26x26x128xf32>
    %c0_30 = arith.constant 0 : index
    %c2_31 = arith.constant 2 : index
    %c1_32 = arith.constant 1 : index
    %c0_33 = arith.constant 0 : index
    %41 = vector.load %arg1[%c0_30, %c2_31, %c1_32, %c0_33] : memref<1x28x28x128xf32, #tpu.memory_space<vmem>>, vector<1x26x26x128xf32>
    %42 = vector.shape_cast %41 : vector<1x26x26x128xf32> to vector<26x26x128xf32>
    %c5 = arith.constant 5 : index
    %c0_34 = arith.constant 0 : index
    %c0_35 = arith.constant 0 : index
    %43 = vector.load %arg2[%c5, %c0_34, %c0_35] : memref<9x1x128xf32, #tpu.memory_space<vmem>>, vector<1x1x128xf32>
    %44 = vector.shape_cast %43 : vector<1x1x128xf32> to vector<1x128xf32>
    %45 = vector.shape_cast %44 : vector<1x128xf32> to vector<1x1x128xf32>
    %46 = vector.broadcast %45 : vector<1x1x128xf32> to vector<26x26x128xf32>
    %47 = arith.mulf %42, %46 : vector<26x26x128xf32>
    %48 = arith.addf %40, %47 : vector<26x26x128xf32>
    %c0_36 = arith.constant 0 : index
    %c0_37 = arith.constant 0 : index
    %c2_38 = arith.constant 2 : index
    %c0_39 = arith.constant 0 : index
    %49 = vector.load %arg1[%c0_36, %c0_37, %c2_38, %c0_39] : memref<1x28x28x128xf32, #tpu.memory_space<vmem>>, vector<1x26x26x128xf32>
    %50 = vector.shape_cast %49 : vector<1x26x26x128xf32> to vector<26x26x128xf32>
    %c6 = arith.constant 6 : index
    %c0_40 = arith.constant 0 : index
    %c0_41 = arith.constant 0 : index
    %51 = vector.load %arg2[%c6, %c0_40, %c0_41] : memref<9x1x128xf32, #tpu.memory_space<vmem>>, vector<1x1x128xf32>
    %52 = vector.shape_cast %51 : vector<1x1x128xf32> to vector<1x128xf32>
    %53 = vector.shape_cast %52 : vector<1x128xf32> to vector<1x1x128xf32>
    %54 = vector.broadcast %53 : vector<1x1x128xf32> to vector<26x26x128xf32>
    %55 = arith.mulf %50, %54 : vector<26x26x128xf32>
    %56 = arith.addf %48, %55 : vector<26x26x128xf32>
    %c0_42 = arith.constant 0 : index
    %c1_43 = arith.constant 1 : index
    %c2_44 = arith.constant 2 : index
    %c0_45 = arith.constant 0 : index
    %57 = vector.load %arg1[%c0_42, %c1_43, %c2_44, %c0_45] : memref<1x28x28x128xf32, #tpu.memory_space<vmem>>, vector<1x26x26x128xf32>
    %58 = vector.shape_cast %57 : vector<1x26x26x128xf32> to vector<26x26x128xf32>
    %c7 = arith.constant 7 : index
    %c0_46 = arith.constant 0 : index
    %c0_47 = arith.constant 0 : index
    %59 = vector.load %arg2[%c7, %c0_46, %c0_47] : memref<9x1x128xf32, #tpu.memory_space<vmem>>, vector<1x1x128xf32>
    %60 = vector.shape_cast %59 : vector<1x1x128xf32> to vector<1x128xf32>
    %61 = vector.shape_cast %60 : vector<1x128xf32> to vector<1x1x128xf32>
    %62 = vector.broadcast %61 : vector<1x1x128xf32> to vector<26x26x128xf32>
    %63 = arith.mulf %58, %62 : vector<26x26x128xf32>
    %64 = arith.addf %56, %63 : vector<26x26x128xf32>
    %c0_48 = arith.constant 0 : index
    %c2_49 = arith.constant 2 : index
    %c2_50 = arith.constant 2 : index
    %c0_51 = arith.constant 0 : index
    %65 = vector.load %arg1[%c0_48, %c2_49, %c2_50, %c0_51] : memref<1x28x28x128xf32, #tpu.memory_space<vmem>>, vector<1x26x26x128xf32>
    %66 = vector.shape_cast %65 : vector<1x26x26x128xf32> to vector<26x26x128xf32>
    %c8 = arith.constant 8 : index
    %c0_52 = arith.constant 0 : index
    %c0_53 = arith.constant 0 : index
    %67 = vector.load %arg2[%c8, %c0_52, %c0_53] : memref<9x1x128xf32, #tpu.memory_space<vmem>>, vector<1x1x128xf32>
    %68 = vector.shape_cast %67 : vector<1x1x128xf32> to vector<1x128xf32>
    %69 = vector.shape_cast %68 : vector<1x128xf32> to vector<1x1x128xf32>
    %70 = vector.broadcast %69 : vector<1x1x128xf32> to vector<26x26x128xf32>
    %71 = arith.mulf %66, %70 : vector<26x26x128xf32>
    %72 = arith.addf %64, %71 : vector<26x26x128xf32>
    %c0_54 = arith.constant 0 : index
    %c0_55 = arith.constant 0 : index
    %73 = vector.load %arg3[%c0_54, %c0_55] : memref<1x128xf32, #tpu.memory_space<vmem>>, vector<1x128xf32>
    %74 = vector.shape_cast %73 : vector<1x128xf32> to vector<1x1x128xf32>
    %75 = vector.broadcast %74 : vector<1x1x128xf32> to vector<26x26x128xf32>
    %76 = arith.addf %72, %75 : vector<26x26x128xf32>
    %cst_56 = arith.constant 0.000000e+00 : f32
    %77 = vector.broadcast %cst_56 : f32 to vector<26x26x128xf32>
    %78 = arith.maximumf %76, %77 : vector<26x26x128xf32>
    %c0_57 = arith.constant 0 : index
    %c0_58 = arith.constant 0 : index
    %c0_59 = arith.constant 0 : index
    %79 = vector.load %arg7[%c0_57, %c0_58, %c0_59] : memref<26x26x128xf32, #tpu.memory_space<vmem>>, vector<26x26x128xf32>
    tpu.vector_store %arg7[%c0_57, %c0_58, %c0_59], %78 {strides = array<i32>} : memref<26x26x128xf32, #tpu.memory_space<vmem>>, vector<26x26x128xf32>,
    %c0_60 = arith.constant 0 : index
    %c0_61 = arith.constant 0 : index
    %c0_62 = arith.constant 0 : index
    %80 = vector.load %arg7[%c0_60, %c0_61, %c0_62] : memref<26x26x128xf32, #tpu.memory_space<vmem>>, vector<1x26x128xf32>
    %81 = vector.shape_cast %80 : vector<1x26x128xf32> to vector<26x128xf32>
    %c1_63 = arith.constant 1 : index
    %c0_64 = arith.constant 0 : index
    %c0_65 = arith.constant 0 : index
    %82 = vector.load %arg7[%c1_63, %c0_64, %c0_65] : memref<26x26x128xf32, #tpu.memory_space<vmem>>, vector<1x26x128xf32>
    %83 = vector.shape_cast %82 : vector<1x26x128xf32> to vector<26x128xf32>
    %84 = arith.maximumf %81, %83 : vector<26x128xf32>
    %c0_66 = arith.constant 0 : index
    %c0_67 = arith.constant 0 : index
    %c0_68 = arith.constant 0 : index
    %85 = vector.load %arg8[%c0_66, %c0_67, %c0_68] : memref<13x26x128xf32, #tpu.memory_space<vmem>>, vector<1x26x128xf32>
    %86 = vector.shape_cast %85 : vector<1x26x128xf32> to vector<26x128xf32>
    %87 = vector.shape_cast %84 : vector<26x128xf32> to vector<1x26x128xf32>
    tpu.vector_store %arg8[%c0_66, %c0_67, %c0_68], %87 {strides = array<i32>} : memref<13x26x128xf32, #tpu.memory_space<vmem>>, vector<1x26x128xf32>,
    %c2_69 = arith.constant 2 : index
    %c0_70 = arith.constant 0 : index
    %c0_71 = arith.constant 0 : index
    %88 = vector.load %arg7[%c2_69, %c0_70, %c0_71] : memref<26x26x128xf32, #tpu.memory_space<vmem>>, vector<1x26x128xf32>
    %89 = vector.shape_cast %88 : vector<1x26x128xf32> to vector<26x128xf32>
    %c3_72 = arith.constant 3 : index
    %c0_73 = arith.constant 0 : index
    %c0_74 = arith.constant 0 : index
    %90 = vector.load %arg7[%c3_72, %c0_73, %c0_74] : memref<26x26x128xf32, #tpu.memory_space<vmem>>, vector<1x26x128xf32>
    %91 = vector.shape_cast %90 : vector<1x26x128xf32> to vector<26x128xf32>
    %92 = arith.maximumf %89, %91 : vector<26x128xf32>
    %c1_75 = arith.constant 1 : index
    %c0_76 = arith.constant 0 : index
    %c0_77 = arith.constant 0 : index
    %93 = vector.load %arg8[%c1_75, %c0_76, %c0_77] : memref<13x26x128xf32, #tpu.memory_space<vmem>>, vector<1x26x128xf32>
    %94 = vector.shape_cast %93 : vector<1x26x128xf32> to vector<26x128xf32>
    %95 = vector.shape_cast %92 : vector<26x128xf32> to vector<1x26x128xf32>
    tpu.vector_store %arg8[%c1_75, %c0_76, %c0_77], %95 {strides = array<i32>} : memref<13x26x128xf32, #tpu.memory_space<vmem>>, vector<1x26x128xf32>,
    %c4_78 = arith.constant 4 : index
    %c0_79 = arith.constant 0 : index
    %c0_80 = arith.constant 0 : index
    %96 = vector.load %arg7[%c4_78, %c0_79, %c0_80] : memref<26x26x128xf32, #tpu.memory_space<vmem>>, vector<1x26x128xf32>
    %97 = vector.shape_cast %96 : vector<1x26x128xf32> to vector<26x128xf32>
    %c5_81 = arith.constant 5 : index
    %c0_82 = arith.constant 0 : index
    %c0_83 = arith.constant 0 : index
    %98 = vector.load %arg7[%c5_81, %c0_82, %c0_83] : memref<26x26x128xf32, #tpu.memory_space<vmem>>, vector<1x26x128xf32>
    %99 = vector.shape_cast %98 : vector<1x26x128xf32> to vector<26x128xf32>
    %100 = arith.maximumf %97, %99 : vector<26x128xf32>
    %c2_84 = arith.constant 2 : index
    %c0_85 = arith.constant 0 : index
    %c0_86 = arith.constant 0 : index
    %101 = vector.load %arg8[%c2_84, %c0_85, %c0_86] : memref<13x26x128xf32, #tpu.memory_space<vmem>>, vector<1x26x128xf32>
    %102 = vector.shape_cast %101 : vector<1x26x128xf32> to vector<26x128xf32>
    %103 = vector.shape_cast %100 : vector<26x128xf32> to vector<1x26x128xf32>
    tpu.vector_store %arg8[%c2_84, %c0_85, %c0_86], %103 {strides = array<i32>} : memref<13x26x128xf32, #tpu.memory_space<vmem>>, vector<1x26x128xf32>,
    %c6_87 = arith.constant 6 : index
    %c0_88 = arith.constant 0 : index
    %c0_89 = arith.constant 0 : index
    %104 = vector.load %arg7[%c6_87, %c0_88, %c0_89] : memref<26x26x128xf32, #tpu.memory_space<vmem>>, vector<1x26x128xf32>
    %105 = vector.shape_cast %104 : vector<1x26x128xf32> to vector<26x128xf32>
    %c7_90 = arith.constant 7 : index
    %c0_91 = arith.constant 0 : index
    %c0_92 = arith.constant 0 : index
    %106 = vector.load %arg7[%c7_90, %c0_91, %c0_92] : memref<26x26x128xf32, #tpu.memory_space<vmem>>, vector<1x26x128xf32>
    %107 = vector.shape_cast %106 : vector<1x26x128xf32> to vector<26x128xf32>
    %108 = arith.maximumf %105, %107 : vector<26x128xf32>
    %c3_93 = arith.constant 3 : index
    %c0_94 = arith.constant 0 : index
    %c0_95 = arith.constant 0 : index
    %109 = vector.load %arg8[%c3_93, %c0_94, %c0_95] : memref<13x26x128xf32, #tpu.memory_space<vmem>>, vector<1x26x128xf32>
    %110 = vector.shape_cast %109 : vector<1x26x128xf32> to vector<26x128xf32>
    %111 = vector.shape_cast %108 : vector<26x128xf32> to vector<1x26x128xf32>
    tpu.vector_store %arg8[%c3_93, %c0_94, %c0_95], %111 {strides = array<i32>} : memref<13x26x128xf32, #tpu.memory_space<vmem>>, vector<1x26x128xf32>,
    %c8_96 = arith.constant 8 : index
    %c0_97 = arith.constant 0 : index
    %c0_98 = arith.constant 0 : index
    %112 = vector.load %arg7[%c8_96, %c0_97, %c0_98] : memref<26x26x128xf32, #tpu.memory_space<vmem>>, vector<1x26x128xf32>
    %113 = vector.shape_cast %112 : vector<1x26x128xf32> to vector<26x128xf32>
    %c9 = arith.constant 9 : index
    %c0_99 = arith.constant 0 : index
    %c0_100 = arith.constant 0 : index
    %114 = vector.load %arg7[%c9, %c0_99, %c0_100] : memref<26x26x128xf32, #tpu.memory_space<vmem>>, vector<1x26x128xf32>
    %115 = vector.shape_cast %114 : vector<1x26x128xf32> to vector<26x128xf32>
    %116 = arith.maximumf %113, %115 : vector<26x128xf32>
    %c4_101 = arith.constant 4 : index
    %c0_102 = arith.constant 0 : index
    %c0_103 = arith.constant 0 : index
    %117 = vector.load %arg8[%c4_101, %c0_102, %c0_103] : memref<13x26x128xf32, #tpu.memory_space<vmem>>, vector<1x26x128xf32>
    %118 = vector.shape_cast %117 : vector<1x26x128xf32> to vector<26x128xf32>
    %119 = vector.shape_cast %116 : vector<26x128xf32> to vector<1x26x128xf32>
    tpu.vector_store %arg8[%c4_101, %c0_102, %c0_103], %119 {strides = array<i32>} : memref<13x26x128xf32, #tpu.memory_space<vmem>>, vector<1x26x128xf32>,
    %c10 = arith.constant 10 : index
    %c0_104 = arith.constant 0 : index
    %c0_105 = arith.constant 0 : index
    %120 = vector.load %arg7[%c10, %c0_104, %c0_105] : memref<26x26x128xf32, #tpu.memory_space<vmem>>, vector<1x26x128xf32>
    %121 = vector.shape_cast %120 : vector<1x26x128xf32> to vector<26x128xf32>
    %c11 = arith.constant 11 : index
    %c0_106 = arith.constant 0 : index
    %c0_107 = arith.constant 0 : index
    %122 = vector.load %arg7[%c11, %c0_106, %c0_107] : memref<26x26x128xf32, #tpu.memory_space<vmem>>, vector<1x26x128xf32>
    %123 = vector.shape_cast %122 : vector<1x26x128xf32> to vector<26x128xf32>
    %124 = arith.maximumf %121, %123 : vector<26x128xf32>
    %c5_108 = arith.constant 5 : index
    %c0_109 = arith.constant 0 : index
    %c0_110 = arith.constant 0 : index
    %125 = vector.load %arg8[%c5_108, %c0_109, %c0_110] : memref<13x26x128xf32, #tpu.memory_space<vmem>>, vector<1x26x128xf32>
    %126 = vector.shape_cast %125 : vector<1x26x128xf32> to vector<26x128xf32>
    %127 = vector.shape_cast %124 : vector<26x128xf32> to vector<1x26x128xf32>
    tpu.vector_store %arg8[%c5_108, %c0_109, %c0_110], %127 {strides = array<i32>} : memref<13x26x128xf32, #tpu.memory_space<vmem>>, vector<1x26x128xf32>,
    %c12 = arith.constant 12 : index
    %c0_111 = arith.constant 0 : index
    %c0_112 = arith.constant 0 : index
    %128 = vector.load %arg7[%c12, %c0_111, %c0_112] : memref<26x26x128xf32, #tpu.memory_space<vmem>>, vector<1x26x128xf32>
    %129 = vector.shape_cast %128 : vector<1x26x128xf32> to vector<26x128xf32>
    %c13 = arith.constant 13 : index
    %c0_113 = arith.constant 0 : index
    %c0_114 = arith.constant 0 : index
    %130 = vector.load %arg7[%c13, %c0_113, %c0_114] : memref<26x26x128xf32, #tpu.memory_space<vmem>>, vector<1x26x128xf32>
    %131 = vector.shape_cast %130 : vector<1x26x128xf32> to vector<26x128xf32>
    %132 = arith.maximumf %129, %131 : vector<26x128xf32>
    %c6_115 = arith.constant 6 : index
    %c0_116 = arith.constant 0 : index
    %c0_117 = arith.constant 0 : index
    %133 = vector.load %arg8[%c6_115, %c0_116, %c0_117] : memref<13x26x128xf32, #tpu.memory_space<vmem>>, vector<1x26x128xf32>
    %134 = vector.shape_cast %133 : vector<1x26x128xf32> to vector<26x128xf32>
    %135 = vector.shape_cast %132 : vector<26x128xf32> to vector<1x26x128xf32>
    tpu.vector_store %arg8[%c6_115, %c0_116, %c0_117], %135 {strides = array<i32>} : memref<13x26x128xf32, #tpu.memory_space<vmem>>, vector<1x26x128xf32>,
    %c14 = arith.constant 14 : index
    %c0_118 = arith.constant 0 : index
    %c0_119 = arith.constant 0 : index
    %136 = vector.load %arg7[%c14, %c0_118, %c0_119] : memref<26x26x128xf32, #tpu.memory_space<vmem>>, vector<1x26x128xf32>
    %137 = vector.shape_cast %136 : vector<1x26x128xf32> to vector<26x128xf32>
    %c15 = arith.constant 15 : index
    %c0_120 = arith.constant 0 : index
    %c0_121 = arith.constant 0 : index
    %138 = vector.load %arg7[%c15, %c0_120, %c0_121] : memref<26x26x128xf32, #tpu.memory_space<vmem>>, vector<1x26x128xf32>
    %139 = vector.shape_cast %138 : vector<1x26x128xf32> to vector<26x128xf32>
    %140 = arith.maximumf %137, %139 : vector<26x128xf32>
    %c7_122 = arith.constant 7 : index
    %c0_123 = arith.constant 0 : index
    %c0_124 = arith.constant 0 : index
    %141 = vector.load %arg8[%c7_122, %c0_123, %c0_124] : memref<13x26x128xf32, #tpu.memory_space<vmem>>, vector<1x26x128xf32>
    %142 = vector.shape_cast %141 : vector<1x26x128xf32> to vector<26x128xf32>
    %143 = vector.shape_cast %140 : vector<26x128xf32> to vector<1x26x128xf32>
    tpu.vector_store %arg8[%c7_122, %c0_123, %c0_124], %143 {strides = array<i32>} : memref<13x26x128xf32, #tpu.memory_space<vmem>>, vector<1x26x128xf32>,
    %c16 = arith.constant 16 : index
    %c0_125 = arith.constant 0 : index
    %c0_126 = arith.constant 0 : index
    %144 = vector.load %arg7[%c16, %c0_125, %c0_126] : memref<26x26x128xf32, #tpu.memory_space<vmem>>, vector<1x26x128xf32>
    %145 = vector.shape_cast %144 : vector<1x26x128xf32> to vector<26x128xf32>
    %c17 = arith.constant 17 : index
    %c0_127 = arith.constant 0 : index
    %c0_128 = arith.constant 0 : index
    %146 = vector.load %arg7[%c17, %c0_127, %c0_128] : memref<26x26x128xf32, #tpu.memory_space<vmem>>, vector<1x26x128xf32>
    %147 = vector.shape_cast %146 : vector<1x26x128xf32> to vector<26x128xf32>
    %148 = arith.maximumf %145, %147 : vector<26x128xf32>
    %c8_129 = arith.constant 8 : index
    %c0_130 = arith.constant 0 : index
    %c0_131 = arith.constant 0 : index
    %149 = vector.load %arg8[%c8_129, %c0_130, %c0_131] : memref<13x26x128xf32, #tpu.memory_space<vmem>>, vector<1x26x128xf32>
    %150 = vector.shape_cast %149 : vector<1x26x128xf32> to vector<26x128xf32>
    %151 = vector.shape_cast %148 : vector<26x128xf32> to vector<1x26x128xf32>
    tpu.vector_store %arg8[%c8_129, %c0_130, %c0_131], %151 {strides = array<i32>} : memref<13x26x128xf32, #tpu.memory_space<vmem>>, vector<1x26x128xf32>,
    %c18 = arith.constant 18 : index
    %c0_132 = arith.constant 0 : index
    %c0_133 = arith.constant 0 : index
    %152 = vector.load %arg7[%c18, %c0_132, %c0_133] : memref<26x26x128xf32, #tpu.memory_space<vmem>>, vector<1x26x128xf32>
    %153 = vector.shape_cast %152 : vector<1x26x128xf32> to vector<26x128xf32>
    %c19 = arith.constant 19 : index
    %c0_134 = arith.constant 0 : index
    %c0_135 = arith.constant 0 : index
    %154 = vector.load %arg7[%c19, %c0_134, %c0_135] : memref<26x26x128xf32, #tpu.memory_space<vmem>>, vector<1x26x128xf32>
    %155 = vector.shape_cast %154 : vector<1x26x128xf32> to vector<26x128xf32>
    %156 = arith.maximumf %153, %155 : vector<26x128xf32>
    %c9_136 = arith.constant 9 : index
    %c0_137 = arith.constant 0 : index
    %c0_138 = arith.constant 0 : index
    %157 = vector.load %arg8[%c9_136, %c0_137, %c0_138] : memref<13x26x128xf32, #tpu.memory_space<vmem>>, vector<1x26x128xf32>
    %158 = vector.shape_cast %157 : vector<1x26x128xf32> to vector<26x128xf32>
    %159 = vector.shape_cast %156 : vector<26x128xf32> to vector<1x26x128xf32>
    tpu.vector_store %arg8[%c9_136, %c0_137, %c0_138], %159 {strides = array<i32>} : memref<13x26x128xf32, #tpu.memory_space<vmem>>, vector<1x26x128xf32>,
    %c20 = arith.constant 20 : index
    %c0_139 = arith.constant 0 : index
    %c0_140 = arith.constant 0 : index
    %160 = vector.load %arg7[%c20, %c0_139, %c0_140] : memref<26x26x128xf32, #tpu.memory_space<vmem>>, vector<1x26x128xf32>
    %161 = vector.shape_cast %160 : vector<1x26x128xf32> to vector<26x128xf32>
    %c21 = arith.constant 21 : index
    %c0_141 = arith.constant 0 : index
    %c0_142 = arith.constant 0 : index
    %162 = vector.load %arg7[%c21, %c0_141, %c0_142] : memref<26x26x128xf32, #tpu.memory_space<vmem>>, vector<1x26x128xf32>
    %163 = vector.shape_cast %162 : vector<1x26x128xf32> to vector<26x128xf32>
    %164 = arith.maximumf %161, %163 : vector<26x128xf32>
    %c10_143 = arith.constant 10 : index
    %c0_144 = arith.constant 0 : index
    %c0_145 = arith.constant 0 : index
    %165 = vector.load %arg8[%c10_143, %c0_144, %c0_145] : memref<13x26x128xf32, #tpu.memory_space<vmem>>, vector<1x26x128xf32>
    %166 = vector.shape_cast %165 : vector<1x26x128xf32> to vector<26x128xf32>
    %167 = vector.shape_cast %164 : vector<26x128xf32> to vector<1x26x128xf32>
    tpu.vector_store %arg8[%c10_143, %c0_144, %c0_145], %167 {strides = array<i32>} : memref<13x26x128xf32, #tpu.memory_space<vmem>>, vector<1x26x128xf32>,
    %c22 = arith.constant 22 : index
    %c0_146 = arith.constant 0 : index
    %c0_147 = arith.constant 0 : index
    %168 = vector.load %arg7[%c22, %c0_146, %c0_147] : memref<26x26x128xf32, #tpu.memory_space<vmem>>, vector<1x26x128xf32>
    %169 = vector.shape_cast %168 : vector<1x26x128xf32> to vector<26x128xf32>
    %c23 = arith.constant 23 : index
    %c0_148 = arith.constant 0 : index
    %c0_149 = arith.constant 0 : index
    %170 = vector.load %arg7[%c23, %c0_148, %c0_149] : memref<26x26x128xf32, #tpu.memory_space<vmem>>, vector<1x26x128xf32>
    %171 = vector.shape_cast %170 : vector<1x26x128xf32> to vector<26x128xf32>
    %172 = arith.maximumf %169, %171 : vector<26x128xf32>
    %c11_150 = arith.constant 11 : index
    %c0_151 = arith.constant 0 : index
    %c0_152 = arith.constant 0 : index
    %173 = vector.load %arg8[%c11_150, %c0_151, %c0_152] : memref<13x26x128xf32, #tpu.memory_space<vmem>>, vector<1x26x128xf32>
    %174 = vector.shape_cast %173 : vector<1x26x128xf32> to vector<26x128xf32>
    %175 = vector.shape_cast %172 : vector<26x128xf32> to vector<1x26x128xf32>
    tpu.vector_store %arg8[%c11_150, %c0_151, %c0_152], %175 {strides = array<i32>} : memref<13x26x128xf32, #tpu.memory_space<vmem>>, vector<1x26x128xf32>,
    %c24 = arith.constant 24 : index
    %c0_153 = arith.constant 0 : index
    %c0_154 = arith.constant 0 : index
    %176 = vector.load %arg7[%c24, %c0_153, %c0_154] : memref<26x26x128xf32, #tpu.memory_space<vmem>>, vector<1x26x128xf32>
    %177 = vector.shape_cast %176 : vector<1x26x128xf32> to vector<26x128xf32>
    %c25 = arith.constant 25 : index
    %c0_155 = arith.constant 0 : index
    %c0_156 = arith.constant 0 : index
    %178 = vector.load %arg7[%c25, %c0_155, %c0_156] : memref<26x26x128xf32, #tpu.memory_space<vmem>>, vector<1x26x128xf32>
    %179 = vector.shape_cast %178 : vector<1x26x128xf32> to vector<26x128xf32>
    %180 = arith.maximumf %177, %179 : vector<26x128xf32>
    %c12_157 = arith.constant 12 : index
    %c0_158 = arith.constant 0 : index
    %c0_159 = arith.constant 0 : index
    %181 = vector.load %arg8[%c12_157, %c0_158, %c0_159] : memref<13x26x128xf32, #tpu.memory_space<vmem>>, vector<1x26x128xf32>
    %182 = vector.shape_cast %181 : vector<1x26x128xf32> to vector<26x128xf32>
    %183 = vector.shape_cast %180 : vector<26x128xf32> to vector<1x26x128xf32>
    tpu.vector_store %arg8[%c12_157, %c0_158, %c0_159], %183 {strides = array<i32>} : memref<13x26x128xf32, #tpu.memory_space<vmem>>, vector<1x26x128xf32>,
    %cst_160 = arith.constant 0.000000e+00 : f32
    %184 = vector.broadcast %cst_160 : f32 to vector<176x128xf32>
    %c0_161 = arith.constant 0 : index
    %c0_162 = arith.constant 0 : index
    %185 = vector.load %arg9[%c0_161, %c0_162] : memref<176x128xf32, #tpu.memory_space<vmem>>, vector<176x128xf32>
    tpu.vector_store %arg9[%c0_161, %c0_162], %184 {strides = array<i32>} : memref<176x128xf32, #tpu.memory_space<vmem>>, vector<176x128xf32>,
    %c0_163 = arith.constant 0 : index
    %c0_164 = arith.constant 0 : index
    %c0_165 = arith.constant 0 : index
    %186 = vector.load %arg8[%c0_163, %c0_164, %c0_165] : memref<13x26x128xf32, #tpu.memory_space<vmem>>, vector<13x2x128xf32>
    %cst_166 = arith.constant dense<0xFF800000> : vector<13x128xf32>
    %187 = vector.multi_reduction <maximumf>, %186, %cst_166 [1] : vector<13x2x128xf32> to vector<13x128xf32>
    %c0_167 = arith.constant 0 : index
    %c0_168 = arith.constant 0 : index
    %188 = vector.load %arg9[%c0_167, %c0_168] : memref<176x128xf32, #tpu.memory_space<vmem>>, vector<13x128xf32>
    tpu.vector_store %arg9[%c0_167, %c0_168], %187 {strides = array<i32>} : memref<176x128xf32, #tpu.memory_space<vmem>>, vector<13x128xf32>,
    %c0_169 = arith.constant 0 : index
    %c2_170 = arith.constant 2 : index
    %c0_171 = arith.constant 0 : index
    %189 = vector.load %arg8[%c0_169, %c2_170, %c0_171] : memref<13x26x128xf32, #tpu.memory_space<vmem>>, vector<13x2x128xf32>
    %cst_172 = arith.constant dense<0xFF800000> : vector<13x128xf32>
    %190 = vector.multi_reduction <maximumf>, %189, %cst_172 [1] : vector<13x2x128xf32> to vector<13x128xf32>
    %c13_173 = arith.constant 13 : index
    %c0_174 = arith.constant 0 : index
    %191 = vector.load %arg9[%c13_173, %c0_174] : memref<176x128xf32, #tpu.memory_space<vmem>>, vector<13x128xf32>
    tpu.vector_store %arg9[%c13_173, %c0_174], %190 {strides = array<i32>} : memref<176x128xf32, #tpu.memory_space<vmem>>, vector<13x128xf32>,
    %c0_175 = arith.constant 0 : index
    %c4_176 = arith.constant 4 : index
    %c0_177 = arith.constant 0 : index
    %192 = vector.load %arg8[%c0_175, %c4_176, %c0_177] : memref<13x26x128xf32, #tpu.memory_space<vmem>>, vector<13x2x128xf32>
    %cst_178 = arith.constant dense<0xFF800000> : vector<13x128xf32>
    %193 = vector.multi_reduction <maximumf>, %192, %cst_178 [1] : vector<13x2x128xf32> to vector<13x128xf32>
    %c26 = arith.constant 26 : index
    %c0_179 = arith.constant 0 : index
    %194 = vector.load %arg9[%c26, %c0_179] : memref<176x128xf32, #tpu.memory_space<vmem>>, vector<13x128xf32>
    tpu.vector_store %arg9[%c26, %c0_179], %193 {strides = array<i32>} : memref<176x128xf32, #tpu.memory_space<vmem>>, vector<13x128xf32>,
    %c0_180 = arith.constant 0 : index
    %c6_181 = arith.constant 6 : index
    %c0_182 = arith.constant 0 : index
    %195 = vector.load %arg8[%c0_180, %c6_181, %c0_182] : memref<13x26x128xf32, #tpu.memory_space<vmem>>, vector<13x2x128xf32>
    %cst_183 = arith.constant dense<0xFF800000> : vector<13x128xf32>
    %196 = vector.multi_reduction <maximumf>, %195, %cst_183 [1] : vector<13x2x128xf32> to vector<13x128xf32>
    %c39 = arith.constant 39 : index
    %c0_184 = arith.constant 0 : index
    %197 = vector.load %arg9[%c39, %c0_184] : memref<176x128xf32, #tpu.memory_space<vmem>>, vector<13x128xf32>
    tpu.vector_store %arg9[%c39, %c0_184], %196 {strides = array<i32>} : memref<176x128xf32, #tpu.memory_space<vmem>>, vector<13x128xf32>,
    %c0_185 = arith.constant 0 : index
    %c8_186 = arith.constant 8 : index
    %c0_187 = arith.constant 0 : index
    %198 = vector.load %arg8[%c0_185, %c8_186, %c0_187] : memref<13x26x128xf32, #tpu.memory_space<vmem>>, vector<13x2x128xf32>
    %cst_188 = arith.constant dense<0xFF800000> : vector<13x128xf32>
    %199 = vector.multi_reduction <maximumf>, %198, %cst_188 [1] : vector<13x2x128xf32> to vector<13x128xf32>
    %c52 = arith.constant 52 : index
    %c0_189 = arith.constant 0 : index
    %200 = vector.load %arg9[%c52, %c0_189] : memref<176x128xf32, #tpu.memory_space<vmem>>, vector<13x128xf32>
    tpu.vector_store %arg9[%c52, %c0_189], %199 {strides = array<i32>} : memref<176x128xf32, #tpu.memory_space<vmem>>, vector<13x128xf32>,
    %c0_190 = arith.constant 0 : index
    %c10_191 = arith.constant 10 : index
    %c0_192 = arith.constant 0 : index
    %201 = vector.load %arg8[%c0_190, %c10_191, %c0_192] : memref<13x26x128xf32, #tpu.memory_space<vmem>>, vector<13x2x128xf32>
    %cst_193 = arith.constant dense<0xFF800000> : vector<13x128xf32>
    %202 = vector.multi_reduction <maximumf>, %201, %cst_193 [1] : vector<13x2x128xf32> to vector<13x128xf32>
    %c65 = arith.constant 65 : index
    %c0_194 = arith.constant 0 : index
    %203 = vector.load %arg9[%c65, %c0_194] : memref<176x128xf32, #tpu.memory_space<vmem>>, vector<13x128xf32>
    tpu.vector_store %arg9[%c65, %c0_194], %202 {strides = array<i32>} : memref<176x128xf32, #tpu.memory_space<vmem>>, vector<13x128xf32>,
    %c0_195 = arith.constant 0 : index
    %c12_196 = arith.constant 12 : index
    %c0_197 = arith.constant 0 : index
    %204 = vector.load %arg8[%c0_195, %c12_196, %c0_197] : memref<13x26x128xf32, #tpu.memory_space<vmem>>, vector<13x2x128xf32>
    %cst_198 = arith.constant dense<0xFF800000> : vector<13x128xf32>
    %205 = vector.multi_reduction <maximumf>, %204, %cst_198 [1] : vector<13x2x128xf32> to vector<13x128xf32>
    %c78 = arith.constant 78 : index
    %c0_199 = arith.constant 0 : index
    %206 = vector.load %arg9[%c78, %c0_199] : memref<176x128xf32, #tpu.memory_space<vmem>>, vector<13x128xf32>
    tpu.vector_store %arg9[%c78, %c0_199], %205 {strides = array<i32>} : memref<176x128xf32, #tpu.memory_space<vmem>>, vector<13x128xf32>,
    %c0_200 = arith.constant 0 : index
    %c14_201 = arith.constant 14 : index
    %c0_202 = arith.constant 0 : index
    %207 = vector.load %arg8[%c0_200, %c14_201, %c0_202] : memref<13x26x128xf32, #tpu.memory_space<vmem>>, vector<13x2x128xf32>
    %cst_203 = arith.constant dense<0xFF800000> : vector<13x128xf32>
    %208 = vector.multi_reduction <maximumf>, %207, %cst_203 [1] : vector<13x2x128xf32> to vector<13x128xf32>
    %c91 = arith.constant 91 : index
    %c0_204 = arith.constant 0 : index
    %209 = vector.load %arg9[%c91, %c0_204] : memref<176x128xf32, #tpu.memory_space<vmem>>, vector<13x128xf32>
    tpu.vector_store %arg9[%c91, %c0_204], %208 {strides = array<i32>} : memref<176x128xf32, #tpu.memory_space<vmem>>, vector<13x128xf32>,
    %c0_205 = arith.constant 0 : index
    %c16_206 = arith.constant 16 : index
    %c0_207 = arith.constant 0 : index
    %210 = vector.load %arg8[%c0_205, %c16_206, %c0_207] : memref<13x26x128xf32, #tpu.memory_space<vmem>>, vector<13x2x128xf32>
    %cst_208 = arith.constant dense<0xFF800000> : vector<13x128xf32>
    %211 = vector.multi_reduction <maximumf>, %210, %cst_208 [1] : vector<13x2x128xf32> to vector<13x128xf32>
    %c104 = arith.constant 104 : index
    %c0_209 = arith.constant 0 : index
    %212 = vector.load %arg9[%c104, %c0_209] : memref<176x128xf32, #tpu.memory_space<vmem>>, vector<13x128xf32>
    tpu.vector_store %arg9[%c104, %c0_209], %211 {strides = array<i32>} : memref<176x128xf32, #tpu.memory_space<vmem>>, vector<13x128xf32>,
    %c0_210 = arith.constant 0 : index
    %c18_211 = arith.constant 18 : index
    %c0_212 = arith.constant 0 : index
    %213 = vector.load %arg8[%c0_210, %c18_211, %c0_212] : memref<13x26x128xf32, #tpu.memory_space<vmem>>, vector<13x2x128xf32>
    %cst_213 = arith.constant dense<0xFF800000> : vector<13x128xf32>
    %214 = vector.multi_reduction <maximumf>, %213, %cst_213 [1] : vector<13x2x128xf32> to vector<13x128xf32>
    %c117 = arith.constant 117 : index
    %c0_214 = arith.constant 0 : index
    %215 = vector.load %arg9[%c117, %c0_214] : memref<176x128xf32, #tpu.memory_space<vmem>>, vector<13x128xf32>
    tpu.vector_store %arg9[%c117, %c0_214], %214 {strides = array<i32>} : memref<176x128xf32, #tpu.memory_space<vmem>>, vector<13x128xf32>,
    %c0_215 = arith.constant 0 : index
    %c20_216 = arith.constant 20 : index
    %c0_217 = arith.constant 0 : index
    %216 = vector.load %arg8[%c0_215, %c20_216, %c0_217] : memref<13x26x128xf32, #tpu.memory_space<vmem>>, vector<13x2x128xf32>
    %cst_218 = arith.constant dense<0xFF800000> : vector<13x128xf32>
    %217 = vector.multi_reduction <maximumf>, %216, %cst_218 [1] : vector<13x2x128xf32> to vector<13x128xf32>
    %c130 = arith.constant 130 : index
    %c0_219 = arith.constant 0 : index
    %218 = vector.load %arg9[%c130, %c0_219] : memref<176x128xf32, #tpu.memory_space<vmem>>, vector<13x128xf32>
    tpu.vector_store %arg9[%c130, %c0_219], %217 {strides = array<i32>} : memref<176x128xf32, #tpu.memory_space<vmem>>, vector<13x128xf32>,
    %c0_220 = arith.constant 0 : index
    %c22_221 = arith.constant 22 : index
    %c0_222 = arith.constant 0 : index
    %219 = vector.load %arg8[%c0_220, %c22_221, %c0_222] : memref<13x26x128xf32, #tpu.memory_space<vmem>>, vector<13x2x128xf32>
    %cst_223 = arith.constant dense<0xFF800000> : vector<13x128xf32>
    %220 = vector.multi_reduction <maximumf>, %219, %cst_223 [1] : vector<13x2x128xf32> to vector<13x128xf32>
    %c143 = arith.constant 143 : index
    %c0_224 = arith.constant 0 : index
    %221 = vector.load %arg9[%c143, %c0_224] : memref<176x128xf32, #tpu.memory_space<vmem>>, vector<13x128xf32>
    tpu.vector_store %arg9[%c143, %c0_224], %220 {strides = array<i32>} : memref<176x128xf32, #tpu.memory_space<vmem>>, vector<13x128xf32>,
    %c0_225 = arith.constant 0 : index
    %c24_226 = arith.constant 24 : index
    %c0_227 = arith.constant 0 : index
    %222 = vector.load %arg8[%c0_225, %c24_226, %c0_227] : memref<13x26x128xf32, #tpu.memory_space<vmem>>, vector<13x2x128xf32>
    %cst_228 = arith.constant dense<0xFF800000> : vector<13x128xf32>
    %223 = vector.multi_reduction <maximumf>, %222, %cst_228 [1] : vector<13x2x128xf32> to vector<13x128xf32>
    %c156 = arith.constant 156 : index
    %c0_229 = arith.constant 0 : index
    %224 = vector.load %arg9[%c156, %c0_229] : memref<176x128xf32, #tpu.memory_space<vmem>>, vector<13x128xf32>
    tpu.vector_store %arg9[%c156, %c0_229], %223 {strides = array<i32>} : memref<176x128xf32, #tpu.memory_space<vmem>>, vector<13x128xf32>,
    %cst_230 = arith.constant 0.000000e+00 : f32
    %225 = vector.broadcast %cst_230 : f32 to vector<144x256xf32>
    %c0_231 = arith.constant 0 : index
    %c0_232 = arith.constant 0 : index
    %226 = vector.load %arg10[%c0_231, %c0_232] : memref<144x256xf32, #tpu.memory_space<vmem>>, vector<144x256xf32>
    tpu.vector_store %arg10[%c0_231, %c0_232], %225 {strides = array<i32>} : memref<144x256xf32, #tpu.memory_space<vmem>>, vector<144x256xf32>,
    %c0_233 = arith.constant 0 : index
    %c0_234 = arith.constant 0 : index
    %227 = vector.load %arg9[%c0_233, %c0_234] : memref<176x128xf32, #tpu.memory_space<vmem>>, vector<144x128xf32>
    %c0_235 = arith.constant 0 : index
    %c0_236 = arith.constant 0 : index
    %228 = vector.load %arg10[%c0_235, %c0_236] : memref<144x256xf32, #tpu.memory_space<vmem>>, vector<144x256xf32>
    %c0_237 = arith.constant 0 : index
    %c0_238 = arith.constant 0 : index
    %c0_239 = arith.constant 0 : index
    %229 = vector.load %arg4[%c0_237, %c0_238, %c0_239] : memref<9x128x256xf32, #tpu.memory_space<vmem>>, vector<1x128x256xf32>
    %230 = vector.shape_cast %229 : vector<1x128x256xf32> to vector<128x256xf32>
    %cst_240 = arith.constant dense<0.000000e+00> : vector<144x256xf32>
    %231 = tpu.matmul %227, %230, %cst_240 {dimension_numbers = #tpu.dot_dimension_numbers<[1], [0], [0], [1], [0, 0, 1, 1], [], []>} : vector<144x128xf32>, vector<128x256xf32>, vector<144x256xf32> -> vector<144x256xf32>
    %232 = arith.addf %228, %231 : vector<144x256xf32>
    %c0_241 = arith.constant 0 : index
    %c0_242 = arith.constant 0 : index
    %233 = vector.load %arg10[%c0_241, %c0_242] : memref<144x256xf32, #tpu.memory_space<vmem>>, vector<144x256xf32>
    tpu.vector_store %arg10[%c0_241, %c0_242], %232 {strides = array<i32>} : memref<144x256xf32, #tpu.memory_space<vmem>>, vector<144x256xf32>,
    %c1_243 = arith.constant 1 : index
    %c0_244 = arith.constant 0 : index
    %234 = vector.load %arg9[%c1_243, %c0_244] : memref<176x128xf32, #tpu.memory_space<vmem>>, vector<144x128xf32>
    %c0_245 = arith.constant 0 : index
    %c0_246 = arith.constant 0 : index
    %235 = vector.load %arg10[%c0_245, %c0_246] : memref<144x256xf32, #tpu.memory_space<vmem>>, vector<144x256xf32>
    %c1_247 = arith.constant 1 : index
    %c0_248 = arith.constant 0 : index
    %c0_249 = arith.constant 0 : index
    %236 = vector.load %arg4[%c1_247, %c0_248, %c0_249] : memref<9x128x256xf32, #tpu.memory_space<vmem>>, vector<1x128x256xf32>
    %237 = vector.shape_cast %236 : vector<1x128x256xf32> to vector<128x256xf32>
    %cst_250 = arith.constant dense<0.000000e+00> : vector<144x256xf32>
    %238 = tpu.matmul %234, %237, %cst_250 {dimension_numbers = #tpu.dot_dimension_numbers<[1], [0], [0], [1], [0, 0, 1, 1], [], []>} : vector<144x128xf32>, vector<128x256xf32>, vector<144x256xf32> -> vector<144x256xf32>
    %239 = arith.addf %235, %238 : vector<144x256xf32>
    %c0_251 = arith.constant 0 : index
    %c0_252 = arith.constant 0 : index
    %240 = vector.load %arg10[%c0_251, %c0_252] : memref<144x256xf32, #tpu.memory_space<vmem>>, vector<144x256xf32>
    tpu.vector_store %arg10[%c0_251, %c0_252], %239 {strides = array<i32>} : memref<144x256xf32, #tpu.memory_space<vmem>>, vector<144x256xf32>,
    %c2_253 = arith.constant 2 : index
    %c0_254 = arith.constant 0 : index
    %241 = vector.load %arg9[%c2_253, %c0_254] : memref<176x128xf32, #tpu.memory_space<vmem>>, vector<144x128xf32>
    %c0_255 = arith.constant 0 : index
    %c0_256 = arith.constant 0 : index
    %242 = vector.load %arg10[%c0_255, %c0_256] : memref<144x256xf32, #tpu.memory_space<vmem>>, vector<144x256xf32>
    %c2_257 = arith.constant 2 : index
    %c0_258 = arith.constant 0 : index
    %c0_259 = arith.constant 0 : index
    %243 = vector.load %arg4[%c2_257, %c0_258, %c0_259] : memref<9x128x256xf32, #tpu.memory_space<vmem>>, vector<1x128x256xf32>
    %244 = vector.shape_cast %243 : vector<1x128x256xf32> to vector<128x256xf32>
    %cst_260 = arith.constant dense<0.000000e+00> : vector<144x256xf32>
    %245 = tpu.matmul %241, %244, %cst_260 {dimension_numbers = #tpu.dot_dimension_numbers<[1], [0], [0], [1], [0, 0, 1, 1], [], []>} : vector<144x128xf32>, vector<128x256xf32>, vector<144x256xf32> -> vector<144x256xf32>
    %246 = arith.addf %242, %245 : vector<144x256xf32>
    %c0_261 = arith.constant 0 : index
    %c0_262 = arith.constant 0 : index
    %247 = vector.load %arg10[%c0_261, %c0_262] : memref<144x256xf32, #tpu.memory_space<vmem>>, vector<144x256xf32>
    tpu.vector_store %arg10[%c0_261, %c0_262], %246 {strides = array<i32>} : memref<144x256xf32, #tpu.memory_space<vmem>>, vector<144x256xf32>,
    %c13_263 = arith.constant 13 : index
    %c0_264 = arith.constant 0 : index
    %248 = vector.load %arg9[%c13_263, %c0_264] : memref<176x128xf32, #tpu.memory_space<vmem>>, vector<144x128xf32>
    %c0_265 = arith.constant 0 : index
    %c0_266 = arith.constant 0 : index
    %249 = vector.load %arg10[%c0_265, %c0_266] : memref<144x256xf32, #tpu.memory_space<vmem>>, vector<144x256xf32>
    %c3_267 = arith.constant 3 : index
    %c0_268 = arith.constant 0 : index
    %c0_269 = arith.constant 0 : index
    %250 = vector.load %arg4[%c3_267, %c0_268, %c0_269] : memref<9x128x256xf32, #tpu.memory_space<vmem>>, vector<1x128x256xf32>
    %251 = vector.shape_cast %250 : vector<1x128x256xf32> to vector<128x256xf32>
    %cst_270 = arith.constant dense<0.000000e+00> : vector<144x256xf32>
    %252 = tpu.matmul %248, %251, %cst_270 {dimension_numbers = #tpu.dot_dimension_numbers<[1], [0], [0], [1], [0, 0, 1, 1], [], []>} : vector<144x128xf32>, vector<128x256xf32>, vector<144x256xf32> -> vector<144x256xf32>
    %253 = arith.addf %249, %252 : vector<144x256xf32>
    %c0_271 = arith.constant 0 : index
    %c0_272 = arith.constant 0 : index
    %254 = vector.load %arg10[%c0_271, %c0_272] : memref<144x256xf32, #tpu.memory_space<vmem>>, vector<144x256xf32>
    tpu.vector_store %arg10[%c0_271, %c0_272], %253 {strides = array<i32>} : memref<144x256xf32, #tpu.memory_space<vmem>>, vector<144x256xf32>,
    %c14_273 = arith.constant 14 : index
    %c0_274 = arith.constant 0 : index
    %255 = vector.load %arg9[%c14_273, %c0_274] : memref<176x128xf32, #tpu.memory_space<vmem>>, vector<144x128xf32>
    %c0_275 = arith.constant 0 : index
    %c0_276 = arith.constant 0 : index
    %256 = vector.load %arg10[%c0_275, %c0_276] : memref<144x256xf32, #tpu.memory_space<vmem>>, vector<144x256xf32>
    %c4_277 = arith.constant 4 : index
    %c0_278 = arith.constant 0 : index
    %c0_279 = arith.constant 0 : index
    %257 = vector.load %arg4[%c4_277, %c0_278, %c0_279] : memref<9x128x256xf32, #tpu.memory_space<vmem>>, vector<1x128x256xf32>
    %258 = vector.shape_cast %257 : vector<1x128x256xf32> to vector<128x256xf32>
    %cst_280 = arith.constant dense<0.000000e+00> : vector<144x256xf32>
    %259 = tpu.matmul %255, %258, %cst_280 {dimension_numbers = #tpu.dot_dimension_numbers<[1], [0], [0], [1], [0, 0, 1, 1], [], []>} : vector<144x128xf32>, vector<128x256xf32>, vector<144x256xf32> -> vector<144x256xf32>
    %260 = arith.addf %256, %259 : vector<144x256xf32>
    %c0_281 = arith.constant 0 : index
    %c0_282 = arith.constant 0 : index
    %261 = vector.load %arg10[%c0_281, %c0_282] : memref<144x256xf32, #tpu.memory_space<vmem>>, vector<144x256xf32>
    tpu.vector_store %arg10[%c0_281, %c0_282], %260 {strides = array<i32>} : memref<144x256xf32, #tpu.memory_space<vmem>>, vector<144x256xf32>,
    %c15_283 = arith.constant 15 : index
    %c0_284 = arith.constant 0 : index
    %262 = vector.load %arg9[%c15_283, %c0_284] : memref<176x128xf32, #tpu.memory_space<vmem>>, vector<144x128xf32>
    %c0_285 = arith.constant 0 : index
    %c0_286 = arith.constant 0 : index
    %263 = vector.load %arg10[%c0_285, %c0_286] : memref<144x256xf32, #tpu.memory_space<vmem>>, vector<144x256xf32>
    %c5_287 = arith.constant 5 : index
    %c0_288 = arith.constant 0 : index
    %c0_289 = arith.constant 0 : index
    %264 = vector.load %arg4[%c5_287, %c0_288, %c0_289] : memref<9x128x256xf32, #tpu.memory_space<vmem>>, vector<1x128x256xf32>
    %265 = vector.shape_cast %264 : vector<1x128x256xf32> to vector<128x256xf32>
    %cst_290 = arith.constant dense<0.000000e+00> : vector<144x256xf32>
    %266 = tpu.matmul %262, %265, %cst_290 {dimension_numbers = #tpu.dot_dimension_numbers<[1], [0], [0], [1], [0, 0, 1, 1], [], []>} : vector<144x128xf32>, vector<128x256xf32>, vector<144x256xf32> -> vector<144x256xf32>
    %267 = arith.addf %263, %266 : vector<144x256xf32>
    %c0_291 = arith.constant 0 : index
    %c0_292 = arith.constant 0 : index
    %268 = vector.load %arg10[%c0_291, %c0_292] : memref<144x256xf32, #tpu.memory_space<vmem>>, vector<144x256xf32>
    tpu.vector_store %arg10[%c0_291, %c0_292], %267 {strides = array<i32>} : memref<144x256xf32, #tpu.memory_space<vmem>>, vector<144x256xf32>,
    %c26_293 = arith.constant 26 : index
    %c0_294 = arith.constant 0 : index
    %269 = vector.load %arg9[%c26_293, %c0_294] : memref<176x128xf32, #tpu.memory_space<vmem>>, vector<144x128xf32>
    %c0_295 = arith.constant 0 : index
    %c0_296 = arith.constant 0 : index
    %270 = vector.load %arg10[%c0_295, %c0_296] : memref<144x256xf32, #tpu.memory_space<vmem>>, vector<144x256xf32>
    %c6_297 = arith.constant 6 : index
    %c0_298 = arith.constant 0 : index
    %c0_299 = arith.constant 0 : index
    %271 = vector.load %arg4[%c6_297, %c0_298, %c0_299] : memref<9x128x256xf32, #tpu.memory_space<vmem>>, vector<1x128x256xf32>
    %272 = vector.shape_cast %271 : vector<1x128x256xf32> to vector<128x256xf32>
    %cst_300 = arith.constant dense<0.000000e+00> : vector<144x256xf32>
    %273 = tpu.matmul %269, %272, %cst_300 {dimension_numbers = #tpu.dot_dimension_numbers<[1], [0], [0], [1], [0, 0, 1, 1], [], []>} : vector<144x128xf32>, vector<128x256xf32>, vector<144x256xf32> -> vector<144x256xf32>
    %274 = arith.addf %270, %273 : vector<144x256xf32>
    %c0_301 = arith.constant 0 : index
    %c0_302 = arith.constant 0 : index
    %275 = vector.load %arg10[%c0_301, %c0_302] : memref<144x256xf32, #tpu.memory_space<vmem>>, vector<144x256xf32>
    tpu.vector_store %arg10[%c0_301, %c0_302], %274 {strides = array<i32>} : memref<144x256xf32, #tpu.memory_space<vmem>>, vector<144x256xf32>,
    %c27 = arith.constant 27 : index
    %c0_303 = arith.constant 0 : index
    %276 = vector.load %arg9[%c27, %c0_303] : memref<176x128xf32, #tpu.memory_space<vmem>>, vector<144x128xf32>
    %c0_304 = arith.constant 0 : index
    %c0_305 = arith.constant 0 : index
    %277 = vector.load %arg10[%c0_304, %c0_305] : memref<144x256xf32, #tpu.memory_space<vmem>>, vector<144x256xf32>
    %c7_306 = arith.constant 7 : index
    %c0_307 = arith.constant 0 : index
    %c0_308 = arith.constant 0 : index
    %278 = vector.load %arg4[%c7_306, %c0_307, %c0_308] : memref<9x128x256xf32, #tpu.memory_space<vmem>>, vector<1x128x256xf32>
    %279 = vector.shape_cast %278 : vector<1x128x256xf32> to vector<128x256xf32>
    %cst_309 = arith.constant dense<0.000000e+00> : vector<144x256xf32>
    %280 = tpu.matmul %276, %279, %cst_309 {dimension_numbers = #tpu.dot_dimension_numbers<[1], [0], [0], [1], [0, 0, 1, 1], [], []>} : vector<144x128xf32>, vector<128x256xf32>, vector<144x256xf32> -> vector<144x256xf32>
    %281 = arith.addf %277, %280 : vector<144x256xf32>
    %c0_310 = arith.constant 0 : index
    %c0_311 = arith.constant 0 : index
    %282 = vector.load %arg10[%c0_310, %c0_311] : memref<144x256xf32, #tpu.memory_space<vmem>>, vector<144x256xf32>
    tpu.vector_store %arg10[%c0_310, %c0_311], %281 {strides = array<i32>} : memref<144x256xf32, #tpu.memory_space<vmem>>, vector<144x256xf32>,
    %c28 = arith.constant 28 : index
    %c0_312 = arith.constant 0 : index
    %283 = vector.load %arg9[%c28, %c0_312] : memref<176x128xf32, #tpu.memory_space<vmem>>, vector<144x128xf32>
    %c0_313 = arith.constant 0 : index
    %c0_314 = arith.constant 0 : index
    %284 = vector.load %arg10[%c0_313, %c0_314] : memref<144x256xf32, #tpu.memory_space<vmem>>, vector<144x256xf32>
    %c8_315 = arith.constant 8 : index
    %c0_316 = arith.constant 0 : index
    %c0_317 = arith.constant 0 : index
    %285 = vector.load %arg4[%c8_315, %c0_316, %c0_317] : memref<9x128x256xf32, #tpu.memory_space<vmem>>, vector<1x128x256xf32>
    %286 = vector.shape_cast %285 : vector<1x128x256xf32> to vector<128x256xf32>
    %cst_318 = arith.constant dense<0.000000e+00> : vector<144x256xf32>
    %287 = tpu.matmul %283, %286, %cst_318 {dimension_numbers = #tpu.dot_dimension_numbers<[1], [0], [0], [1], [0, 0, 1, 1], [], []>} : vector<144x128xf32>, vector<128x256xf32>, vector<144x256xf32> -> vector<144x256xf32>
    %288 = arith.addf %284, %287 : vector<144x256xf32>
    %c0_319 = arith.constant 0 : index
    %c0_320 = arith.constant 0 : index
    %289 = vector.load %arg10[%c0_319, %c0_320] : memref<144x256xf32, #tpu.memory_space<vmem>>, vector<144x256xf32>
    tpu.vector_store %arg10[%c0_319, %c0_320], %288 {strides = array<i32>} : memref<144x256xf32, #tpu.memory_space<vmem>>, vector<144x256xf32>,
    %c0_321 = arith.constant 0 : index
    %c0_322 = arith.constant 0 : index
    %290 = vector.load %arg10[%c0_321, %c0_322] : memref<144x256xf32, #tpu.memory_space<vmem>>, vector<144x256xf32>
    %c0_323 = arith.constant 0 : index
    %c0_324 = arith.constant 0 : index
    %291 = vector.load %arg5[%c0_323, %c0_324] : memref<1x256xf32, #tpu.memory_space<vmem>>, vector<1x256xf32>
    %292 = vector.broadcast %291 : vector<1x256xf32> to vector<144x256xf32>
    %293 = arith.addf %290, %292 : vector<144x256xf32>
    %cst_325 = arith.constant 0.000000e+00 : f32
    %294 = vector.broadcast %cst_325 : f32 to vector<144x256xf32>
    %295 = arith.maximumf %293, %294 : vector<144x256xf32>
    %c0_326 = arith.constant 0 : index
    %c0_327 = arith.constant 0 : index
    %c0_328 = arith.constant 0 : index
    %296 = vector.load %arg6[%c0_326, %c0_327, %c0_328] : memref<1x144x256xf32, #tpu.memory_space<vmem>>, vector<1x144x256xf32>
    %297 = vector.shape_cast %296 : vector<1x144x256xf32> to vector<144x256xf32>
    %298 = vector.shape_cast %295 : vector<144x256xf32> to vector<1x144x256xf32>
    tpu.vector_store %arg6[%c0_326, %c0_327, %c0_328], %298 {strides = array<i32>} : memref<1x144x256xf32, #tpu.memory_space<vmem>>, vector<1x144x256xf32>,
    return
  }
  func.func @transform_0(%arg0: i32) -> (i32, i32, i32, i32) {
    %c0_i32 = arith.constant 0 : i32
    %c0_i32_0 = arith.constant 0 : i32
    %c0_i32_1 = arith.constant 0 : i32
    %c0_i32_2 = arith.constant 0 : i32
    return %arg0, %c0_i32, %c0_i32_0, %c0_i32_1 : i32, i32, i32, i32
  }
  func.func @transform_1(%arg0: i32) -> (i32, i32, i32) {
    %c0_i32 = arith.constant 0 : i32
    %c0_i32_0 = arith.constant 0 : i32
    %c0_i32_1 = arith.constant 0 : i32
    %c0_i32_2 = arith.constant 0 : i32
    return %c0_i32, %c0_i32_0, %c0_i32_1 : i32, i32, i32
  }
  func.func @transform_2(%arg0: i32) -> (i32, i32) {
    %c0_i32 = arith.constant 0 : i32
    %c0_i32_0 = arith.constant 0 : i32
    %c0_i32_1 = arith.constant 0 : i32
    return %c0_i32, %c0_i32_0 : i32, i32
  }
  func.func @transform_3(%arg0: i32) -> (i32, i32, i32) {
    %c0_i32 = arith.constant 0 : i32
    %c0_i32_0 = arith.constant 0 : i32
    %c0_i32_1 = arith.constant 0 : i32
    %c0_i32_2 = arith.constant 0 : i32
    return %c0_i32, %c0_i32_0, %c0_i32_1 : i32, i32, i32
  }
  func.func @transform_4(%arg0: i32) -> (i32, i32) {
    %c0_i32 = arith.constant 0 : i32
    %c0_i32_0 = arith.constant 0 : i32
    %c0_i32_1 = arith.constant 0 : i32
    return %c0_i32, %c0_i32_0 : i32, i32
  }
  func.func @transform_5(%arg0: i32) -> (i32, i32, i32) {
    %c0_i32 = arith.constant 0 : i32
    %c0_i32_0 = arith.constant 0 : i32
    %c0_i32_1 = arith.constant 0 : i32
    return %arg0, %c0_i32, %c0_i32_0 : i32, i32, i32
  }
}

</mosaic_0001>

<llo_original>
// kernel: tpu_custom_call.1
$region0: #{tpu_custom_call.1}
  #allocation0 [shape = 'u32[]', space=smem, size = 0x4, offset = 0x4, fixed_abs, tag = 'smem constant byte address 0x4 - core index']
  #allocation1 [shape = 'u32[144,128]{1,0:T(1,128)}', space=vmem, size = 0x12000, scoped, tag = 'internal scratch']
  #allocation2 [shape = 'f32[26,26,128]{2,1,0:T(8,128)}', space=vmem, size = 0x68000, scoped, tag = 'scratch operand']
  #allocation3 [shape = 'f32[13,26,128]{2,1,0:T(8,128)}', space=vmem, size = 0x34000, scoped, tag = 'scratch operand']
  #allocation4 [shape = 'f32[176,128]{1,0:T(8,128)}', space=vmem, size = 0x16000, scoped, tag = 'scratch operand']
  #allocation5 [shape = 'f32[144,256]{1,0:T(8,128)}', space=vmem, size = 0x24000, scoped, tag = 'scratch operand']
  %s0 = inlined_call_operand.vmem [shape: f32[2,28,28,128], index: 0, kind: input, shape index: {}]
  %s1 = inlined_call_operand.vmem [shape: f32[9,1,128], index: 1, kind: input, shape index: {}]
  %s2 = inlined_call_operand.vmem [shape: f32[1,128], index: 2, kind: input, shape index: {}]
  %s3 = inlined_call_operand.vmem [shape: f32[9,128,256], index: 3, kind: input, shape index: {}]
  %s4 = inlined_call_operand.vmem [shape: f32[1,256], index: 4, kind: input, shape index: {}]
  %s5 = inlined_call_operand.hbm [shape: f32[2,144,256], index: 5, kind: output, shape index: {}]
  %s6 = sld [smem:[#allocation0]]
  $region53: #{tpu_custom_call.1} parent=0
    _
  %s8 = ssub.s32 1, %s6
  %s9 = scalar_select 0, %s8, %s6
  $region1: #{tpu_custom_call.1} parent=0
    #allocation6 [shape = 'u8[294912]{0}', space=vmem, size = 0x48000, scoped, tag = 'output window, operand 0']
    #allocation7 [shape = 's32[2]{0}', space=sflag, size = 0x8, scoped, tag = 'scoped memory for tpu_custom_call.1']
    %10 = vsyncpa [#allocation7], 0
    %s11 = scalar_lea.sflag [#allocation7], 1
    %12 = vsyncpa %s11, 0
    loop: start=0, step=1, limit=4
    $region2: #{tpu_custom_call.1} parent=1 // loop_pre_header
      _
    $region3: #{tpu_custom_call.1} parent=1 // loop_header
      %s14 = sphi 0, %s18
      %p15 = scmp.ge.s32.totalorder %s14, 4
      %s24 = sphi 0, %s26
      %s27 = sphi 0, %s24
      %s28 = sphi 0, %s27
      %s44 = sphi 0, %s28
      %s48 = sphi 0, %s48
      %s50 = sphi 0, %s48
      %s51 = sphi 0, %s50
      %s65 = sphi 0, %s51
      %s69 = sphi 0, %s69
      %s71 = sphi 0, %s69
      %s72 = sphi 0, %s71
      %s86 = sphi 0, %s72
      %s90 = sphi 0, %s90
      %s92 = sphi 0, %s90
      %s93 = sphi 0, %s92
      %s107 = sphi 0, %s93
      %s111 = sphi 0, %s111
      %s113 = sphi 0, %s111
      %s114 = sphi 0, %s113
      %s128 = sphi 0, %s114
      %s134 = sphi 0, %s136
      %s137 = sphi 0, %s134
      %s138 = sphi 0, %s137
      %s154 = sphi 0, %s138
    $region4: #{tpu_custom_call.1} parent=1 // loop_header_branch
      %17 = sbr.rel (%p15) target = $region8
    $region5: #{tpu_custom_call.1} parent=1 // loop_body
      %s19 = ssub.s32 %s14, 1
      %s20 = ssub.s32 %s14, 2
      %s21 = sadd.s32 %s14, 1
      %s22 = ssub.s32 %s14, %s21
      %p23 = scmp.eq.s32.totalorder %s22, 0
      %s25 = sadd.s32 %s24, 1
      %s26 = scalar_select %p23, %s24, %s25
      %p29 = pneg %p23
      %p30 = scmp.eq.s32.totalorder %s14, 1
      %p31 = por %p29, %p30
      %p32 = scmp.ne.s32.totalorder %s24, %s27
      %p33 = scmp.eq.s32.totalorder %s14, 0
      %p34 = por %p32, %p33
      %p35 = scmp.ne.s32.totalorder %s24, %s27
      %p36 = scmp.eq.s32.totalorder %s19, 1
      %p37 = por %p35, %p36
      %p38 = scmp.ne.s32.totalorder %s27, %s28
      %p39 = scmp.eq.s32.totalorder %s19, 0
      %p40 = por %p38, %p39
      %p41 = scmp.ne.s32.totalorder %s27, %s28
      %p42 = scmp.eq.s32.totalorder %s20, 1
      %p43 = por %p41, %p42
      %p45 = scmp.ne.s32.totalorder %s28, %s44
      %p46 = scmp.eq.s32.totalorder %s20, 0
      %p47 = por %p45, %p46
      %s49 = sadd.s32 %s48, 1
      %p52 = scmp.eq.s32.totalorder %s14, 1
      %p53 = scmp.ne.s32.totalorder %s48, %s50
      %p54 = scmp.eq.s32.totalorder %s14, 0
      %p55 = por %p53, %p54
      %p56 = scmp.ne.s32.totalorder %s48, %s50
      %p57 = scmp.eq.s32.totalorder %s19, 1
      %p58 = por %p56, %p57
      %p59 = scmp.ne.s32.totalorder %s50, %s51
      %p60 = scmp.eq.s32.totalorder %s19, 0
      %p61 = por %p59, %p60
      %p62 = scmp.ne.s32.totalorder %s50, %s51
      %p63 = scmp.eq.s32.totalorder %s20, 1
      %p64 = por %p62, %p63
      %p66 = scmp.ne.s32.totalorder %s51, %s65
      %p67 = scmp.eq.s32.totalorder %s20, 0
      %p68 = por %p66, %p67
      %s70 = sadd.s32 %s69, 1
      %p73 = scmp.eq.s32.totalorder %s14, 1
      %p74 = scmp.ne.s32.totalorder %s69, %s71
      %p75 = scmp.eq.s32.totalorder %s14, 0
      %p76 = por %p74, %p75
      %p77 = scmp.ne.s32.totalorder %s69, %s71
      %p78 = scmp.eq.s32.totalorder %s19, 1
      %p79 = por %p77, %p78
      %p80 = scmp.ne.s32.totalorder %s71, %s72
      %p81 = scmp.eq.s32.totalorder %s19, 0
      %p82 = por %p80, %p81
      %p83 = scmp.ne.s32.totalorder %s71, %s72
      %p84 = scmp.eq.s32.totalorder %s20, 1
      %p85 = por %p83, %p84
      %p87 = scmp.ne.s32.totalorder %s72, %s86
      %p88 = scmp.eq.s32.totalorder %s20, 0
      %p89 = por %p87, %p88
      %s91 = sadd.s32 %s90, 1
      %p94 = scmp.eq.s32.totalorder %s14, 1
      %p95 = scmp.ne.s32.totalorder %s90, %s92
      %p96 = scmp.eq.s32.totalorder %s14, 0
      %p97 = por %p95, %p96
      %p98 = scmp.ne.s32.totalorder %s90, %s92
      %p99 = scmp.eq.s32.totalorder %s19, 1
      %p100 = por %p98, %p99
      %p101 = scmp.ne.s32.totalorder %s92, %s93
      %p102 = scmp.eq.s32.totalorder %s19, 0
      %p103 = por %p101, %p102
      %p104 = scmp.ne.s32.totalorder %s92, %s93
      %p105 = scmp.eq.s32.totalorder %s20, 1
      %p106 = por %p104, %p105
      %p108 = scmp.ne.s32.totalorder %s93, %s107
      %p109 = scmp.eq.s32.totalorder %s20, 0
      %p110 = por %p108, %p109
      %s112 = sadd.s32 %s111, 1
      %p115 = scmp.eq.s32.totalorder %s14, 1
      %p116 = scmp.ne.s32.totalorder %s111, %s113
      %p117 = scmp.eq.s32.totalorder %s14, 0
      %p118 = por %p116, %p117
      %p119 = scmp.ne.s32.totalorder %s111, %s113
      %p120 = scmp.eq.s32.totalorder %s19, 1
      %p121 = por %p119, %p120
      %p122 = scmp.ne.s32.totalorder %s113, %s114
      %p123 = scmp.eq.s32.totalorder %s19, 0
      %p124 = por %p122, %p123
      %p125 = scmp.ne.s32.totalorder %s113, %s114
      %p126 = scmp.eq.s32.totalorder %s20, 1
      %p127 = por %p125, %p126
      %p129 = scmp.ne.s32.totalorder %s114, %s128
      %p130 = scmp.eq.s32.totalorder %s20, 0
      %p131 = por %p129, %p130
      %s132 = ssub.s32 %s14, %s21
      %p133 = scmp.eq.s32.totalorder %s132, 0
      %s135 = sadd.s32 %s134, 1
      %s136 = scalar_select %p133, %s134, %s135
      %p139 = pneg %p133
      %p140 = scmp.eq.s32.totalorder %s14, 1
      %p141 = por %p139, %p140
      %p142 = scmp.ne.s32.totalorder %s134, %s137
      %p143 = scmp.eq.s32.totalorder %s14, 0
      %p144 = por %p142, %p143
      %p145 = scmp.ne.s32.totalorder %s134, %s137
      %p146 = scmp.eq.s32.totalorder %s19, 1
      %p147 = por %p145, %p146
      %p148 = scmp.ne.s32.totalorder %s137, %s138
      %p149 = scmp.eq.s32.totalorder %s19, 0
      %p150 = por %p148, %p149
      %p151 = scmp.ne.s32.totalorder %s137, %s138
      %p152 = scmp.eq.s32.totalorder %s20, 1
      %p153 = por %p151, %p152
      %p155 = scmp.ne.s32.totalorder %s138, %s154
      %p156 = scmp.eq.s32.totalorder %s20, 0
      %p157 = por %p155, %p156
      %p158 = scmp.le.s32.totalorder 1, %s14
      %p159 = scmp.lt.s32.totalorder %s14, 3
      %p160 = pnand %p158, %p159
      %p161 = pneg %p160
      // Predicated region
      $region9: #{tpu_custom_call.1} parent=5 // pred_check
        _
      $region10: #{tpu_custom_call.1} parent=5 // pred_check_branch
        %163 = sbr.rel (%p160) target = $region12
      $region11: #{tpu_custom_call.1} parent=5 // pred_region
        %s164 = ssub.s32 %s14, 1
        // Predicated region
        $region13: #{tpu_custom_call.1} parent=11 // pred_check
          %p165 = pneg %p61
        $region14: #{tpu_custom_call.1} parent=11 // pred_check_branch
          %167 = sbr.rel (%p165) target = $region16
        $region15: #{tpu_custom_call.1} parent=11 // pred_region
          _
        $region16: #{tpu_custom_call.1} parent=11 // pred_fallthru
          _
        // Predicated region
        $region17: #{tpu_custom_call.1} parent=11 // pred_check
          %p168 = pneg %p82
        $region18: #{tpu_custom_call.1} parent=11 // pred_check_branch
          %170 = sbr.rel (%p168) target = $region20
        $region19: #{tpu_custom_call.1} parent=11 // pred_region
          _
        $region20: #{tpu_custom_call.1} parent=11 // pred_fallthru
          _
        // Predicated region
        $region21: #{tpu_custom_call.1} parent=11 // pred_check
          %p171 = pneg %p103
        $region22: #{tpu_custom_call.1} parent=11 // pred_check_branch
          %173 = sbr.rel (%p171) target = $region24
        $region23: #{tpu_custom_call.1} parent=11 // pred_region
          _
        $region24: #{tpu_custom_call.1} parent=11 // pred_fallthru
          _
        // Predicated region
        $region25: #{tpu_custom_call.1} parent=11 // pred_check
          %p174 = pneg %p124
        $region26: #{tpu_custom_call.1} parent=11 // pred_check_branch
          %176 = sbr.rel (%p174) target = $region28
        $region27: #{tpu_custom_call.1} parent=11 // pred_region
          _
        $region28: #{tpu_custom_call.1} parent=11 // pred_fallthru
          _
      $region12: #{tpu_custom_call.1} parent=5 // pred_fallthru
        _
      %p177 = scmp.lt.s32.totalorder %s14, 2
      // Predicated region
      $region29: #{tpu_custom_call.1} parent=5 // pred_check
        %p178 = pneg %p177
      $region30: #{tpu_custom_call.1} parent=5 // pred_check_branch
        %180 = sbr.rel (%p178) target = $region32
      $region31: #{tpu_custom_call.1} parent=5 // pred_region
        // Predicated region
        $region33: #{tpu_custom_call.1} parent=31 // pred_check
          %p181 = pneg %p34
        $region34: #{tpu_custom_call.1} parent=31 // pred_check_branch
          %183 = sbr.rel (%p181) target = $region36
        $region35: #{tpu_custom_call.1} parent=31 // pred_region
          %p184 = scmp.lt.s32.totalorder %s14, 1
          %s185 = scalar_select %p184, %s14, 1
          %s186 = smul.addr %s185, 112
          %s187 = smul.addr %s186, 8
          %s188 = scalar_lea.vmem %s0, %s187
        $region36: #{tpu_custom_call.1} parent=31 // pred_fallthru
          _
      $region32: #{tpu_custom_call.1} parent=5 // pred_fallthru
        _
      %p189 = scmp.le.s32.totalorder 1, %s14
      %p190 = scmp.lt.s32.totalorder %s14, 3
      %p191 = pnand %p189, %p190
      %p192 = pneg %p191
      // Predicated region
      $region37: #{tpu_custom_call.1} parent=5 // pred_check
        _
      $region38: #{tpu_custom_call.1} parent=5 // pred_check_branch
        %194 = sbr.rel (%p191) target = $region40
      $region39: #{tpu_custom_call.1} parent=5 // pred_region
        %s195 = ssub.s32 %s14, 1
        %p196 = scmp.lt.s32.totalorder %s19, 1
        %s197 = scalar_select %p196, %s19, 1
        %s198 = smul.addr %s197, 112
        %s199 = smul.addr %s198, 8
        %s200 = scalar_lea.vmem %s0, %s199
        %p201 = pneg %p40
        %p202 = pneg %p37
        %p203 = pneg %p61
        %p204 = pneg %p58
        %p205 = pneg %p82
        %p206 = pneg %p79
        %p207 = pneg %p103
        %p208 = pneg %p100
        %p209 = pneg %p124
        %p210 = pneg %p121
        %p211 = pneg %p150
        %p212 = pneg %p147
        %s213 = sand.u32 %s137, 1
        %s214 = scalar_lea.sflag [#allocation7], %s213
        %s215 = sand.u32 %s137, 1
        %s216 = smul.addr %s215, 288
        %s217 = scalar_lea.vmem [#allocation6], %s216
        %p218 = scmp.lt.s32.totalorder %s19, 1
        %s219 = scalar_select %p218, %s19, 1
        %s220 = smul.addr %s219, 112
        %s221 = smul.addr %s220, 8
        %s222 = scalar_lea.vmem %s0, %s221
        %v223 = vld [vmem:[%s222] sm:$0xff]
        %v224 = vld [vmem:[%s222 + $0x8] sm:$0xff]
        %v225 = vld [vmem:[%s222 + $0x10] sm:$0xff]
        %v226 = vld [vmem:[%s222 + $0x18] sm:$0x3]
        %v227 = vld [vmem:[%s222 + $0x20] sm:$0xff]
        %v228 = vld [vmem:[%s222 + $0x28] sm:$0xff]
        %v229 = vld [vmem:[%s222 + $0x30] sm:$0xff]
        %v230 = vld [vmem:[%s222 + $0x38] sm:$0x3]
        %v231 = vld [vmem:[%s222 + $0x40] sm:$0xff]
        %v232 = vld [vmem:[%s222 + $0x48] sm:$0xff]
        %v233 = vld [vmem:[%s222 + $0x50] sm:$0xff]
        %v234 = vld [vmem:[%s222 + $0x58] sm:$0x3]
        %v235 = vld [vmem:[%s222 + $0x60] sm:$0xff]
        %v236 = vld [vmem:[%s222 + $0x68] sm:$0xff]
        %v237 = vld [vmem:[%s222 + $0x70] sm:$0xff]
        %v238 = vld [vmem:[%s222 + $0x78] sm:$0x3]
        %v239 = vld [vmem:[%s222 + $0x80] sm:$0xff]
        %v240 = vld [vmem:[%s222 + $0x88] sm:$0xff]
        %v241 = vld [vmem:[%s222 + $0x90] sm:$0xff]
        %v242 = vld [vmem:[%s222 + $0x98] sm:$0x3]
        %v243 = vld [vmem:[%s222 + $0xa0] sm:$0xff]
        %v244 = vld [vmem:[%s222 + $0xa8] sm:$0xff]
        %v245 = vld [vmem:[%s222 + $0xb0] sm:$0xff]
        %v246 = vld [vmem:[%s222 + $0xb8] sm:$0x3]
        %v247 = vld [vmem:[%s222 + $0xc0] sm:$0xff]
        %v248 = vld [vmem:[%s222 + $0xc8] sm:$0xff]
        %v249 = vld [vmem:[%s222 + $0xd0] sm:$0xff]
        %v250 = vld [vmem:[%s222 + $0xd8] sm:$0x3]
        %v251 = vld [vmem:[%s222 + $0xe0] sm:$0xff]
        %v252 = vld [vmem:[%s222 + $0xe8] sm:$0xff]
        %v253 = vld [vmem:[%s222 + $0xf0] sm:$0xff]
        %v254 = vld [vmem:[%s222 + $0xf8] sm:$0x3]
        %v255 = vld [vmem:[%s222 + $0x100] sm:$0xff]
        %v256 = vld [vmem:[%s222 + $0x108] sm:$0xff]
        %v257 = vld [vmem:[%s222 + $0x110] sm:$0xff]
        %v258 = vld [vmem:[%s222 + $0x118] sm:$0x3]
        %v259 = vld [vmem:[%s222 + $0x120] sm:$0xff]
        %v260 = vld [vmem:[%s222 + $0x128] sm:$0xff]
        %v261 = vld [vmem:[%s222 + $0x130] sm:$0xff]
        %v262 = vld [vmem:[%s222 + $0x138] sm:$0x3]
        %v263 = vld [vmem:[%s222 + $0x140] sm:$0xff]
        %v264 = vld [vmem:[%s222 + $0x148] sm:$0xff]
        %v265 = vld [vmem:[%s222 + $0x150] sm:$0xff]
        %v266 = vld [vmem:[%s222 + $0x158] sm:$0x3]
        %v267 = vld [vmem:[%s222 + $0x160] sm:$0xff]
        %v268 = vld [vmem:[%s222 + $0x168] sm:$0xff]
        %v269 = vld [vmem:[%s222 + $0x170] sm:$0xff]
        %v270 = vld [vmem:[%s222 + $0x178] sm:$0x3]
        %v271 = vld [vmem:[%s222 + $0x180] sm:$0xff]
        %v272 = vld [vmem:[%s222 + $0x188] sm:$0xff]
        %v273 = vld [vmem:[%s222 + $0x190] sm:$0xff]
        %v274 = vld [vmem:[%s222 + $0x198] sm:$0x3]
        %v275 = vld [vmem:[%s222 + $0x1a0] sm:$0xff]
        %v276 = vld [vmem:[%s222 + $0x1a8] sm:$0xff]
        %v277 = vld [vmem:[%s222 + $0x1b0] sm:$0xff]
        %v278 = vld [vmem:[%s222 + $0x1b8] sm:$0x3]
        %v279 = vld [vmem:[%s222 + $0x1c0] sm:$0xff]
        %v280 = vld [vmem:[%s222 + $0x1c8] sm:$0xff]
        %v281 = vld [vmem:[%s222 + $0x1d0] sm:$0xff]
        %v282 = vld [vmem:[%s222 + $0x1d8] sm:$0x3]
        %v283 = vld [vmem:[%s222 + $0x1e0] sm:$0xff]
        %v284 = vld [vmem:[%s222 + $0x1e8] sm:$0xff]
        %v285 = vld [vmem:[%s222 + $0x1f0] sm:$0xff]
        %v286 = vld [vmem:[%s222 + $0x1f8] sm:$0x3]
        %v287 = vld [vmem:[%s222 + $0x200] sm:$0xff]
        %v288 = vld [vmem:[%s222 + $0x208] sm:$0xff]
        %v289 = vld [vmem:[%s222 + $0x210] sm:$0xff]
        %v290 = vld [vmem:[%s222 + $0x218] sm:$0x3]
        %v291 = vld [vmem:[%s222 + $0x220] sm:$0xff]
        %v292 = vld [vmem:[%s222 + $0x228] sm:$0xff]
        %v293 = vld [vmem:[%s222 + $0x230] sm:$0xff]
        %v294 = vld [vmem:[%s222 + $0x238] sm:$0x3]
        %v295 = vld [vmem:[%s222 + $0x240] sm:$0xff]
        %v296 = vld [vmem:[%s222 + $0x248] sm:$0xff]
        %v297 = vld [vmem:[%s222 + $0x250] sm:$0xff]
        %v298 = vld [vmem:[%s222 + $0x258] sm:$0x3]
        %v299 = vld [vmem:[%s222 + $0x260] sm:$0xff]
        %v300 = vld [vmem:[%s222 + $0x268] sm:$0xff]
        %v301 = vld [vmem:[%s222 + $0x270] sm:$0xff]
        %v302 = vld [vmem:[%s222 + $0x278] sm:$0x3]
        %v303 = vld [vmem:[%s222 + $0x280] sm:$0xff]
        %v304 = vld [vmem:[%s222 + $0x288] sm:$0xff]
        %v305 = vld [vmem:[%s222 + $0x290] sm:$0xff]
        %v306 = vld [vmem:[%s222 + $0x298] sm:$0x3]
        %v307 = vld [vmem:[%s222 + $0x2a0] sm:$0xff]
        %v308 = vld [vmem:[%s222 + $0x2a8] sm:$0xff]
        %v309 = vld [vmem:[%s222 + $0x2b0] sm:$0xff]
        %v310 = vld [vmem:[%s222 + $0x2b8] sm:$0x3]
        %v311 = vld [vmem:[%s222 + $0x2c0] sm:$0xff]
        %v312 = vld [vmem:[%s222 + $0x2c8] sm:$0xff]
        %v313 = vld [vmem:[%s222 + $0x2d0] sm:$0xff]
        %v314 = vld [vmem:[%s222 + $0x2d8] sm:$0x3]
        %v315 = vld [vmem:[%s222 + $0x2e0] sm:$0xff]
        %v316 = vld [vmem:[%s222 + $0x2e8] sm:$0xff]
        %v317 = vld [vmem:[%s222 + $0x2f0] sm:$0xff]
        %v318 = vld [vmem:[%s222 + $0x2f8] sm:$0x3]
        %v319 = vld [vmem:[%s222 + $0x300] sm:$0xff]
        %v320 = vld [vmem:[%s222 + $0x308] sm:$0xff]
        %v321 = vld [vmem:[%s222 + $0x310] sm:$0xff]
        %v322 = vld [vmem:[%s222 + $0x318] sm:$0x3]
        %v323 = vld [vmem:[%s222 + $0x320] sm:$0xff]
        %v324 = vld [vmem:[%s222 + $0x328] sm:$0xff]
        %v325 = vld [vmem:[%s222 + $0x330] sm:$0xff]
        %v326 = vld [vmem:[%s222 + $0x338] sm:$0x3]
        %v327 = vld [vmem:[%s1] sm:$0x1]
        %v329 = vlaneseq
        %v330 = vshrl.u32 %v329, 7
        %v331 = vsub.s32 0, %v330
        %v332 = vrot.slane %v327, %v331
        %v334 = vmul.f32 %v223, %v332
        %v335 = vmul.f32 %v224, %v332
        %v336 = vmul.f32 %v225, %v332
        %v337 = vmul.f32 %v226, %v332
        %v338 = vmul.f32 %v227, %v332
        %v339 = vmul.f32 %v228, %v332
        %v340 = vmul.f32 %v229, %v332
        %v341 = vmul.f32 %v230, %v332
        %v342 = vmul.f32 %v231, %v332
        %v343 = vmul.f32 %v232, %v332
        %v344 = vmul.f32 %v233, %v332
        %v345 = vmul.f32 %v234, %v332
        %v346 = vmul.f32 %v235, %v332
        %v347 = vmul.f32 %v236, %v332
        %v348 = vmul.f32 %v237, %v332
        %v349 = vmul.f32 %v238, %v332
        %v350 = vmul.f32 %v239, %v332
        %v351 = vmul.f32 %v240, %v332
        %v352 = vmul.f32 %v241, %v332
        %v353 = vmul.f32 %v242, %v332
        %v354 = vmul.f32 %v243, %v332
        %v355 = vmul.f32 %v244, %v332
        %v356 = vmul.f32 %v245, %v332
        %v357 = vmul.f32 %v246, %v332
        %v358 = vmul.f32 %v247, %v332
        %v359 = vmul.f32 %v248, %v332
        %v360 = vmul.f32 %v249, %v332
        %v361 = vmul.f32 %v250, %v332
        %v362 = vmul.f32 %v251, %v332
        %v363 = vmul.f32 %v252, %v332
        %v364 = vmul.f32 %v253, %v332
        %v365 = vmul.f32 %v254, %v332
        %v366 = vmul.f32 %v255, %v332
        %v367 = vmul.f32 %v256, %v332
        %v368 = vmul.f32 %v257, %v332
        %v369 = vmul.f32 %v258, %v332
        %v370 = vmul.f32 %v259, %v332
        %v371 = vmul.f32 %v260, %v332
        %v372 = vmul.f32 %v261, %v332
        %v373 = vmul.f32 %v262, %v332
        %v374 = vmul.f32 %v263, %v332
        %v375 = vmul.f32 %v264, %v332
        %v376 = vmul.f32 %v265, %v332
        %v377 = vmul.f32 %v266, %v332
        %v378 = vmul.f32 %v267, %v332
        %v379 = vmul.f32 %v268, %v332
        %v380 = vmul.f32 %v269, %v332
        %v381 = vmul.f32 %v270, %v332
        %v382 = vmul.f32 %v271, %v332
        %v383 = vmul.f32 %v272, %v332
        %v384 = vmul.f32 %v273, %v332
        %v385 = vmul.f32 %v274, %v332
        %v386 = vmul.f32 %v275, %v332
        %v387 = vmul.f32 %v276, %v332
        %v388 = vmul.f32 %v277, %v332
        %v389 = vmul.f32 %v278, %v332
        %v390 = vmul.f32 %v279, %v332
        %v391 = vmul.f32 %v280, %v332
        %v392 = vmul.f32 %v281, %v332
        %v393 = vmul.f32 %v282, %v332
        %v394 = vmul.f32 %v283, %v332
        %v395 = vmul.f32 %v284, %v332
        %v396 = vmul.f32 %v285, %v332
        %v397 = vmul.f32 %v286, %v332
        %v398 = vmul.f32 %v287, %v332
        %v399 = vmul.f32 %v288, %v332
        %v400 = vmul.f32 %v289, %v332
        %v401 = vmul.f32 %v290, %v332
        %v402 = vmul.f32 %v291, %v332
        %v403 = vmul.f32 %v292, %v332
        %v404 = vmul.f32 %v293, %v332
        %v405 = vmul.f32 %v294, %v332
        %v406 = vmul.f32 %v295, %v332
        %v407 = vmul.f32 %v296, %v332
        %v408 = vmul.f32 %v297, %v332
        %v409 = vmul.f32 %v298, %v332
        %v410 = vmul.f32 %v299, %v332
        %v411 = vmul.f32 %v300, %v332
        %v412 = vmul.f32 %v301, %v332
        %v413 = vmul.f32 %v302, %v332
        %v414 = vmul.f32 %v303, %v332
        %v415 = vmul.f32 %v304, %v332
        %v416 = vmul.f32 %v305, %v332
        %v417 = vmul.f32 %v306, %v332
        %v418 = vmul.f32 %v307, %v332
        %v419 = vmul.f32 %v308, %v332
        %v420 = vmul.f32 %v309, %v332
        %v421 = vmul.f32 %v310, %v332
        %v422 = vmul.f32 %v311, %v332
        %v423 = vmul.f32 %v312, %v332
        %v424 = vmul.f32 %v313, %v332
        %v425 = vmul.f32 %v314, %v332
        %v426 = vmul.f32 %v315, %v332
        %v427 = vmul.f32 %v316, %v332
        %v428 = vmul.f32 %v317, %v332
        %v429 = vmul.f32 %v318, %v332
        %v430 = vmul.f32 %v319, %v332
        %v431 = vmul.f32 %v320, %v332
        %v432 = vmul.f32 %v321, %v332
        %v433 = vmul.f32 %v322, %v332
        %v434 = vmul.f32 %v323, %v332
        %v435 = vmul.f32 %v324, %v332
        %v436 = vmul.f32 %v325, %v332
        %v437 = vmul.f32 %v326, %v332
        %v438 = vadd.f32 %v334, 0.0
        %v439 = vadd.f32 %v335, 0.0
        %v440 = vadd.f32 %v336, 0.0
        %v441 = vadd.f32 %v337, 0.0
        %v442 = vadd.f32 %v338, 0.0
        %v443 = vadd.f32 %v339, 0.0
        %v444 = vadd.f32 %v340, 0.0
        %v445 = vadd.f32 %v341, 0.0
        %v446 = vadd.f32 %v342, 0.0
        %v447 = vadd.f32 %v343, 0.0
        %v448 = vadd.f32 %v344, 0.0
        %v449 = vadd.f32 %v345, 0.0
        %v450 = vadd.f32 %v346, 0.0
        %v451 = vadd.f32 %v347, 0.0
        %v452 = vadd.f32 %v348, 0.0
        %v453 = vadd.f32 %v349, 0.0
        %v454 = vadd.f32 %v350, 0.0
        %v455 = vadd.f32 %v351, 0.0
        %v456 = vadd.f32 %v352, 0.0
        %v457 = vadd.f32 %v353, 0.0
        %v458 = vadd.f32 %v354, 0.0
        %v459 = vadd.f32 %v355, 0.0
        %v460 = vadd.f32 %v356, 0.0
        %v461 = vadd.f32 %v357, 0.0
        %v462 = vadd.f32 %v358, 0.0
        %v463 = vadd.f32 %v359, 0.0
        %v464 = vadd.f32 %v360, 0.0
        %v465 = vadd.f32 %v361, 0.0
        %v466 = vadd.f32 %v362, 0.0
        %v467 = vadd.f32 %v363, 0.0
        %v468 = vadd.f32 %v364, 0.0
        %v469 = vadd.f32 %v365, 0.0
        %v470 = vadd.f32 %v366, 0.0
        %v471 = vadd.f32 %v367, 0.0
        %v472 = vadd.f32 %v368, 0.0
        %v473 = vadd.f32 %v369, 0.0
        %v474 = vadd.f32 %v370, 0.0
        %v475 = vadd.f32 %v371, 0.0
        %v476 = vadd.f32 %v372, 0.0
        %v477 = vadd.f32 %v373, 0.0
        %v478 = vadd.f32 %v374, 0.0
        %v479 = vadd.f32 %v375, 0.0
        %v480 = vadd.f32 %v376, 0.0
        %v481 = vadd.f32 %v377, 0.0
        %v482 = vadd.f32 %v378, 0.0
        %v483 = vadd.f32 %v379, 0.0
        %v484 = vadd.f32 %v380, 0.0
        %v485 = vadd.f32 %v381, 0.0
        %v486 = vadd.f32 %v382, 0.0
        %v487 = vadd.f32 %v383, 0.0
        %v488 = vadd.f32 %v384, 0.0
        %v489 = vadd.f32 %v385, 0.0
        %v490 = vadd.f32 %v386, 0.0
        %v491 = vadd.f32 %v387, 0.0
        %v492 = vadd.f32 %v388, 0.0
        %v493 = vadd.f32 %v389, 0.0
        %v494 = vadd.f32 %v390, 0.0
        %v495 = vadd.f32 %v391, 0.0
        %v496 = vadd.f32 %v392, 0.0
        %v497 = vadd.f32 %v393, 0.0
        %v498 = vadd.f32 %v394, 0.0
        %v499 = vadd.f32 %v395, 0.0
        %v500 = vadd.f32 %v396, 0.0
        %v501 = vadd.f32 %v397, 0.0
        %v502 = vadd.f32 %v398, 0.0
        %v503 = vadd.f32 %v399, 0.0
        %v504 = vadd.f32 %v400, 0.0
        %v505 = vadd.f32 %v401, 0.0
        %v506 = vadd.f32 %v402, 0.0
        %v507 = vadd.f32 %v403, 0.0
        %v508 = vadd.f32 %v404, 0.0
        %v509 = vadd.f32 %v405, 0.0
        %v510 = vadd.f32 %v406, 0.0
        %v511 = vadd.f32 %v407, 0.0
        %v512 = vadd.f32 %v408, 0.0
        %v513 = vadd.f32 %v409, 0.0
        %v514 = vadd.f32 %v410, 0.0
        %v515 = vadd.f32 %v411, 0.0
        %v516 = vadd.f32 %v412, 0.0
        %v517 = vadd.f32 %v413, 0.0
        %v518 = vadd.f32 %v414, 0.0
        %v519 = vadd.f32 %v415, 0.0
        %v520 = vadd.f32 %v416, 0.0
        %v521 = vadd.f32 %v417, 0.0
        %v522 = vadd.f32 %v418, 0.0
        %v523 = vadd.f32 %v419, 0.0
        %v524 = vadd.f32 %v420, 0.0
        %v525 = vadd.f32 %v421, 0.0
        %v526 = vadd.f32 %v422, 0.0
        %v527 = vadd.f32 %v423, 0.0
        %v528 = vadd.f32 %v424, 0.0
        %v529 = vadd.f32 %v425, 0.0
        %v530 = vadd.f32 %v426, 0.0
        %v531 = vadd.f32 %v427, 0.0
        %v532 = vadd.f32 %v428, 0.0
        %v533 = vadd.f32 %v429, 0.0
        %v534 = vadd.f32 %v430, 0.0
        %v535 = vadd.f32 %v431, 0.0
        %v536 = vadd.f32 %v432, 0.0
        %v537 = vadd.f32 %v433, 0.0
        %v538 = vadd.f32 %v434, 0.0
        %v539 = vadd.f32 %v435, 0.0
        %v540 = vadd.f32 %v436, 0.0
        %v541 = vadd.f32 %v437, 0.0
        %s542 = scalar_lea.vmem %s222, 32
        %v543 = vld [vmem:[%s542] sm:$0xff]
        %v544 = vld [vmem:[%s542 + $0x8] sm:$0xff]
        %v545 = vld [vmem:[%s542 + $0x10] sm:$0xff]
        %v546 = vld [vmem:[%s542 + $0x18] sm:$0x3]
        %v547 = vld [vmem:[%s542 + $0x20] sm:$0xff]
        %v548 = vld [vmem:[%s542 + $0x28] sm:$0xff]
        %v549 = vld [vmem:[%s542 + $0x30] sm:$0xff]
        %v550 = vld [vmem:[%s542 + $0x38] sm:$0x3]
        %v551 = vld [vmem:[%s542 + $0x40] sm:$0xff]
        %v552 = vld [vmem:[%s542 + $0x48] sm:$0xff]
        %v553 = vld [vmem:[%s542 + $0x50] sm:$0xff]
        %v554 = vld [vmem:[%s542 + $0x58] sm:$0x3]
        %v555 = vld [vmem:[%s542 + $0x60] sm:$0xff]
        %v556 = vld [vmem:[%s542 + $0x68] sm:$0xff]
        %v557 = vld [vmem:[%s542 + $0x70] sm:$0xff]
        %v558 = vld [vmem:[%s542 + $0x78] sm:$0x3]
        %v559 = vld [vmem:[%s542 + $0x80] sm:$0xff]
        %v560 = vld [vmem:[%s542 + $0x88] sm:$0xff]
        %v561 = vld [vmem:[%s542 + $0x90] sm:$0xff]
        %v562 = vld [vmem:[%s542 + $0x98] sm:$0x3]
        %v563 = vld [vmem:[%s542 + $0xa0] sm:$0xff]
        %v564 = vld [vmem:[%s542 + $0xa8] sm:$0xff]
        %v565 = vld [vmem:[%s542 + $0xb0] sm:$0xff]
        %v566 = vld [vmem:[%s542 + $0xb8] sm:$0x3]
        %v567 = vld [vmem:[%s542 + $0xc0] sm:$0xff]
        %v568 = vld [vmem:[%s542 + $0xc8] sm:$0xff]
        %v569 = vld [vmem:[%s542 + $0xd0] sm:$0xff]
        %v570 = vld [vmem:[%s542 + $0xd8] sm:$0x3]
        %v571 = vld [vmem:[%s542 + $0xe0] sm:$0xff]
        %v572 = vld [vmem:[%s542 + $0xe8] sm:$0xff]
        %v573 = vld [vmem:[%s542 + $0xf0] sm:$0xff]
        %v574 = vld [vmem:[%s542 + $0xf8] sm:$0x3]
        %v575 = vld [vmem:[%s542 + $0x100] sm:$0xff]
        %v576 = vld [vmem:[%s542 + $0x108] sm:$0xff]
        %v577 = vld [vmem:[%s542 + $0x110] sm:$0xff]
        %v578 = vld [vmem:[%s542 + $0x118] sm:$0x3]
        %v579 = vld [vmem:[%s542 + $0x120] sm:$0xff]
        %v580 = vld [vmem:[%s542 + $0x128] sm:$0xff]
        %v581 = vld [vmem:[%s542 + $0x130] sm:$0xff]
        %v582 = vld [vmem:[%s542 + $0x138] sm:$0x3]
        %v583 = vld [vmem:[%s542 + $0x140] sm:$0xff]
        %v584 = vld [vmem:[%s542 + $0x148] sm:$0xff]
        %v585 = vld [vmem:[%s542 + $0x150] sm:$0xff]
        %v586 = vld [vmem:[%s542 + $0x158] sm:$0x3]
        %v587 = vld [vmem:[%s542 + $0x160] sm:$0xff]
        %v588 = vld [vmem:[%s542 + $0x168] sm:$0xff]
        %v589 = vld [vmem:[%s542 + $0x170] sm:$0xff]
        %v590 = vld [vmem:[%s542 + $0x178] sm:$0x3]
        %v591 = vld [vmem:[%s542 + $0x180] sm:$0xff]
        %v592 = vld [vmem:[%s542 + $0x188] sm:$0xff]
        %v593 = vld [vmem:[%s542 + $0x190] sm:$0xff]
        %v594 = vld [vmem:[%s542 + $0x198] sm:$0x3]
        %v595 = vld [vmem:[%s542 + $0x1a0] sm:$0xff]
        %v596 = vld [vmem:[%s542 + $0x1a8] sm:$0xff]
        %v597 = vld [vmem:[%s542 + $0x1b0] sm:$0xff]
        %v598 = vld [vmem:[%s542 + $0x1b8] sm:$0x3]
        %v599 = vld [vmem:[%s542 + $0x1c0] sm:$0xff]
        %v600 = vld [vmem:[%s542 + $0x1c8] sm:$0xff]
        %v601 = vld [vmem:[%s542 + $0x1d0] sm:$0xff]
        %v602 = vld [vmem:[%s542 + $0x1d8] sm:$0x3]
        %v603 = vld [vmem:[%s542 + $0x1e0] sm:$0xff]
        %v604 = vld [vmem:[%s542 + $0x1e8] sm:$0xff]
        %v605 = vld [vmem:[%s542 + $0x1f0] sm:$0xff]
        %v606 = vld [vmem:[%s542 + $0x1f8] sm:$0x3]
        %v607 = vld [vmem:[%s542 + $0x200] sm:$0xff]
        %v608 = vld [vmem:[%s542 + $0x208] sm:$0xff]
        %v609 = vld [vmem:[%s542 + $0x210] sm:$0xff]
        %v610 = vld [vmem:[%s542 + $0x218] sm:$0x3]
        %v611 = vld [vmem:[%s542 + $0x220] sm:$0xff]
        %v612 = vld [vmem:[%s542 + $0x228] sm:$0xff]
        %v613 = vld [vmem:[%s542 + $0x230] sm:$0xff]
        %v614 = vld [vmem:[%s542 + $0x238] sm:$0x3]
        %v615 = vld [vmem:[%s542 + $0x240] sm:$0xff]
        %v616 = vld [vmem:[%s542 + $0x248] sm:$0xff]
        %v617 = vld [vmem:[%s542 + $0x250] sm:$0xff]
        %v618 = vld [vmem:[%s542 + $0x258] sm:$0x3]
        %v619 = vld [vmem:[%s542 + $0x260] sm:$0xff]
        %v620 = vld [vmem:[%s542 + $0x268] sm:$0xff]
        %v621 = vld [vmem:[%s542 + $0x270] sm:$0xff]
        %v622 = vld [vmem:[%s542 + $0x278] sm:$0x3]
        %v623 = vld [vmem:[%s542 + $0x280] sm:$0xff]
        %v624 = vld [vmem:[%s542 + $0x288] sm:$0xff]
        %v625 = vld [vmem:[%s542 + $0x290] sm:$0xff]
        %v626 = vld [vmem:[%s542 + $0x298] sm:$0x3]
        %v627 = vld [vmem:[%s542 + $0x2a0] sm:$0xff]
        %v628 = vld [vmem:[%s542 + $0x2a8] sm:$0xff]
        %v629 = vld [vmem:[%s542 + $0x2b0] sm:$0xff]
        %v630 = vld [vmem:[%s542 + $0x2b8] sm:$0x3]
        %v631 = vld [vmem:[%s542 + $0x2c0] sm:$0xff]
        %v632 = vld [vmem:[%s542 + $0x2c8] sm:$0xff]
        %v633 = vld [vmem:[%s542 + $0x2d0] sm:$0xff]
        %v634 = vld [vmem:[%s542 + $0x2d8] sm:$0x3]
        %v635 = vld [vmem:[%s542 + $0x2e0] sm:$0xff]
        %v636 = vld [vmem:[%s542 + $0x2e8] sm:$0xff]
        %v637 = vld [vmem:[%s542 + $0x2f0] sm:$0xff]
        %v638 = vld [vmem:[%s542 + $0x2f8] sm:$0x3]
        %v639 = vld [vmem:[%s542 + $0x300] sm:$0xff]
        %v640 = vld [vmem:[%s542 + $0x308] sm:$0xff]
        %v641 = vld [vmem:[%s542 + $0x310] sm:$0xff]
        %v642 = vld [vmem:[%s542 + $0x318] sm:$0x3]
        %v643 = vld [vmem:[%s542 + $0x320] sm:$0xff]
        %v644 = vld [vmem:[%s542 + $0x328] sm:$0xff]
        %v645 = vld [vmem:[%s542 + $0x330] sm:$0xff]
        %v646 = vld [vmem:[%s542 + $0x338] sm:$0x3]
        %s647 = scalar_lea.vmem %s1, 1
        %v648 = vld [vmem:[%s647] sm:$0x1]
        %v650 = vlaneseq
        %v651 = vshrl.u32 %v650, 7
        %v652 = vsub.s32 0, %v651
        %v653 = vrot.slane %v648, %v652
        %v655 = vmul.f32 %v543, %v653
        %v656 = vmul.f32 %v544, %v653
        %v657 = vmul.f32 %v545, %v653
        %v658 = vmul.f32 %v546, %v653
        %v659 = vmul.f32 %v547, %v653
        %v660 = vmul.f32 %v548, %v653
        %v661 = vmul.f32 %v549, %v653
        %v662 = vmul.f32 %v550, %v653
        %v663 = vmul.f32 %v551, %v653
        %v664 = vmul.f32 %v552, %v653
        %v665 = vmul.f32 %v553, %v653
        %v666 = vmul.f32 %v554, %v653
        %v667 = vmul.f32 %v555, %v653
        %v668 = vmul.f32 %v556, %v653
        %v669 = vmul.f32 %v557, %v653
        %v670 = vmul.f32 %v558, %v653
        %v671 = vmul.f32 %v559, %v653
        %v672 = vmul.f32 %v560, %v653
        %v673 = vmul.f32 %v561, %v653
        %v674 = vmul.f32 %v562, %v653
        %v675 = vmul.f32 %v563, %v653
        %v676 = vmul.f32 %v564, %v653
        %v677 = vmul.f32 %v565, %v653
        %v678 = vmul.f32 %v566, %v653
        %v679 = vmul.f32 %v567, %v653
        %v680 = vmul.f32 %v568, %v653
        %v681 = vmul.f32 %v569, %v653
        %v682 = vmul.f32 %v570, %v653
        %v683 = vmul.f32 %v571, %v653
        %v684 = vmul.f32 %v572, %v653
        %v685 = vmul.f32 %v573, %v653
        %v686 = vmul.f32 %v574, %v653
        %v687 = vmul.f32 %v575, %v653
        %v688 = vmul.f32 %v576, %v653
        %v689 = vmul.f32 %v577, %v653
        %v690 = vmul.f32 %v578, %v653
        %v691 = vmul.f32 %v579, %v653
        %v692 = vmul.f32 %v580, %v653
        %v693 = vmul.f32 %v581, %v653
        %v694 = vmul.f32 %v582, %v653
        %v695 = vmul.f32 %v583, %v653
        %v696 = vmul.f32 %v584, %v653
        %v697 = vmul.f32 %v585, %v653
        %v698 = vmul.f32 %v586, %v653
        %v699 = vmul.f32 %v587, %v653
        %v700 = vmul.f32 %v588, %v653
        %v701 = vmul.f32 %v589, %v653
        %v702 = vmul.f32 %v590, %v653
        %v703 = vmul.f32 %v591, %v653
        %v704 = vmul.f32 %v592, %v653
        %v705 = vmul.f32 %v593, %v653
        %v706 = vmul.f32 %v594, %v653
        %v707 = vmul.f32 %v595, %v653
        %v708 = vmul.f32 %v596, %v653
        %v709 = vmul.f32 %v597, %v653
        %v710 = vmul.f32 %v598, %v653
        %v711 = vmul.f32 %v599, %v653
        %v712 = vmul.f32 %v600, %v653
        %v713 = vmul.f32 %v601, %v653
        %v714 = vmul.f32 %v602, %v653
        %v715 = vmul.f32 %v603, %v653
        %v716 = vmul.f32 %v604, %v653
        %v717 = vmul.f32 %v605, %v653
        %v718 = vmul.f32 %v606, %v653
        %v719 = vmul.f32 %v607, %v653
        %v720 = vmul.f32 %v608, %v653
        %v721 = vmul.f32 %v609, %v653
        %v722 = vmul.f32 %v610, %v653
        %v723 = vmul.f32 %v611, %v653
        %v724 = vmul.f32 %v612, %v653
        %v725 = vmul.f32 %v613, %v653
        %v726 = vmul.f32 %v614, %v653
        %v727 = vmul.f32 %v615, %v653
        %v728 = vmul.f32 %v616, %v653
        %v729 = vmul.f32 %v617, %v653
        %v730 = vmul.f32 %v618, %v653
        %v731 = vmul.f32 %v619, %v653
        %v732 = vmul.f32 %v620, %v653
        %v733 = vmul.f32 %v621, %v653
        %v734 = vmul.f32 %v622, %v653
        %v735 = vmul.f32 %v623, %v653
        %v736 = vmul.f32 %v624, %v653
        %v737 = vmul.f32 %v625, %v653
        %v738 = vmul.f32 %v626, %v653
        %v739 = vmul.f32 %v627, %v653
        %v740 = vmul.f32 %v628, %v653
        %v741 = vmul.f32 %v629, %v653
        %v742 = vmul.f32 %v630, %v653
        %v743 = vmul.f32 %v631, %v653
        %v744 = vmul.f32 %v632, %v653
        %v745 = vmul.f32 %v633, %v653
        %v746 = vmul.f32 %v634, %v653
        %v747 = vmul.f32 %v635, %v653
        %v748 = vmul.f32 %v636, %v653
        %v749 = vmul.f32 %v637, %v653
        %v750 = vmul.f32 %v638, %v653
        %v751 = vmul.f32 %v639, %v653
        %v752 = vmul.f32 %v640, %v653
        %v753 = vmul.f32 %v641, %v653
        %v754 = vmul.f32 %v642, %v653
        %v755 = vmul.f32 %v643, %v653
        %v756 = vmul.f32 %v644, %v653
        %v757 = vmul.f32 %v645, %v653
        %v758 = vmul.f32 %v646, %v653
        %v759 = vadd.f32 %v438, %v655
        %v760 = vadd.f32 %v439, %v656
        %v761 = vadd.f32 %v440, %v657
        %v762 = vadd.f32 %v441, %v658
        %v763 = vadd.f32 %v442, %v659
        %v764 = vadd.f32 %v443, %v660
        %v765 = vadd.f32 %v444, %v661
        %v766 = vadd.f32 %v445, %v662
        %v767 = vadd.f32 %v446, %v663
        %v768 = vadd.f32 %v447, %v664
        %v769 = vadd.f32 %v448, %v665
        %v770 = vadd.f32 %v449, %v666
        %v771 = vadd.f32 %v450, %v667
        %v772 = vadd.f32 %v451, %v668
        %v773 = vadd.f32 %v452, %v669
        %v774 = vadd.f32 %v453, %v670
        %v775 = vadd.f32 %v454, %v671
        %v776 = vadd.f32 %v455, %v672
        %v777 = vadd.f32 %v456, %v673
        %v778 = vadd.f32 %v457, %v674
        %v779 = vadd.f32 %v458, %v675
        %v780 = vadd.f32 %v459, %v676
        %v781 = vadd.f32 %v460, %v677
        %v782 = vadd.f32 %v461, %v678
        %v783 = vadd.f32 %v462, %v679
        %v784 = vadd.f32 %v463, %v680
        %v785 = vadd.f32 %v464, %v681
        %v786 = vadd.f32 %v465, %v682
        %v787 = vadd.f32 %v466, %v683
        %v788 = vadd.f32 %v467, %v684
        %v789 = vadd.f32 %v468, %v685
        %v790 = vadd.f32 %v469, %v686
        %v791 = vadd.f32 %v470, %v687
        %v792 = vadd.f32 %v471, %v688
        %v793 = vadd.f32 %v472, %v689
        %v794 = vadd.f32 %v473, %v690
        %v795 = vadd.f32 %v474, %v691
        %v796 = vadd.f32 %v475, %v692
        %v797 = vadd.f32 %v476, %v693
        %v798 = vadd.f32 %v477, %v694
        %v799 = vadd.f32 %v478, %v695
        %v800 = vadd.f32 %v479, %v696
        %v801 = vadd.f32 %v480, %v697
        %v802 = vadd.f32 %v481, %v698
        %v803 = vadd.f32 %v482, %v699
        %v804 = vadd.f32 %v483, %v700
        %v805 = vadd.f32 %v484, %v701
        %v806 = vadd.f32 %v485, %v702
        %v807 = vadd.f32 %v486, %v703
        %v808 = vadd.f32 %v487, %v704
        %v809 = vadd.f32 %v488, %v705
        %v810 = vadd.f32 %v489, %v706
        %v811 = vadd.f32 %v490, %v707
        %v812 = vadd.f32 %v491, %v708
        %v813 = vadd.f32 %v492, %v709
        %v814 = vadd.f32 %v493, %v710
        %v815 = vadd.f32 %v494, %v711
        %v816 = vadd.f32 %v495, %v712
        %v817 = vadd.f32 %v496, %v713
        %v818 = vadd.f32 %v497, %v714
        %v819 = vadd.f32 %v498, %v715
        %v820 = vadd.f32 %v499, %v716
        %v821 = vadd.f32 %v500, %v717
        %v822 = vadd.f32 %v501, %v718
        %v823 = vadd.f32 %v502, %v719
        %v824 = vadd.f32 %v503, %v720
        %v825 = vadd.f32 %v504, %v721
        %v826 = vadd.f32 %v505, %v722
        %v827 = vadd.f32 %v506, %v723
        %v828 = vadd.f32 %v507, %v724
        %v829 = vadd.f32 %v508, %v725
        %v830 = vadd.f32 %v509, %v726
        %v831 = vadd.f32 %v510, %v727
        %v832 = vadd.f32 %v511, %v728
        %v833 = vadd.f32 %v512, %v729
        %v834 = vadd.f32 %v513, %v730
        %v835 = vadd.f32 %v514, %v731
        %v836 = vadd.f32 %v515, %v732
        %v837 = vadd.f32 %v516, %v733
        %v838 = vadd.f32 %v517, %v734
        %v839 = vadd.f32 %v518, %v735
        %v840 = vadd.f32 %v519, %v736
        %v841 = vadd.f32 %v520, %v737
        %v842 = vadd.f32 %v521, %v738
        %v843 = vadd.f32 %v522, %v739
        %v844 = vadd.f32 %v523, %v740
        %v845 = vadd.f32 %v524, %v741
        %v846 = vadd.f32 %v525, %v742
        %v847 = vadd.f32 %v526, %v743
        %v848 = vadd.f32 %v527, %v744
        %v849 = vadd.f32 %v528, %v745
        %v850 = vadd.f32 %v529, %v746
        %v851 = vadd.f32 %v530, %v747
        %v852 = vadd.f32 %v531, %v748
        %v853 = vadd.f32 %v532, %v749
        %v854 = vadd.f32 %v533, %v750
        %v855 = vadd.f32 %v534, %v751
        %v856 = vadd.f32 %v535, %v752
        %v857 = vadd.f32 %v536, %v753
        %v858 = vadd.f32 %v537, %v754
        %v859 = vadd.f32 %v538, %v755
        %v860 = vadd.f32 %v539, %v756
        %v861 = vadd.f32 %v540, %v757
        %v862 = vadd.f32 %v541, %v758
        %s863 = scalar_lea.vmem %s222, 64
        %v864 = vld [vmem:[%s863] sm:$0xff]
        %v865 = vld [vmem:[%s863 + $0x8] sm:$0xff]
        %v866 = vld [vmem:[%s863 + $0x10] sm:$0xff]
        %v867 = vld [vmem:[%s863 + $0x18] sm:$0x3]
        %v868 = vld [vmem:[%s863 + $0x20] sm:$0xff]
        %v869 = vld [vmem:[%s863 + $0x28] sm:$0xff]
        %v870 = vld [vmem:[%s863 + $0x30] sm:$0xff]
        %v871 = vld [vmem:[%s863 + $0x38] sm:$0x3]
        %v872 = vld [vmem:[%s863 + $0x40] sm:$0xff]
        %v873 = vld [vmem:[%s863 + $0x48] sm:$0xff]
        %v874 = vld [vmem:[%s863 + $0x50] sm:$0xff]
        %v875 = vld [vmem:[%s863 + $0x58] sm:$0x3]
        %v876 = vld [vmem:[%s863 + $0x60] sm:$0xff]
        %v877 = vld [vmem:[%s863 + $0x68] sm:$0xff]
        %v878 = vld [vmem:[%s863 + $0x70] sm:$0xff]
        %v879 = vld [vmem:[%s863 + $0x78] sm:$0x3]
        %v880 = vld [vmem:[%s863 + $0x80] sm:$0xff]
        %v881 = vld [vmem:[%s863 + $0x88] sm:$0xff]
        %v882 = vld [vmem:[%s863 + $0x90] sm:$0xff]
        %v883 = vld [vmem:[%s863 + $0x98] sm:$0x3]
        %v884 = vld [vmem:[%s863 + $0xa0] sm:$0xff]
        %v885 = vld [vmem:[%s863 + $0xa8] sm:$0xff]
        %v886 = vld [vmem:[%s863 + $0xb0] sm:$0xff]
        %v887 = vld [vmem:[%s863 + $0xb8] sm:$0x3]
        %v888 = vld [vmem:[%s863 + $0xc0] sm:$0xff]
        %v889 = vld [vmem:[%s863 + $0xc8] sm:$0xff]
        %v890 = vld [vmem:[%s863 + $0xd0] sm:$0xff]
        %v891 = vld [vmem:[%s863 + $0xd8] sm:$0x3]
        %v892 = vld [vmem:[%s863 + $0xe0] sm:$0xff]
        %v893 = vld [vmem:[%s863 + $0xe8] sm:$0xff]
        %v894 = vld [vmem:[%s863 + $0xf0] sm:$0xff]
        %v895 = vld [vmem:[%s863 + $0xf8] sm:$0x3]
        %v896 = vld [vmem:[%s863 + $0x100] sm:$0xff]
        %v897 = vld [vmem:[%s863 + $0x108] sm:$0xff]
        %v898 = vld [vmem:[%s863 + $0x110] sm:$0xff]
        %v899 = vld [vmem:[%s863 + $0x118] sm:$0x3]
        %v900 = vld [vmem:[%s863 + $0x120] sm:$0xff]
        %v901 = vld [vmem:[%s863 + $0x128] sm:$0xff]
        %v902 = vld [vmem:[%s863 + $0x130] sm:$0xff]
        %v903 = vld [vmem:[%s863 + $0x138] sm:$0x3]
        %v904 = vld [vmem:[%s863 + $0x140] sm:$0xff]
        %v905 = vld [vmem:[%s863 + $0x148] sm:$0xff]
        %v906 = vld [vmem:[%s863 + $0x150] sm:$0xff]
        %v907 = vld [vmem:[%s863 + $0x158] sm:$0x3]
        %v908 = vld [vmem:[%s863 + $0x160] sm:$0xff]
        %v909 = vld [vmem:[%s863 + $0x168] sm:$0xff]
        %v910 = vld [vmem:[%s863 + $0x170] sm:$0xff]
        %v911 = vld [vmem:[%s863 + $0x178] sm:$0x3]
        %v912 = vld [vmem:[%s863 + $0x180] sm:$0xff]
        %v913 = vld [vmem:[%s863 + $0x188] sm:$0xff]
        %v914 = vld [vmem:[%s863 + $0x190] sm:$0xff]
        %v915 = vld [vmem:[%s863 + $0x198] sm:$0x3]
        %v916 = vld [vmem:[%s863 + $0x1a0] sm:$0xff]
        %v917 = vld [vmem:[%s863 + $0x1a8] sm:$0xff]
        %v918 = vld [vmem:[%s863 + $0x1b0] sm:$0xff]
        %v919 = vld [vmem:[%s863 + $0x1b8] sm:$0x3]
        %v920 = vld [vmem:[%s863 + $0x1c0] sm:$0xff]
        %v921 = vld [vmem:[%s863 + $0x1c8] sm:$0xff]
        %v922 = vld [vmem:[%s863 + $0x1d0] sm:$0xff]
        %v923 = vld [vmem:[%s863 + $0x1d8] sm:$0x3]
        %v924 = vld [vmem:[%s863 + $0x1e0] sm:$0xff]
        %v925 = vld [vmem:[%s863 + $0x1e8] sm:$0xff]
        %v926 = vld [vmem:[%s863 + $0x1f0] sm:$0xff]
        %v927 = vld [vmem:[%s863 + $0x1f8] sm:$0x3]
        %v928 = vld [vmem:[%s863 + $0x200] sm:$0xff]
        %v929 = vld [vmem:[%s863 + $0x208] sm:$0xff]
        %v930 = vld [vmem:[%s863 + $0x210] sm:$0xff]
        %v931 = vld [vmem:[%s863 + $0x218] sm:$0x3]
        %v932 = vld [vmem:[%s863 + $0x220] sm:$0xff]
        %v933 = vld [vmem:[%s863 + $0x228] sm:$0xff]
        %v934 = vld [vmem:[%s863 + $0x230] sm:$0xff]
        %v935 = vld [vmem:[%s863 + $0x238] sm:$0x3]
        %v936 = vld [vmem:[%s863 + $0x240] sm:$0xff]
        %v937 = vld [vmem:[%s863 + $0x248] sm:$0xff]
        %v938 = vld [vmem:[%s863 + $0x250] sm:$0xff]
        %v939 = vld [vmem:[%s863 + $0x258] sm:$0x3]
        %v940 = vld [vmem:[%s863 + $0x260] sm:$0xff]
        %v941 = vld [vmem:[%s863 + $0x268] sm:$0xff]
        %v942 = vld [vmem:[%s863 + $0x270] sm:$0xff]
        %v943 = vld [vmem:[%s863 + $0x278] sm:$0x3]
        %v944 = vld [vmem:[%s863 + $0x280] sm:$0xff]
        %v945 = vld [vmem:[%s863 + $0x288] sm:$0xff]
        %v946 = vld [vmem:[%s863 + $0x290] sm:$0xff]
        %v947 = vld [vmem:[%s863 + $0x298] sm:$0x3]
        %v948 = vld [vmem:[%s863 + $0x2a0] sm:$0xff]
        %v949 = vld [vmem:[%s863 + $0x2a8] sm:$0xff]
        %v950 = vld [vmem:[%s863 + $0x2b0] sm:$0xff]
        %v951 = vld [vmem:[%s863 + $0x2b8] sm:$0x3]
        %v952 = vld [vmem:[%s863 + $0x2c0] sm:$0xff]
        %v953 = vld [vmem:[%s863 + $0x2c8] sm:$0xff]
        %v954 = vld [vmem:[%s863 + $0x2d0] sm:$0xff]
        %v955 = vld [vmem:[%s863 + $0x2d8] sm:$0x3]
        %v956 = vld [vmem:[%s863 + $0x2e0] sm:$0xff]
        %v957 = vld [vmem:[%s863 + $0x2e8] sm:$0xff]
        %v958 = vld [vmem:[%s863 + $0x2f0] sm:$0xff]
        %v959 = vld [vmem:[%s863 + $0x2f8] sm:$0x3]
        %v960 = vld [vmem:[%s863 + $0x300] sm:$0xff]
        %v961 = vld [vmem:[%s863 + $0x308] sm:$0xff]
        %v962 = vld [vmem:[%s863 + $0x310] sm:$0xff]
        %v963 = vld [vmem:[%s863 + $0x318] sm:$0x3]
        %v964 = vld [vmem:[%s863 + $0x320] sm:$0xff]
        %v965 = vld [vmem:[%s863 + $0x328] sm:$0xff]
        %v966 = vld [vmem:[%s863 + $0x330] sm:$0xff]
        %v967 = vld [vmem:[%s863 + $0x338] sm:$0x3]
        %s968 = scalar_lea.vmem %s1, 2
        %v969 = vld [vmem:[%s968] sm:$0x1]
        %v971 = vlaneseq
        %v972 = vshrl.u32 %v971, 7
        %v973 = vsub.s32 0, %v972
        %v974 = vrot.slane %v969, %v973
        %v976 = vmul.f32 %v864, %v974
        %v977 = vmul.f32 %v865, %v974
        %v978 = vmul.f32 %v866, %v974
        %v979 = vmul.f32 %v867, %v974
        %v980 = vmul.f32 %v868, %v974
        %v981 = vmul.f32 %v869, %v974
        %v982 = vmul.f32 %v870, %v974
        %v983 = vmul.f32 %v871, %v974
        %v984 = vmul.f32 %v872, %v974
        %v985 = vmul.f32 %v873, %v974
        %v986 = vmul.f32 %v874, %v974
        %v987 = vmul.f32 %v875, %v974
        %v988 = vmul.f32 %v876, %v974
        %v989 = vmul.f32 %v877, %v974
        %v990 = vmul.f32 %v878, %v974
        %v991 = vmul.f32 %v879, %v974
        %v992 = vmul.f32 %v880, %v974
        %v993 = vmul.f32 %v881, %v974
        %v994 = vmul.f32 %v882, %v974
        %v995 = vmul.f32 %v883, %v974
        %v996 = vmul.f32 %v884, %v974
        %v997 = vmul.f32 %v885, %v974
        %v998 = vmul.f32 %v886, %v974
        %v999 = vmul.f32 %v887, %v974
        %v1000 = vmul.f32 %v888, %v974
        %v1001 = vmul.f32 %v889, %v974
        %v1002 = vmul.f32 %v890, %v974
        %v1003 = vmul.f32 %v891, %v974
        %v1004 = vmul.f32 %v892, %v974
        %v1005 = vmul.f32 %v893, %v974
        %v1006 = vmul.f32 %v894, %v974
        %v1007 = vmul.f32 %v895, %v974
        %v1008 = vmul.f32 %v896, %v974
        %v1009 = vmul.f32 %v897, %v974
        %v1010 = vmul.f32 %v898, %v974
        %v1011 = vmul.f32 %v899, %v974
        %v1012 = vmul.f32 %v900, %v974
        %v1013 = vmul.f32 %v901, %v974
        %v1014 = vmul.f32 %v902, %v974
        %v1015 = vmul.f32 %v903, %v974
        %v1016 = vmul.f32 %v904, %v974
        %v1017 = vmul.f32 %v905, %v974
        %v1018 = vmul.f32 %v906, %v974
        %v1019 = vmul.f32 %v907, %v974
        %v1020 = vmul.f32 %v908, %v974
        %v1021 = vmul.f32 %v909, %v974
        %v1022 = vmul.f32 %v910, %v974
        %v1023 = vmul.f32 %v911, %v974
        %v1024 = vmul.f32 %v912, %v974
        %v1025 = vmul.f32 %v913, %v974
        %v1026 = vmul.f32 %v914, %v974
        %v1027 = vmul.f32 %v915, %v974
        %v1028 = vmul.f32 %v916, %v974
        %v1029 = vmul.f32 %v917, %v974
        %v1030 = vmul.f32 %v918, %v974
        %v1031 = vmul.f32 %v919, %v974
        %v1032 = vmul.f32 %v920, %v974
        %v1033 = vmul.f32 %v921, %v974
        %v1034 = vmul.f32 %v922, %v974
        %v1035 = vmul.f32 %v923, %v974
        %v1036 = vmul.f32 %v924, %v974
        %v1037 = vmul.f32 %v925, %v974
        %v1038 = vmul.f32 %v926, %v974
        %v1039 = vmul.f32 %v927, %v974
        %v1040 = vmul.f32 %v928, %v974
        %v1041 = vmul.f32 %v929, %v974
        %v1042 = vmul.f32 %v930, %v974
        %v1043 = vmul.f32 %v931, %v974
        %v1044 = vmul.f32 %v932, %v974
        %v1045 = vmul.f32 %v933, %v974
        %v1046 = vmul.f32 %v934, %v974
        %v1047 = vmul.f32 %v935, %v974
        %v1048 = vmul.f32 %v936, %v974
        %v1049 = vmul.f32 %v937, %v974
        %v1050 = vmul.f32 %v938, %v974
        %v1051 = vmul.f32 %v939, %v974
        %v1052 = vmul.f32 %v940, %v974
        %v1053 = vmul.f32 %v941, %v974
        %v1054 = vmul.f32 %v942, %v974
        %v1055 = vmul.f32 %v943, %v974
        %v1056 = vmul.f32 %v944, %v974
        %v1057 = vmul.f32 %v945, %v974
        %v1058 = vmul.f32 %v946, %v974
        %v1059 = vmul.f32 %v947, %v974
        %v1060 = vmul.f32 %v948, %v974
        %v1061 = vmul.f32 %v949, %v974
        %v1062 = vmul.f32 %v950, %v974
        %v1063 = vmul.f32 %v951, %v974
        %v1064 = vmul.f32 %v952, %v974
        %v1065 = vmul.f32 %v953, %v974
        %v1066 = vmul.f32 %v954, %v974
        %v1067 = vmul.f32 %v955, %v974
        %v1068 = vmul.f32 %v956, %v974
        %v1069 = vmul.f32 %v957, %v974
        %v1070 = vmul.f32 %v958, %v974
        %v1071 = vmul.f32 %v959, %v974
        %v1072 = vmul.f32 %v960, %v974
        %v1073 = vmul.f32 %v961, %v974
        %v1074 = vmul.f32 %v962, %v974
        %v1075 = vmul.f32 %v963, %v974
        %v1076 = vmul.f32 %v964, %v974
        %v1077 = vmul.f32 %v965, %v974
        %v1078 = vmul.f32 %v966, %v974
        %v1079 = vmul.f32 %v967, %v974
        %v1080 = vadd.f32 %v759, %v976
        %v1081 = vadd.f32 %v760, %v977
        %v1082 = vadd.f32 %v761, %v978
        %v1083 = vadd.f32 %v762, %v979
        %v1084 = vadd.f32 %v763, %v980
        %v1085 = vadd.f32 %v764, %v981
        %v1086 = vadd.f32 %v765, %v982
        %v1087 = vadd.f32 %v766, %v983
        %v1088 = vadd.f32 %v767, %v984
        %v1089 = vadd.f32 %v768, %v985
        %v1090 = vadd.f32 %v769, %v986
        %v1091 = vadd.f32 %v770, %v987
        %v1092 = vadd.f32 %v771, %v988
        %v1093 = vadd.f32 %v772, %v989
        %v1094 = vadd.f32 %v773, %v990
        %v1095 = vadd.f32 %v774, %v991
        %v1096 = vadd.f32 %v775, %v992
        %v1097 = vadd.f32 %v776, %v993
        %v1098 = vadd.f32 %v777, %v994
        %v1099 = vadd.f32 %v778, %v995
        %v1100 = vadd.f32 %v779, %v996
        %v1101 = vadd.f32 %v780, %v997
        %v1102 = vadd.f32 %v781, %v998
        %v1103 = vadd.f32 %v782, %v999
        %v1104 = vadd.f32 %v783, %v1000
        %v1105 = vadd.f32 %v784, %v1001
        %v1106 = vadd.f32 %v785, %v1002
        %v1107 = vadd.f32 %v786, %v1003
        %v1108 = vadd.f32 %v787, %v1004
        %v1109 = vadd.f32 %v788, %v1005
        %v1110 = vadd.f32 %v789, %v1006
        %v1111 = vadd.f32 %v790, %v1007
        %v1112 = vadd.f32 %v791, %v1008
        %v1113 = vadd.f32 %v792, %v1009
        %v1114 = vadd.f32 %v793, %v1010
        %v1115 = vadd.f32 %v794, %v1011
        %v1116 = vadd.f32 %v795, %v1012
        %v1117 = vadd.f32 %v796, %v1013
        %v1118 = vadd.f32 %v797, %v1014
        %v1119 = vadd.f32 %v798, %v1015
        %v1120 = vadd.f32 %v799, %v1016
        %v1121 = vadd.f32 %v800, %v1017
        %v1122 = vadd.f32 %v801, %v1018
        %v1123 = vadd.f32 %v802, %v1019
        %v1124 = vadd.f32 %v803, %v1020
        %v1125 = vadd.f32 %v804, %v1021
        %v1126 = vadd.f32 %v805, %v1022
        %v1127 = vadd.f32 %v806, %v1023
        %v1128 = vadd.f32 %v807, %v1024
        %v1129 = vadd.f32 %v808, %v1025
        %v1130 = vadd.f32 %v809, %v1026
        %v1131 = vadd.f32 %v810, %v1027
        %v1132 = vadd.f32 %v811, %v1028
        %v1133 = vadd.f32 %v812, %v1029
        %v1134 = vadd.f32 %v813, %v1030
        %v1135 = vadd.f32 %v814, %v1031
        %v1136 = vadd.f32 %v815, %v1032
        %v1137 = vadd.f32 %v816, %v1033
        %v1138 = vadd.f32 %v817, %v1034
        %v1139 = vadd.f32 %v818, %v1035
        %v1140 = vadd.f32 %v819, %v1036
        %v1141 = vadd.f32 %v820, %v1037
        %v1142 = vadd.f32 %v821, %v1038
        %v1143 = vadd.f32 %v822, %v1039
        %v1144 = vadd.f32 %v823, %v1040
        %v1145 = vadd.f32 %v824, %v1041
        %v1146 = vadd.f32 %v825, %v1042
        %v1147 = vadd.f32 %v826, %v1043
        %v1148 = vadd.f32 %v827, %v1044
        %v1149 = vadd.f32 %v828, %v1045
        %v1150 = vadd.f32 %v829, %v1046
        %v1151 = vadd.f32 %v830, %v1047
        %v1152 = vadd.f32 %v831, %v1048
        %v1153 = vadd.f32 %v832, %v1049
        %v1154 = vadd.f32 %v833, %v1050
        %v1155 = vadd.f32 %v834, %v1051
        %v1156 = vadd.f32 %v835, %v1052
        %v1157 = vadd.f32 %v836, %v1053
        %v1158 = vadd.f32 %v837, %v1054
        %v1159 = vadd.f32 %v838, %v1055
        %v1160 = vadd.f32 %v839, %v1056
        %v1161 = vadd.f32 %v840, %v1057
        %v1162 = vadd.f32 %v841, %v1058
        %v1163 = vadd.f32 %v842, %v1059
        %v1164 = vadd.f32 %v843, %v1060
        %v1165 = vadd.f32 %v844, %v1061
        %v1166 = vadd.f32 %v845, %v1062
        %v1167 = vadd.f32 %v846, %v1063
        %v1168 = vadd.f32 %v847, %v1064
        %v1169 = vadd.f32 %v848, %v1065
        %v1170 = vadd.f32 %v849, %v1066
        %v1171 = vadd.f32 %v850, %v1067
        %v1172 = vadd.f32 %v851, %v1068
        %v1173 = vadd.f32 %v852, %v1069
        %v1174 = vadd.f32 %v853, %v1070
        %v1175 = vadd.f32 %v854, %v1071
        %v1176 = vadd.f32 %v855, %v1072
        %v1177 = vadd.f32 %v856, %v1073
        %v1178 = vadd.f32 %v857, %v1074
        %v1179 = vadd.f32 %v858, %v1075
        %v1180 = vadd.f32 %v859, %v1076
        %v1181 = vadd.f32 %v860, %v1077
        %v1182 = vadd.f32 %v861, %v1078
        %v1183 = vadd.f32 %v862, %v1079
        %v1184 = vld [vmem:[%s222 + $0x1] sm:$0xff]
        %v1185 = vld [vmem:[%s222 + $0x9] sm:$0xff]
        %v1186 = vld [vmem:[%s222 + $0x11] sm:$0xff]
        %v1187 = vld [vmem:[%s222 + $0x19] sm:$0x3]
        %v1188 = vld [vmem:[%s222 + $0x21] sm:$0xff]
        %v1189 = vld [vmem:[%s222 + $0x29] sm:$0xff]
        %v1190 = vld [vmem:[%s222 + $0x31] sm:$0xff]
        %v1191 = vld [vmem:[%s222 + $0x39] sm:$0x3]
        %v1192 = vld [vmem:[%s222 + $0x41] sm:$0xff]
        %v1193 = vld [vmem:[%s222 + $0x49] sm:$0xff]
        %v1194 = vld [vmem:[%s222 + $0x51] sm:$0xff]
        %v1195 = vld [vmem:[%s222 + $0x59] sm:$0x3]
        %v1196 = vld [vmem:[%s222 + $0x61] sm:$0xff]
        %v1197 = vld [vmem:[%s222 + $0x69] sm:$0xff]
        %v1198 = vld [vmem:[%s222 + $0x71] sm:$0xff]
        %v1199 = vld [vmem:[%s222 + $0x79] sm:$0x3]
        %v1200 = vld [vmem:[%s222 + $0x81] sm:$0xff]
        %v1201 = vld [vmem:[%s222 + $0x89] sm:$0xff]
        %v1202 = vld [vmem:[%s222 + $0x91] sm:$0xff]
        %v1203 = vld [vmem:[%s222 + $0x99] sm:$0x3]
        %v1204 = vld [vmem:[%s222 + $0xa1] sm:$0xff]
        %v1205 = vld [vmem:[%s222 + $0xa9] sm:$0xff]
        %v1206 = vld [vmem:[%s222 + $0xb1] sm:$0xff]
        %v1207 = vld [vmem:[%s222 + $0xb9] sm:$0x3]
        %v1208 = vld [vmem:[%s222 + $0xc1] sm:$0xff]
        %v1209 = vld [vmem:[%s222 + $0xc9] sm:$0xff]
        %v1210 = vld [vmem:[%s222 + $0xd1] sm:$0xff]
        %v1211 = vld [vmem:[%s222 + $0xd9] sm:$0x3]
        %v1212 = vld [vmem:[%s222 + $0xe1] sm:$0xff]
        %v1213 = vld [vmem:[%s222 + $0xe9] sm:$0xff]
        %v1214 = vld [vmem:[%s222 + $0xf1] sm:$0xff]
        %v1215 = vld [vmem:[%s222 + $0xf9] sm:$0x3]
        %v1216 = vld [vmem:[%s222 + $0x101] sm:$0xff]
        %v1217 = vld [vmem:[%s222 + $0x109] sm:$0xff]
        %v1218 = vld [vmem:[%s222 + $0x111] sm:$0xff]
        %v1219 = vld [vmem:[%s222 + $0x119] sm:$0x3]
        %v1220 = vld [vmem:[%s222 + $0x121] sm:$0xff]
        %v1221 = vld [vmem:[%s222 + $0x129] sm:$0xff]
        %v1222 = vld [vmem:[%s222 + $0x131] sm:$0xff]
        %v1223 = vld [vmem:[%s222 + $0x139] sm:$0x3]
        %v1224 = vld [vmem:[%s222 + $0x141] sm:$0xff]
        %v1225 = vld [vmem:[%s222 + $0x149] sm:$0xff]
        %v1226 = vld [vmem:[%s222 + $0x151] sm:$0xff]
        %v1227 = vld [vmem:[%s222 + $0x159] sm:$0x3]
        %v1228 = vld [vmem:[%s222 + $0x161] sm:$0xff]
        %v1229 = vld [vmem:[%s222 + $0x169] sm:$0xff]
        %v1230 = vld [vmem:[%s222 + $0x171] sm:$0xff]
        %v1231 = vld [vmem:[%s222 + $0x179] sm:$0x3]
        %v1232 = vld [vmem:[%s222 + $0x181] sm:$0xff]
        %v1233 = vld [vmem:[%s222 + $0x189] sm:$0xff]
        %v1234 = vld [vmem:[%s222 + $0x191] sm:$0xff]
        %v1235 = vld [vmem:[%s222 + $0x199] sm:$0x3]
        %v1236 = vld [vmem:[%s222 + $0x1a1] sm:$0xff]
        %v1237 = vld [vmem:[%s222 + $0x1a9] sm:$0xff]
        %v1238 = vld [vmem:[%s222 + $0x1b1] sm:$0xff]
        %v1239 = vld [vmem:[%s222 + $0x1b9] sm:$0x3]
        %v1240 = vld [vmem:[%s222 + $0x1c1] sm:$0xff]
        %v1241 = vld [vmem:[%s222 + $0x1c9] sm:$0xff]
        %v1242 = vld [vmem:[%s222 + $0x1d1] sm:$0xff]
        %v1243 = vld [vmem:[%s222 + $0x1d9] sm:$0x3]
        %v1244 = vld [vmem:[%s222 + $0x1e1] sm:$0xff]
        %v1245 = vld [vmem:[%s222 + $0x1e9] sm:$0xff]
        %v1246 = vld [vmem:[%s222 + $0x1f1] sm:$0xff]
        %v1247 = vld [vmem:[%s222 + $0x1f9] sm:$0x3]
        %v1248 = vld [vmem:[%s222 + $0x201] sm:$0xff]
        %v1249 = vld [vmem:[%s222 + $0x209] sm:$0xff]
        %v1250 = vld [vmem:[%s222 + $0x211] sm:$0xff]
        %v1251 = vld [vmem:[%s222 + $0x219] sm:$0x3]
        %v1252 = vld [vmem:[%s222 + $0x221] sm:$0xff]
        %v1253 = vld [vmem:[%s222 + $0x229] sm:$0xff]
        %v1254 = vld [vmem:[%s222 + $0x231] sm:$0xff]
        %v1255 = vld [vmem:[%s222 + $0x239] sm:$0x3]
        %v1256 = vld [vmem:[%s222 + $0x241] sm:$0xff]
        %v1257 = vld [vmem:[%s222 + $0x249] sm:$0xff]
        %v1258 = vld [vmem:[%s222 + $0x251] sm:$0xff]
        %v1259 = vld [vmem:[%s222 + $0x259] sm:$0x3]
        %v1260 = vld [vmem:[%s222 + $0x261] sm:$0xff]
        %v1261 = vld [vmem:[%s222 + $0x269] sm:$0xff]
        %v1262 = vld [vmem:[%s222 + $0x271] sm:$0xff]
        %v1263 = vld [vmem:[%s222 + $0x279] sm:$0x3]
        %v1264 = vld [vmem:[%s222 + $0x281] sm:$0xff]
        %v1265 = vld [vmem:[%s222 + $0x289] sm:$0xff]
        %v1266 = vld [vmem:[%s222 + $0x291] sm:$0xff]
        %v1267 = vld [vmem:[%s222 + $0x299] sm:$0x3]
        %v1268 = vld [vmem:[%s222 + $0x2a1] sm:$0xff]
        %v1269 = vld [vmem:[%s222 + $0x2a9] sm:$0xff]
        %v1270 = vld [vmem:[%s222 + $0x2b1] sm:$0xff]
        %v1271 = vld [vmem:[%s222 + $0x2b9] sm:$0x3]
        %v1272 = vld [vmem:[%s222 + $0x2c1] sm:$0xff]
        %v1273 = vld [vmem:[%s222 + $0x2c9] sm:$0xff]
        %v1274 = vld [vmem:[%s222 + $0x2d1] sm:$0xff]
        %v1275 = vld [vmem:[%s222 + $0x2d9] sm:$0x3]
        %v1276 = vld [vmem:[%s222 + $0x2e1] sm:$0xff]
        %v1277 = vld [vmem:[%s222 + $0x2e9] sm:$0xff]
        %v1278 = vld [vmem:[%s222 + $0x2f1] sm:$0xff]
        %v1279 = vld [vmem:[%s222 + $0x2f9] sm:$0x3]
        %v1280 = vld [vmem:[%s222 + $0x301] sm:$0xff]
        %v1281 = vld [vmem:[%s222 + $0x309] sm:$0xff]
        %v1282 = vld [vmem:[%s222 + $0x311] sm:$0xff]
        %v1283 = vld [vmem:[%s222 + $0x319] sm:$0x3]
        %v1284 = vld [vmem:[%s222 + $0x321] sm:$0xff]
        %v1285 = vld [vmem:[%s222 + $0x329] sm:$0xff]
        %v1286 = vld [vmem:[%s222 + $0x331] sm:$0xff]
        %v1287 = vld [vmem:[%s222 + $0x339] sm:$0x3]
        %s1288 = scalar_lea.vmem %s1, 3
        %v1289 = vld [vmem:[%s1288] sm:$0x1]
        %v1291 = vlaneseq
        %v1292 = vshrl.u32 %v1291, 7
        %v1293 = vsub.s32 0, %v1292
        %v1294 = vrot.slane %v1289, %v1293
        %v1296 = vmul.f32 %v1184, %v1294
        %v1297 = vmul.f32 %v1185, %v1294
        %v1298 = vmul.f32 %v1186, %v1294
        %v1299 = vmul.f32 %v1187, %v1294
        %v1300 = vmul.f32 %v1188, %v1294
        %v1301 = vmul.f32 %v1189, %v1294
        %v1302 = vmul.f32 %v1190, %v1294
        %v1303 = vmul.f32 %v1191, %v1294
        %v1304 = vmul.f32 %v1192, %v1294
        %v1305 = vmul.f32 %v1193, %v1294
        %v1306 = vmul.f32 %v1194, %v1294
        %v1307 = vmul.f32 %v1195, %v1294
        %v1308 = vmul.f32 %v1196, %v1294
        %v1309 = vmul.f32 %v1197, %v1294
        %v1310 = vmul.f32 %v1198, %v1294
        %v1311 = vmul.f32 %v1199, %v1294
        %v1312 = vmul.f32 %v1200, %v1294
        %v1313 = vmul.f32 %v1201, %v1294
        %v1314 = vmul.f32 %v1202, %v1294
        %v1315 = vmul.f32 %v1203, %v1294
        %v1316 = vmul.f32 %v1204, %v1294
        %v1317 = vmul.f32 %v1205, %v1294
        %v1318 = vmul.f32 %v1206, %v1294
        %v1319 = vmul.f32 %v1207, %v1294
        %v1320 = vmul.f32 %v1208, %v1294
        %v1321 = vmul.f32 %v1209, %v1294
        %v1322 = vmul.f32 %v1210, %v1294
        %v1323 = vmul.f32 %v1211, %v1294
        %v1324 = vmul.f32 %v1212, %v1294
        %v1325 = vmul.f32 %v1213, %v1294
        %v1326 = vmul.f32 %v1214, %v1294
        %v1327 = vmul.f32 %v1215, %v1294
        %v1328 = vmul.f32 %v1216, %v1294
        %v1329 = vmul.f32 %v1217, %v1294
        %v1330 = vmul.f32 %v1218, %v1294
        %v1331 = vmul.f32 %v1219, %v1294
        %v1332 = vmul.f32 %v1220, %v1294
        %v1333 = vmul.f32 %v1221, %v1294
        %v1334 = vmul.f32 %v1222, %v1294
        %v1335 = vmul.f32 %v1223, %v1294
        %v1336 = vmul.f32 %v1224, %v1294
        %v1337 = vmul.f32 %v1225, %v1294
        %v1338 = vmul.f32 %v1226, %v1294
        %v1339 = vmul.f32 %v1227, %v1294
        %v1340 = vmul.f32 %v1228, %v1294
        %v1341 = vmul.f32 %v1229, %v1294
        %v1342 = vmul.f32 %v1230, %v1294
        %v1343 = vmul.f32 %v1231, %v1294
        %v1344 = vmul.f32 %v1232, %v1294
        %v1345 = vmul.f32 %v1233, %v1294
        %v1346 = vmul.f32 %v1234, %v1294
        %v1347 = vmul.f32 %v1235, %v1294
        %v1348 = vmul.f32 %v1236, %v1294
        %v1349 = vmul.f32 %v1237, %v1294
        %v1350 = vmul.f32 %v1238, %v1294
        %v1351 = vmul.f32 %v1239, %v1294
        %v1352 = vmul.f32 %v1240, %v1294
        %v1353 = vmul.f32 %v1241, %v1294
        %v1354 = vmul.f32 %v1242, %v1294
        %v1355 = vmul.f32 %v1243, %v1294
        %v1356 = vmul.f32 %v1244, %v1294
        %v1357 = vmul.f32 %v1245, %v1294
        %v1358 = vmul.f32 %v1246, %v1294
        %v1359 = vmul.f32 %v1247, %v1294
        %v1360 = vmul.f32 %v1248, %v1294
        %v1361 = vmul.f32 %v1249, %v1294
        %v1362 = vmul.f32 %v1250, %v1294
        %v1363 = vmul.f32 %v1251, %v1294
        %v1364 = vmul.f32 %v1252, %v1294
        %v1365 = vmul.f32 %v1253, %v1294
        %v1366 = vmul.f32 %v1254, %v1294
        %v1367 = vmul.f32 %v1255, %v1294
        %v1368 = vmul.f32 %v1256, %v1294
        %v1369 = vmul.f32 %v1257, %v1294
        %v1370 = vmul.f32 %v1258, %v1294
        %v1371 = vmul.f32 %v1259, %v1294
        %v1372 = vmul.f32 %v1260, %v1294
        %v1373 = vmul.f32 %v1261, %v1294
        %v1374 = vmul.f32 %v1262, %v1294
        %v1375 = vmul.f32 %v1263, %v1294
        %v1376 = vmul.f32 %v1264, %v1294
        %v1377 = vmul.f32 %v1265, %v1294
        %v1378 = vmul.f32 %v1266, %v1294
        %v1379 = vmul.f32 %v1267, %v1294
        %v1380 = vmul.f32 %v1268, %v1294
        %v1381 = vmul.f32 %v1269, %v1294
        %v1382 = vmul.f32 %v1270, %v1294
        %v1383 = vmul.f32 %v1271, %v1294
        %v1384 = vmul.f32 %v1272, %v1294
        %v1385 = vmul.f32 %v1273, %v1294
        %v1386 = vmul.f32 %v1274, %v1294
        %v1387 = vmul.f32 %v1275, %v1294
        %v1388 = vmul.f32 %v1276, %v1294
        %v1389 = vmul.f32 %v1277, %v1294
        %v1390 = vmul.f32 %v1278, %v1294
        %v1391 = vmul.f32 %v1279, %v1294
        %v1392 = vmul.f32 %v1280, %v1294
        %v1393 = vmul.f32 %v1281, %v1294
        %v1394 = vmul.f32 %v1282, %v1294
        %v1395 = vmul.f32 %v1283, %v1294
        %v1396 = vmul.f32 %v1284, %v1294
        %v1397 = vmul.f32 %v1285, %v1294
        %v1398 = vmul.f32 %v1286, %v1294
        %v1399 = vmul.f32 %v1287, %v1294
        %v1400 = vadd.f32 %v1080, %v1296
        %v1401 = vadd.f32 %v1081, %v1297
        %v1402 = vadd.f32 %v1082, %v1298
        %v1403 = vadd.f32 %v1083, %v1299
        %v1404 = vadd.f32 %v1084, %v1300
        %v1405 = vadd.f32 %v1085, %v1301
        %v1406 = vadd.f32 %v1086, %v1302
        %v1407 = vadd.f32 %v1087, %v1303
        %v1408 = vadd.f32 %v1088, %v1304
        %v1409 = vadd.f32 %v1089, %v1305
        %v1410 = vadd.f32 %v1090, %v1306
        %v1411 = vadd.f32 %v1091, %v1307
        %v1412 = vadd.f32 %v1092, %v1308
        %v1413 = vadd.f32 %v1093, %v1309
        %v1414 = vadd.f32 %v1094, %v1310
        %v1415 = vadd.f32 %v1095, %v1311
        %v1416 = vadd.f32 %v1096, %v1312
        %v1417 = vadd.f32 %v1097, %v1313
        %v1418 = vadd.f32 %v1098, %v1314
        %v1419 = vadd.f32 %v1099, %v1315
        %v1420 = vadd.f32 %v1100, %v1316
        %v1421 = vadd.f32 %v1101, %v1317
        %v1422 = vadd.f32 %v1102, %v1318
        %v1423 = vadd.f32 %v1103, %v1319
        %v1424 = vadd.f32 %v1104, %v1320
        %v1425 = vadd.f32 %v1105, %v1321
        %v1426 = vadd.f32 %v1106, %v1322
        %v1427 = vadd.f32 %v1107, %v1323
        %v1428 = vadd.f32 %v1108, %v1324
        %v1429 = vadd.f32 %v1109, %v1325
        %v1430 = vadd.f32 %v1110, %v1326
        %v1431 = vadd.f32 %v1111, %v1327
        %v1432 = vadd.f32 %v1112, %v1328
        %v1433 = vadd.f32 %v1113, %v1329
        %v1434 = vadd.f32 %v1114, %v1330
        %v1435 = vadd.f32 %v1115, %v1331
        %v1436 = vadd.f32 %v1116, %v1332
        %v1437 = vadd.f32 %v1117, %v1333
        %v1438 = vadd.f32 %v1118, %v1334
        %v1439 = vadd.f32 %v1119, %v1335
        %v1440 = vadd.f32 %v1120, %v1336
        %v1441 = vadd.f32 %v1121, %v1337
        %v1442 = vadd.f32 %v1122, %v1338
        %v1443 = vadd.f32 %v1123, %v1339
        %v1444 = vadd.f32 %v1124, %v1340
        %v1445 = vadd.f32 %v1125, %v1341
        %v1446 = vadd.f32 %v1126, %v1342
        %v1447 = vadd.f32 %v1127, %v1343
        %v1448 = vadd.f32 %v1128, %v1344
        %v1449 = vadd.f32 %v1129, %v1345
        %v1450 = vadd.f32 %v1130, %v1346
        %v1451 = vadd.f32 %v1131, %v1347
        %v1452 = vadd.f32 %v1132, %v1348
        %v1453 = vadd.f32 %v1133, %v1349
        %v1454 = vadd.f32 %v1134, %v1350
        %v1455 = vadd.f32 %v1135, %v1351
        %v1456 = vadd.f32 %v1136, %v1352
        %v1457 = vadd.f32 %v1137, %v1353
        %v1458 = vadd.f32 %v1138, %v1354
        %v1459 = vadd.f32 %v1139, %v1355
        %v1460 = vadd.f32 %v1140, %v1356
        %v1461 = vadd.f32 %v1141, %v1357
        %v1462 = vadd.f32 %v1142, %v1358
        %v1463 = vadd.f32 %v1143, %v1359
        %v1464 = vadd.f32 %v1144, %v1360
        %v1465 = vadd.f32 %v1145, %v1361
        %v1466 = vadd.f32 %v1146, %v1362
        %v1467 = vadd.f32 %v1147, %v1363
        %v1468 = vadd.f32 %v1148, %v1364
        %v1469 = vadd.f32 %v1149, %v1365
        %v1470 = vadd.f32 %v1150, %v1366
        %v1471 = vadd.f32 %v1151, %v1367
        %v1472 = vadd.f32 %v1152, %v1368
        %v1473 = vadd.f32 %v1153, %v1369
        %v1474 = vadd.f32 %v1154, %v1370
        %v1475 = vadd.f32 %v1155, %v1371
        %v1476 = vadd.f32 %v1156, %v1372
        %v1477 = vadd.f32 %v1157, %v1373
        %v1478 = vadd.f32 %v1158, %v1374
        %v1479 = vadd.f32 %v1159, %v1375
        %v1480 = vadd.f32 %v1160, %v1376
        %v1481 = vadd.f32 %v1161, %v1377
        %v1482 = vadd.f32 %v1162, %v1378
        %v1483 = vadd.f32 %v1163, %v1379
        %v1484 = vadd.f32 %v1164, %v1380
        %v1485 = vadd.f32 %v1165, %v1381
        %v1486 = vadd.f32 %v1166, %v1382
        %v1487 = vadd.f32 %v1167, %v1383
        %v1488 = vadd.f32 %v1168, %v1384
        %v1489 = vadd.f32 %v1169, %v1385
        %v1490 = vadd.f32 %v1170, %v1386
        %v1491 = vadd.f32 %v1171, %v1387
        %v1492 = vadd.f32 %v1172, %v1388
        %v1493 = vadd.f32 %v1173, %v1389
        %v1494 = vadd.f32 %v1174, %v1390
        %v1495 = vadd.f32 %v1175, %v1391
        %v1496 = vadd.f32 %v1176, %v1392
        %v1497 = vadd.f32 %v1177, %v1393
        %v1498 = vadd.f32 %v1178, %v1394
        %v1499 = vadd.f32 %v1179, %v1395
        %v1500 = vadd.f32 %v1180, %v1396
        %v1501 = vadd.f32 %v1181, %v1397
        %v1502 = vadd.f32 %v1182, %v1398
        %v1503 = vadd.f32 %v1183, %v1399
        %v1504 = vld [vmem:[%s542 + $0x1] sm:$0xff]
        %v1505 = vld [vmem:[%s542 + $0x9] sm:$0xff]
        %v1506 = vld [vmem:[%s542 + $0x11] sm:$0xff]
        %v1507 = vld [vmem:[%s542 + $0x19] sm:$0x3]
        %v1508 = vld [vmem:[%s542 + $0x21] sm:$0xff]
        %v1509 = vld [vmem:[%s542 + $0x29] sm:$0xff]
        %v1510 = vld [vmem:[%s542 + $0x31] sm:$0xff]
        %v1511 = vld [vmem:[%s542 + $0x39] sm:$0x3]
        %v1512 = vld [vmem:[%s542 + $0x41] sm:$0xff]
        %v1513 = vld [vmem:[%s542 + $0x49] sm:$0xff]
        %v1514 = vld [vmem:[%s542 + $0x51] sm:$0xff]
        %v1515 = vld [vmem:[%s542 + $0x59] sm:$0x3]
        %v1516 = vld [vmem:[%s542 + $0x61] sm:$0xff]
        %v1517 = vld [vmem:[%s542 + $0x69] sm:$0xff]
        %v1518 = vld [vmem:[%s542 + $0x71] sm:$0xff]
        %v1519 = vld [vmem:[%s542 + $0x79] sm:$0x3]
        %v1520 = vld [vmem:[%s542 + $0x81] sm:$0xff]
        %v1521 = vld [vmem:[%s542 + $0x89] sm:$0xff]
        %v1522 = vld [vmem:[%s542 + $0x91] sm:$0xff]
        %v1523 = vld [vmem:[%s542 + $0x99] sm:$0x3]
        %v1524 = vld [vmem:[%s542 + $0xa1] sm:$0xff]
        %v1525 = vld [vmem:[%s542 + $0xa9] sm:$0xff]
        %v1526 = vld [vmem:[%s542 + $0xb1] sm:$0xff]
        %v1527 = vld [vmem:[%s542 + $0xb9] sm:$0x3]
        %v1528 = vld [vmem:[%s542 + $0xc1] sm:$0xff]
        %v1529 = vld [vmem:[%s542 + $0xc9] sm:$0xff]
        %v1530 = vld [vmem:[%s542 + $0xd1] sm:$0xff]
        %v1531 = vld [vmem:[%s542 + $0xd9] sm:$0x3]
        %v1532 = vld [vmem:[%s542 + $0xe1] sm:$0xff]
        %v1533 = vld [vmem:[%s542 + $0xe9] sm:$0xff]
        %v1534 = vld [vmem:[%s542 + $0xf1] sm:$0xff]
        %v1535 = vld [vmem:[%s542 + $0xf9] sm:$0x3]
        %v1536 = vld [vmem:[%s542 + $0x101] sm:$0xff]
        %v1537 = vld [vmem:[%s542 + $0x109] sm:$0xff]
        %v1538 = vld [vmem:[%s542 + $0x111] sm:$0xff]
        %v1539 = vld [vmem:[%s542 + $0x119] sm:$0x3]
        %v1540 = vld [vmem:[%s542 + $0x121] sm:$0xff]
        %v1541 = vld [vmem:[%s542 + $0x129] sm:$0xff]
        %v1542 = vld [vmem:[%s542 + $0x131] sm:$0xff]
        %v1543 = vld [vmem:[%s542 + $0x139] sm:$0x3]
        %v1544 = vld [vmem:[%s542 + $0x141] sm:$0xff]
        %v1545 = vld [vmem:[%s542 + $0x149] sm:$0xff]
        %v1546 = vld [vmem:[%s542 + $0x151] sm:$0xff]
        %v1547 = vld [vmem:[%s542 + $0x159] sm:$0x3]
        %v1548 = vld [vmem:[%s542 + $0x161] sm:$0xff]
        %v1549 = vld [vmem:[%s542 + $0x169] sm:$0xff]
        %v1550 = vld [vmem:[%s542 + $0x171] sm:$0xff]
        %v1551 = vld [vmem:[%s542 + $0x179] sm:$0x3]
        %v1552 = vld [vmem:[%s542 + $0x181] sm:$0xff]
        %v1553 = vld [vmem:[%s542 + $0x189] sm:$0xff]
        %v1554 = vld [vmem:[%s542 + $0x191] sm:$0xff]
        %v1555 = vld [vmem:[%s542 + $0x199] sm:$0x3]
        %v1556 = vld [vmem:[%s542 + $0x1a1] sm:$0xff]
        %v1557 = vld [vmem:[%s542 + $0x1a9] sm:$0xff]
        %v1558 = vld [vmem:[%s542 + $0x1b1] sm:$0xff]
        %v1559 = vld [vmem:[%s542 + $0x1b9] sm:$0x3]
        %v1560 = vld [vmem:[%s542 + $0x1c1] sm:$0xff]
        %v1561 = vld [vmem:[%s542 + $0x1c9] sm:$0xff]
        %v1562 = vld [vmem:[%s542 + $0x1d1] sm:$0xff]
        %v1563 = vld [vmem:[%s542 + $0x1d9] sm:$0x3]
        %v1564 = vld [vmem:[%s542 + $0x1e1] sm:$0xff]
        %v1565 = vld [vmem:[%s542 + $0x1e9] sm:$0xff]
        %v1566 = vld [vmem:[%s542 + $0x1f1] sm:$0xff]
        %v1567 = vld [vmem:[%s542 + $0x1f9] sm:$0x3]
        %v1568 = vld [vmem:[%s542 + $0x201] sm:$0xff]
        %v1569 = vld [vmem:[%s542 + $0x209] sm:$0xff]
        %v1570 = vld [vmem:[%s542 + $0x211] sm:$0xff]
        %v1571 = vld [vmem:[%s542 + $0x219] sm:$0x3]
        %v1572 = vld [vmem:[%s542 + $0x221] sm:$0xff]
        %v1573 = vld [vmem:[%s542 + $0x229] sm:$0xff]
        %v1574 = vld [vmem:[%s542 + $0x231] sm:$0xff]
        %v1575 = vld [vmem:[%s542 + $0x239] sm:$0x3]
        %v1576 = vld [vmem:[%s542 + $0x241] sm:$0xff]
        %v1577 = vld [vmem:[%s542 + $0x249] sm:$0xff]
        %v1578 = vld [vmem:[%s542 + $0x251] sm:$0xff]
        %v1579 = vld [vmem:[%s542 + $0x259] sm:$0x3]
        %v1580 = vld [vmem:[%s542 + $0x261] sm:$0xff]
        %v1581 = vld [vmem:[%s542 + $0x269] sm:$0xff]
        %v1582 = vld [vmem:[%s542 + $0x271] sm:$0xff]
        %v1583 = vld [vmem:[%s542 + $0x279] sm:$0x3]
        %v1584 = vld [vmem:[%s542 + $0x281] sm:$0xff]
        %v1585 = vld [vmem:[%s542 + $0x289] sm:$0xff]
        %v1586 = vld [vmem:[%s542 + $0x291] sm:$0xff]
        %v1587 = vld [vmem:[%s542 + $0x299] sm:$0x3]
        %v1588 = vld [vmem:[%s542 + $0x2a1] sm:$0xff]
        %v1589 = vld [vmem:[%s542 + $0x2a9] sm:$0xff]
        %v1590 = vld [vmem:[%s542 + $0x2b1] sm:$0xff]
        %v1591 = vld [vmem:[%s542 + $0x2b9] sm:$0x3]
        %v1592 = vld [vmem:[%s542 + $0x2c1] sm:$0xff]
        %v1593 = vld [vmem:[%s542 + $0x2c9] sm:$0xff]
        %v1594 = vld [vmem:[%s542 + $0x2d1] sm:$0xff]
        %v1595 = vld [vmem:[%s542 + $0x2d9] sm:$0x3]
        %v1596 = vld [vmem:[%s542 + $0x2e1] sm:$0xff]
        %v1597 = vld [vmem:[%s542 + $0x2e9] sm:$0xff]
        %v1598 = vld [vmem:[%s542 + $0x2f1] sm:$0xff]
        %v1599 = vld [vmem:[%s542 + $0x2f9] sm:$0x3]
        %v1600 = vld [vmem:[%s542 + $0x301] sm:$0xff]
        %v1601 = vld [vmem:[%s542 + $0x309] sm:$0xff]
        %v1602 = vld [vmem:[%s542 + $0x311] sm:$0xff]
        %v1603 = vld [vmem:[%s542 + $0x319] sm:$0x3]
        %v1604 = vld [vmem:[%s542 + $0x321] sm:$0xff]
        %v1605 = vld [vmem:[%s542 + $0x329] sm:$0xff]
        %v1606 = vld [vmem:[%s542 + $0x331] sm:$0xff]
        %v1607 = vld [vmem:[%s542 + $0x339] sm:$0x3]
        %s1608 = scalar_lea.vmem %s1, 4
        %v1609 = vld [vmem:[%s1608] sm:$0x1]
        %v1611 = vlaneseq
        %v1612 = vshrl.u32 %v1611, 7
        %v1613 = vsub.s32 0, %v1612
        %v1614 = vrot.slane %v1609, %v1613
        %v1616 = vmul.f32 %v1504, %v1614
        %v1617 = vmul.f32 %v1505, %v1614
        %v1618 = vmul.f32 %v1506, %v1614
        %v1619 = vmul.f32 %v1507, %v1614
        %v1620 = vmul.f32 %v1508, %v1614
        %v1621 = vmul.f32 %v1509, %v1614
        %v1622 = vmul.f32 %v1510, %v1614
        %v1623 = vmul.f32 %v1511, %v1614
        %v1624 = vmul.f32 %v1512, %v1614
        %v1625 = vmul.f32 %v1513, %v1614
        %v1626 = vmul.f32 %v1514, %v1614
        %v1627 = vmul.f32 %v1515, %v1614
        %v1628 = vmul.f32 %v1516, %v1614
        %v1629 = vmul.f32 %v1517, %v1614
        %v1630 = vmul.f32 %v1518, %v1614
        %v1631 = vmul.f32 %v1519, %v1614
        %v1632 = vmul.f32 %v1520, %v1614
        %v1633 = vmul.f32 %v1521, %v1614
        %v1634 = vmul.f32 %v1522, %v1614
        %v1635 = vmul.f32 %v1523, %v1614
        %v1636 = vmul.f32 %v1524, %v1614
        %v1637 = vmul.f32 %v1525, %v1614
        %v1638 = vmul.f32 %v1526, %v1614
        %v1639 = vmul.f32 %v1527, %v1614
        %v1640 = vmul.f32 %v1528, %v1614
        %v1641 = vmul.f32 %v1529, %v1614
        %v1642 = vmul.f32 %v1530, %v1614
        %v1643 = vmul.f32 %v1531, %v1614
        %v1644 = vmul.f32 %v1532, %v1614
        %v1645 = vmul.f32 %v1533, %v1614
        %v1646 = vmul.f32 %v1534, %v1614
        %v1647 = vmul.f32 %v1535, %v1614
        %v1648 = vmul.f32 %v1536, %v1614
        %v1649 = vmul.f32 %v1537, %v1614
        %v1650 = vmul.f32 %v1538, %v1614
        %v1651 = vmul.f32 %v1539, %v1614
        %v1652 = vmul.f32 %v1540, %v1614
        %v1653 = vmul.f32 %v1541, %v1614
        %v1654 = vmul.f32 %v1542, %v1614
        %v1655 = vmul.f32 %v1543, %v1614
        %v1656 = vmul.f32 %v1544, %v1614
        %v1657 = vmul.f32 %v1545, %v1614
        %v1658 = vmul.f32 %v1546, %v1614
        %v1659 = vmul.f32 %v1547, %v1614
        %v1660 = vmul.f32 %v1548, %v1614
        %v1661 = vmul.f32 %v1549, %v1614
        %v1662 = vmul.f32 %v1550, %v1614
        %v1663 = vmul.f32 %v1551, %v1614
        %v1664 = vmul.f32 %v1552, %v1614
        %v1665 = vmul.f32 %v1553, %v1614
        %v1666 = vmul.f32 %v1554, %v1614
        %v1667 = vmul.f32 %v1555, %v1614
        %v1668 = vmul.f32 %v1556, %v1614
        %v1669 = vmul.f32 %v1557, %v1614
        %v1670 = vmul.f32 %v1558, %v1614
        %v1671 = vmul.f32 %v1559, %v1614
        %v1672 = vmul.f32 %v1560, %v1614
        %v1673 = vmul.f32 %v1561, %v1614
        %v1674 = vmul.f32 %v1562, %v1614
        %v1675 = vmul.f32 %v1563, %v1614
        %v1676 = vmul.f32 %v1564, %v1614
        %v1677 = vmul.f32 %v1565, %v1614
        %v1678 = vmul.f32 %v1566, %v1614
        %v1679 = vmul.f32 %v1567, %v1614
        %v1680 = vmul.f32 %v1568, %v1614
        %v1681 = vmul.f32 %v1569, %v1614
        %v1682 = vmul.f32 %v1570, %v1614
        %v1683 = vmul.f32 %v1571, %v1614
        %v1684 = vmul.f32 %v1572, %v1614
        %v1685 = vmul.f32 %v1573, %v1614
        %v1686 = vmul.f32 %v1574, %v1614
        %v1687 = vmul.f32 %v1575, %v1614
        %v1688 = vmul.f32 %v1576, %v1614
        %v1689 = vmul.f32 %v1577, %v1614
        %v1690 = vmul.f32 %v1578, %v1614
        %v1691 = vmul.f32 %v1579, %v1614
        %v1692 = vmul.f32 %v1580, %v1614
        %v1693 = vmul.f32 %v1581, %v1614
        %v1694 = vmul.f32 %v1582, %v1614
        %v1695 = vmul.f32 %v1583, %v1614
        %v1696 = vmul.f32 %v1584, %v1614
        %v1697 = vmul.f32 %v1585, %v1614
        %v1698 = vmul.f32 %v1586, %v1614
        %v1699 = vmul.f32 %v1587, %v1614
        %v1700 = vmul.f32 %v1588, %v1614
        %v1701 = vmul.f32 %v1589, %v1614
        %v1702 = vmul.f32 %v1590, %v1614
        %v1703 = vmul.f32 %v1591, %v1614
        %v1704 = vmul.f32 %v1592, %v1614
        %v1705 = vmul.f32 %v1593, %v1614
        %v1706 = vmul.f32 %v1594, %v1614
        %v1707 = vmul.f32 %v1595, %v1614
        %v1708 = vmul.f32 %v1596, %v1614
        %v1709 = vmul.f32 %v1597, %v1614
        %v1710 = vmul.f32 %v1598, %v1614
        %v1711 = vmul.f32 %v1599, %v1614
        %v1712 = vmul.f32 %v1600, %v1614
        %v1713 = vmul.f32 %v1601, %v1614
        %v1714 = vmul.f32 %v1602, %v1614
        %v1715 = vmul.f32 %v1603, %v1614
        %v1716 = vmul.f32 %v1604, %v1614
        %v1717 = vmul.f32 %v1605, %v1614
        %v1718 = vmul.f32 %v1606, %v1614
        %v1719 = vmul.f32 %v1607, %v1614
        %v1720 = vadd.f32 %v1400, %v1616
        %v1721 = vadd.f32 %v1401, %v1617
        %v1722 = vadd.f32 %v1402, %v1618
        %v1723 = vadd.f32 %v1403, %v1619
        %v1724 = vadd.f32 %v1404, %v1620
        %v1725 = vadd.f32 %v1405, %v1621
        %v1726 = vadd.f32 %v1406, %v1622
        %v1727 = vadd.f32 %v1407, %v1623
        %v1728 = vadd.f32 %v1408, %v1624
        %v1729 = vadd.f32 %v1409, %v1625
        %v1730 = vadd.f32 %v1410, %v1626
        %v1731 = vadd.f32 %v1411, %v1627
        %v1732 = vadd.f32 %v1412, %v1628
        %v1733 = vadd.f32 %v1413, %v1629
        %v1734 = vadd.f32 %v1414, %v1630
        %v1735 = vadd.f32 %v1415, %v1631
        %v1736 = vadd.f32 %v1416, %v1632
        %v1737 = vadd.f32 %v1417, %v1633
        %v1738 = vadd.f32 %v1418, %v1634
        %v1739 = vadd.f32 %v1419, %v1635
        %v1740 = vadd.f32 %v1420, %v1636
        %v1741 = vadd.f32 %v1421, %v1637
        %v1742 = vadd.f32 %v1422, %v1638
        %v1743 = vadd.f32 %v1423, %v1639
        %v1744 = vadd.f32 %v1424, %v1640
        %v1745 = vadd.f32 %v1425, %v1641
        %v1746 = vadd.f32 %v1426, %v1642
        %v1747 = vadd.f32 %v1427, %v1643
        %v1748 = vadd.f32 %v1428, %v1644
        %v1749 = vadd.f32 %v1429, %v1645
        %v1750 = vadd.f32 %v1430, %v1646
        %v1751 = vadd.f32 %v1431, %v1647
        %v1752 = vadd.f32 %v1432, %v1648
        %v1753 = vadd.f32 %v1433, %v1649
        %v1754 = vadd.f32 %v1434, %v1650
        %v1755 = vadd.f32 %v1435, %v1651
        %v1756 = vadd.f32 %v1436, %v1652
        %v1757 = vadd.f32 %v1437, %v1653
        %v1758 = vadd.f32 %v1438, %v1654
        %v1759 = vadd.f32 %v1439, %v1655
        %v1760 = vadd.f32 %v1440, %v1656
        %v1761 = vadd.f32 %v1441, %v1657
        %v1762 = vadd.f32 %v1442, %v1658
        %v1763 = vadd.f32 %v1443, %v1659
        %v1764 = vadd.f32 %v1444, %v1660
        %v1765 = vadd.f32 %v1445, %v1661
        %v1766 = vadd.f32 %v1446, %v1662
        %v1767 = vadd.f32 %v1447, %v1663
        %v1768 = vadd.f32 %v1448, %v1664
        %v1769 = vadd.f32 %v1449, %v1665
        %v1770 = vadd.f32 %v1450, %v1666
        %v1771 = vadd.f32 %v1451, %v1667
        %v1772 = vadd.f32 %v1452, %v1668
        %v1773 = vadd.f32 %v1453, %v1669
        %v1774 = vadd.f32 %v1454, %v1670
        %v1775 = vadd.f32 %v1455, %v1671
        %v1776 = vadd.f32 %v1456, %v1672
        %v1777 = vadd.f32 %v1457, %v1673
        %v1778 = vadd.f32 %v1458, %v1674
        %v1779 = vadd.f32 %v1459, %v1675
        %v1780 = vadd.f32 %v1460, %v1676
        %v1781 = vadd.f32 %v1461, %v1677
        %v1782 = vadd.f32 %v1462, %v1678
        %v1783 = vadd.f32 %v1463, %v1679
        %v1784 = vadd.f32 %v1464, %v1680
        %v1785 = vadd.f32 %v1465, %v1681
        %v1786 = vadd.f32 %v1466, %v1682
        %v1787 = vadd.f32 %v1467, %v1683
        %v1788 = vadd.f32 %v1468, %v1684
        %v1789 = vadd.f32 %v1469, %v1685
        %v1790 = vadd.f32 %v1470, %v1686
        %v1791 = vadd.f32 %v1471, %v1687
        %v1792 = vadd.f32 %v1472, %v1688
        %v1793 = vadd.f32 %v1473, %v1689
        %v1794 = vadd.f32 %v1474, %v1690
        %v1795 = vadd.f32 %v1475, %v1691
        %v1796 = vadd.f32 %v1476, %v1692
        %v1797 = vadd.f32 %v1477, %v1693
        %v1798 = vadd.f32 %v1478, %v1694
        %v1799 = vadd.f32 %v1479, %v1695
        %v1800 = vadd.f32 %v1480, %v1696
        %v1801 = vadd.f32 %v1481, %v1697
        %v1802 = vadd.f32 %v1482, %v1698
        %v1803 = vadd.f32 %v1483, %v1699
        %v1804 = vadd.f32 %v1484, %v1700
        %v1805 = vadd.f32 %v1485, %v1701
        %v1806 = vadd.f32 %v1486, %v1702
        %v1807 = vadd.f32 %v1487, %v1703
        %v1808 = vadd.f32 %v1488, %v1704
        %v1809 = vadd.f32 %v1489, %v1705
        %v1810 = vadd.f32 %v1490, %v1706
        %v1811 = vadd.f32 %v1491, %v1707
        %v1812 = vadd.f32 %v1492, %v1708
        %v1813 = vadd.f32 %v1493, %v1709
        %v1814 = vadd.f32 %v1494, %v1710
        %v1815 = vadd.f32 %v1495, %v1711
        %v1816 = vadd.f32 %v1496, %v1712
        %v1817 = vadd.f32 %v1497, %v1713
        %v1818 = vadd.f32 %v1498, %v1714
        %v1819 = vadd.f32 %v1499, %v1715
        %v1820 = vadd.f32 %v1500, %v1716
        %v1821 = vadd.f32 %v1501, %v1717
        %v1822 = vadd.f32 %v1502, %v1718
        %v1823 = vadd.f32 %v1503, %v1719
        %v1824 = vld [vmem:[%s863 + $0x1] sm:$0xff]
        %v1825 = vld [vmem:[%s863 + $0x9] sm:$0xff]
        %v1826 = vld [vmem:[%s863 + $0x11] sm:$0xff]
        %v1827 = vld [vmem:[%s863 + $0x19] sm:$0x3]
        %v1828 = vld [vmem:[%s863 + $0x21] sm:$0xff]
        %v1829 = vld [vmem:[%s863 + $0x29] sm:$0xff]
        %v1830 = vld [vmem:[%s863 + $0x31] sm:$0xff]
        %v1831 = vld [vmem:[%s863 + $0x39] sm:$0x3]
        %v1832 = vld [vmem:[%s863 + $0x41] sm:$0xff]
        %v1833 = vld [vmem:[%s863 + $0x49] sm:$0xff]
        %v1834 = vld [vmem:[%s863 + $0x51] sm:$0xff]
        %v1835 = vld [vmem:[%s863 + $0x59] sm:$0x3]
        %v1836 = vld [vmem:[%s863 + $0x61] sm:$0xff]
        %v1837 = vld [vmem:[%s863 + $0x69] sm:$0xff]
        %v1838 = vld [vmem:[%s863 + $0x71] sm:$0xff]
        %v1839 = vld [vmem:[%s863 + $0x79] sm:$0x3]
        %v1840 = vld [vmem:[%s863 + $0x81] sm:$0xff]
        %v1841 = vld [vmem:[%s863 + $0x89] sm:$0xff]
        %v1842 = vld [vmem:[%s863 + $0x91] sm:$0xff]
        %v1843 = vld [vmem:[%s863 + $0x99] sm:$0x3]
        %v1844 = vld [vmem:[%s863 + $0xa1] sm:$0xff]
        %v1845 = vld [vmem:[%s863 + $0xa9] sm:$0xff]
        %v1846 = vld [vmem:[%s863 + $0xb1] sm:$0xff]
        %v1847 = vld [vmem:[%s863 + $0xb9] sm:$0x3]
        %v1848 = vld [vmem:[%s863 + $0xc1] sm:$0xff]
        %v1849 = vld [vmem:[%s863 + $0xc9] sm:$0xff]
        %v1850 = vld [vmem:[%s863 + $0xd1] sm:$0xff]
        %v1851 = vld [vmem:[%s863 + $0xd9] sm:$0x3]
        %v1852 = vld [vmem:[%s863 + $0xe1] sm:$0xff]
        %v1853 = vld [vmem:[%s863 + $0xe9] sm:$0xff]
        %v1854 = vld [vmem:[%s863 + $0xf1] sm:$0xff]
        %v1855 = vld [vmem:[%s863 + $0xf9] sm:$0x3]
        %v1856 = vld [vmem:[%s863 + $0x101] sm:$0xff]
        %v1857 = vld [vmem:[%s863 + $0x109] sm:$0xff]
        %v1858 = vld [vmem:[%s863 + $0x111] sm:$0xff]
        %v1859 = vld [vmem:[%s863 + $0x119] sm:$0x3]
        %v1860 = vld [vmem:[%s863 + $0x121] sm:$0xff]
        %v1861 = vld [vmem:[%s863 + $0x129] sm:$0xff]
        %v1862 = vld [vmem:[%s863 + $0x131] sm:$0xff]
        %v1863 = vld [vmem:[%s863 + $0x139] sm:$0x3]
        %v1864 = vld [vmem:[%s863 + $0x141] sm:$0xff]
        %v1865 = vld [vmem:[%s863 + $0x149] sm:$0xff]
        %v1866 = vld [vmem:[%s863 + $0x151] sm:$0xff]
        %v1867 = vld [vmem:[%s863 + $0x159] sm:$0x3]
        %v1868 = vld [vmem:[%s863 + $0x161] sm:$0xff]
        %v1869 = vld [vmem:[%s863 + $0x169] sm:$0xff]
        %v1870 = vld [vmem:[%s863 + $0x171] sm:$0xff]
        %v1871 = vld [vmem:[%s863 + $0x179] sm:$0x3]
        %v1872 = vld [vmem:[%s863 + $0x181] sm:$0xff]
        %v1873 = vld [vmem:[%s863 + $0x189] sm:$0xff]
        %v1874 = vld [vmem:[%s863 + $0x191] sm:$0xff]
        %v1875 = vld [vmem:[%s863 + $0x199] sm:$0x3]
        %v1876 = vld [vmem:[%s863 + $0x1a1] sm:$0xff]
        %v1877 = vld [vmem:[%s863 + $0x1a9] sm:$0xff]
        %v1878 = vld [vmem:[%s863 + $0x1b1] sm:$0xff]
        %v1879 = vld [vmem:[%s863 + $0x1b9] sm:$0x3]
        %v1880 = vld [vmem:[%s863 + $0x1c1] sm:$0xff]
        %v1881 = vld [vmem:[%s863 + $0x1c9] sm:$0xff]
        %v1882 = vld [vmem:[%s863 + $0x1d1] sm:$0xff]
        %v1883 = vld [vmem:[%s863 + $0x1d9] sm:$0x3]
        %v1884 = vld [vmem:[%s863 + $0x1e1] sm:$0xff]
        %v1885 = vld [vmem:[%s863 + $0x1e9] sm:$0xff]
        %v1886 = vld [vmem:[%s863 + $0x1f1] sm:$0xff]
        %v1887 = vld [vmem:[%s863 + $0x1f9] sm:$0x3]
        %v1888 = vld [vmem:[%s863 + $0x201] sm:$0xff]
        %v1889 = vld [vmem:[%s863 + $0x209] sm:$0xff]
        %v1890 = vld [vmem:[%s863 + $0x211] sm:$0xff]
        %v1891 = vld [vmem:[%s863 + $0x219] sm:$0x3]
        %v1892 = vld [vmem:[%s863 + $0x221] sm:$0xff]
        %v1893 = vld [vmem:[%s863 + $0x229] sm:$0xff]
        %v1894 = vld [vmem:[%s863 + $0x231] sm:$0xff]
        %v1895 = vld [vmem:[%s863 + $0x239] sm:$0x3]
        %v1896 = vld [vmem:[%s863 + $0x241] sm:$0xff]
        %v1897 = vld [vmem:[%s863 + $0x249] sm:$0xff]
        %v1898 = vld [vmem:[%s863 + $0x251] sm:$0xff]
        %v1899 = vld [vmem:[%s863 + $0x259] sm:$0x3]
        %v1900 = vld [vmem:[%s863 + $0x261] sm:$0xff]
        %v1901 = vld [vmem:[%s863 + $0x269] sm:$0xff]
        %v1902 = vld [vmem:[%s863 + $0x271] sm:$0xff]
        %v1903 = vld [vmem:[%s863 + $0x279] sm:$0x3]
        %v1904 = vld [vmem:[%s863 + $0x281] sm:$0xff]
        %v1905 = vld [vmem:[%s863 + $0x289] sm:$0xff]
        %v1906 = vld [vmem:[%s863 + $0x291] sm:$0xff]
        %v1907 = vld [vmem:[%s863 + $0x299] sm:$0x3]
        %v1908 = vld [vmem:[%s863 + $0x2a1] sm:$0xff]
        %v1909 = vld [vmem:[%s863 + $0x2a9] sm:$0xff]
        %v1910 = vld [vmem:[%s863 + $0x2b1] sm:$0xff]
        %v1911 = vld [vmem:[%s863 + $0x2b9] sm:$0x3]
        %v1912 = vld [vmem:[%s863 + $0x2c1] sm:$0xff]
        %v1913 = vld [vmem:[%s863 + $0x2c9] sm:$0xff]
        %v1914 = vld [vmem:[%s863 + $0x2d1] sm:$0xff]
        %v1915 = vld [vmem:[%s863 + $0x2d9] sm:$0x3]
        %v1916 = vld [vmem:[%s863 + $0x2e1] sm:$0xff]
        %v1917 = vld [vmem:[%s863 + $0x2e9] sm:$0xff]
        %v1918 = vld [vmem:[%s863 + $0x2f1] sm:$0xff]
        %v1919 = vld [vmem:[%s863 + $0x2f9] sm:$0x3]
        %v1920 = vld [vmem:[%s863 + $0x301] sm:$0xff]
        %v1921 = vld [vmem:[%s863 + $0x309] sm:$0xff]
        %v1922 = vld [vmem:[%s863 + $0x311] sm:$0xff]
        %v1923 = vld [vmem:[%s863 + $0x319] sm:$0x3]
        %v1924 = vld [vmem:[%s863 + $0x321] sm:$0xff]
        %v1925 = vld [vmem:[%s863 + $0x329] sm:$0xff]
        %v1926 = vld [vmem:[%s863 + $0x331] sm:$0xff]
        %v1927 = vld [vmem:[%s863 + $0x339] sm:$0x3]
        %s1928 = scalar_lea.vmem %s1, 5
        %v1929 = vld [vmem:[%s1928] sm:$0x1]
        %v1931 = vlaneseq
        %v1932 = vshrl.u32 %v1931, 7
        %v1933 = vsub.s32 0, %v1932
        %v1934 = vrot.slane %v1929, %v1933
        %v1936 = vmul.f32 %v1824, %v1934
        %v1937 = vmul.f32 %v1825, %v1934
        %v1938 = vmul.f32 %v1826, %v1934
        %v1939 = vmul.f32 %v1827, %v1934
        %v1940 = vmul.f32 %v1828, %v1934
        %v1941 = vmul.f32 %v1829, %v1934
        %v1942 = vmul.f32 %v1830, %v1934
        %v1943 = vmul.f32 %v1831, %v1934
        %v1944 = vmul.f32 %v1832, %v1934
        %v1945 = vmul.f32 %v1833, %v1934
        %v1946 = vmul.f32 %v1834, %v1934
        %v1947 = vmul.f32 %v1835, %v1934
        %v1948 = vmul.f32 %v1836, %v1934
        %v1949 = vmul.f32 %v1837, %v1934
        %v1950 = vmul.f32 %v1838, %v1934
        %v1951 = vmul.f32 %v1839, %v1934
        %v1952 = vmul.f32 %v1840, %v1934
        %v1953 = vmul.f32 %v1841, %v1934
        %v1954 = vmul.f32 %v1842, %v1934
        %v1955 = vmul.f32 %v1843, %v1934
        %v1956 = vmul.f32 %v1844, %v1934
        %v1957 = vmul.f32 %v1845, %v1934
        %v1958 = vmul.f32 %v1846, %v1934
        %v1959 = vmul.f32 %v1847, %v1934
        %v1960 = vmul.f32 %v1848, %v1934
        %v1961 = vmul.f32 %v1849, %v1934
        %v1962 = vmul.f32 %v1850, %v1934
        %v1963 = vmul.f32 %v1851, %v1934
        %v1964 = vmul.f32 %v1852, %v1934
        %v1965 = vmul.f32 %v1853, %v1934
        %v1966 = vmul.f32 %v1854, %v1934
        %v1967 = vmul.f32 %v1855, %v1934
        %v1968 = vmul.f32 %v1856, %v1934
        %v1969 = vmul.f32 %v1857, %v1934
        %v1970 = vmul.f32 %v1858, %v1934
        %v1971 = vmul.f32 %v1859, %v1934
        %v1972 = vmul.f32 %v1860, %v1934
        %v1973 = vmul.f32 %v1861, %v1934
        %v1974 = vmul.f32 %v1862, %v1934
        %v1975 = vmul.f32 %v1863, %v1934
        %v1976 = vmul.f32 %v1864, %v1934
        %v1977 = vmul.f32 %v1865, %v1934
        %v1978 = vmul.f32 %v1866, %v1934
        %v1979 = vmul.f32 %v1867, %v1934
        %v1980 = vmul.f32 %v1868, %v1934
        %v1981 = vmul.f32 %v1869, %v1934
        %v1982 = vmul.f32 %v1870, %v1934
        %v1983 = vmul.f32 %v1871, %v1934
        %v1984 = vmul.f32 %v1872, %v1934
        %v1985 = vmul.f32 %v1873, %v1934
        %v1986 = vmul.f32 %v1874, %v1934
        %v1987 = vmul.f32 %v1875, %v1934
        %v1988 = vmul.f32 %v1876, %v1934
        %v1989 = vmul.f32 %v1877, %v1934
        %v1990 = vmul.f32 %v1878, %v1934
        %v1991 = vmul.f32 %v1879, %v1934
        %v1992 = vmul.f32 %v1880, %v1934
        %v1993 = vmul.f32 %v1881, %v1934
        %v1994 = vmul.f32 %v1882, %v1934
        %v1995 = vmul.f32 %v1883, %v1934
        %v1996 = vmul.f32 %v1884, %v1934
        %v1997 = vmul.f32 %v1885, %v1934
        %v1998 = vmul.f32 %v1886, %v1934
        %v1999 = vmul.f32 %v1887, %v1934
        %v2000 = vmul.f32 %v1888, %v1934
        %v2001 = vmul.f32 %v1889, %v1934
        %v2002 = vmul.f32 %v1890, %v1934
        %v2003 = vmul.f32 %v1891, %v1934
        %v2004 = vmul.f32 %v1892, %v1934
        %v2005 = vmul.f32 %v1893, %v1934
        %v2006 = vmul.f32 %v1894, %v1934
        %v2007 = vmul.f32 %v1895, %v1934
        %v2008 = vmul.f32 %v1896, %v1934
        %v2009 = vmul.f32 %v1897, %v1934
        %v2010 = vmul.f32 %v1898, %v1934
        %v2011 = vmul.f32 %v1899, %v1934
        %v2012 = vmul.f32 %v1900, %v1934
        %v2013 = vmul.f32 %v1901, %v1934
        %v2014 = vmul.f32 %v1902, %v1934
        %v2015 = vmul.f32 %v1903, %v1934
        %v2016 = vmul.f32 %v1904, %v1934
        %v2017 = vmul.f32 %v1905, %v1934
        %v2018 = vmul.f32 %v1906, %v1934
        %v2019 = vmul.f32 %v1907, %v1934
        %v2020 = vmul.f32 %v1908, %v1934
        %v2021 = vmul.f32 %v1909, %v1934
        %v2022 = vmul.f32 %v1910, %v1934
        %v2023 = vmul.f32 %v1911, %v1934
        %v2024 = vmul.f32 %v1912, %v1934
        %v2025 = vmul.f32 %v1913, %v1934
        %v2026 = vmul.f32 %v1914, %v1934
        %v2027 = vmul.f32 %v1915, %v1934
        %v2028 = vmul.f32 %v1916, %v1934
        %v2029 = vmul.f32 %v1917, %v1934
        %v2030 = vmul.f32 %v1918, %v1934
        %v2031 = vmul.f32 %v1919, %v1934
        %v2032 = vmul.f32 %v1920, %v1934
        %v2033 = vmul.f32 %v1921, %v1934
        %v2034 = vmul.f32 %v1922, %v1934
        %v2035 = vmul.f32 %v1923, %v1934
        %v2036 = vmul.f32 %v1924, %v1934
        %v2037 = vmul.f32 %v1925, %v1934
        %v2038 = vmul.f32 %v1926, %v1934
        %v2039 = vmul.f32 %v1927, %v1934
        %v2040 = vadd.f32 %v1720, %v1936
        %v2041 = vadd.f32 %v1721, %v1937
        %v2042 = vadd.f32 %v1722, %v1938
        %v2043 = vadd.f32 %v1723, %v1939
        %v2044 = vadd.f32 %v1724, %v1940
        %v2045 = vadd.f32 %v1725, %v1941
        %v2046 = vadd.f32 %v1726, %v1942
        %v2047 = vadd.f32 %v1727, %v1943
        %v2048 = vadd.f32 %v1728, %v1944
        %v2049 = vadd.f32 %v1729, %v1945
        %v2050 = vadd.f32 %v1730, %v1946
        %v2051 = vadd.f32 %v1731, %v1947
        %v2052 = vadd.f32 %v1732, %v1948
        %v2053 = vadd.f32 %v1733, %v1949
        %v2054 = vadd.f32 %v1734, %v1950
        %v2055 = vadd.f32 %v1735, %v1951
        %v2056 = vadd.f32 %v1736, %v1952
        %v2057 = vadd.f32 %v1737, %v1953
        %v2058 = vadd.f32 %v1738, %v1954
        %v2059 = vadd.f32 %v1739, %v1955
        %v2060 = vadd.f32 %v1740, %v1956
        %v2061 = vadd.f32 %v1741, %v1957
        %v2062 = vadd.f32 %v1742, %v1958
        %v2063 = vadd.f32 %v1743, %v1959
        %v2064 = vadd.f32 %v1744, %v1960
        %v2065 = vadd.f32 %v1745, %v1961
        %v2066 = vadd.f32 %v1746, %v1962
        %v2067 = vadd.f32 %v1747, %v1963
        %v2068 = vadd.f32 %v1748, %v1964
        %v2069 = vadd.f32 %v1749, %v1965
        %v2070 = vadd.f32 %v1750, %v1966
        %v2071 = vadd.f32 %v1751, %v1967
        %v2072 = vadd.f32 %v1752, %v1968
        %v2073 = vadd.f32 %v1753, %v1969
        %v2074 = vadd.f32 %v1754, %v1970
        %v2075 = vadd.f32 %v1755, %v1971
        %v2076 = vadd.f32 %v1756, %v1972
        %v2077 = vadd.f32 %v1757, %v1973
        %v2078 = vadd.f32 %v1758, %v1974
        %v2079 = vadd.f32 %v1759, %v1975
        %v2080 = vadd.f32 %v1760, %v1976
        %v2081 = vadd.f32 %v1761, %v1977
        %v2082 = vadd.f32 %v1762, %v1978
        %v2083 = vadd.f32 %v1763, %v1979
        %v2084 = vadd.f32 %v1764, %v1980
        %v2085 = vadd.f32 %v1765, %v1981
        %v2086 = vadd.f32 %v1766, %v1982
        %v2087 = vadd.f32 %v1767, %v1983
        %v2088 = vadd.f32 %v1768, %v1984
        %v2089 = vadd.f32 %v1769, %v1985
        %v2090 = vadd.f32 %v1770, %v1986
        %v2091 = vadd.f32 %v1771, %v1987
        %v2092 = vadd.f32 %v1772, %v1988
        %v2093 = vadd.f32 %v1773, %v1989
        %v2094 = vadd.f32 %v1774, %v1990
        %v2095 = vadd.f32 %v1775, %v1991
        %v2096 = vadd.f32 %v1776, %v1992
        %v2097 = vadd.f32 %v1777, %v1993
        %v2098 = vadd.f32 %v1778, %v1994
        %v2099 = vadd.f32 %v1779, %v1995
        %v2100 = vadd.f32 %v1780, %v1996
        %v2101 = vadd.f32 %v1781, %v1997
        %v2102 = vadd.f32 %v1782, %v1998
        %v2103 = vadd.f32 %v1783, %v1999
        %v2104 = vadd.f32 %v1784, %v2000
        %v2105 = vadd.f32 %v1785, %v2001
        %v2106 = vadd.f32 %v1786, %v2002
        %v2107 = vadd.f32 %v1787, %v2003
        %v2108 = vadd.f32 %v1788, %v2004
        %v2109 = vadd.f32 %v1789, %v2005
        %v2110 = vadd.f32 %v1790, %v2006
        %v2111 = vadd.f32 %v1791, %v2007
        %v2112 = vadd.f32 %v1792, %v2008
        %v2113 = vadd.f32 %v1793, %v2009
        %v2114 = vadd.f32 %v1794, %v2010
        %v2115 = vadd.f32 %v1795, %v2011
        %v2116 = vadd.f32 %v1796, %v2012
        %v2117 = vadd.f32 %v1797, %v2013
        %v2118 = vadd.f32 %v1798, %v2014
        %v2119 = vadd.f32 %v1799, %v2015
        %v2120 = vadd.f32 %v1800, %v2016
        %v2121 = vadd.f32 %v1801, %v2017
        %v2122 = vadd.f32 %v1802, %v2018
        %v2123 = vadd.f32 %v1803, %v2019
        %v2124 = vadd.f32 %v1804, %v2020
        %v2125 = vadd.f32 %v1805, %v2021
        %v2126 = vadd.f32 %v1806, %v2022
        %v2127 = vadd.f32 %v1807, %v2023
        %v2128 = vadd.f32 %v1808, %v2024
        %v2129 = vadd.f32 %v1809, %v2025
        %v2130 = vadd.f32 %v1810, %v2026
        %v2131 = vadd.f32 %v1811, %v2027
        %v2132 = vadd.f32 %v1812, %v2028
        %v2133 = vadd.f32 %v1813, %v2029
        %v2134 = vadd.f32 %v1814, %v2030
        %v2135 = vadd.f32 %v1815, %v2031
        %v2136 = vadd.f32 %v1816, %v2032
        %v2137 = vadd.f32 %v1817, %v2033
        %v2138 = vadd.f32 %v1818, %v2034
        %v2139 = vadd.f32 %v1819, %v2035
        %v2140 = vadd.f32 %v1820, %v2036
        %v2141 = vadd.f32 %v1821, %v2037
        %v2142 = vadd.f32 %v1822, %v2038
        %v2143 = vadd.f32 %v1823, %v2039
        %v2144 = vld [vmem:[%s222 + $0x2] sm:$0xff]
        %v2145 = vld [vmem:[%s222 + $0xa] sm:$0xff]
        %v2146 = vld [vmem:[%s222 + $0x12] sm:$0xff]
        %v2147 = vld [vmem:[%s222 + $0x1a] sm:$0x3]
        %v2148 = vld [vmem:[%s222 + $0x22] sm:$0xff]
        %v2149 = vld [vmem:[%s222 + $0x2a] sm:$0xff]
        %v2150 = vld [vmem:[%s222 + $0x32] sm:$0xff]
        %v2151 = vld [vmem:[%s222 + $0x3a] sm:$0x3]
        %v2152 = vld [vmem:[%s222 + $0x42] sm:$0xff]
        %v2153 = vld [vmem:[%s222 + $0x4a] sm:$0xff]
        %v2154 = vld [vmem:[%s222 + $0x52] sm:$0xff]
        %v2155 = vld [vmem:[%s222 + $0x5a] sm:$0x3]
        %v2156 = vld [vmem:[%s222 + $0x62] sm:$0xff]
        %v2157 = vld [vmem:[%s222 + $0x6a] sm:$0xff]
        %v2158 = vld [vmem:[%s222 + $0x72] sm:$0xff]
        %v2159 = vld [vmem:[%s222 + $0x7a] sm:$0x3]
        %v2160 = vld [vmem:[%s222 + $0x82] sm:$0xff]
        %v2161 = vld [vmem:[%s222 + $0x8a] sm:$0xff]
        %v2162 = vld [vmem:[%s222 + $0x92] sm:$0xff]
        %v2163 = vld [vmem:[%s222 + $0x9a] sm:$0x3]
        %v2164 = vld [vmem:[%s222 + $0xa2] sm:$0xff]
        %v2165 = vld [vmem:[%s222 + $0xaa] sm:$0xff]
        %v2166 = vld [vmem:[%s222 + $0xb2] sm:$0xff]
        %v2167 = vld [vmem:[%s222 + $0xba] sm:$0x3]
        %v2168 = vld [vmem:[%s222 + $0xc2] sm:$0xff]
        %v2169 = vld [vmem:[%s222 + $0xca] sm:$0xff]
        %v2170 = vld [vmem:[%s222 + $0xd2] sm:$0xff]
        %v2171 = vld [vmem:[%s222 + $0xda] sm:$0x3]
        %v2172 = vld [vmem:[%s222 + $0xe2] sm:$0xff]
        %v2173 = vld [vmem:[%s222 + $0xea] sm:$0xff]
        %v2174 = vld [vmem:[%s222 + $0xf2] sm:$0xff]
        %v2175 = vld [vmem:[%s222 + $0xfa] sm:$0x3]
        %v2176 = vld [vmem:[%s222 + $0x102] sm:$0xff]
        %v2177 = vld [vmem:[%s222 + $0x10a] sm:$0xff]
        %v2178 = vld [vmem:[%s222 + $0x112] sm:$0xff]
        %v2179 = vld [vmem:[%s222 + $0x11a] sm:$0x3]
        %v2180 = vld [vmem:[%s222 + $0x122] sm:$0xff]
        %v2181 = vld [vmem:[%s222 + $0x12a] sm:$0xff]
        %v2182 = vld [vmem:[%s222 + $0x132] sm:$0xff]
        %v2183 = vld [vmem:[%s222 + $0x13a] sm:$0x3]
        %v2184 = vld [vmem:[%s222 + $0x142] sm:$0xff]
        %v2185 = vld [vmem:[%s222 + $0x14a] sm:$0xff]
        %v2186 = vld [vmem:[%s222 + $0x152] sm:$0xff]
        %v2187 = vld [vmem:[%s222 + $0x15a] sm:$0x3]
        %v2188 = vld [vmem:[%s222 + $0x162] sm:$0xff]
        %v2189 = vld [vmem:[%s222 + $0x16a] sm:$0xff]
        %v2190 = vld [vmem:[%s222 + $0x172] sm:$0xff]
        %v2191 = vld [vmem:[%s222 + $0x17a] sm:$0x3]
        %v2192 = vld [vmem:[%s222 + $0x182] sm:$0xff]
        %v2193 = vld [vmem:[%s222 + $0x18a] sm:$0xff]
        %v2194 = vld [vmem:[%s222 + $0x192] sm:$0xff]
        %v2195 = vld [vmem:[%s222 + $0x19a] sm:$0x3]
        %v2196 = vld [vmem:[%s222 + $0x1a2] sm:$0xff]
        %v2197 = vld [vmem:[%s222 + $0x1aa] sm:$0xff]
        %v2198 = vld [vmem:[%s222 + $0x1b2] sm:$0xff]
        %v2199 = vld [vmem:[%s222 + $0x1ba] sm:$0x3]
        %v2200 = vld [vmem:[%s222 + $0x1c2] sm:$0xff]
        %v2201 = vld [vmem:[%s222 + $0x1ca] sm:$0xff]
        %v2202 = vld [vmem:[%s222 + $0x1d2] sm:$0xff]
        %v2203 = vld [vmem:[%s222 + $0x1da] sm:$0x3]
        %v2204 = vld [vmem:[%s222 + $0x1e2] sm:$0xff]
        %v2205 = vld [vmem:[%s222 + $0x1ea] sm:$0xff]
        %v2206 = vld [vmem:[%s222 + $0x1f2] sm:$0xff]
        %v2207 = vld [vmem:[%s222 + $0x1fa] sm:$0x3]
        %v2208 = vld [vmem:[%s222 + $0x202] sm:$0xff]
        %v2209 = vld [vmem:[%s222 + $0x20a] sm:$0xff]
        %v2210 = vld [vmem:[%s222 + $0x212] sm:$0xff]
        %v2211 = vld [vmem:[%s222 + $0x21a] sm:$0x3]
        %v2212 = vld [vmem:[%s222 + $0x222] sm:$0xff]
        %v2213 = vld [vmem:[%s222 + $0x22a] sm:$0xff]
        %v2214 = vld [vmem:[%s222 + $0x232] sm:$0xff]
        %v2215 = vld [vmem:[%s222 + $0x23a] sm:$0x3]
        %v2216 = vld [vmem:[%s222 + $0x242] sm:$0xff]
        %v2217 = vld [vmem:[%s222 + $0x24a] sm:$0xff]
        %v2218 = vld [vmem:[%s222 + $0x252] sm:$0xff]
        %v2219 = vld [vmem:[%s222 + $0x25a] sm:$0x3]
        %v2220 = vld [vmem:[%s222 + $0x262] sm:$0xff]
        %v2221 = vld [vmem:[%s222 + $0x26a] sm:$0xff]
        %v2222 = vld [vmem:[%s222 + $0x272] sm:$0xff]
        %v2223 = vld [vmem:[%s222 + $0x27a] sm:$0x3]
        %v2224 = vld [vmem:[%s222 + $0x282] sm:$0xff]
        %v2225 = vld [vmem:[%s222 + $0x28a] sm:$0xff]
        %v2226 = vld [vmem:[%s222 + $0x292] sm:$0xff]
        %v2227 = vld [vmem:[%s222 + $0x29a] sm:$0x3]
        %v2228 = vld [vmem:[%s222 + $0x2a2] sm:$0xff]
        %v2229 = vld [vmem:[%s222 + $0x2aa] sm:$0xff]
        %v2230 = vld [vmem:[%s222 + $0x2b2] sm:$0xff]
        %v2231 = vld [vmem:[%s222 + $0x2ba] sm:$0x3]
        %v2232 = vld [vmem:[%s222 + $0x2c2] sm:$0xff]
        %v2233 = vld [vmem:[%s222 + $0x2ca] sm:$0xff]
        %v2234 = vld [vmem:[%s222 + $0x2d2] sm:$0xff]
        %v2235 = vld [vmem:[%s222 + $0x2da] sm:$0x3]
        %v2236 = vld [vmem:[%s222 + $0x2e2] sm:$0xff]
        %v2237 = vld [vmem:[%s222 + $0x2ea] sm:$0xff]
        %v2238 = vld [vmem:[%s222 + $0x2f2] sm:$0xff]
        %v2239 = vld [vmem:[%s222 + $0x2fa] sm:$0x3]
        %v2240 = vld [vmem:[%s222 + $0x302] sm:$0xff]
        %v2241 = vld [vmem:[%s222 + $0x30a] sm:$0xff]
        %v2242 = vld [vmem:[%s222 + $0x312] sm:$0xff]
        %v2243 = vld [vmem:[%s222 + $0x31a] sm:$0x3]
        %v2244 = vld [vmem:[%s222 + $0x322] sm:$0xff]
        %v2245 = vld [vmem:[%s222 + $0x32a] sm:$0xff]
        %v2246 = vld [vmem:[%s222 + $0x332] sm:$0xff]
        %v2247 = vld [vmem:[%s222 + $0x33a] sm:$0x3]
        %s2248 = scalar_lea.vmem %s1, 6
        %v2249 = vld [vmem:[%s2248] sm:$0x1]
        %v2251 = vlaneseq
        %v2252 = vshrl.u32 %v2251, 7
        %v2253 = vsub.s32 0, %v2252
        %v2254 = vrot.slane %v2249, %v2253
        %v2256 = vmul.f32 %v2144, %v2254
        %v2257 = vmul.f32 %v2145, %v2254
        %v2258 = vmul.f32 %v2146, %v2254
        %v2259 = vmul.f32 %v2147, %v2254
        %v2260 = vmul.f32 %v2148, %v2254
        %v2261 = vmul.f32 %v2149, %v2254
        %v2262 = vmul.f32 %v2150, %v2254
        %v2263 = vmul.f32 %v2151, %v2254
        %v2264 = vmul.f32 %v2152, %v2254
        %v2265 = vmul.f32 %v2153, %v2254
        %v2266 = vmul.f32 %v2154, %v2254
        %v2267 = vmul.f32 %v2155, %v2254
        %v2268 = vmul.f32 %v2156, %v2254
        %v2269 = vmul.f32 %v2157, %v2254
        %v2270 = vmul.f32 %v2158, %v2254
        %v2271 = vmul.f32 %v2159, %v2254
        %v2272 = vmul.f32 %v2160, %v2254
        %v2273 = vmul.f32 %v2161, %v2254
        %v2274 = vmul.f32 %v2162, %v2254
        %v2275 = vmul.f32 %v2163, %v2254
        %v2276 = vmul.f32 %v2164, %v2254
        %v2277 = vmul.f32 %v2165, %v2254
        %v2278 = vmul.f32 %v2166, %v2254
        %v2279 = vmul.f32 %v2167, %v2254
        %v2280 = vmul.f32 %v2168, %v2254
        %v2281 = vmul.f32 %v2169, %v2254
        %v2282 = vmul.f32 %v2170, %v2254
        %v2283 = vmul.f32 %v2171, %v2254
        %v2284 = vmul.f32 %v2172, %v2254
        %v2285 = vmul.f32 %v2173, %v2254
        %v2286 = vmul.f32 %v2174, %v2254
        %v2287 = vmul.f32 %v2175, %v2254
        %v2288 = vmul.f32 %v2176, %v2254
        %v2289 = vmul.f32 %v2177, %v2254
        %v2290 = vmul.f32 %v2178, %v2254
        %v2291 = vmul.f32 %v2179, %v2254
        %v2292 = vmul.f32 %v2180, %v2254
        %v2293 = vmul.f32 %v2181, %v2254
        %v2294 = vmul.f32 %v2182, %v2254
        %v2295 = vmul.f32 %v2183, %v2254
        %v2296 = vmul.f32 %v2184, %v2254
        %v2297 = vmul.f32 %v2185, %v2254
        %v2298 = vmul.f32 %v2186, %v2254
        %v2299 = vmul.f32 %v2187, %v2254
        %v2300 = vmul.f32 %v2188, %v2254
        %v2301 = vmul.f32 %v2189, %v2254
        %v2302 = vmul.f32 %v2190, %v2254
        %v2303 = vmul.f32 %v2191, %v2254
        %v2304 = vmul.f32 %v2192, %v2254
        %v2305 = vmul.f32 %v2193, %v2254
        %v2306 = vmul.f32 %v2194, %v2254
        %v2307 = vmul.f32 %v2195, %v2254
        %v2308 = vmul.f32 %v2196, %v2254
        %v2309 = vmul.f32 %v2197, %v2254
        %v2310 = vmul.f32 %v2198, %v2254
        %v2311 = vmul.f32 %v2199, %v2254
        %v2312 = vmul.f32 %v2200, %v2254
        %v2313 = vmul.f32 %v2201, %v2254
        %v2314 = vmul.f32 %v2202, %v2254
        %v2315 = vmul.f32 %v2203, %v2254
        %v2316 = vmul.f32 %v2204, %v2254
        %v2317 = vmul.f32 %v2205, %v2254
        %v2318 = vmul.f32 %v2206, %v2254
        %v2319 = vmul.f32 %v2207, %v2254
        %v2320 = vmul.f32 %v2208, %v2254
        %v2321 = vmul.f32 %v2209, %v2254
        %v2322 = vmul.f32 %v2210, %v2254
        %v2323 = vmul.f32 %v2211, %v2254
        %v2324 = vmul.f32 %v2212, %v2254
        %v2325 = vmul.f32 %v2213, %v2254
        %v2326 = vmul.f32 %v2214, %v2254
        %v2327 = vmul.f32 %v2215, %v2254
        %v2328 = vmul.f32 %v2216, %v2254
        %v2329 = vmul.f32 %v2217, %v2254
        %v2330 = vmul.f32 %v2218, %v2254
        %v2331 = vmul.f32 %v2219, %v2254
        %v2332 = vmul.f32 %v2220, %v2254
        %v2333 = vmul.f32 %v2221, %v2254
        %v2334 = vmul.f32 %v2222, %v2254
        %v2335 = vmul.f32 %v2223, %v2254
        %v2336 = vmul.f32 %v2224, %v2254
        %v2337 = vmul.f32 %v2225, %v2254
        %v2338 = vmul.f32 %v2226, %v2254
        %v2339 = vmul.f32 %v2227, %v2254
        %v2340 = vmul.f32 %v2228, %v2254
        %v2341 = vmul.f32 %v2229, %v2254
        %v2342 = vmul.f32 %v2230, %v2254
        %v2343 = vmul.f32 %v2231, %v2254
        %v2344 = vmul.f32 %v2232, %v2254
        %v2345 = vmul.f32 %v2233, %v2254
        %v2346 = vmul.f32 %v2234, %v2254
        %v2347 = vmul.f32 %v2235, %v2254
        %v2348 = vmul.f32 %v2236, %v2254
        %v2349 = vmul.f32 %v2237, %v2254
        %v2350 = vmul.f32 %v2238, %v2254
        %v2351 = vmul.f32 %v2239, %v2254
        %v2352 = vmul.f32 %v2240, %v2254
        %v2353 = vmul.f32 %v2241, %v2254
        %v2354 = vmul.f32 %v2242, %v2254
        %v2355 = vmul.f32 %v2243, %v2254
        %v2356 = vmul.f32 %v2244, %v2254
        %v2357 = vmul.f32 %v2245, %v2254
        %v2358 = vmul.f32 %v2246, %v2254
        %v2359 = vmul.f32 %v2247, %v2254
        %v2360 = vadd.f32 %v2040, %v2256
        %v2361 = vadd.f32 %v2041, %v2257
        %v2362 = vadd.f32 %v2042, %v2258
        %v2363 = vadd.f32 %v2043, %v2259
        %v2364 = vadd.f32 %v2044, %v2260
        %v2365 = vadd.f32 %v2045, %v2261
        %v2366 = vadd.f32 %v2046, %v2262
        %v2367 = vadd.f32 %v2047, %v2263
        %v2368 = vadd.f32 %v2048, %v2264
        %v2369 = vadd.f32 %v2049, %v2265
        %v2370 = vadd.f32 %v2050, %v2266
        %v2371 = vadd.f32 %v2051, %v2267
        %v2372 = vadd.f32 %v2052, %v2268
        %v2373 = vadd.f32 %v2053, %v2269
        %v2374 = vadd.f32 %v2054, %v2270
        %v2375 = vadd.f32 %v2055, %v2271
        %v2376 = vadd.f32 %v2056, %v2272
        %v2377 = vadd.f32 %v2057, %v2273
        %v2378 = vadd.f32 %v2058, %v2274
        %v2379 = vadd.f32 %v2059, %v2275
        %v2380 = vadd.f32 %v2060, %v2276
        %v2381 = vadd.f32 %v2061, %v2277
        %v2382 = vadd.f32 %v2062, %v2278
        %v2383 = vadd.f32 %v2063, %v2279
        %v2384 = vadd.f32 %v2064, %v2280
        %v2385 = vadd.f32 %v2065, %v2281
        %v2386 = vadd.f32 %v2066, %v2282
        %v2387 = vadd.f32 %v2067, %v2283
        %v2388 = vadd.f32 %v2068, %v2284
        %v2389 = vadd.f32 %v2069, %v2285
        %v2390 = vadd.f32 %v2070, %v2286
        %v2391 = vadd.f32 %v2071, %v2287
        %v2392 = vadd.f32 %v2072, %v2288
        %v2393 = vadd.f32 %v2073, %v2289
        %v2394 = vadd.f32 %v2074, %v2290
        %v2395 = vadd.f32 %v2075, %v2291
        %v2396 = vadd.f32 %v2076, %v2292
        %v2397 = vadd.f32 %v2077, %v2293
        %v2398 = vadd.f32 %v2078, %v2294
        %v2399 = vadd.f32 %v2079, %v2295
        %v2400 = vadd.f32 %v2080, %v2296
        %v2401 = vadd.f32 %v2081, %v2297
        %v2402 = vadd.f32 %v2082, %v2298
        %v2403 = vadd.f32 %v2083, %v2299
        %v2404 = vadd.f32 %v2084, %v2300
        %v2405 = vadd.f32 %v2085, %v2301
        %v2406 = vadd.f32 %v2086, %v2302
        %v2407 = vadd.f32 %v2087, %v2303
        %v2408 = vadd.f32 %v2088, %v2304
        %v2409 = vadd.f32 %v2089, %v2305
        %v2410 = vadd.f32 %v2090, %v2306
        %v2411 = vadd.f32 %v2091, %v2307
        %v2412 = vadd.f32 %v2092, %v2308
        %v2413 = vadd.f32 %v2093, %v2309
        %v2414 = vadd.f32 %v2094, %v2310
        %v2415 = vadd.f32 %v2095, %v2311
        %v2416 = vadd.f32 %v2096, %v2312
        %v2417 = vadd.f32 %v2097, %v2313
        %v2418 = vadd.f32 %v2098, %v2314
        %v2419 = vadd.f32 %v2099, %v2315
        %v2420 = vadd.f32 %v2100, %v2316
        %v2421 = vadd.f32 %v2101, %v2317
        %v2422 = vadd.f32 %v2102, %v2318
        %v2423 = vadd.f32 %v2103, %v2319
        %v2424 = vadd.f32 %v2104, %v2320
        %v2425 = vadd.f32 %v2105, %v2321
        %v2426 = vadd.f32 %v2106, %v2322
        %v2427 = vadd.f32 %v2107, %v2323
        %v2428 = vadd.f32 %v2108, %v2324
        %v2429 = vadd.f32 %v2109, %v2325
        %v2430 = vadd.f32 %v2110, %v2326
        %v2431 = vadd.f32 %v2111, %v2327
        %v2432 = vadd.f32 %v2112, %v2328
        %v2433 = vadd.f32 %v2113, %v2329
        %v2434 = vadd.f32 %v2114, %v2330
        %v2435 = vadd.f32 %v2115, %v2331
        %v2436 = vadd.f32 %v2116, %v2332
        %v2437 = vadd.f32 %v2117, %v2333
        %v2438 = vadd.f32 %v2118, %v2334
        %v2439 = vadd.f32 %v2119, %v2335
        %v2440 = vadd.f32 %v2120, %v2336
        %v2441 = vadd.f32 %v2121, %v2337
        %v2442 = vadd.f32 %v2122, %v2338
        %v2443 = vadd.f32 %v2123, %v2339
        %v2444 = vadd.f32 %v2124, %v2340
        %v2445 = vadd.f32 %v2125, %v2341
        %v2446 = vadd.f32 %v2126, %v2342
        %v2447 = vadd.f32 %v2127, %v2343
        %v2448 = vadd.f32 %v2128, %v2344
        %v2449 = vadd.f32 %v2129, %v2345
        %v2450 = vadd.f32 %v2130, %v2346
        %v2451 = vadd.f32 %v2131, %v2347
        %v2452 = vadd.f32 %v2132, %v2348
        %v2453 = vadd.f32 %v2133, %v2349
        %v2454 = vadd.f32 %v2134, %v2350
        %v2455 = vadd.f32 %v2135, %v2351
        %v2456 = vadd.f32 %v2136, %v2352
        %v2457 = vadd.f32 %v2137, %v2353
        %v2458 = vadd.f32 %v2138, %v2354
        %v2459 = vadd.f32 %v2139, %v2355
        %v2460 = vadd.f32 %v2140, %v2356
        %v2461 = vadd.f32 %v2141, %v2357
        %v2462 = vadd.f32 %v2142, %v2358
        %v2463 = vadd.f32 %v2143, %v2359
        %v2464 = vld [vmem:[%s542 + $0x2] sm:$0xff]
        %v2465 = vld [vmem:[%s542 + $0xa] sm:$0xff]
        %v2466 = vld [vmem:[%s542 + $0x12] sm:$0xff]
        %v2467 = vld [vmem:[%s542 + $0x1a] sm:$0x3]
        %v2468 = vld [vmem:[%s542 + $0x22] sm:$0xff]
        %v2469 = vld [vmem:[%s542 + $0x2a] sm:$0xff]
        %v2470 = vld [vmem:[%s542 + $0x32] sm:$0xff]
        %v2471 = vld [vmem:[%s542 + $0x3a] sm:$0x3]
        %v2472 = vld [vmem:[%s542 + $0x42] sm:$0xff]
        %v2473 = vld [vmem:[%s542 + $0x4a] sm:$0xff]
        %v2474 = vld [vmem:[%s542 + $0x52] sm:$0xff]
        %v2475 = vld [vmem:[%s542 + $0x5a] sm:$0x3]
        %v2476 = vld [vmem:[%s542 + $0x62] sm:$0xff]
        %v2477 = vld [vmem:[%s542 + $0x6a] sm:$0xff]
        %v2478 = vld [vmem:[%s542 + $0x72] sm:$0xff]
        %v2479 = vld [vmem:[%s542 + $0x7a] sm:$0x3]
        %v2480 = vld [vmem:[%s542 + $0x82] sm:$0xff]
        %v2481 = vld [vmem:[%s542 + $0x8a] sm:$0xff]
        %v2482 = vld [vmem:[%s542 + $0x92] sm:$0xff]
        %v2483 = vld [vmem:[%s542 + $0x9a] sm:$0x3]
        %v2484 = vld [vmem:[%s542 + $0xa2] sm:$0xff]
        %v2485 = vld [vmem:[%s542 + $0xaa] sm:$0xff]
        %v2486 = vld [vmem:[%s542 + $0xb2] sm:$0xff]
        %v2487 = vld [vmem:[%s542 + $0xba] sm:$0x3]
        %v2488 = vld [vmem:[%s542 + $0xc2] sm:$0xff]
        %v2489 = vld [vmem:[%s542 + $0xca] sm:$0xff]
        %v2490 = vld [vmem:[%s542 + $0xd2] sm:$0xff]
        %v2491 = vld [vmem:[%s542 + $0xda] sm:$0x3]
        %v2492 = vld [vmem:[%s542 + $0xe2] sm:$0xff]
        %v2493 = vld [vmem:[%s542 + $0xea] sm:$0xff]
        %v2494 = vld [vmem:[%s542 + $0xf2] sm:$0xff]
        %v2495 = vld [vmem:[%s542 + $0xfa] sm:$0x3]
        %v2496 = vld [vmem:[%s542 + $0x102] sm:$0xff]
        %v2497 = vld [vmem:[%s542 + $0x10a] sm:$0xff]
        %v2498 = vld [vmem:[%s542 + $0x112] sm:$0xff]
        %v2499 = vld [vmem:[%s542 + $0x11a] sm:$0x3]
        %v2500 = vld [vmem:[%s542 + $0x122] sm:$0xff]
        %v2501 = vld [vmem:[%s542 + $0x12a] sm:$0xff]
        %v2502 = vld [vmem:[%s542 + $0x132] sm:$0xff]
        %v2503 = vld [vmem:[%s542 + $0x13a] sm:$0x3]
        %v2504 = vld [vmem:[%s542 + $0x142] sm:$0xff]
        %v2505 = vld [vmem:[%s542 + $0x14a] sm:$0xff]
        %v2506 = vld [vmem:[%s542 + $0x152] sm:$0xff]
        %v2507 = vld [vmem:[%s542 + $0x15a] sm:$0x3]
        %v2508 = vld [vmem:[%s542 + $0x162] sm:$0xff]
        %v2509 = vld [vmem:[%s542 + $0x16a] sm:$0xff]
        %v2510 = vld [vmem:[%s542 + $0x172] sm:$0xff]
        %v2511 = vld [vmem:[%s542 + $0x17a] sm:$0x3]
        %v2512 = vld [vmem:[%s542 + $0x182] sm:$0xff]
        %v2513 = vld [vmem:[%s542 + $0x18a] sm:$0xff]
        %v2514 = vld [vmem:[%s542 + $0x192] sm:$0xff]
        %v2515 = vld [vmem:[%s542 + $0x19a] sm:$0x3]
        %v2516 = vld [vmem:[%s542 + $0x1a2] sm:$0xff]
        %v2517 = vld [vmem:[%s542 + $0x1aa] sm:$0xff]
        %v2518 = vld [vmem:[%s542 + $0x1b2] sm:$0xff]
        %v2519 = vld [vmem:[%s542 + $0x1ba] sm:$0x3]
        %v2520 = vld [vmem:[%s542 + $0x1c2] sm:$0xff]
        %v2521 = vld [vmem:[%s542 + $0x1ca] sm:$0xff]
        %v2522 = vld [vmem:[%s542 + $0x1d2] sm:$0xff]
        %v2523 = vld [vmem:[%s542 + $0x1da] sm:$0x3]
        %v2524 = vld [vmem:[%s542 + $0x1e2] sm:$0xff]
        %v2525 = vld [vmem:[%s542 + $0x1ea] sm:$0xff]
        %v2526 = vld [vmem:[%s542 + $0x1f2] sm:$0xff]
        %v2527 = vld [vmem:[%s542 + $0x1fa] sm:$0x3]
        %v2528 = vld [vmem:[%s542 + $0x202] sm:$0xff]
        %v2529 = vld [vmem:[%s542 + $0x20a] sm:$0xff]
        %v2530 = vld [vmem:[%s542 + $0x212] sm:$0xff]
        %v2531 = vld [vmem:[%s542 + $0x21a] sm:$0x3]
        %v2532 = vld [vmem:[%s542 + $0x222] sm:$0xff]
        %v2533 = vld [vmem:[%s542 + $0x22a] sm:$0xff]
        %v2534 = vld [vmem:[%s542 + $0x232] sm:$0xff]
        %v2535 = vld [vmem:[%s542 + $0x23a] sm:$0x3]
        %v2536 = vld [vmem:[%s542 + $0x242] sm:$0xff]
        %v2537 = vld [vmem:[%s542 + $0x24a] sm:$0xff]
        %v2538 = vld [vmem:[%s542 + $0x252] sm:$0xff]
        %v2539 = vld [vmem:[%s542 + $0x25a] sm:$0x3]
        %v2540 = vld [vmem:[%s542 + $0x262] sm:$0xff]
        %v2541 = vld [vmem:[%s542 + $0x26a] sm:$0xff]
        %v2542 = vld [vmem:[%s542 + $0x272] sm:$0xff]
        %v2543 = vld [vmem:[%s542 + $0x27a] sm:$0x3]
        %v2544 = vld [vmem:[%s542 + $0x282] sm:$0xff]
        %v2545 = vld [vmem:[%s542 + $0x28a] sm:$0xff]
        %v2546 = vld [vmem:[%s542 + $0x292] sm:$0xff]
        %v2547 = vld [vmem:[%s542 + $0x29a] sm:$0x3]
        %v2548 = vld [vmem:[%s542 + $0x2a2] sm:$0xff]
        %v2549 = vld [vmem:[%s542 + $0x2aa] sm:$0xff]
        %v2550 = vld [vmem:[%s542 + $0x2b2] sm:$0xff]
        %v2551 = vld [vmem:[%s542 + $0x2ba] sm:$0x3]
        %v2552 = vld [vmem:[%s542 + $0x2c2] sm:$0xff]
        %v2553 = vld [vmem:[%s542 + $0x2ca] sm:$0xff]
        %v2554 = vld [vmem:[%s542 + $0x2d2] sm:$0xff]
        %v2555 = vld [vmem:[%s542 + $0x2da] sm:$0x3]
        %v2556 = vld [vmem:[%s542 + $0x2e2] sm:$0xff]
        %v2557 = vld [vmem:[%s542 + $0x2ea] sm:$0xff]
        %v2558 = vld [vmem:[%s542 + $0x2f2] sm:$0xff]
        %v2559 = vld [vmem:[%s542 + $0x2fa] sm:$0x3]
        %v2560 = vld [vmem:[%s542 + $0x302] sm:$0xff]
        %v2561 = vld [vmem:[%s542 + $0x30a] sm:$0xff]
        %v2562 = vld [vmem:[%s542 + $0x312] sm:$0xff]
        %v2563 = vld [vmem:[%s542 + $0x31a] sm:$0x3]
        %v2564 = vld [vmem:[%s542 + $0x322] sm:$0xff]
        %v2565 = vld [vmem:[%s542 + $0x32a] sm:$0xff]
        %v2566 = vld [vmem:[%s542 + $0x332] sm:$0xff]
        %v2567 = vld [vmem:[%s542 + $0x33a] sm:$0x3]
        %s2568 = scalar_lea.vmem %s1, 7
        %v2569 = vld [vmem:[%s2568] sm:$0x1]
        %v2571 = vlaneseq
        %v2572 = vshrl.u32 %v2571, 7
        %v2573 = vsub.s32 0, %v2572
        %v2574 = vrot.slane %v2569, %v2573
        %v2576 = vmul.f32 %v2464, %v2574
        %v2577 = vmul.f32 %v2465, %v2574
        %v2578 = vmul.f32 %v2466, %v2574
        %v2579 = vmul.f32 %v2467, %v2574
        %v2580 = vmul.f32 %v2468, %v2574
        %v2581 = vmul.f32 %v2469, %v2574
        %v2582 = vmul.f32 %v2470, %v2574
        %v2583 = vmul.f32 %v2471, %v2574
        %v2584 = vmul.f32 %v2472, %v2574
        %v2585 = vmul.f32 %v2473, %v2574
        %v2586 = vmul.f32 %v2474, %v2574
        %v2587 = vmul.f32 %v2475, %v2574
        %v2588 = vmul.f32 %v2476, %v2574
        %v2589 = vmul.f32 %v2477, %v2574
        %v2590 = vmul.f32 %v2478, %v2574
        %v2591 = vmul.f32 %v2479, %v2574
        %v2592 = vmul.f32 %v2480, %v2574
        %v2593 = vmul.f32 %v2481, %v2574
        %v2594 = vmul.f32 %v2482, %v2574
        %v2595 = vmul.f32 %v2483, %v2574
        %v2596 = vmul.f32 %v2484, %v2574
        %v2597 = vmul.f32 %v2485, %v2574
        %v2598 = vmul.f32 %v2486, %v2574
        %v2599 = vmul.f32 %v2487, %v2574
        %v2600 = vmul.f32 %v2488, %v2574
        %v2601 = vmul.f32 %v2489, %v2574
        %v2602 = vmul.f32 %v2490, %v2574
        %v2603 = vmul.f32 %v2491, %v2574
        %v2604 = vmul.f32 %v2492, %v2574
        %v2605 = vmul.f32 %v2493, %v2574
        %v2606 = vmul.f32 %v2494, %v2574
        %v2607 = vmul.f32 %v2495, %v2574
        %v2608 = vmul.f32 %v2496, %v2574
        %v2609 = vmul.f32 %v2497, %v2574
        %v2610 = vmul.f32 %v2498, %v2574
        %v2611 = vmul.f32 %v2499, %v2574
        %v2612 = vmul.f32 %v2500, %v2574
        %v2613 = vmul.f32 %v2501, %v2574
        %v2614 = vmul.f32 %v2502, %v2574
        %v2615 = vmul.f32 %v2503, %v2574
        %v2616 = vmul.f32 %v2504, %v2574
        %v2617 = vmul.f32 %v2505, %v2574
        %v2618 = vmul.f32 %v2506, %v2574
        %v2619 = vmul.f32 %v2507, %v2574
        %v2620 = vmul.f32 %v2508, %v2574
        %v2621 = vmul.f32 %v2509, %v2574
        %v2622 = vmul.f32 %v2510, %v2574
        %v2623 = vmul.f32 %v2511, %v2574
        %v2624 = vmul.f32 %v2512, %v2574
        %v2625 = vmul.f32 %v2513, %v2574
        %v2626 = vmul.f32 %v2514, %v2574
        %v2627 = vmul.f32 %v2515, %v2574
        %v2628 = vmul.f32 %v2516, %v2574
        %v2629 = vmul.f32 %v2517, %v2574
        %v2630 = vmul.f32 %v2518, %v2574
        %v2631 = vmul.f32 %v2519, %v2574
        %v2632 = vmul.f32 %v2520, %v2574
        %v2633 = vmul.f32 %v2521, %v2574
        %v2634 = vmul.f32 %v2522, %v2574
        %v2635 = vmul.f32 %v2523, %v2574
        %v2636 = vmul.f32 %v2524, %v2574
        %v2637 = vmul.f32 %v2525, %v2574
        %v2638 = vmul.f32 %v2526, %v2574
        %v2639 = vmul.f32 %v2527, %v2574
        %v2640 = vmul.f32 %v2528, %v2574
        %v2641 = vmul.f32 %v2529, %v2574
        %v2642 = vmul.f32 %v2530, %v2574
        %v2643 = vmul.f32 %v2531, %v2574
        %v2644 = vmul.f32 %v2532, %v2574
        %v2645 = vmul.f32 %v2533, %v2574
        %v2646 = vmul.f32 %v2534, %v2574
        %v2647 = vmul.f32 %v2535, %v2574
        %v2648 = vmul.f32 %v2536, %v2574
        %v2649 = vmul.f32 %v2537, %v2574
        %v2650 = vmul.f32 %v2538, %v2574
        %v2651 = vmul.f32 %v2539, %v2574
        %v2652 = vmul.f32 %v2540, %v2574
        %v2653 = vmul.f32 %v2541, %v2574
        %v2654 = vmul.f32 %v2542, %v2574
        %v2655 = vmul.f32 %v2543, %v2574
        %v2656 = vmul.f32 %v2544, %v2574
        %v2657 = vmul.f32 %v2545, %v2574
        %v2658 = vmul.f32 %v2546, %v2574
        %v2659 = vmul.f32 %v2547, %v2574
        %v2660 = vmul.f32 %v2548, %v2574
        %v2661 = vmul.f32 %v2549, %v2574
        %v2662 = vmul.f32 %v2550, %v2574
        %v2663 = vmul.f32 %v2551, %v2574
        %v2664 = vmul.f32 %v2552, %v2574
        %v2665 = vmul.f32 %v2553, %v2574
        %v2666 = vmul.f32 %v2554, %v2574
        %v2667 = vmul.f32 %v2555, %v2574
        %v2668 = vmul.f32 %v2556, %v2574
        %v2669 = vmul.f32 %v2557, %v2574
        %v2670 = vmul.f32 %v2558, %v2574
        %v2671 = vmul.f32 %v2559, %v2574
        %v2672 = vmul.f32 %v2560, %v2574
        %v2673 = vmul.f32 %v2561, %v2574
        %v2674 = vmul.f32 %v2562, %v2574
        %v2675 = vmul.f32 %v2563, %v2574
        %v2676 = vmul.f32 %v2564, %v2574
        %v2677 = vmul.f32 %v2565, %v2574
        %v2678 = vmul.f32 %v2566, %v2574
        %v2679 = vmul.f32 %v2567, %v2574
        %v2680 = vadd.f32 %v2360, %v2576
        %v2681 = vadd.f32 %v2361, %v2577
        %v2682 = vadd.f32 %v2362, %v2578
        %v2683 = vadd.f32 %v2363, %v2579
        %v2684 = vadd.f32 %v2364, %v2580
        %v2685 = vadd.f32 %v2365, %v2581
        %v2686 = vadd.f32 %v2366, %v2582
        %v2687 = vadd.f32 %v2367, %v2583
        %v2688 = vadd.f32 %v2368, %v2584
        %v2689 = vadd.f32 %v2369, %v2585
        %v2690 = vadd.f32 %v2370, %v2586
        %v2691 = vadd.f32 %v2371, %v2587
        %v2692 = vadd.f32 %v2372, %v2588
        %v2693 = vadd.f32 %v2373, %v2589
        %v2694 = vadd.f32 %v2374, %v2590
        %v2695 = vadd.f32 %v2375, %v2591
        %v2696 = vadd.f32 %v2376, %v2592
        %v2697 = vadd.f32 %v2377, %v2593
        %v2698 = vadd.f32 %v2378, %v2594
        %v2699 = vadd.f32 %v2379, %v2595
        %v2700 = vadd.f32 %v2380, %v2596
        %v2701 = vadd.f32 %v2381, %v2597
        %v2702 = vadd.f32 %v2382, %v2598
        %v2703 = vadd.f32 %v2383, %v2599
        %v2704 = vadd.f32 %v2384, %v2600
        %v2705 = vadd.f32 %v2385, %v2601
        %v2706 = vadd.f32 %v2386, %v2602
        %v2707 = vadd.f32 %v2387, %v2603
        %v2708 = vadd.f32 %v2388, %v2604
        %v2709 = vadd.f32 %v2389, %v2605
        %v2710 = vadd.f32 %v2390, %v2606
        %v2711 = vadd.f32 %v2391, %v2607
        %v2712 = vadd.f32 %v2392, %v2608
        %v2713 = vadd.f32 %v2393, %v2609
        %v2714 = vadd.f32 %v2394, %v2610
        %v2715 = vadd.f32 %v2395, %v2611
        %v2716 = vadd.f32 %v2396, %v2612
        %v2717 = vadd.f32 %v2397, %v2613
        %v2718 = vadd.f32 %v2398, %v2614
        %v2719 = vadd.f32 %v2399, %v2615
        %v2720 = vadd.f32 %v2400, %v2616
        %v2721 = vadd.f32 %v2401, %v2617
        %v2722 = vadd.f32 %v2402, %v2618
        %v2723 = vadd.f32 %v2403, %v2619
        %v2724 = vadd.f32 %v2404, %v2620
        %v2725 = vadd.f32 %v2405, %v2621
        %v2726 = vadd.f32 %v2406, %v2622
        %v2727 = vadd.f32 %v2407, %v2623
        %v2728 = vadd.f32 %v2408, %v2624
        %v2729 = vadd.f32 %v2409, %v2625
        %v2730 = vadd.f32 %v2410, %v2626
        %v2731 = vadd.f32 %v2411, %v2627
        %v2732 = vadd.f32 %v2412, %v2628
        %v2733 = vadd.f32 %v2413, %v2629
        %v2734 = vadd.f32 %v2414, %v2630
        %v2735 = vadd.f32 %v2415, %v2631
        %v2736 = vadd.f32 %v2416, %v2632
        %v2737 = vadd.f32 %v2417, %v2633
        %v2738 = vadd.f32 %v2418, %v2634
        %v2739 = vadd.f32 %v2419, %v2635
        %v2740 = vadd.f32 %v2420, %v2636
        %v2741 = vadd.f32 %v2421, %v2637
        %v2742 = vadd.f32 %v2422, %v2638
        %v2743 = vadd.f32 %v2423, %v2639
        %v2744 = vadd.f32 %v2424, %v2640
        %v2745 = vadd.f32 %v2425, %v2641
        %v2746 = vadd.f32 %v2426, %v2642
        %v2747 = vadd.f32 %v2427, %v2643
        %v2748 = vadd.f32 %v2428, %v2644
        %v2749 = vadd.f32 %v2429, %v2645
        %v2750 = vadd.f32 %v2430, %v2646
        %v2751 = vadd.f32 %v2431, %v2647
        %v2752 = vadd.f32 %v2432, %v2648
        %v2753 = vadd.f32 %v2433, %v2649
        %v2754 = vadd.f32 %v2434, %v2650
        %v2755 = vadd.f32 %v2435, %v2651
        %v2756 = vadd.f32 %v2436, %v2652
        %v2757 = vadd.f32 %v2437, %v2653
        %v2758 = vadd.f32 %v2438, %v2654
        %v2759 = vadd.f32 %v2439, %v2655
        %v2760 = vadd.f32 %v2440, %v2656
        %v2761 = vadd.f32 %v2441, %v2657
        %v2762 = vadd.f32 %v2442, %v2658
        %v2763 = vadd.f32 %v2443, %v2659
        %v2764 = vadd.f32 %v2444, %v2660
        %v2765 = vadd.f32 %v2445, %v2661
        %v2766 = vadd.f32 %v2446, %v2662
        %v2767 = vadd.f32 %v2447, %v2663
        %v2768 = vadd.f32 %v2448, %v2664
        %v2769 = vadd.f32 %v2449, %v2665
        %v2770 = vadd.f32 %v2450, %v2666
        %v2771 = vadd.f32 %v2451, %v2667
        %v2772 = vadd.f32 %v2452, %v2668
        %v2773 = vadd.f32 %v2453, %v2669
        %v2774 = vadd.f32 %v2454, %v2670
        %v2775 = vadd.f32 %v2455, %v2671
        %v2776 = vadd.f32 %v2456, %v2672
        %v2777 = vadd.f32 %v2457, %v2673
        %v2778 = vadd.f32 %v2458, %v2674
        %v2779 = vadd.f32 %v2459, %v2675
        %v2780 = vadd.f32 %v2460, %v2676
        %v2781 = vadd.f32 %v2461, %v2677
        %v2782 = vadd.f32 %v2462, %v2678
        %v2783 = vadd.f32 %v2463, %v2679
        %v2784 = vld [vmem:[%s863 + $0x2] sm:$0xff]
        %v2785 = vld [vmem:[%s863 + $0xa] sm:$0xff]
        %v2786 = vld [vmem:[%s863 + $0x12] sm:$0xff]
        %v2787 = vld [vmem:[%s863 + $0x1a] sm:$0x3]
        %v2788 = vld [vmem:[%s863 + $0x22] sm:$0xff]
        %v2789 = vld [vmem:[%s863 + $0x2a] sm:$0xff]
        %v2790 = vld [vmem:[%s863 + $0x32] sm:$0xff]
        %v2791 = vld [vmem:[%s863 + $0x3a] sm:$0x3]
        %v2792 = vld [vmem:[%s863 + $0x42] sm:$0xff]
        %v2793 = vld [vmem:[%s863 + $0x4a] sm:$0xff]
        %v2794 = vld [vmem:[%s863 + $0x52] sm:$0xff]
        %v2795 = vld [vmem:[%s863 + $0x5a] sm:$0x3]
        %v2796 = vld [vmem:[%s863 + $0x62] sm:$0xff]
        %v2797 = vld [vmem:[%s863 + $0x6a] sm:$0xff]
        %v2798 = vld [vmem:[%s863 + $0x72] sm:$0xff]
        %v2799 = vld [vmem:[%s863 + $0x7a] sm:$0x3]
        %v2800 = vld [vmem:[%s863 + $0x82] sm:$0xff]
        %v2801 = vld [vmem:[%s863 + $0x8a] sm:$0xff]
        %v2802 = vld [vmem:[%s863 + $0x92] sm:$0xff]
        %v2803 = vld [vmem:[%s863 + $0x9a] sm:$0x3]
        %v2804 = vld [vmem:[%s863 + $0xa2] sm:$0xff]
        %v2805 = vld [vmem:[%s863 + $0xaa] sm:$0xff]
        %v2806 = vld [vmem:[%s863 + $0xb2] sm:$0xff]
        %v2807 = vld [vmem:[%s863 + $0xba] sm:$0x3]
        %v2808 = vld [vmem:[%s863 + $0xc2] sm:$0xff]
        %v2809 = vld [vmem:[%s863 + $0xca] sm:$0xff]
        %v2810 = vld [vmem:[%s863 + $0xd2] sm:$0xff]
        %v2811 = vld [vmem:[%s863 + $0xda] sm:$0x3]
        %v2812 = vld [vmem:[%s863 + $0xe2] sm:$0xff]
        %v2813 = vld [vmem:[%s863 + $0xea] sm:$0xff]
        %v2814 = vld [vmem:[%s863 + $0xf2] sm:$0xff]
        %v2815 = vld [vmem:[%s863 + $0xfa] sm:$0x3]
        %v2816 = vld [vmem:[%s863 + $0x102] sm:$0xff]
        %v2817 = vld [vmem:[%s863 + $0x10a] sm:$0xff]
        %v2818 = vld [vmem:[%s863 + $0x112] sm:$0xff]
        %v2819 = vld [vmem:[%s863 + $0x11a] sm:$0x3]
        %v2820 = vld [vmem:[%s863 + $0x122] sm:$0xff]
        %v2821 = vld [vmem:[%s863 + $0x12a] sm:$0xff]
        %v2822 = vld [vmem:[%s863 + $0x132] sm:$0xff]
        %v2823 = vld [vmem:[%s863 + $0x13a] sm:$0x3]
        %v2824 = vld [vmem:[%s863 + $0x142] sm:$0xff]
        %v2825 = vld [vmem:[%s863 + $0x14a] sm:$0xff]
        %v2826 = vld [vmem:[%s863 + $0x152] sm:$0xff]
        %v2827 = vld [vmem:[%s863 + $0x15a] sm:$0x3]
        %v2828 = vld [vmem:[%s863 + $0x162] sm:$0xff]
        %v2829 = vld [vmem:[%s863 + $0x16a] sm:$0xff]
        %v2830 = vld [vmem:[%s863 + $0x172] sm:$0xff]
        %v2831 = vld [vmem:[%s863 + $0x17a] sm:$0x3]
        %v2832 = vld [vmem:[%s863 + $0x182] sm:$0xff]
        %v2833 = vld [vmem:[%s863 + $0x18a] sm:$0xff]
        %v2834 = vld [vmem:[%s863 + $0x192] sm:$0xff]
        %v2835 = vld [vmem:[%s863 + $0x19a] sm:$0x3]
        %v2836 = vld [vmem:[%s863 + $0x1a2] sm:$0xff]
        %v2837 = vld [vmem:[%s863 + $0x1aa] sm:$0xff]
        %v2838 = vld [vmem:[%s863 + $0x1b2] sm:$0xff]
        %v2839 = vld [vmem:[%s863 + $0x1ba] sm:$0x3]
        %v2840 = vld [vmem:[%s863 + $0x1c2] sm:$0xff]
        %v2841 = vld [vmem:[%s863 + $0x1ca] sm:$0xff]
        %v2842 = vld [vmem:[%s863 + $0x1d2] sm:$0xff]
        %v2843 = vld [vmem:[%s863 + $0x1da] sm:$0x3]
        %v2844 = vld [vmem:[%s863 + $0x1e2] sm:$0xff]
        %v2845 = vld [vmem:[%s863 + $0x1ea] sm:$0xff]
        %v2846 = vld [vmem:[%s863 + $0x1f2] sm:$0xff]
        %v2847 = vld [vmem:[%s863 + $0x1fa] sm:$0x3]
        %v2848 = vld [vmem:[%s863 + $0x202] sm:$0xff]
        %v2849 = vld [vmem:[%s863 + $0x20a] sm:$0xff]
        %v2850 = vld [vmem:[%s863 + $0x212] sm:$0xff]
        %v2851 = vld [vmem:[%s863 + $0x21a] sm:$0x3]
        %v2852 = vld [vmem:[%s863 + $0x222] sm:$0xff]
        %v2853 = vld [vmem:[%s863 + $0x22a] sm:$0xff]
        %v2854 = vld [vmem:[%s863 + $0x232] sm:$0xff]
        %v2855 = vld [vmem:[%s863 + $0x23a] sm:$0x3]
        %v2856 = vld [vmem:[%s863 + $0x242] sm:$0xff]
        %v2857 = vld [vmem:[%s863 + $0x24a] sm:$0xff]
        %v2858 = vld [vmem:[%s863 + $0x252] sm:$0xff]
        %v2859 = vld [vmem:[%s863 + $0x25a] sm:$0x3]
        %v2860 = vld [vmem:[%s863 + $0x262] sm:$0xff]
        %v2861 = vld [vmem:[%s863 + $0x26a] sm:$0xff]
        %v2862 = vld [vmem:[%s863 + $0x272] sm:$0xff]
        %v2863 = vld [vmem:[%s863 + $0x27a] sm:$0x3]
        %v2864 = vld [vmem:[%s863 + $0x282] sm:$0xff]
        %v2865 = vld [vmem:[%s863 + $0x28a] sm:$0xff]
        %v2866 = vld [vmem:[%s863 + $0x292] sm:$0xff]
        %v2867 = vld [vmem:[%s863 + $0x29a] sm:$0x3]
        %v2868 = vld [vmem:[%s863 + $0x2a2] sm:$0xff]
        %v2869 = vld [vmem:[%s863 + $0x2aa] sm:$0xff]
        %v2870 = vld [vmem:[%s863 + $0x2b2] sm:$0xff]
        %v2871 = vld [vmem:[%s863 + $0x2ba] sm:$0x3]
        %v2872 = vld [vmem:[%s863 + $0x2c2] sm:$0xff]
        %v2873 = vld [vmem:[%s863 + $0x2ca] sm:$0xff]
        %v2874 = vld [vmem:[%s863 + $0x2d2] sm:$0xff]
        %v2875 = vld [vmem:[%s863 + $0x2da] sm:$0x3]
        %v2876 = vld [vmem:[%s863 + $0x2e2] sm:$0xff]
        %v2877 = vld [vmem:[%s863 + $0x2ea] sm:$0xff]
        %v2878 = vld [vmem:[%s863 + $0x2f2] sm:$0xff]
        %v2879 = vld [vmem:[%s863 + $0x2fa] sm:$0x3]
        %v2880 = vld [vmem:[%s863 + $0x302] sm:$0xff]
        %v2881 = vld [vmem:[%s863 + $0x30a] sm:$0xff]
        %v2882 = vld [vmem:[%s863 + $0x312] sm:$0xff]
        %v2883 = vld [vmem:[%s863 + $0x31a] sm:$0x3]
        %v2884 = vld [vmem:[%s863 + $0x322] sm:$0xff]
        %v2885 = vld [vmem:[%s863 + $0x32a] sm:$0xff]
        %v2886 = vld [vmem:[%s863 + $0x332] sm:$0xff]
        %v2887 = vld [vmem:[%s863 + $0x33a] sm:$0x3]
        %s2888 = scalar_lea.vmem %s1, 8
        %v2889 = vld [vmem:[%s2888] sm:$0x1]
        %v2891 = vlaneseq
        %v2892 = vshrl.u32 %v2891, 7
        %v2893 = vsub.s32 0, %v2892
        %v2894 = vrot.slane %v2889, %v2893
        %v2896 = vmul.f32 %v2784, %v2894
        %v2897 = vmul.f32 %v2785, %v2894
        %v2898 = vmul.f32 %v2786, %v2894
        %v2899 = vmul.f32 %v2787, %v2894
        %v2900 = vmul.f32 %v2788, %v2894
        %v2901 = vmul.f32 %v2789, %v2894
        %v2902 = vmul.f32 %v2790, %v2894
        %v2903 = vmul.f32 %v2791, %v2894
        %v2904 = vmul.f32 %v2792, %v2894
        %v2905 = vmul.f32 %v2793, %v2894
        %v2906 = vmul.f32 %v2794, %v2894
        %v2907 = vmul.f32 %v2795, %v2894
        %v2908 = vmul.f32 %v2796, %v2894
        %v2909 = vmul.f32 %v2797, %v2894
        %v2910 = vmul.f32 %v2798, %v2894
        %v2911 = vmul.f32 %v2799, %v2894
        %v2912 = vmul.f32 %v2800, %v2894
        %v2913 = vmul.f32 %v2801, %v2894
        %v2914 = vmul.f32 %v2802, %v2894
        %v2915 = vmul.f32 %v2803, %v2894
        %v2916 = vmul.f32 %v2804, %v2894
        %v2917 = vmul.f32 %v2805, %v2894
        %v2918 = vmul.f32 %v2806, %v2894
        %v2919 = vmul.f32 %v2807, %v2894
        %v2920 = vmul.f32 %v2808, %v2894
        %v2921 = vmul.f32 %v2809, %v2894
        %v2922 = vmul.f32 %v2810, %v2894
        %v2923 = vmul.f32 %v2811, %v2894
        %v2924 = vmul.f32 %v2812, %v2894
        %v2925 = vmul.f32 %v2813, %v2894
        %v2926 = vmul.f32 %v2814, %v2894
        %v2927 = vmul.f32 %v2815, %v2894
        %v2928 = vmul.f32 %v2816, %v2894
        %v2929 = vmul.f32 %v2817, %v2894
        %v2930 = vmul.f32 %v2818, %v2894
        %v2931 = vmul.f32 %v2819, %v2894
        %v2932 = vmul.f32 %v2820, %v2894
        %v2933 = vmul.f32 %v2821, %v2894
        %v2934 = vmul.f32 %v2822, %v2894
        %v2935 = vmul.f32 %v2823, %v2894
        %v2936 = vmul.f32 %v2824, %v2894
        %v2937 = vmul.f32 %v2825, %v2894
        %v2938 = vmul.f32 %v2826, %v2894
        %v2939 = vmul.f32 %v2827, %v2894
        %v2940 = vmul.f32 %v2828, %v2894
        %v2941 = vmul.f32 %v2829, %v2894
        %v2942 = vmul.f32 %v2830, %v2894
        %v2943 = vmul.f32 %v2831, %v2894
        %v2944 = vmul.f32 %v2832, %v2894
        %v2945 = vmul.f32 %v2833, %v2894
        %v2946 = vmul.f32 %v2834, %v2894
        %v2947 = vmul.f32 %v2835, %v2894
        %v2948 = vmul.f32 %v2836, %v2894
        %v2949 = vmul.f32 %v2837, %v2894
        %v2950 = vmul.f32 %v2838, %v2894
        %v2951 = vmul.f32 %v2839, %v2894
        %v2952 = vmul.f32 %v2840, %v2894
        %v2953 = vmul.f32 %v2841, %v2894
        %v2954 = vmul.f32 %v2842, %v2894
        %v2955 = vmul.f32 %v2843, %v2894
        %v2956 = vmul.f32 %v2844, %v2894
        %v2957 = vmul.f32 %v2845, %v2894
        %v2958 = vmul.f32 %v2846, %v2894
        %v2959 = vmul.f32 %v2847, %v2894
        %v2960 = vmul.f32 %v2848, %v2894
        %v2961 = vmul.f32 %v2849, %v2894
        %v2962 = vmul.f32 %v2850, %v2894
        %v2963 = vmul.f32 %v2851, %v2894
        %v2964 = vmul.f32 %v2852, %v2894
        %v2965 = vmul.f32 %v2853, %v2894
        %v2966 = vmul.f32 %v2854, %v2894
        %v2967 = vmul.f32 %v2855, %v2894
        %v2968 = vmul.f32 %v2856, %v2894
        %v2969 = vmul.f32 %v2857, %v2894
        %v2970 = vmul.f32 %v2858, %v2894
        %v2971 = vmul.f32 %v2859, %v2894
        %v2972 = vmul.f32 %v2860, %v2894
        %v2973 = vmul.f32 %v2861, %v2894
        %v2974 = vmul.f32 %v2862, %v2894
        %v2975 = vmul.f32 %v2863, %v2894
        %v2976 = vmul.f32 %v2864, %v2894
        %v2977 = vmul.f32 %v2865, %v2894
        %v2978 = vmul.f32 %v2866, %v2894
        %v2979 = vmul.f32 %v2867, %v2894
        %v2980 = vmul.f32 %v2868, %v2894
        %v2981 = vmul.f32 %v2869, %v2894
        %v2982 = vmul.f32 %v2870, %v2894
        %v2983 = vmul.f32 %v2871, %v2894
        %v2984 = vmul.f32 %v2872, %v2894
        %v2985 = vmul.f32 %v2873, %v2894
        %v2986 = vmul.f32 %v2874, %v2894
        %v2987 = vmul.f32 %v2875, %v2894
        %v2988 = vmul.f32 %v2876, %v2894
        %v2989 = vmul.f32 %v2877, %v2894
        %v2990 = vmul.f32 %v2878, %v2894
        %v2991 = vmul.f32 %v2879, %v2894
        %v2992 = vmul.f32 %v2880, %v2894
        %v2993 = vmul.f32 %v2881, %v2894
        %v2994 = vmul.f32 %v2882, %v2894
        %v2995 = vmul.f32 %v2883, %v2894
        %v2996 = vmul.f32 %v2884, %v2894
        %v2997 = vmul.f32 %v2885, %v2894
        %v2998 = vmul.f32 %v2886, %v2894
        %v2999 = vmul.f32 %v2887, %v2894
        %v3000 = vadd.f32 %v2680, %v2896
        %v3001 = vadd.f32 %v2681, %v2897
        %v3002 = vadd.f32 %v2682, %v2898
        %v3003 = vadd.f32 %v2683, %v2899
        %v3004 = vadd.f32 %v2684, %v2900
        %v3005 = vadd.f32 %v2685, %v2901
        %v3006 = vadd.f32 %v2686, %v2902
        %v3007 = vadd.f32 %v2687, %v2903
        %v3008 = vadd.f32 %v2688, %v2904
        %v3009 = vadd.f32 %v2689, %v2905
        %v3010 = vadd.f32 %v2690, %v2906
        %v3011 = vadd.f32 %v2691, %v2907
        %v3012 = vadd.f32 %v2692, %v2908
        %v3013 = vadd.f32 %v2693, %v2909
        %v3014 = vadd.f32 %v2694, %v2910
        %v3015 = vadd.f32 %v2695, %v2911
        %v3016 = vadd.f32 %v2696, %v2912
        %v3017 = vadd.f32 %v2697, %v2913
        %v3018 = vadd.f32 %v2698, %v2914
        %v3019 = vadd.f32 %v2699, %v2915
        %v3020 = vadd.f32 %v2700, %v2916
        %v3021 = vadd.f32 %v2701, %v2917
        %v3022 = vadd.f32 %v2702, %v2918
        %v3023 = vadd.f32 %v2703, %v2919
        %v3024 = vadd.f32 %v2704, %v2920
        %v3025 = vadd.f32 %v2705, %v2921
        %v3026 = vadd.f32 %v2706, %v2922
        %v3027 = vadd.f32 %v2707, %v2923
        %v3028 = vadd.f32 %v2708, %v2924
        %v3029 = vadd.f32 %v2709, %v2925
        %v3030 = vadd.f32 %v2710, %v2926
        %v3031 = vadd.f32 %v2711, %v2927
        %v3032 = vadd.f32 %v2712, %v2928
        %v3033 = vadd.f32 %v2713, %v2929
        %v3034 = vadd.f32 %v2714, %v2930
        %v3035 = vadd.f32 %v2715, %v2931
        %v3036 = vadd.f32 %v2716, %v2932
        %v3037 = vadd.f32 %v2717, %v2933
        %v3038 = vadd.f32 %v2718, %v2934
        %v3039 = vadd.f32 %v2719, %v2935
        %v3040 = vadd.f32 %v2720, %v2936
        %v3041 = vadd.f32 %v2721, %v2937
        %v3042 = vadd.f32 %v2722, %v2938
        %v3043 = vadd.f32 %v2723, %v2939
        %v3044 = vadd.f32 %v2724, %v2940
        %v3045 = vadd.f32 %v2725, %v2941
        %v3046 = vadd.f32 %v2726, %v2942
        %v3047 = vadd.f32 %v2727, %v2943
        %v3048 = vadd.f32 %v2728, %v2944
        %v3049 = vadd.f32 %v2729, %v2945
        %v3050 = vadd.f32 %v2730, %v2946
        %v3051 = vadd.f32 %v2731, %v2947
        %v3052 = vadd.f32 %v2732, %v2948
        %v3053 = vadd.f32 %v2733, %v2949
        %v3054 = vadd.f32 %v2734, %v2950
        %v3055 = vadd.f32 %v2735, %v2951
        %v3056 = vadd.f32 %v2736, %v2952
        %v3057 = vadd.f32 %v2737, %v2953
        %v3058 = vadd.f32 %v2738, %v2954
        %v3059 = vadd.f32 %v2739, %v2955
        %v3060 = vadd.f32 %v2740, %v2956
        %v3061 = vadd.f32 %v2741, %v2957
        %v3062 = vadd.f32 %v2742, %v2958
        %v3063 = vadd.f32 %v2743, %v2959
        %v3064 = vadd.f32 %v2744, %v2960
        %v3065 = vadd.f32 %v2745, %v2961
        %v3066 = vadd.f32 %v2746, %v2962
        %v3067 = vadd.f32 %v2747, %v2963
        %v3068 = vadd.f32 %v2748, %v2964
        %v3069 = vadd.f32 %v2749, %v2965
        %v3070 = vadd.f32 %v2750, %v2966
        %v3071 = vadd.f32 %v2751, %v2967
        %v3072 = vadd.f32 %v2752, %v2968
        %v3073 = vadd.f32 %v2753, %v2969
        %v3074 = vadd.f32 %v2754, %v2970
        %v3075 = vadd.f32 %v2755, %v2971
        %v3076 = vadd.f32 %v2756, %v2972
        %v3077 = vadd.f32 %v2757, %v2973
        %v3078 = vadd.f32 %v2758, %v2974
        %v3079 = vadd.f32 %v2759, %v2975
        %v3080 = vadd.f32 %v2760, %v2976
        %v3081 = vadd.f32 %v2761, %v2977
        %v3082 = vadd.f32 %v2762, %v2978
        %v3083 = vadd.f32 %v2763, %v2979
        %v3084 = vadd.f32 %v2764, %v2980
        %v3085 = vadd.f32 %v2765, %v2981
        %v3086 = vadd.f32 %v2766, %v2982
        %v3087 = vadd.f32 %v2767, %v2983
        %v3088 = vadd.f32 %v2768, %v2984
        %v3089 = vadd.f32 %v2769, %v2985
        %v3090 = vadd.f32 %v2770, %v2986
        %v3091 = vadd.f32 %v2771, %v2987
        %v3092 = vadd.f32 %v2772, %v2988
        %v3093 = vadd.f32 %v2773, %v2989
        %v3094 = vadd.f32 %v2774, %v2990
        %v3095 = vadd.f32 %v2775, %v2991
        %v3096 = vadd.f32 %v2776, %v2992
        %v3097 = vadd.f32 %v2777, %v2993
        %v3098 = vadd.f32 %v2778, %v2994
        %v3099 = vadd.f32 %v2779, %v2995
        %v3100 = vadd.f32 %v2780, %v2996
        %v3101 = vadd.f32 %v2781, %v2997
        %v3102 = vadd.f32 %v2782, %v2998
        %v3103 = vadd.f32 %v2783, %v2999
        %v3104 = vld [vmem:[%s2] sm:$0x1]
        %v3106 = vlaneseq
        %v3107 = vshrl.u32 %v3106, 7
        %v3108 = vsub.s32 0, %v3107
        %v3109 = vrot.slane %v3104, %v3108
        %v3111 = vadd.f32 %v3000, %v3109
        %v3112 = vadd.f32 %v3001, %v3109
        %v3113 = vadd.f32 %v3002, %v3109
        %v3114 = vadd.f32 %v3003, %v3109
        %v3115 = vadd.f32 %v3004, %v3109
        %v3116 = vadd.f32 %v3005, %v3109
        %v3117 = vadd.f32 %v3006, %v3109
        %v3118 = vadd.f32 %v3007, %v3109
        %v3119 = vadd.f32 %v3008, %v3109
        %v3120 = vadd.f32 %v3009, %v3109
        %v3121 = vadd.f32 %v3010, %v3109
        %v3122 = vadd.f32 %v3011, %v3109
        %v3123 = vadd.f32 %v3012, %v3109
        %v3124 = vadd.f32 %v3013, %v3109
        %v3125 = vadd.f32 %v3014, %v3109
        %v3126 = vadd.f32 %v3015, %v3109
        %v3127 = vadd.f32 %v3016, %v3109
        %v3128 = vadd.f32 %v3017, %v3109
        %v3129 = vadd.f32 %v3018, %v3109
        %v3130 = vadd.f32 %v3019, %v3109
        %v3131 = vadd.f32 %v3020, %v3109
        %v3132 = vadd.f32 %v3021, %v3109
        %v3133 = vadd.f32 %v3022, %v3109
        %v3134 = vadd.f32 %v3023, %v3109
        %v3135 = vadd.f32 %v3024, %v3109
        %v3136 = vadd.f32 %v3025, %v3109
        %v3137 = vadd.f32 %v3026, %v3109
        %v3138 = vadd.f32 %v3027, %v3109
        %v3139 = vadd.f32 %v3028, %v3109
        %v3140 = vadd.f32 %v3029, %v3109
        %v3141 = vadd.f32 %v3030, %v3109
        %v3142 = vadd.f32 %v3031, %v3109
        %v3143 = vadd.f32 %v3032, %v3109
        %v3144 = vadd.f32 %v3033, %v3109
        %v3145 = vadd.f32 %v3034, %v3109
        %v3146 = vadd.f32 %v3035, %v3109
        %v3147 = vadd.f32 %v3036, %v3109
        %v3148 = vadd.f32 %v3037, %v3109
        %v3149 = vadd.f32 %v3038, %v3109
        %v3150 = vadd.f32 %v3039, %v3109
        %v3151 = vadd.f32 %v3040, %v3109
        %v3152 = vadd.f32 %v3041, %v3109
        %v3153 = vadd.f32 %v3042, %v3109
        %v3154 = vadd.f32 %v3043, %v3109
        %v3155 = vadd.f32 %v3044, %v3109
        %v3156 = vadd.f32 %v3045, %v3109
        %v3157 = vadd.f32 %v3046, %v3109
        %v3158 = vadd.f32 %v3047, %v3109
        %v3159 = vadd.f32 %v3048, %v3109
        %v3160 = vadd.f32 %v3049, %v3109
        %v3161 = vadd.f32 %v3050, %v3109
        %v3162 = vadd.f32 %v3051, %v3109
        %v3163 = vadd.f32 %v3052, %v3109
        %v3164 = vadd.f32 %v3053, %v3109
        %v3165 = vadd.f32 %v3054, %v3109
        %v3166 = vadd.f32 %v3055, %v3109
        %v3167 = vadd.f32 %v3056, %v3109
        %v3168 = vadd.f32 %v3057, %v3109
        %v3169 = vadd.f32 %v3058, %v3109
        %v3170 = vadd.f32 %v3059, %v3109
        %v3171 = vadd.f32 %v3060, %v3109
        %v3172 = vadd.f32 %v3061, %v3109
        %v3173 = vadd.f32 %v3062, %v3109
        %v3174 = vadd.f32 %v3063, %v3109
        %v3175 = vadd.f32 %v3064, %v3109
        %v3176 = vadd.f32 %v3065, %v3109
        %v3177 = vadd.f32 %v3066, %v3109
        %v3178 = vadd.f32 %v3067, %v3109
        %v3179 = vadd.f32 %v3068, %v3109
        %v3180 = vadd.f32 %v3069, %v3109
        %v3181 = vadd.f32 %v3070, %v3109
        %v3182 = vadd.f32 %v3071, %v3109
        %v3183 = vadd.f32 %v3072, %v3109
        %v3184 = vadd.f32 %v3073, %v3109
        %v3185 = vadd.f32 %v3074, %v3109
        %v3186 = vadd.f32 %v3075, %v3109
        %v3187 = vadd.f32 %v3076, %v3109
        %v3188 = vadd.f32 %v3077, %v3109
        %v3189 = vadd.f32 %v3078, %v3109
        %v3190 = vadd.f32 %v3079, %v3109
        %v3191 = vadd.f32 %v3080, %v3109
        %v3192 = vadd.f32 %v3081, %v3109
        %v3193 = vadd.f32 %v3082, %v3109
        %v3194 = vadd.f32 %v3083, %v3109
        %v3195 = vadd.f32 %v3084, %v3109
        %v3196 = vadd.f32 %v3085, %v3109
        %v3197 = vadd.f32 %v3086, %v3109
        %v3198 = vadd.f32 %v3087, %v3109
        %v3199 = vadd.f32 %v3088, %v3109
        %v3200 = vadd.f32 %v3089, %v3109
        %v3201 = vadd.f32 %v3090, %v3109
        %v3202 = vadd.f32 %v3091, %v3109
        %v3203 = vadd.f32 %v3092, %v3109
        %v3204 = vadd.f32 %v3093, %v3109
        %v3205 = vadd.f32 %v3094, %v3109
        %v3206 = vadd.f32 %v3095, %v3109
        %v3207 = vadd.f32 %v3096, %v3109
        %v3208 = vadd.f32 %v3097, %v3109
        %v3209 = vadd.f32 %v3098, %v3109
        %v3210 = vadd.f32 %v3099, %v3109
        %v3211 = vadd.f32 %v3100, %v3109
        %v3212 = vadd.f32 %v3101, %v3109
        %v3213 = vadd.f32 %v3102, %v3109
        %v3214 = vadd.f32 %v3103, %v3109
        %v3215 = vmax.f32 %v3111, 0.0
        %v3216 = vmax.f32 %v3112, 0.0
        %v3217 = vmax.f32 %v3113, 0.0
        %v3218 = vmax.f32 %v3114, 0.0
        %v3219 = vmax.f32 %v3115, 0.0
        %v3220 = vmax.f32 %v3116, 0.0
        %v3221 = vmax.f32 %v3117, 0.0
        %v3222 = vmax.f32 %v3118, 0.0
        %v3223 = vmax.f32 %v3119, 0.0
        %v3224 = vmax.f32 %v3120, 0.0
        %v3225 = vmax.f32 %v3121, 0.0
        %v3226 = vmax.f32 %v3122, 0.0
        %v3227 = vmax.f32 %v3123, 0.0
        %v3228 = vmax.f32 %v3124, 0.0
        %v3229 = vmax.f32 %v3125, 0.0
        %v3230 = vmax.f32 %v3126, 0.0
        %v3231 = vmax.f32 %v3127, 0.0
        %v3232 = vmax.f32 %v3128, 0.0
        %v3233 = vmax.f32 %v3129, 0.0
        %v3234 = vmax.f32 %v3130, 0.0
        %v3235 = vmax.f32 %v3131, 0.0
        %v3236 = vmax.f32 %v3132, 0.0
        %v3237 = vmax.f32 %v3133, 0.0
        %v3238 = vmax.f32 %v3134, 0.0
        %v3239 = vmax.f32 %v3135, 0.0
        %v3240 = vmax.f32 %v3136, 0.0
        %v3241 = vmax.f32 %v3137, 0.0
        %v3242 = vmax.f32 %v3138, 0.0
        %v3243 = vmax.f32 %v3139, 0.0
        %v3244 = vmax.f32 %v3140, 0.0
        %v3245 = vmax.f32 %v3141, 0.0
        %v3246 = vmax.f32 %v3142, 0.0
        %v3247 = vmax.f32 %v3143, 0.0
        %v3248 = vmax.f32 %v3144, 0.0
        %v3249 = vmax.f32 %v3145, 0.0
        %v3250 = vmax.f32 %v3146, 0.0
        %v3251 = vmax.f32 %v3147, 0.0
        %v3252 = vmax.f32 %v3148, 0.0
        %v3253 = vmax.f32 %v3149, 0.0
        %v3254 = vmax.f32 %v3150, 0.0
        %v3255 = vmax.f32 %v3151, 0.0
        %v3256 = vmax.f32 %v3152, 0.0
        %v3257 = vmax.f32 %v3153, 0.0
        %v3258 = vmax.f32 %v3154, 0.0
        %v3259 = vmax.f32 %v3155, 0.0
        %v3260 = vmax.f32 %v3156, 0.0
        %v3261 = vmax.f32 %v3157, 0.0
        %v3262 = vmax.f32 %v3158, 0.0
        %v3263 = vmax.f32 %v3159, 0.0
        %v3264 = vmax.f32 %v3160, 0.0
        %v3265 = vmax.f32 %v3161, 0.0
        %v3266 = vmax.f32 %v3162, 0.0
        %v3267 = vmax.f32 %v3163, 0.0
        %v3268 = vmax.f32 %v3164, 0.0
        %v3269 = vmax.f32 %v3165, 0.0
        %v3270 = vmax.f32 %v3166, 0.0
        %v3271 = vmax.f32 %v3167, 0.0
        %v3272 = vmax.f32 %v3168, 0.0
        %v3273 = vmax.f32 %v3169, 0.0
        %v3274 = vmax.f32 %v3170, 0.0
        %v3275 = vmax.f32 %v3171, 0.0
        %v3276 = vmax.f32 %v3172, 0.0
        %v3277 = vmax.f32 %v3173, 0.0
        %v3278 = vmax.f32 %v3174, 0.0
        %v3279 = vmax.f32 %v3175, 0.0
        %v3280 = vmax.f32 %v3176, 0.0
        %v3281 = vmax.f32 %v3177, 0.0
        %v3282 = vmax.f32 %v3178, 0.0
        %v3283 = vmax.f32 %v3179, 0.0
        %v3284 = vmax.f32 %v3180, 0.0
        %v3285 = vmax.f32 %v3181, 0.0
        %v3286 = vmax.f32 %v3182, 0.0
        %v3287 = vmax.f32 %v3183, 0.0
        %v3288 = vmax.f32 %v3184, 0.0
        %v3289 = vmax.f32 %v3185, 0.0
        %v3290 = vmax.f32 %v3186, 0.0
        %v3291 = vmax.f32 %v3187, 0.0
        %v3292 = vmax.f32 %v3188, 0.0
        %v3293 = vmax.f32 %v3189, 0.0
        %v3294 = vmax.f32 %v3190, 0.0
        %v3295 = vmax.f32 %v3191, 0.0
        %v3296 = vmax.f32 %v3192, 0.0
        %v3297 = vmax.f32 %v3193, 0.0
        %v3298 = vmax.f32 %v3194, 0.0
        %v3299 = vmax.f32 %v3195, 0.0
        %v3300 = vmax.f32 %v3196, 0.0
        %v3301 = vmax.f32 %v3197, 0.0
        %v3302 = vmax.f32 %v3198, 0.0
        %v3303 = vmax.f32 %v3199, 0.0
        %v3304 = vmax.f32 %v3200, 0.0
        %v3305 = vmax.f32 %v3201, 0.0
        %v3306 = vmax.f32 %v3202, 0.0
        %v3307 = vmax.f32 %v3203, 0.0
        %v3308 = vmax.f32 %v3204, 0.0
        %v3309 = vmax.f32 %v3205, 0.0
        %v3310 = vmax.f32 %v3206, 0.0
        %v3311 = vmax.f32 %v3207, 0.0
        %v3312 = vmax.f32 %v3208, 0.0
        %v3313 = vmax.f32 %v3209, 0.0
        %v3314 = vmax.f32 %v3210, 0.0
        %v3315 = vmax.f32 %v3211, 0.0
        %v3316 = vmax.f32 %v3212, 0.0
        %v3317 = vmax.f32 %v3213, 0.0
        %v3318 = vmax.f32 %v3214, 0.0
        %3319 = vst [vmem:[#allocation2] sm:$0xff] %v3215
        %3320 = vst [vmem:[#allocation2 + $0x8] sm:$0xff] %v3216
        %3321 = vst [vmem:[#allocation2 + $0x10] sm:$0xff] %v3217
        %3322 = vst [vmem:[#allocation2 + $0x18] sm:$0x3] %v3218
        %3323 = vst [vmem:[#allocation2 + $0x20] sm:$0xff] %v3219
        %3324 = vst [vmem:[#allocation2 + $0x28] sm:$0xff] %v3220
        %3325 = vst [vmem:[#allocation2 + $0x30] sm:$0xff] %v3221
        %3326 = vst [vmem:[#allocation2 + $0x38] sm:$0x3] %v3222
        %3327 = vst [vmem:[#allocation2 + $0x40] sm:$0xff] %v3223
        %3328 = vst [vmem:[#allocation2 + $0x48] sm:$0xff] %v3224
        %3329 = vst [vmem:[#allocation2 + $0x50] sm:$0xff] %v3225
        %3330 = vst [vmem:[#allocation2 + $0x58] sm:$0x3] %v3226
        %3331 = vst [vmem:[#allocation2 + $0x60] sm:$0xff] %v3227
        %3332 = vst [vmem:[#allocation2 + $0x68] sm:$0xff] %v3228
        %3333 = vst [vmem:[#allocation2 + $0x70] sm:$0xff] %v3229
        %3334 = vst [vmem:[#allocation2 + $0x78] sm:$0x3] %v3230
        %3335 = vst [vmem:[#allocation2 + $0x80] sm:$0xff] %v3231
        %3336 = vst [vmem:[#allocation2 + $0x88] sm:$0xff] %v3232
        %3337 = vst [vmem:[#allocation2 + $0x90] sm:$0xff] %v3233
        %3338 = vst [vmem:[#allocation2 + $0x98] sm:$0x3] %v3234
        %3339 = vst [vmem:[#allocation2 + $0xa0] sm:$0xff] %v3235
        %3340 = vst [vmem:[#allocation2 + $0xa8] sm:$0xff] %v3236
        %3341 = vst [vmem:[#allocation2 + $0xb0] sm:$0xff] %v3237
        %3342 = vst [vmem:[#allocation2 + $0xb8] sm:$0x3] %v3238
        %3343 = vst [vmem:[#allocation2 + $0xc0] sm:$0xff] %v3239
        %3344 = vst [vmem:[#allocation2 + $0xc8] sm:$0xff] %v3240
        %3345 = vst [vmem:[#allocation2 + $0xd0] sm:$0xff] %v3241
        %3346 = vst [vmem:[#allocation2 + $0xd8] sm:$0x3] %v3242
        %3347 = vst [vmem:[#allocation2 + $0xe0] sm:$0xff] %v3243
        %3348 = vst [vmem:[#allocation2 + $0xe8] sm:$0xff] %v3244
        %3349 = vst [vmem:[#allocation2 + $0xf0] sm:$0xff] %v3245
        %3350 = vst [vmem:[#allocation2 + $0xf8] sm:$0x3] %v3246
        %3351 = vst [vmem:[#allocation2 + $0x100] sm:$0xff] %v3247
        %3352 = vst [vmem:[#allocation2 + $0x108] sm:$0xff] %v3248
        %3353 = vst [vmem:[#allocation2 + $0x110] sm:$0xff] %v3249
        %3354 = vst [vmem:[#allocation2 + $0x118] sm:$0x3] %v3250
        %3355 = vst [vmem:[#allocation2 + $0x120] sm:$0xff] %v3251
        %3356 = vst [vmem:[#allocation2 + $0x128] sm:$0xff] %v3252
        %3357 = vst [vmem:[#allocation2 + $0x130] sm:$0xff] %v3253
        %3358 = vst [vmem:[#allocation2 + $0x138] sm:$0x3] %v3254
        %3359 = vst [vmem:[#allocation2 + $0x140] sm:$0xff] %v3255
        %3360 = vst [vmem:[#allocation2 + $0x148] sm:$0xff] %v3256
        %3361 = vst [vmem:[#allocation2 + $0x150] sm:$0xff] %v3257
        %3362 = vst [vmem:[#allocation2 + $0x158] sm:$0x3] %v3258
        %3363 = vst [vmem:[#allocation2 + $0x160] sm:$0xff] %v3259
        %3364 = vst [vmem:[#allocation2 + $0x168] sm:$0xff] %v3260
        %3365 = vst [vmem:[#allocation2 + $0x170] sm:$0xff] %v3261
        %3366 = vst [vmem:[#allocation2 + $0x178] sm:$0x3] %v3262
        %3367 = vst [vmem:[#allocation2 + $0x180] sm:$0xff] %v3263
        %3368 = vst [vmem:[#allocation2 + $0x188] sm:$0xff] %v3264
        %3369 = vst [vmem:[#allocation2 + $0x190] sm:$0xff] %v3265
        %3370 = vst [vmem:[#allocation2 + $0x198] sm:$0x3] %v3266
        %3371 = vst [vmem:[#allocation2 + $0x1a0] sm:$0xff] %v3267
        %3372 = vst [vmem:[#allocation2 + $0x1a8] sm:$0xff] %v3268
        %3373 = vst [vmem:[#allocation2 + $0x1b0] sm:$0xff] %v3269
        %3374 = vst [vmem:[#allocation2 + $0x1b8] sm:$0x3] %v3270
        %3375 = vst [vmem:[#allocation2 + $0x1c0] sm:$0xff] %v3271
        %3376 = vst [vmem:[#allocation2 + $0x1c8] sm:$0xff] %v3272
        %3377 = vst [vmem:[#allocation2 + $0x1d0] sm:$0xff] %v3273
        %3378 = vst [vmem:[#allocation2 + $0x1d8] sm:$0x3] %v3274
        %3379 = vst [vmem:[#allocation2 + $0x1e0] sm:$0xff] %v3275
        %3380 = vst [vmem:[#allocation2 + $0x1e8] sm:$0xff] %v3276
        %3381 = vst [vmem:[#allocation2 + $0x1f0] sm:$0xff] %v3277
        %3382 = vst [vmem:[#allocation2 + $0x1f8] sm:$0x3] %v3278
        %3383 = vst [vmem:[#allocation2 + $0x200] sm:$0xff] %v3279
        %3384 = vst [vmem:[#allocation2 + $0x208] sm:$0xff] %v3280
        %3385 = vst [vmem:[#allocation2 + $0x210] sm:$0xff] %v3281
        %3386 = vst [vmem:[#allocation2 + $0x218] sm:$0x3] %v3282
        %3387 = vst [vmem:[#allocation2 + $0x220] sm:$0xff] %v3283
        %3388 = vst [vmem:[#allocation2 + $0x228] sm:$0xff] %v3284
        %3389 = vst [vmem:[#allocation2 + $0x230] sm:$0xff] %v3285
        %3390 = vst [vmem:[#allocation2 + $0x238] sm:$0x3] %v3286
        %3391 = vst [vmem:[#allocation2 + $0x240] sm:$0xff] %v3287
        %3392 = vst [vmem:[#allocation2 + $0x248] sm:$0xff] %v3288
        %3393 = vst [vmem:[#allocation2 + $0x250] sm:$0xff] %v3289
        %3394 = vst [vmem:[#allocation2 + $0x258] sm:$0x3] %v3290
        %3395 = vst [vmem:[#allocation2 + $0x260] sm:$0xff] %v3291
        %3396 = vst [vmem:[#allocation2 + $0x268] sm:$0xff] %v3292
        %3397 = vst [vmem:[#allocation2 + $0x270] sm:$0xff] %v3293
        %3398 = vst [vmem:[#allocation2 + $0x278] sm:$0x3] %v3294
        %3399 = vst [vmem:[#allocation2 + $0x280] sm:$0xff] %v3295
        %3400 = vst [vmem:[#allocation2 + $0x288] sm:$0xff] %v3296
        %3401 = vst [vmem:[#allocation2 + $0x290] sm:$0xff] %v3297
        %3402 = vst [vmem:[#allocation2 + $0x298] sm:$0x3] %v3298
        %3403 = vst [vmem:[#allocation2 + $0x2a0] sm:$0xff] %v3299
        %3404 = vst [vmem:[#allocation2 + $0x2a8] sm:$0xff] %v3300
        %3405 = vst [vmem:[#allocation2 + $0x2b0] sm:$0xff] %v3301
        %3406 = vst [vmem:[#allocation2 + $0x2b8] sm:$0x3] %v3302
        %3407 = vst [vmem:[#allocation2 + $0x2c0] sm:$0xff] %v3303
        %3408 = vst [vmem:[#allocation2 + $0x2c8] sm:$0xff] %v3304
        %3409 = vst [vmem:[#allocation2 + $0x2d0] sm:$0xff] %v3305
        %3410 = vst [vmem:[#allocation2 + $0x2d8] sm:$0x3] %v3306
        %3411 = vst [vmem:[#allocation2 + $0x2e0] sm:$0xff] %v3307
        %3412 = vst [vmem:[#allocation2 + $0x2e8] sm:$0xff] %v3308
        %3413 = vst [vmem:[#allocation2 + $0x2f0] sm:$0xff] %v3309
        %3414 = vst [vmem:[#allocation2 + $0x2f8] sm:$0x3] %v3310
        %3415 = vst [vmem:[#allocation2 + $0x300] sm:$0xff] %v3311
        %3416 = vst [vmem:[#allocation2 + $0x308] sm:$0xff] %v3312
        %3417 = vst [vmem:[#allocation2 + $0x310] sm:$0xff] %v3313
        %3418 = vst [vmem:[#allocation2 + $0x318] sm:$0x3] %v3314
        %3419 = vst [vmem:[#allocation2 + $0x320] sm:$0xff] %v3315
        %3420 = vst [vmem:[#allocation2 + $0x328] sm:$0xff] %v3316
        %3421 = vst [vmem:[#allocation2 + $0x330] sm:$0xff] %v3317
        %3422 = vst [vmem:[#allocation2 + $0x338] sm:$0x3] %v3318
        %v3423 = vld [vmem:[#allocation2] sm:$0xff]
        %v3424 = vld [vmem:[#allocation2 + $0x8] sm:$0xff]
        %v3425 = vld [vmem:[#allocation2 + $0x10] sm:$0xff]
        %v3426 = vld [vmem:[#allocation2 + $0x18] sm:$0x3]
        %s3427 = scalar_lea.vmem [#allocation2], 32
        %v3428 = vld [vmem:[%s3427] sm:$0xff]
        %v3429 = vld [vmem:[%s3427 + $0x8] sm:$0xff]
        %v3430 = vld [vmem:[%s3427 + $0x10] sm:$0xff]
        %v3431 = vld [vmem:[%s3427 + $0x18] sm:$0x3]
        %v3432 = vmax.f32 %v3423, %v3428
        %v3433 = vmax.f32 %v3424, %v3429
        %v3434 = vmax.f32 %v3425, %v3430
        %v3435 = vmax.f32 %v3426, %v3431
        %3436 = vst [vmem:[#allocation3] sm:$0xff] %v3432
        %3437 = vst [vmem:[#allocation3 + $0x8] sm:$0xff] %v3433
        %3438 = vst [vmem:[#allocation3 + $0x10] sm:$0xff] %v3434
        %3439 = vst [vmem:[#allocation3 + $0x18] sm:$0x3] %v3435
        %s3440 = scalar_lea.vmem [#allocation2], 64
        %v3441 = vld [vmem:[%s3440] sm:$0xff]
        %v3442 = vld [vmem:[%s3440 + $0x8] sm:$0xff]
        %v3443 = vld [vmem:[%s3440 + $0x10] sm:$0xff]
        %v3444 = vld [vmem:[%s3440 + $0x18] sm:$0x3]
        %s3445 = scalar_lea.vmem [#allocation2], 96
        %v3446 = vld [vmem:[%s3445] sm:$0xff]
        %v3447 = vld [vmem:[%s3445 + $0x8] sm:$0xff]
        %v3448 = vld [vmem:[%s3445 + $0x10] sm:$0xff]
        %v3449 = vld [vmem:[%s3445 + $0x18] sm:$0x3]
        %v3450 = vmax.f32 %v3441, %v3446
        %v3451 = vmax.f32 %v3442, %v3447
        %v3452 = vmax.f32 %v3443, %v3448
        %v3453 = vmax.f32 %v3444, %v3449
        %s3454 = scalar_lea.vmem [#allocation3], 32
        %3455 = vst [vmem:[%s3454] sm:$0xff] %v3450
        %3456 = vst [vmem:[%s3454 + $0x8] sm:$0xff] %v3451
        %3457 = vst [vmem:[%s3454 + $0x10] sm:$0xff] %v3452
        %3458 = vst [vmem:[%s3454 + $0x18] sm:$0x3] %v3453
        %s3459 = scalar_lea.vmem [#allocation2], 128
        %v3460 = vld [vmem:[%s3459] sm:$0xff]
        %v3461 = vld [vmem:[%s3459 + $0x8] sm:$0xff]
        %v3462 = vld [vmem:[%s3459 + $0x10] sm:$0xff]
        %v3463 = vld [vmem:[%s3459 + $0x18] sm:$0x3]
        %s3464 = scalar_lea.vmem [#allocation2], 160
        %v3465 = vld [vmem:[%s3464] sm:$0xff]
        %v3466 = vld [vmem:[%s3464 + $0x8] sm:$0xff]
        %v3467 = vld [vmem:[%s3464 + $0x10] sm:$0xff]
        %v3468 = vld [vmem:[%s3464 + $0x18] sm:$0x3]
        %v3469 = vmax.f32 %v3460, %v3465
        %v3470 = vmax.f32 %v3461, %v3466
        %v3471 = vmax.f32 %v3462, %v3467
        %v3472 = vmax.f32 %v3463, %v3468
        %s3473 = scalar_lea.vmem [#allocation3], 64
        %3474 = vst [vmem:[%s3473] sm:$0xff] %v3469
        %3475 = vst [vmem:[%s3473 + $0x8] sm:$0xff] %v3470
        %3476 = vst [vmem:[%s3473 + $0x10] sm:$0xff] %v3471
        %3477 = vst [vmem:[%s3473 + $0x18] sm:$0x3] %v3472
        %s3478 = scalar_lea.vmem [#allocation2], 192
        %v3479 = vld [vmem:[%s3478] sm:$0xff]
        %v3480 = vld [vmem:[%s3478 + $0x8] sm:$0xff]
        %v3481 = vld [vmem:[%s3478 + $0x10] sm:$0xff]
        %v3482 = vld [vmem:[%s3478 + $0x18] sm:$0x3]
        %s3483 = scalar_lea.vmem [#allocation2], 224
        %v3484 = vld [vmem:[%s3483] sm:$0xff]
        %v3485 = vld [vmem:[%s3483 + $0x8] sm:$0xff]
        %v3486 = vld [vmem:[%s3483 + $0x10] sm:$0xff]
        %v3487 = vld [vmem:[%s3483 + $0x18] sm:$0x3]
        %v3488 = vmax.f32 %v3479, %v3484
        %v3489 = vmax.f32 %v3480, %v3485
        %v3490 = vmax.f32 %v3481, %v3486
        %v3491 = vmax.f32 %v3482, %v3487
        %s3492 = scalar_lea.vmem [#allocation3], 96
        %3493 = vst [vmem:[%s3492] sm:$0xff] %v3488
        %3494 = vst [vmem:[%s3492 + $0x8] sm:$0xff] %v3489
        %3495 = vst [vmem:[%s3492 + $0x10] sm:$0xff] %v3490
        %3496 = vst [vmem:[%s3492 + $0x18] sm:$0x3] %v3491
        %s3497 = scalar_lea.vmem [#allocation2], 256
        %v3498 = vld [vmem:[%s3497] sm:$0xff]
        %v3499 = vld [vmem:[%s3497 + $0x8] sm:$0xff]
        %v3500 = vld [vmem:[%s3497 + $0x10] sm:$0xff]
        %v3501 = vld [vmem:[%s3497 + $0x18] sm:$0x3]
        %s3502 = scalar_lea.vmem [#allocation2], 288
        %v3503 = vld [vmem:[%s3502] sm:$0xff]
        %v3504 = vld [vmem:[%s3502 + $0x8] sm:$0xff]
        %v3505 = vld [vmem:[%s3502 + $0x10] sm:$0xff]
        %v3506 = vld [vmem:[%s3502 + $0x18] sm:$0x3]
        %v3507 = vmax.f32 %v3498, %v3503
        %v3508 = vmax.f32 %v3499, %v3504
        %v3509 = vmax.f32 %v3500, %v3505
        %v3510 = vmax.f32 %v3501, %v3506
        %s3511 = scalar_lea.vmem [#allocation3], 128
        %3512 = vst [vmem:[%s3511] sm:$0xff] %v3507
        %3513 = vst [vmem:[%s3511 + $0x8] sm:$0xff] %v3508
        %3514 = vst [vmem:[%s3511 + $0x10] sm:$0xff] %v3509
        %3515 = vst [vmem:[%s3511 + $0x18] sm:$0x3] %v3510
        %s3516 = scalar_lea.vmem [#allocation2], 320
        %v3517 = vld [vmem:[%s3516] sm:$0xff]
        %v3518 = vld [vmem:[%s3516 + $0x8] sm:$0xff]
        %v3519 = vld [vmem:[%s3516 + $0x10] sm:$0xff]
        %v3520 = vld [vmem:[%s3516 + $0x18] sm:$0x3]
        %s3521 = scalar_lea.vmem [#allocation2], 352
        %v3522 = vld [vmem:[%s3521] sm:$0xff]
        %v3523 = vld [vmem:[%s3521 + $0x8] sm:$0xff]
        %v3524 = vld [vmem:[%s3521 + $0x10] sm:$0xff]
        %v3525 = vld [vmem:[%s3521 + $0x18] sm:$0x3]
        %v3526 = vmax.f32 %v3517, %v3522
        %v3527 = vmax.f32 %v3518, %v3523
        %v3528 = vmax.f32 %v3519, %v3524
        %v3529 = vmax.f32 %v3520, %v3525
        %s3530 = scalar_lea.vmem [#allocation3], 160
        %3531 = vst [vmem:[%s3530] sm:$0xff] %v3526
        %3532 = vst [vmem:[%s3530 + $0x8] sm:$0xff] %v3527
        %3533 = vst [vmem:[%s3530 + $0x10] sm:$0xff] %v3528
        %3534 = vst [vmem:[%s3530 + $0x18] sm:$0x3] %v3529
        %s3535 = scalar_lea.vmem [#allocation2], 384
        %v3536 = vld [vmem:[%s3535] sm:$0xff]
        %v3537 = vld [vmem:[%s3535 + $0x8] sm:$0xff]
        %v3538 = vld [vmem:[%s3535 + $0x10] sm:$0xff]
        %v3539 = vld [vmem:[%s3535 + $0x18] sm:$0x3]
        %s3540 = scalar_lea.vmem [#allocation2], 416
        %v3541 = vld [vmem:[%s3540] sm:$0xff]
        %v3542 = vld [vmem:[%s3540 + $0x8] sm:$0xff]
        %v3543 = vld [vmem:[%s3540 + $0x10] sm:$0xff]
        %v3544 = vld [vmem:[%s3540 + $0x18] sm:$0x3]
        %v3545 = vmax.f32 %v3536, %v3541
        %v3546 = vmax.f32 %v3537, %v3542
        %v3547 = vmax.f32 %v3538, %v3543
        %v3548 = vmax.f32 %v3539, %v3544
        %s3549 = scalar_lea.vmem [#allocation3], 192
        %3550 = vst [vmem:[%s3549] sm:$0xff] %v3545
        %3551 = vst [vmem:[%s3549 + $0x8] sm:$0xff] %v3546
        %3552 = vst [vmem:[%s3549 + $0x10] sm:$0xff] %v3547
        %3553 = vst [vmem:[%s3549 + $0x18] sm:$0x3] %v3548
        %s3554 = scalar_lea.vmem [#allocation2], 448
        %v3555 = vld [vmem:[%s3554] sm:$0xff]
        %v3556 = vld [vmem:[%s3554 + $0x8] sm:$0xff]
        %v3557 = vld [vmem:[%s3554 + $0x10] sm:$0xff]
        %v3558 = vld [vmem:[%s3554 + $0x18] sm:$0x3]
        %s3559 = scalar_lea.vmem [#allocation2], 480
        %v3560 = vld [vmem:[%s3559] sm:$0xff]
        %v3561 = vld [vmem:[%s3559 + $0x8] sm:$0xff]
        %v3562 = vld [vmem:[%s3559 + $0x10] sm:$0xff]
        %v3563 = vld [vmem:[%s3559 + $0x18] sm:$0x3]
        %v3564 = vmax.f32 %v3555, %v3560
        %v3565 = vmax.f32 %v3556, %v3561
        %v3566 = vmax.f32 %v3557, %v3562
        %v3567 = vmax.f32 %v3558, %v3563
        %s3568 = scalar_lea.vmem [#allocation3], 224
        %3569 = vst [vmem:[%s3568] sm:$0xff] %v3564
        %3570 = vst [vmem:[%s3568 + $0x8] sm:$0xff] %v3565
        %3571 = vst [vmem:[%s3568 + $0x10] sm:$0xff] %v3566
        %3572 = vst [vmem:[%s3568 + $0x18] sm:$0x3] %v3567
        %s3573 = scalar_lea.vmem [#allocation2], 512
        %v3574 = vld [vmem:[%s3573] sm:$0xff]
        %v3575 = vld [vmem:[%s3573 + $0x8] sm:$0xff]
        %v3576 = vld [vmem:[%s3573 + $0x10] sm:$0xff]
        %v3577 = vld [vmem:[%s3573 + $0x18] sm:$0x3]
        %s3578 = scalar_lea.vmem [#allocation2], 544
        %v3579 = vld [vmem:[%s3578] sm:$0xff]
        %v3580 = vld [vmem:[%s3578 + $0x8] sm:$0xff]
        %v3581 = vld [vmem:[%s3578 + $0x10] sm:$0xff]
        %v3582 = vld [vmem:[%s3578 + $0x18] sm:$0x3]
        %v3583 = vmax.f32 %v3574, %v3579
        %v3584 = vmax.f32 %v3575, %v3580
        %v3585 = vmax.f32 %v3576, %v3581
        %v3586 = vmax.f32 %v3577, %v3582
        %s3587 = scalar_lea.vmem [#allocation3], 256
        %3588 = vst [vmem:[%s3587] sm:$0xff] %v3583
        %3589 = vst [vmem:[%s3587 + $0x8] sm:$0xff] %v3584
        %3590 = vst [vmem:[%s3587 + $0x10] sm:$0xff] %v3585
        %3591 = vst [vmem:[%s3587 + $0x18] sm:$0x3] %v3586
        %s3592 = scalar_lea.vmem [#allocation2], 576
        %v3593 = vld [vmem:[%s3592] sm:$0xff]
        %v3594 = vld [vmem:[%s3592 + $0x8] sm:$0xff]
        %v3595 = vld [vmem:[%s3592 + $0x10] sm:$0xff]
        %v3596 = vld [vmem:[%s3592 + $0x18] sm:$0x3]
        %s3597 = scalar_lea.vmem [#allocation2], 608
        %v3598 = vld [vmem:[%s3597] sm:$0xff]
        %v3599 = vld [vmem:[%s3597 + $0x8] sm:$0xff]
        %v3600 = vld [vmem:[%s3597 + $0x10] sm:$0xff]
        %v3601 = vld [vmem:[%s3597 + $0x18] sm:$0x3]
        %v3602 = vmax.f32 %v3593, %v3598
        %v3603 = vmax.f32 %v3594, %v3599
        %v3604 = vmax.f32 %v3595, %v3600
        %v3605 = vmax.f32 %v3596, %v3601
        %s3606 = scalar_lea.vmem [#allocation3], 288
        %3607 = vst [vmem:[%s3606] sm:$0xff] %v3602
        %3608 = vst [vmem:[%s3606 + $0x8] sm:$0xff] %v3603
        %3609 = vst [vmem:[%s3606 + $0x10] sm:$0xff] %v3604
        %3610 = vst [vmem:[%s3606 + $0x18] sm:$0x3] %v3605
        %s3611 = scalar_lea.vmem [#allocation2], 640
        %v3612 = vld [vmem:[%s3611] sm:$0xff]
        %v3613 = vld [vmem:[%s3611 + $0x8] sm:$0xff]
        %v3614 = vld [vmem:[%s3611 + $0x10] sm:$0xff]
        %v3615 = vld [vmem:[%s3611 + $0x18] sm:$0x3]
        %s3616 = scalar_lea.vmem [#allocation2], 672
        %v3617 = vld [vmem:[%s3616] sm:$0xff]
        %v3618 = vld [vmem:[%s3616 + $0x8] sm:$0xff]
        %v3619 = vld [vmem:[%s3616 + $0x10] sm:$0xff]
        %v3620 = vld [vmem:[%s3616 + $0x18] sm:$0x3]
        %v3621 = vmax.f32 %v3612, %v3617
        %v3622 = vmax.f32 %v3613, %v3618
        %v3623 = vmax.f32 %v3614, %v3619
        %v3624 = vmax.f32 %v3615, %v3620
        %s3625 = scalar_lea.vmem [#allocation3], 320
        %3626 = vst [vmem:[%s3625] sm:$0xff] %v3621
        %3627 = vst [vmem:[%s3625 + $0x8] sm:$0xff] %v3622
        %3628 = vst [vmem:[%s3625 + $0x10] sm:$0xff] %v3623
        %3629 = vst [vmem:[%s3625 + $0x18] sm:$0x3] %v3624
        %s3630 = scalar_lea.vmem [#allocation2], 704
        %v3631 = vld [vmem:[%s3630] sm:$0xff]
        %v3632 = vld [vmem:[%s3630 + $0x8] sm:$0xff]
        %v3633 = vld [vmem:[%s3630 + $0x10] sm:$0xff]
        %v3634 = vld [vmem:[%s3630 + $0x18] sm:$0x3]
        %s3635 = scalar_lea.vmem [#allocation2], 736
        %v3636 = vld [vmem:[%s3635] sm:$0xff]
        %v3637 = vld [vmem:[%s3635 + $0x8] sm:$0xff]
        %v3638 = vld [vmem:[%s3635 + $0x10] sm:$0xff]
        %v3639 = vld [vmem:[%s3635 + $0x18] sm:$0x3]
        %v3640 = vmax.f32 %v3631, %v3636
        %v3641 = vmax.f32 %v3632, %v3637
        %v3642 = vmax.f32 %v3633, %v3638
        %v3643 = vmax.f32 %v3634, %v3639
        %s3644 = scalar_lea.vmem [#allocation3], 352
        %3645 = vst [vmem:[%s3644] sm:$0xff] %v3640
        %3646 = vst [vmem:[%s3644 + $0x8] sm:$0xff] %v3641
        %3647 = vst [vmem:[%s3644 + $0x10] sm:$0xff] %v3642
        %3648 = vst [vmem:[%s3644 + $0x18] sm:$0x3] %v3643
        %s3649 = scalar_lea.vmem [#allocation2], 768
        %v3650 = vld [vmem:[%s3649] sm:$0xff]
        %v3651 = vld [vmem:[%s3649 + $0x8] sm:$0xff]
        %v3652 = vld [vmem:[%s3649 + $0x10] sm:$0xff]
        %v3653 = vld [vmem:[%s3649 + $0x18] sm:$0x3]
        %s3654 = scalar_lea.vmem [#allocation2], 800
        %v3655 = vld [vmem:[%s3654] sm:$0xff]
        %v3656 = vld [vmem:[%s3654 + $0x8] sm:$0xff]
        %v3657 = vld [vmem:[%s3654 + $0x10] sm:$0xff]
        %v3658 = vld [vmem:[%s3654 + $0x18] sm:$0x3]
        %v3659 = vmax.f32 %v3650, %v3655
        %v3660 = vmax.f32 %v3651, %v3656
        %v3661 = vmax.f32 %v3652, %v3657
        %v3662 = vmax.f32 %v3653, %v3658
        %s3663 = scalar_lea.vmem [#allocation3], 384
        %3664 = vst [vmem:[%s3663] sm:$0xff] %v3659
        %3665 = vst [vmem:[%s3663 + $0x8] sm:$0xff] %v3660
        %3666 = vst [vmem:[%s3663 + $0x10] sm:$0xff] %v3661
        %3667 = vst [vmem:[%s3663 + $0x18] sm:$0x3] %v3662
        %3668 = vst [vmem:[#allocation4] sm:$0xff] 0.0
        %3669 = vst [vmem:[#allocation4 + $0x8] sm:$0xff] 0.0
        %3670 = vst [vmem:[#allocation4 + $0x10] sm:$0xff] 0.0
        %3671 = vst [vmem:[#allocation4 + $0x18] sm:$0xff] 0.0
        %3672 = vst [vmem:[#allocation4 + $0x20] sm:$0xff] 0.0
        %3673 = vst [vmem:[#allocation4 + $0x28] sm:$0xff] 0.0
        %3674 = vst [vmem:[#allocation4 + $0x30] sm:$0xff] 0.0
        %3675 = vst [vmem:[#allocation4 + $0x38] sm:$0xff] 0.0
        %3676 = vst [vmem:[#allocation4 + $0x40] sm:$0xff] 0.0
        %3677 = vst [vmem:[#allocation4 + $0x48] sm:$0xff] 0.0
        %3678 = vst [vmem:[#allocation4 + $0x50] sm:$0xff] 0.0
        %3679 = vst [vmem:[#allocation4 + $0x58] sm:$0xff] 0.0
        %3680 = vst [vmem:[#allocation4 + $0x60] sm:$0xff] 0.0
        %3681 = vst [vmem:[#allocation4 + $0x68] sm:$0xff] 0.0
        %3682 = vst [vmem:[#allocation4 + $0x70] sm:$0xff] 0.0
        %3683 = vst [vmem:[#allocation4 + $0x78] sm:$0xff] 0.0
        %3684 = vst [vmem:[#allocation4 + $0x80] sm:$0xff] 0.0
        %3685 = vst [vmem:[#allocation4 + $0x88] sm:$0xff] 0.0
        %3686 = vst [vmem:[#allocation4 + $0x90] sm:$0xff] 0.0
        %3687 = vst [vmem:[#allocation4 + $0x98] sm:$0xff] 0.0
        %3688 = vst [vmem:[#allocation4 + $0xa0] sm:$0xff] 0.0
        %3689 = vst [vmem:[#allocation4 + $0xa8] sm:$0xff] 0.0
        %v3690 = vld [vmem:[#allocation3] sm:$0x3]
        %v3691 = vld [vmem:[#allocation3 + $0x20] sm:$0x3]
        %v3692 = vld [vmem:[#allocation3 + $0x40] sm:$0x3]
        %v3693 = vld [vmem:[#allocation3 + $0x60] sm:$0x3]
        %v3694 = vld [vmem:[#allocation3 + $0x80] sm:$0x3]
        %v3695 = vld [vmem:[#allocation3 + $0xa0] sm:$0x3]
        %v3696 = vld [vmem:[#allocation3 + $0xc0] sm:$0x3]
        %v3697 = vld [vmem:[#allocation3 + $0xe0] sm:$0x3]
        %v3698 = vld [vmem:[#allocation3 + $0x100] sm:$0x3]
        %v3699 = vld [vmem:[#allocation3 + $0x120] sm:$0x3]
        %v3700 = vld [vmem:[#allocation3 + $0x140] sm:$0x3]
        %v3701 = vld [vmem:[#allocation3 + $0x160] sm:$0x3]
        %v3702 = vld [vmem:[#allocation3 + $0x180] sm:$0x3]
        %vm3703 = vcmask 1041408
        %v3704 = vsel %vm3703, %v3690, -inf
        %v3705 = vrot.slane %v3704, 4
        %v3706 = vmax.f32 %v3704, %v3705
        %v3707 = vrot.slane %v3706, 2
        %v3708 = vmax.f32 %v3706, %v3707
        %v3709 = vrot.slane %v3708, 1
        %v3710 = vmax.f32 %v3708, %v3709
        %v3711 = vsel %vm3703, %v3691, -inf
        %v3712 = vrot.slane %v3711, 4
        %v3713 = vmax.f32 %v3711, %v3712
        %v3714 = vrot.slane %v3713, 2
        %v3715 = vmax.f32 %v3713, %v3714
        %v3716 = vrot.slane %v3715, 1
        %v3717 = vmax.f32 %v3715, %v3716
        %v3718 = vsel %vm3703, %v3692, -inf
        %v3719 = vrot.slane %v3718, 4
        %v3720 = vmax.f32 %v3718, %v3719
        %v3721 = vrot.slane %v3720, 2
        %v3722 = vmax.f32 %v3720, %v3721
        %v3723 = vrot.slane %v3722, 1
        %v3724 = vmax.f32 %v3722, %v3723
        %v3725 = vsel %vm3703, %v3693, -inf
        %v3726 = vrot.slane %v3725, 4
        %v3727 = vmax.f32 %v3725, %v3726
        %v3728 = vrot.slane %v3727, 2
        %v3729 = vmax.f32 %v3727, %v3728
        %v3730 = vrot.slane %v3729, 1
        %v3731 = vmax.f32 %v3729, %v3730
        %v3732 = vsel %vm3703, %v3694, -inf
        %v3733 = vrot.slane %v3732, 4
        %v3734 = vmax.f32 %v3732, %v3733
        %v3735 = vrot.slane %v3734, 2
        %v3736 = vmax.f32 %v3734, %v3735
        %v3737 = vrot.slane %v3736, 1
        %v3738 = vmax.f32 %v3736, %v3737
        %v3739 = vsel %vm3703, %v3695, -inf
        %v3740 = vrot.slane %v3739, 4
        %v3741 = vmax.f32 %v3739, %v3740
        %v3742 = vrot.slane %v3741, 2
        %v3743 = vmax.f32 %v3741, %v3742
        %v3744 = vrot.slane %v3743, 1
        %v3745 = vmax.f32 %v3743, %v3744
        %v3746 = vsel %vm3703, %v3696, -inf
        %v3747 = vrot.slane %v3746, 4
        %v3748 = vmax.f32 %v3746, %v3747
        %v3749 = vrot.slane %v3748, 2
        %v3750 = vmax.f32 %v3748, %v3749
        %v3751 = vrot.slane %v3750, 1
        %v3752 = vmax.f32 %v3750, %v3751
        %v3753 = vsel %vm3703, %v3697, -inf
        %v3754 = vrot.slane %v3753, 4
        %v3755 = vmax.f32 %v3753, %v3754
        %v3756 = vrot.slane %v3755, 2
        %v3757 = vmax.f32 %v3755, %v3756
        %v3758 = vrot.slane %v3757, 1
        %v3759 = vmax.f32 %v3757, %v3758
        %v3760 = vsel %vm3703, %v3698, -inf
        %v3761 = vrot.slane %v3760, 4
        %v3762 = vmax.f32 %v3760, %v3761
        %v3763 = vrot.slane %v3762, 2
        %v3764 = vmax.f32 %v3762, %v3763
        %v3765 = vrot.slane %v3764, 1
        %v3766 = vmax.f32 %v3764, %v3765
        %v3767 = vsel %vm3703, %v3699, -inf
        %v3768 = vrot.slane %v3767, 4
        %v3769 = vmax.f32 %v3767, %v3768
        %v3770 = vrot.slane %v3769, 2
        %v3771 = vmax.f32 %v3769, %v3770
        %v3772 = vrot.slane %v3771, 1
        %v3773 = vmax.f32 %v3771, %v3772
        %v3774 = vsel %vm3703, %v3700, -inf
        %v3775 = vrot.slane %v3774, 4
        %v3776 = vmax.f32 %v3774, %v3775
        %v3777 = vrot.slane %v3776, 2
        %v3778 = vmax.f32 %v3776, %v3777
        %v3779 = vrot.slane %v3778, 1
        %v3780 = vmax.f32 %v3778, %v3779
        %v3781 = vsel %vm3703, %v3701, -inf
        %v3782 = vrot.slane %v3781, 4
        %v3783 = vmax.f32 %v3781, %v3782
        %v3784 = vrot.slane %v3783, 2
        %v3785 = vmax.f32 %v3783, %v3784
        %v3786 = vrot.slane %v3785, 1
        %v3787 = vmax.f32 %v3785, %v3786
        %v3788 = vsel %vm3703, %v3702, -inf
        %v3789 = vrot.slane %v3788, 4
        %v3790 = vmax.f32 %v3788, %v3789
        %v3791 = vrot.slane %v3790, 2
        %v3792 = vmax.f32 %v3790, %v3791
        %v3793 = vrot.slane %v3792, 1
        %v3794 = vmax.f32 %v3792, %v3793
        %vm3808 = vcmask 1041409
        %v3809 = vsel %vm3808, %v3717, %v3710
        %vm3810 = vcmask 1042434
        %v3811 = vsel %vm3810, %v3724, %v3809
        %vm3812 = vcmask 1043459
        %v3813 = vsel %vm3812, %v3731, %v3811
        %vm3814 = vcmask 1044484
        %v3815 = vsel %vm3814, %v3738, %v3813
        %vm3816 = vcmask 1045509
        %v3817 = vsel %vm3816, %v3745, %v3815
        %vm3818 = vcmask 1046534
        %v3819 = vsel %vm3818, %v3752, %v3817
        %vm3820 = vcmask 1047559
        %v3821 = vsel %vm3820, %v3759, %v3819
        %v3822 = vsel %vm3808, %v3773, %v3766
        %v3823 = vsel %vm3810, %v3780, %v3822
        %v3824 = vsel %vm3812, %v3787, %v3823
        %v3825 = vsel %vm3814, %v3794, %v3824
        %3828 = vst [vmem:[#allocation4] sm:$0xff] %v3821
        %3829 = vst [vmem:[#allocation4 + $0x8] sm:$0x1f] %v3825
        %v3830 = vld [vmem:[#allocation3 + $0x2] sm:$0x3]
        %v3831 = vld [vmem:[#allocation3 + $0x22] sm:$0x3]
        %v3832 = vld [vmem:[#allocation3 + $0x42] sm:$0x3]
        %v3833 = vld [vmem:[#allocation3 + $0x62] sm:$0x3]
        %v3834 = vld [vmem:[#allocation3 + $0x82] sm:$0x3]
        %v3835 = vld [vmem:[#allocation3 + $0xa2] sm:$0x3]
        %v3836 = vld [vmem:[#allocation3 + $0xc2] sm:$0x3]
        %v3837 = vld [vmem:[#allocation3 + $0xe2] sm:$0x3]
        %v3838 = vld [vmem:[#allocation3 + $0x102] sm:$0x3]
        %v3839 = vld [vmem:[#allocation3 + $0x122] sm:$0x3]
        %v3840 = vld [vmem:[#allocation3 + $0x142] sm:$0x3]
        %v3841 = vld [vmem:[#allocation3 + $0x162] sm:$0x3]
        %v3842 = vld [vmem:[#allocation3 + $0x182] sm:$0x3]
        %v3843 = vsel %vm3703, %v3830, -inf
        %v3844 = vrot.slane %v3843, 4
        %v3845 = vmax.f32 %v3843, %v3844
        %v3846 = vrot.slane %v3845, 2
        %v3847 = vmax.f32 %v3845, %v3846
        %v3848 = vrot.slane %v3847, 1
        %v3849 = vmax.f32 %v3847, %v3848
        %v3850 = vsel %vm3703, %v3831, -inf
        %v3851 = vrot.slane %v3850, 4
        %v3852 = vmax.f32 %v3850, %v3851
        %v3853 = vrot.slane %v3852, 2
        %v3854 = vmax.f32 %v3852, %v3853
        %v3855 = vrot.slane %v3854, 1
        %v3856 = vmax.f32 %v3854, %v3855
        %v3857 = vsel %vm3703, %v3832, -inf
        %v3858 = vrot.slane %v3857, 4
        %v3859 = vmax.f32 %v3857, %v3858
        %v3860 = vrot.slane %v3859, 2
        %v3861 = vmax.f32 %v3859, %v3860
        %v3862 = vrot.slane %v3861, 1
        %v3863 = vmax.f32 %v3861, %v3862
        %v3864 = vsel %vm3703, %v3833, -inf
        %v3865 = vrot.slane %v3864, 4
        %v3866 = vmax.f32 %v3864, %v3865
        %v3867 = vrot.slane %v3866, 2
        %v3868 = vmax.f32 %v3866, %v3867
        %v3869 = vrot.slane %v3868, 1
        %v3870 = vmax.f32 %v3868, %v3869
        %v3871 = vsel %vm3703, %v3834, -inf
        %v3872 = vrot.slane %v3871, 4
        %v3873 = vmax.f32 %v3871, %v3872
        %v3874 = vrot.slane %v3873, 2
        %v3875 = vmax.f32 %v3873, %v3874
        %v3876 = vrot.slane %v3875, 1
        %v3877 = vmax.f32 %v3875, %v3876
        %v3878 = vsel %vm3703, %v3835, -inf
        %v3879 = vrot.slane %v3878, 4
        %v3880 = vmax.f32 %v3878, %v3879
        %v3881 = vrot.slane %v3880, 2
        %v3882 = vmax.f32 %v3880, %v3881
        %v3883 = vrot.slane %v3882, 1
        %v3884 = vmax.f32 %v3882, %v3883
        %v3885 = vsel %vm3703, %v3836, -inf
        %v3886 = vrot.slane %v3885, 4
        %v3887 = vmax.f32 %v3885, %v3886
        %v3888 = vrot.slane %v3887, 2
        %v3889 = vmax.f32 %v3887, %v3888
        %v3890 = vrot.slane %v3889, 1
        %v3891 = vmax.f32 %v3889, %v3890
        %v3892 = vsel %vm3703, %v3837, -inf
        %v3893 = vrot.slane %v3892, 4
        %v3894 = vmax.f32 %v3892, %v3893
        %v3895 = vrot.slane %v3894, 2
        %v3896 = vmax.f32 %v3894, %v3895
        %v3897 = vrot.slane %v3896, 1
        %v3898 = vmax.f32 %v3896, %v3897
        %v3899 = vsel %vm3703, %v3838, -inf
        %v3900 = vrot.slane %v3899, 4
        %v3901 = vmax.f32 %v3899, %v3900
        %v3902 = vrot.slane %v3901, 2
        %v3903 = vmax.f32 %v3901, %v3902
        %v3904 = vrot.slane %v3903, 1
        %v3905 = vmax.f32 %v3903, %v3904
        %v3906 = vsel %vm3703, %v3839, -inf
        %v3907 = vrot.slane %v3906, 4
        %v3908 = vmax.f32 %v3906, %v3907
        %v3909 = vrot.slane %v3908, 2
        %v3910 = vmax.f32 %v3908, %v3909
        %v3911 = vrot.slane %v3910, 1
        %v3912 = vmax.f32 %v3910, %v3911
        %v3913 = vsel %vm3703, %v3840, -inf
        %v3914 = vrot.slane %v3913, 4
        %v3915 = vmax.f32 %v3913, %v3914
        %v3916 = vrot.slane %v3915, 2
        %v3917 = vmax.f32 %v3915, %v3916
        %v3918 = vrot.slane %v3917, 1
        %v3919 = vmax.f32 %v3917, %v3918
        %v3920 = vsel %vm3703, %v3841, -inf
        %v3921 = vrot.slane %v3920, 4
        %v3922 = vmax.f32 %v3920, %v3921
        %v3923 = vrot.slane %v3922, 2
        %v3924 = vmax.f32 %v3922, %v3923
        %v3925 = vrot.slane %v3924, 1
        %v3926 = vmax.f32 %v3924, %v3925
        %v3927 = vsel %vm3703, %v3842, -inf
        %v3928 = vrot.slane %v3927, 4
        %v3929 = vmax.f32 %v3927, %v3928
        %v3930 = vrot.slane %v3929, 2
        %v3931 = vmax.f32 %v3929, %v3930
        %v3932 = vrot.slane %v3931, 1
        %v3933 = vmax.f32 %v3931, %v3932
        %v3947 = vsel %vm3808, %v3856, %v3849
        %v3948 = vsel %vm3810, %v3863, %v3947
        %v3949 = vsel %vm3812, %v3870, %v3948
        %v3950 = vsel %vm3814, %v3877, %v3949
        %v3951 = vsel %vm3816, %v3884, %v3950
        %v3952 = vsel %vm3818, %v3891, %v3951
        %v3953 = vsel %vm3820, %v3898, %v3952
        %v3954 = vsel %vm3808, %v3912, %v3905
        %v3955 = vsel %vm3810, %v3919, %v3954
        %v3956 = vsel %vm3812, %v3926, %v3955
        %v3957 = vsel %vm3814, %v3933, %v3956
        %3960 = vst [vmem:[#allocation4 + $0xd] sm:$0xff] %v3953
        %3961 = vst [vmem:[#allocation4 + $0x15] sm:$0x1f] %v3957
        %v3962 = vld [vmem:[#allocation3 + $0x4] sm:$0x3]
        %v3963 = vld [vmem:[#allocation3 + $0x24] sm:$0x3]
        %v3964 = vld [vmem:[#allocation3 + $0x44] sm:$0x3]
        %v3965 = vld [vmem:[#allocation3 + $0x64] sm:$0x3]
        %v3966 = vld [vmem:[#allocation3 + $0x84] sm:$0x3]
        %v3967 = vld [vmem:[#allocation3 + $0xa4] sm:$0x3]
        %v3968 = vld [vmem:[#allocation3 + $0xc4] sm:$0x3]
        %v3969 = vld [vmem:[#allocation3 + $0xe4] sm:$0x3]
        %v3970 = vld [vmem:[#allocation3 + $0x104] sm:$0x3]
        %v3971 = vld [vmem:[#allocation3 + $0x124] sm:$0x3]
        %v3972 = vld [vmem:[#allocation3 + $0x144] sm:$0x3]
        %v3973 = vld [vmem:[#allocation3 + $0x164] sm:$0x3]
        %v3974 = vld [vmem:[#allocation3 + $0x184] sm:$0x3]
        %v3975 = vsel %vm3703, %v3962, -inf
        %v3976 = vrot.slane %v3975, 4
        %v3977 = vmax.f32 %v3975, %v3976
        %v3978 = vrot.slane %v3977, 2
        %v3979 = vmax.f32 %v3977, %v3978
        %v3980 = vrot.slane %v3979, 1
        %v3981 = vmax.f32 %v3979, %v3980
        %v3982 = vsel %vm3703, %v3963, -inf
        %v3983 = vrot.slane %v3982, 4
        %v3984 = vmax.f32 %v3982, %v3983
        %v3985 = vrot.slane %v3984, 2
        %v3986 = vmax.f32 %v3984, %v3985
        %v3987 = vrot.slane %v3986, 1
        %v3988 = vmax.f32 %v3986, %v3987
        %v3989 = vsel %vm3703, %v3964, -inf
        %v3990 = vrot.slane %v3989, 4
        %v3991 = vmax.f32 %v3989, %v3990
        %v3992 = vrot.slane %v3991, 2
        %v3993 = vmax.f32 %v3991, %v3992
        %v3994 = vrot.slane %v3993, 1
        %v3995 = vmax.f32 %v3993, %v3994
        %v3996 = vsel %vm3703, %v3965, -inf
        %v3997 = vrot.slane %v3996, 4
        %v3998 = vmax.f32 %v3996, %v3997
        %v3999 = vrot.slane %v3998, 2
        %v4000 = vmax.f32 %v3998, %v3999
        %v4001 = vrot.slane %v4000, 1
        %v4002 = vmax.f32 %v4000, %v4001
        %v4003 = vsel %vm3703, %v3966, -inf
        %v4004 = vrot.slane %v4003, 4
        %v4005 = vmax.f32 %v4003, %v4004
        %v4006 = vrot.slane %v4005, 2
        %v4007 = vmax.f32 %v4005, %v4006
        %v4008 = vrot.slane %v4007, 1
        %v4009 = vmax.f32 %v4007, %v4008
        %v4010 = vsel %vm3703, %v3967, -inf
        %v4011 = vrot.slane %v4010, 4
        %v4012 = vmax.f32 %v4010, %v4011
        %v4013 = vrot.slane %v4012, 2
        %v4014 = vmax.f32 %v4012, %v4013
        %v4015 = vrot.slane %v4014, 1
        %v4016 = vmax.f32 %v4014, %v4015
        %v4017 = vsel %vm3703, %v3968, -inf
        %v4018 = vrot.slane %v4017, 4
        %v4019 = vmax.f32 %v4017, %v4018
        %v4020 = vrot.slane %v4019, 2
        %v4021 = vmax.f32 %v4019, %v4020
        %v4022 = vrot.slane %v4021, 1
        %v4023 = vmax.f32 %v4021, %v4022
        %v4024 = vsel %vm3703, %v3969, -inf
        %v4025 = vrot.slane %v4024, 4
        %v4026 = vmax.f32 %v4024, %v4025
        %v4027 = vrot.slane %v4026, 2
        %v4028 = vmax.f32 %v4026, %v4027
        %v4029 = vrot.slane %v4028, 1
        %v4030 = vmax.f32 %v4028, %v4029
        %v4031 = vsel %vm3703, %v3970, -inf
        %v4032 = vrot.slane %v4031, 4
        %v4033 = vmax.f32 %v4031, %v4032
        %v4034 = vrot.slane %v4033, 2
        %v4035 = vmax.f32 %v4033, %v4034
        %v4036 = vrot.slane %v4035, 1
        %v4037 = vmax.f32 %v4035, %v4036
        %v4038 = vsel %vm3703, %v3971, -inf
        %v4039 = vrot.slane %v4038, 4
        %v4040 = vmax.f32 %v4038, %v4039
        %v4041 = vrot.slane %v4040, 2
        %v4042 = vmax.f32 %v4040, %v4041
        %v4043 = vrot.slane %v4042, 1
        %v4044 = vmax.f32 %v4042, %v4043
        %v4045 = vsel %vm3703, %v3972, -inf
        %v4046 = vrot.slane %v4045, 4
        %v4047 = vmax.f32 %v4045, %v4046
        %v4048 = vrot.slane %v4047, 2
        %v4049 = vmax.f32 %v4047, %v4048
        %v4050 = vrot.slane %v4049, 1
        %v4051 = vmax.f32 %v4049, %v4050
        %v4052 = vsel %vm3703, %v3973, -inf
        %v4053 = vrot.slane %v4052, 4
        %v4054 = vmax.f32 %v4052, %v4053
        %v4055 = vrot.slane %v4054, 2
        %v4056 = vmax.f32 %v4054, %v4055
        %v4057 = vrot.slane %v4056, 1
        %v4058 = vmax.f32 %v4056, %v4057
        %v4059 = vsel %vm3703, %v3974, -inf
        %v4060 = vrot.slane %v4059, 4
        %v4061 = vmax.f32 %v4059, %v4060
        %v4062 = vrot.slane %v4061, 2
        %v4063 = vmax.f32 %v4061, %v4062
        %v4064 = vrot.slane %v4063, 1
        %v4065 = vmax.f32 %v4063, %v4064
        %v4079 = vsel %vm3808, %v3988, %v3981
        %v4080 = vsel %vm3810, %v3995, %v4079
        %v4081 = vsel %vm3812, %v4002, %v4080
        %v4082 = vsel %vm3814, %v4009, %v4081
        %v4083 = vsel %vm3816, %v4016, %v4082
        %v4084 = vsel %vm3818, %v4023, %v4083
        %v4085 = vsel %vm3820, %v4030, %v4084
        %v4086 = vsel %vm3808, %v4044, %v4037
        %v4087 = vsel %vm3810, %v4051, %v4086
        %v4088 = vsel %vm3812, %v4058, %v4087
        %v4089 = vsel %vm3814, %v4065, %v4088
        %4092 = vst [vmem:[#allocation4 + $0x1a] sm:$0xff] %v4085
        %4093 = vst [vmem:[#allocation4 + $0x22] sm:$0x1f] %v4089
        %v4094 = vld [vmem:[#allocation3 + $0x6] sm:$0x3]
        %v4095 = vld [vmem:[#allocation3 + $0x26] sm:$0x3]
        %v4096 = vld [vmem:[#allocation3 + $0x46] sm:$0x3]
        %v4097 = vld [vmem:[#allocation3 + $0x66] sm:$0x3]
        %v4098 = vld [vmem:[#allocation3 + $0x86] sm:$0x3]
        %v4099 = vld [vmem:[#allocation3 + $0xa6] sm:$0x3]
        %v4100 = vld [vmem:[#allocation3 + $0xc6] sm:$0x3]
        %v4101 = vld [vmem:[#allocation3 + $0xe6] sm:$0x3]
        %v4102 = vld [vmem:[#allocation3 + $0x106] sm:$0x3]
        %v4103 = vld [vmem:[#allocation3 + $0x126] sm:$0x3]
        %v4104 = vld [vmem:[#allocation3 + $0x146] sm:$0x3]
        %v4105 = vld [vmem:[#allocation3 + $0x166] sm:$0x3]
        %v4106 = vld [vmem:[#allocation3 + $0x186] sm:$0x3]
        %v4107 = vsel %vm3703, %v4094, -inf
        %v4108 = vrot.slane %v4107, 4
        %v4109 = vmax.f32 %v4107, %v4108
        %v4110 = vrot.slane %v4109, 2
        %v4111 = vmax.f32 %v4109, %v4110
        %v4112 = vrot.slane %v4111, 1
        %v4113 = vmax.f32 %v4111, %v4112
        %v4114 = vsel %vm3703, %v4095, -inf
        %v4115 = vrot.slane %v4114, 4
        %v4116 = vmax.f32 %v4114, %v4115
        %v4117 = vrot.slane %v4116, 2
        %v4118 = vmax.f32 %v4116, %v4117
        %v4119 = vrot.slane %v4118, 1
        %v4120 = vmax.f32 %v4118, %v4119
        %v4121 = vsel %vm3703, %v4096, -inf
        %v4122 = vrot.slane %v4121, 4
        %v4123 = vmax.f32 %v4121, %v4122
        %v4124 = vrot.slane %v4123, 2
        %v4125 = vmax.f32 %v4123, %v4124
        %v4126 = vrot.slane %v4125, 1
        %v4127 = vmax.f32 %v4125, %v4126
        %v4128 = vsel %vm3703, %v4097, -inf
        %v4129 = vrot.slane %v4128, 4
        %v4130 = vmax.f32 %v4128, %v4129
        %v4131 = vrot.slane %v4130, 2
        %v4132 = vmax.f32 %v4130, %v4131
        %v4133 = vrot.slane %v4132, 1
        %v4134 = vmax.f32 %v4132, %v4133
        %v4135 = vsel %vm3703, %v4098, -inf
        %v4136 = vrot.slane %v4135, 4
        %v4137 = vmax.f32 %v4135, %v4136
        %v4138 = vrot.slane %v4137, 2
        %v4139 = vmax.f32 %v4137, %v4138
        %v4140 = vrot.slane %v4139, 1
        %v4141 = vmax.f32 %v4139, %v4140
        %v4142 = vsel %vm3703, %v4099, -inf
        %v4143 = vrot.slane %v4142, 4
        %v4144 = vmax.f32 %v4142, %v4143
        %v4145 = vrot.slane %v4144, 2
        %v4146 = vmax.f32 %v4144, %v4145
        %v4147 = vrot.slane %v4146, 1
        %v4148 = vmax.f32 %v4146, %v4147
        %v4149 = vsel %vm3703, %v4100, -inf
        %v4150 = vrot.slane %v4149, 4
        %v4151 = vmax.f32 %v4149, %v4150
        %v4152 = vrot.slane %v4151, 2
        %v4153 = vmax.f32 %v4151, %v4152
        %v4154 = vrot.slane %v4153, 1
        %v4155 = vmax.f32 %v4153, %v4154
        %v4156 = vsel %vm3703, %v4101, -inf
        %v4157 = vrot.slane %v4156, 4
        %v4158 = vmax.f32 %v4156, %v4157
        %v4159 = vrot.slane %v4158, 2
        %v4160 = vmax.f32 %v4158, %v4159
        %v4161 = vrot.slane %v4160, 1
        %v4162 = vmax.f32 %v4160, %v4161
        %v4163 = vsel %vm3703, %v4102, -inf
        %v4164 = vrot.slane %v4163, 4
        %v4165 = vmax.f32 %v4163, %v4164
        %v4166 = vrot.slane %v4165, 2
        %v4167 = vmax.f32 %v4165, %v4166
        %v4168 = vrot.slane %v4167, 1
        %v4169 = vmax.f32 %v4167, %v4168
        %v4170 = vsel %vm3703, %v4103, -inf
        %v4171 = vrot.slane %v4170, 4
        %v4172 = vmax.f32 %v4170, %v4171
        %v4173 = vrot.slane %v4172, 2
        %v4174 = vmax.f32 %v4172, %v4173
        %v4175 = vrot.slane %v4174, 1
        %v4176 = vmax.f32 %v4174, %v4175
        %v4177 = vsel %vm3703, %v4104, -inf
        %v4178 = vrot.slane %v4177, 4
        %v4179 = vmax.f32 %v4177, %v4178
        %v4180 = vrot.slane %v4179, 2
        %v4181 = vmax.f32 %v4179, %v4180
        %v4182 = vrot.slane %v4181, 1
        %v4183 = vmax.f32 %v4181, %v4182
        %v4184 = vsel %vm3703, %v4105, -inf
        %v4185 = vrot.slane %v4184, 4
        %v4186 = vmax.f32 %v4184, %v4185
        %v4187 = vrot.slane %v4186, 2
        %v4188 = vmax.f32 %v4186, %v4187
        %v4189 = vrot.slane %v4188, 1
        %v4190 = vmax.f32 %v4188, %v4189
        %v4191 = vsel %vm3703, %v4106, -inf
        %v4192 = vrot.slane %v4191, 4
        %v4193 = vmax.f32 %v4191, %v4192
        %v4194 = vrot.slane %v4193, 2
        %v4195 = vmax.f32 %v4193, %v4194
        %v4196 = vrot.slane %v4195, 1
        %v4197 = vmax.f32 %v4195, %v4196
        %v4211 = vsel %vm3808, %v4120, %v4113
        %v4212 = vsel %vm3810, %v4127, %v4211
        %v4213 = vsel %vm3812, %v4134, %v4212
        %v4214 = vsel %vm3814, %v4141, %v4213
        %v4215 = vsel %vm3816, %v4148, %v4214
        %v4216 = vsel %vm3818, %v4155, %v4215
        %v4217 = vsel %vm3820, %v4162, %v4216
        %v4218 = vsel %vm3808, %v4176, %v4169
        %v4219 = vsel %vm3810, %v4183, %v4218
        %v4220 = vsel %vm3812, %v4190, %v4219
        %v4221 = vsel %vm3814, %v4197, %v4220
        %4224 = vst [vmem:[#allocation4 + $0x27] sm:$0xff] %v4217
        %4225 = vst [vmem:[#allocation4 + $0x2f] sm:$0x1f] %v4221
        %v4226 = vld [vmem:[#allocation3 + $0x8] sm:$0x3]
        %v4227 = vld [vmem:[#allocation3 + $0x28] sm:$0x3]
        %v4228 = vld [vmem:[#allocation3 + $0x48] sm:$0x3]
        %v4229 = vld [vmem:[#allocation3 + $0x68] sm:$0x3]
        %v4230 = vld [vmem:[#allocation3 + $0x88] sm:$0x3]
        %v4231 = vld [vmem:[#allocation3 + $0xa8] sm:$0x3]
        %v4232 = vld [vmem:[#allocation3 + $0xc8] sm:$0x3]
        %v4233 = vld [vmem:[#allocation3 + $0xe8] sm:$0x3]
        %v4234 = vld [vmem:[#allocation3 + $0x108] sm:$0x3]
        %v4235 = vld [vmem:[#allocation3 + $0x128] sm:$0x3]
        %v4236 = vld [vmem:[#allocation3 + $0x148] sm:$0x3]
        %v4237 = vld [vmem:[#allocation3 + $0x168] sm:$0x3]
        %v4238 = vld [vmem:[#allocation3 + $0x188] sm:$0x3]
        %v4239 = vsel %vm3703, %v4226, -inf
        %v4240 = vrot.slane %v4239, 4
        %v4241 = vmax.f32 %v4239, %v4240
        %v4242 = vrot.slane %v4241, 2
        %v4243 = vmax.f32 %v4241, %v4242
        %v4244 = vrot.slane %v4243, 1
        %v4245 = vmax.f32 %v4243, %v4244
        %v4246 = vsel %vm3703, %v4227, -inf
        %v4247 = vrot.slane %v4246, 4
        %v4248 = vmax.f32 %v4246, %v4247
        %v4249 = vrot.slane %v4248, 2
        %v4250 = vmax.f32 %v4248, %v4249
        %v4251 = vrot.slane %v4250, 1
        %v4252 = vmax.f32 %v4250, %v4251
        %v4253 = vsel %vm3703, %v4228, -inf
        %v4254 = vrot.slane %v4253, 4
        %v4255 = vmax.f32 %v4253, %v4254
        %v4256 = vrot.slane %v4255, 2
        %v4257 = vmax.f32 %v4255, %v4256
        %v4258 = vrot.slane %v4257, 1
        %v4259 = vmax.f32 %v4257, %v4258
        %v4260 = vsel %vm3703, %v4229, -inf
        %v4261 = vrot.slane %v4260, 4
        %v4262 = vmax.f32 %v4260, %v4261
        %v4263 = vrot.slane %v4262, 2
        %v4264 = vmax.f32 %v4262, %v4263
        %v4265 = vrot.slane %v4264, 1
        %v4266 = vmax.f32 %v4264, %v4265
        %v4267 = vsel %vm3703, %v4230, -inf
        %v4268 = vrot.slane %v4267, 4
        %v4269 = vmax.f32 %v4267, %v4268
        %v4270 = vrot.slane %v4269, 2
        %v4271 = vmax.f32 %v4269, %v4270
        %v4272 = vrot.slane %v4271, 1
        %v4273 = vmax.f32 %v4271, %v4272
        %v4274 = vsel %vm3703, %v4231, -inf
        %v4275 = vrot.slane %v4274, 4
        %v4276 = vmax.f32 %v4274, %v4275
        %v4277 = vrot.slane %v4276, 2
        %v4278 = vmax.f32 %v4276, %v4277
        %v4279 = vrot.slane %v4278, 1
        %v4280 = vmax.f32 %v4278, %v4279
        %v4281 = vsel %vm3703, %v4232, -inf
        %v4282 = vrot.slane %v4281, 4
        %v4283 = vmax.f32 %v4281, %v4282
        %v4284 = vrot.slane %v4283, 2
        %v4285 = vmax.f32 %v4283, %v4284
        %v4286 = vrot.slane %v4285, 1
        %v4287 = vmax.f32 %v4285, %v4286
        %v4288 = vsel %vm3703, %v4233, -inf
        %v4289 = vrot.slane %v4288, 4
        %v4290 = vmax.f32 %v4288, %v4289
        %v4291 = vrot.slane %v4290, 2
        %v4292 = vmax.f32 %v4290, %v4291
        %v4293 = vrot.slane %v4292, 1
        %v4294 = vmax.f32 %v4292, %v4293
        %v4295 = vsel %vm3703, %v4234, -inf
        %v4296 = vrot.slane %v4295, 4
        %v4297 = vmax.f32 %v4295, %v4296
        %v4298 = vrot.slane %v4297, 2
        %v4299 = vmax.f32 %v4297, %v4298
        %v4300 = vrot.slane %v4299, 1
        %v4301 = vmax.f32 %v4299, %v4300
        %v4302 = vsel %vm3703, %v4235, -inf
        %v4303 = vrot.slane %v4302, 4
        %v4304 = vmax.f32 %v4302, %v4303
        %v4305 = vrot.slane %v4304, 2
        %v4306 = vmax.f32 %v4304, %v4305
        %v4307 = vrot.slane %v4306, 1
        %v4308 = vmax.f32 %v4306, %v4307
        %v4309 = vsel %vm3703, %v4236, -inf
        %v4310 = vrot.slane %v4309, 4
        %v4311 = vmax.f32 %v4309, %v4310
        %v4312 = vrot.slane %v4311, 2
        %v4313 = vmax.f32 %v4311, %v4312
        %v4314 = vrot.slane %v4313, 1
        %v4315 = vmax.f32 %v4313, %v4314
        %v4316 = vsel %vm3703, %v4237, -inf
        %v4317 = vrot.slane %v4316, 4
        %v4318 = vmax.f32 %v4316, %v4317
        %v4319 = vrot.slane %v4318, 2
        %v4320 = vmax.f32 %v4318, %v4319
        %v4321 = vrot.slane %v4320, 1
        %v4322 = vmax.f32 %v4320, %v4321
        %v4323 = vsel %vm3703, %v4238, -inf
        %v4324 = vrot.slane %v4323, 4
        %v4325 = vmax.f32 %v4323, %v4324
        %v4326 = vrot.slane %v4325, 2
        %v4327 = vmax.f32 %v4325, %v4326
        %v4328 = vrot.slane %v4327, 1
        %v4329 = vmax.f32 %v4327, %v4328
        %v4343 = vsel %vm3808, %v4252, %v4245
        %v4344 = vsel %vm3810, %v4259, %v4343
        %v4345 = vsel %vm3812, %v4266, %v4344
        %v4346 = vsel %vm3814, %v4273, %v4345
        %v4347 = vsel %vm3816, %v4280, %v4346
        %v4348 = vsel %vm3818, %v4287, %v4347
        %v4349 = vsel %vm3820, %v4294, %v4348
        %v4350 = vsel %vm3808, %v4308, %v4301
        %v4351 = vsel %vm3810, %v4315, %v4350
        %v4352 = vsel %vm3812, %v4322, %v4351
        %v4353 = vsel %vm3814, %v4329, %v4352
        %4356 = vst [vmem:[#allocation4 + $0x34] sm:$0xff] %v4349
        %4357 = vst [vmem:[#allocation4 + $0x3c] sm:$0x1f] %v4353
        %v4358 = vld [vmem:[#allocation3 + $0xa] sm:$0x3]
        %v4359 = vld [vmem:[#allocation3 + $0x2a] sm:$0x3]
        %v4360 = vld [vmem:[#allocation3 + $0x4a] sm:$0x3]
        %v4361 = vld [vmem:[#allocation3 + $0x6a] sm:$0x3]
        %v4362 = vld [vmem:[#allocation3 + $0x8a] sm:$0x3]
        %v4363 = vld [vmem:[#allocation3 + $0xaa] sm:$0x3]
        %v4364 = vld [vmem:[#allocation3 + $0xca] sm:$0x3]
        %v4365 = vld [vmem:[#allocation3 + $0xea] sm:$0x3]
        %v4366 = vld [vmem:[#allocation3 + $0x10a] sm:$0x3]
        %v4367 = vld [vmem:[#allocation3 + $0x12a] sm:$0x3]
        %v4368 = vld [vmem:[#allocation3 + $0x14a] sm:$0x3]
        %v4369 = vld [vmem:[#allocation3 + $0x16a] sm:$0x3]
        %v4370 = vld [vmem:[#allocation3 + $0x18a] sm:$0x3]
        %v4371 = vsel %vm3703, %v4358, -inf
        %v4372 = vrot.slane %v4371, 4
        %v4373 = vmax.f32 %v4371, %v4372
        %v4374 = vrot.slane %v4373, 2
        %v4375 = vmax.f32 %v4373, %v4374
        %v4376 = vrot.slane %v4375, 1
        %v4377 = vmax.f32 %v4375, %v4376
        %v4378 = vsel %vm3703, %v4359, -inf
        %v4379 = vrot.slane %v4378, 4
        %v4380 = vmax.f32 %v4378, %v4379
        %v4381 = vrot.slane %v4380, 2
        %v4382 = vmax.f32 %v4380, %v4381
        %v4383 = vrot.slane %v4382, 1
        %v4384 = vmax.f32 %v4382, %v4383
        %v4385 = vsel %vm3703, %v4360, -inf
        %v4386 = vrot.slane %v4385, 4
        %v4387 = vmax.f32 %v4385, %v4386
        %v4388 = vrot.slane %v4387, 2
        %v4389 = vmax.f32 %v4387, %v4388
        %v4390 = vrot.slane %v4389, 1
        %v4391 = vmax.f32 %v4389, %v4390
        %v4392 = vsel %vm3703, %v4361, -inf
        %v4393 = vrot.slane %v4392, 4
        %v4394 = vmax.f32 %v4392, %v4393
        %v4395 = vrot.slane %v4394, 2
        %v4396 = vmax.f32 %v4394, %v4395
        %v4397 = vrot.slane %v4396, 1
        %v4398 = vmax.f32 %v4396, %v4397
        %v4399 = vsel %vm3703, %v4362, -inf
        %v4400 = vrot.slane %v4399, 4
        %v4401 = vmax.f32 %v4399, %v4400
        %v4402 = vrot.slane %v4401, 2
        %v4403 = vmax.f32 %v4401, %v4402
        %v4404 = vrot.slane %v4403, 1
        %v4405 = vmax.f32 %v4403, %v4404
        %v4406 = vsel %vm3703, %v4363, -inf
        %v4407 = vrot.slane %v4406, 4
        %v4408 = vmax.f32 %v4406, %v4407
        %v4409 = vrot.slane %v4408, 2
        %v4410 = vmax.f32 %v4408, %v4409
        %v4411 = vrot.slane %v4410, 1
        %v4412 = vmax.f32 %v4410, %v4411
        %v4413 = vsel %vm3703, %v4364, -inf
        %v4414 = vrot.slane %v4413, 4
        %v4415 = vmax.f32 %v4413, %v4414
        %v4416 = vrot.slane %v4415, 2
        %v4417 = vmax.f32 %v4415, %v4416
        %v4418 = vrot.slane %v4417, 1
        %v4419 = vmax.f32 %v4417, %v4418
        %v4420 = vsel %vm3703, %v4365, -inf
        %v4421 = vrot.slane %v4420, 4
        %v4422 = vmax.f32 %v4420, %v4421
        %v4423 = vrot.slane %v4422, 2
        %v4424 = vmax.f32 %v4422, %v4423
        %v4425 = vrot.slane %v4424, 1
        %v4426 = vmax.f32 %v4424, %v4425
        %v4427 = vsel %vm3703, %v4366, -inf
        %v4428 = vrot.slane %v4427, 4
        %v4429 = vmax.f32 %v4427, %v4428
        %v4430 = vrot.slane %v4429, 2
        %v4431 = vmax.f32 %v4429, %v4430
        %v4432 = vrot.slane %v4431, 1
        %v4433 = vmax.f32 %v4431, %v4432
        %v4434 = vsel %vm3703, %v4367, -inf
        %v4435 = vrot.slane %v4434, 4
        %v4436 = vmax.f32 %v4434, %v4435
        %v4437 = vrot.slane %v4436, 2
        %v4438 = vmax.f32 %v4436, %v4437
        %v4439 = vrot.slane %v4438, 1
        %v4440 = vmax.f32 %v4438, %v4439
        %v4441 = vsel %vm3703, %v4368, -inf
        %v4442 = vrot.slane %v4441, 4
        %v4443 = vmax.f32 %v4441, %v4442
        %v4444 = vrot.slane %v4443, 2
        %v4445 = vmax.f32 %v4443, %v4444
        %v4446 = vrot.slane %v4445, 1
        %v4447 = vmax.f32 %v4445, %v4446
        %v4448 = vsel %vm3703, %v4369, -inf
        %v4449 = vrot.slane %v4448, 4
        %v4450 = vmax.f32 %v4448, %v4449
        %v4451 = vrot.slane %v4450, 2
        %v4452 = vmax.f32 %v4450, %v4451
        %v4453 = vrot.slane %v4452, 1
        %v4454 = vmax.f32 %v4452, %v4453
        %v4455 = vsel %vm3703, %v4370, -inf
        %v4456 = vrot.slane %v4455, 4
        %v4457 = vmax.f32 %v4455, %v4456
        %v4458 = vrot.slane %v4457, 2
        %v4459 = vmax.f32 %v4457, %v4458
        %v4460 = vrot.slane %v4459, 1
        %v4461 = vmax.f32 %v4459, %v4460
        %v4475 = vsel %vm3808, %v4384, %v4377
        %v4476 = vsel %vm3810, %v4391, %v4475
        %v4477 = vsel %vm3812, %v4398, %v4476
        %v4478 = vsel %vm3814, %v4405, %v4477
        %v4479 = vsel %vm3816, %v4412, %v4478
        %v4480 = vsel %vm3818, %v4419, %v4479
        %v4481 = vsel %vm3820, %v4426, %v4480
        %v4482 = vsel %vm3808, %v4440, %v4433
        %v4483 = vsel %vm3810, %v4447, %v4482
        %v4484 = vsel %vm3812, %v4454, %v4483
        %v4485 = vsel %vm3814, %v4461, %v4484
        %4488 = vst [vmem:[#allocation4 + $0x41] sm:$0xff] %v4481
        %4489 = vst [vmem:[#allocation4 + $0x49] sm:$0x1f] %v4485
        %v4490 = vld [vmem:[#allocation3 + $0xc] sm:$0x3]
        %v4491 = vld [vmem:[#allocation3 + $0x2c] sm:$0x3]
        %v4492 = vld [vmem:[#allocation3 + $0x4c] sm:$0x3]
        %v4493 = vld [vmem:[#allocation3 + $0x6c] sm:$0x3]
        %v4494 = vld [vmem:[#allocation3 + $0x8c] sm:$0x3]
        %v4495 = vld [vmem:[#allocation3 + $0xac] sm:$0x3]
        %v4496 = vld [vmem:[#allocation3 + $0xcc] sm:$0x3]
        %v4497 = vld [vmem:[#allocation3 + $0xec] sm:$0x3]
        %v4498 = vld [vmem:[#allocation3 + $0x10c] sm:$0x3]
        %v4499 = vld [vmem:[#allocation3 + $0x12c] sm:$0x3]
        %v4500 = vld [vmem:[#allocation3 + $0x14c] sm:$0x3]
        %v4501 = vld [vmem:[#allocation3 + $0x16c] sm:$0x3]
        %v4502 = vld [vmem:[#allocation3 + $0x18c] sm:$0x3]
        %v4503 = vsel %vm3703, %v4490, -inf
        %v4504 = vrot.slane %v4503, 4
        %v4505 = vmax.f32 %v4503, %v4504
        %v4506 = vrot.slane %v4505, 2
        %v4507 = vmax.f32 %v4505, %v4506
        %v4508 = vrot.slane %v4507, 1
        %v4509 = vmax.f32 %v4507, %v4508
        %v4510 = vsel %vm3703, %v4491, -inf
        %v4511 = vrot.slane %v4510, 4
        %v4512 = vmax.f32 %v4510, %v4511
        %v4513 = vrot.slane %v4512, 2
        %v4514 = vmax.f32 %v4512, %v4513
        %v4515 = vrot.slane %v4514, 1
        %v4516 = vmax.f32 %v4514, %v4515
        %v4517 = vsel %vm3703, %v4492, -inf
        %v4518 = vrot.slane %v4517, 4
        %v4519 = vmax.f32 %v4517, %v4518
        %v4520 = vrot.slane %v4519, 2
        %v4521 = vmax.f32 %v4519, %v4520
        %v4522 = vrot.slane %v4521, 1
        %v4523 = vmax.f32 %v4521, %v4522
        %v4524 = vsel %vm3703, %v4493, -inf
        %v4525 = vrot.slane %v4524, 4
        %v4526 = vmax.f32 %v4524, %v4525
        %v4527 = vrot.slane %v4526, 2
        %v4528 = vmax.f32 %v4526, %v4527
        %v4529 = vrot.slane %v4528, 1
        %v4530 = vmax.f32 %v4528, %v4529
        %v4531 = vsel %vm3703, %v4494, -inf
        %v4532 = vrot.slane %v4531, 4
        %v4533 = vmax.f32 %v4531, %v4532
        %v4534 = vrot.slane %v4533, 2
        %v4535 = vmax.f32 %v4533, %v4534
        %v4536 = vrot.slane %v4535, 1
        %v4537 = vmax.f32 %v4535, %v4536
        %v4538 = vsel %vm3703, %v4495, -inf
        %v4539 = vrot.slane %v4538, 4
        %v4540 = vmax.f32 %v4538, %v4539
        %v4541 = vrot.slane %v4540, 2
        %v4542 = vmax.f32 %v4540, %v4541
        %v4543 = vrot.slane %v4542, 1
        %v4544 = vmax.f32 %v4542, %v4543
        %v4545 = vsel %vm3703, %v4496, -inf
        %v4546 = vrot.slane %v4545, 4
        %v4547 = vmax.f32 %v4545, %v4546
        %v4548 = vrot.slane %v4547, 2
        %v4549 = vmax.f32 %v4547, %v4548
        %v4550 = vrot.slane %v4549, 1
        %v4551 = vmax.f32 %v4549, %v4550
        %v4552 = vsel %vm3703, %v4497, -inf
        %v4553 = vrot.slane %v4552, 4
        %v4554 = vmax.f32 %v4552, %v4553
        %v4555 = vrot.slane %v4554, 2
        %v4556 = vmax.f32 %v4554, %v4555
        %v4557 = vrot.slane %v4556, 1
        %v4558 = vmax.f32 %v4556, %v4557
        %v4559 = vsel %vm3703, %v4498, -inf
        %v4560 = vrot.slane %v4559, 4
        %v4561 = vmax.f32 %v4559, %v4560
        %v4562 = vrot.slane %v4561, 2
        %v4563 = vmax.f32 %v4561, %v4562
        %v4564 = vrot.slane %v4563, 1
        %v4565 = vmax.f32 %v4563, %v4564
        %v4566 = vsel %vm3703, %v4499, -inf
        %v4567 = vrot.slane %v4566, 4
        %v4568 = vmax.f32 %v4566, %v4567
        %v4569 = vrot.slane %v4568, 2
        %v4570 = vmax.f32 %v4568, %v4569
        %v4571 = vrot.slane %v4570, 1
        %v4572 = vmax.f32 %v4570, %v4571
        %v4573 = vsel %vm3703, %v4500, -inf
        %v4574 = vrot.slane %v4573, 4
        %v4575 = vmax.f32 %v4573, %v4574
        %v4576 = vrot.slane %v4575, 2
        %v4577 = vmax.f32 %v4575, %v4576
        %v4578 = vrot.slane %v4577, 1
        %v4579 = vmax.f32 %v4577, %v4578
        %v4580 = vsel %vm3703, %v4501, -inf
        %v4581 = vrot.slane %v4580, 4
        %v4582 = vmax.f32 %v4580, %v4581
        %v4583 = vrot.slane %v4582, 2
        %v4584 = vmax.f32 %v4582, %v4583
        %v4585 = vrot.slane %v4584, 1
        %v4586 = vmax.f32 %v4584, %v4585
        %v4587 = vsel %vm3703, %v4502, -inf
        %v4588 = vrot.slane %v4587, 4
        %v4589 = vmax.f32 %v4587, %v4588
        %v4590 = vrot.slane %v4589, 2
        %v4591 = vmax.f32 %v4589, %v4590
        %v4592 = vrot.slane %v4591, 1
        %v4593 = vmax.f32 %v4591, %v4592
        %v4607 = vsel %vm3808, %v4516, %v4509
        %v4608 = vsel %vm3810, %v4523, %v4607
        %v4609 = vsel %vm3812, %v4530, %v4608
        %v4610 = vsel %vm3814, %v4537, %v4609
        %v4611 = vsel %vm3816, %v4544, %v4610
        %v4612 = vsel %vm3818, %v4551, %v4611
        %v4613 = vsel %vm3820, %v4558, %v4612
        %v4614 = vsel %vm3808, %v4572, %v4565
        %v4615 = vsel %vm3810, %v4579, %v4614
        %v4616 = vsel %vm3812, %v4586, %v4615
        %v4617 = vsel %vm3814, %v4593, %v4616
        %4620 = vst [vmem:[#allocation4 + $0x4e] sm:$0xff] %v4613
        %4621 = vst [vmem:[#allocation4 + $0x56] sm:$0x1f] %v4617
        %v4622 = vld [vmem:[#allocation3 + $0xe] sm:$0x3]
        %v4623 = vld [vmem:[#allocation3 + $0x2e] sm:$0x3]
        %v4624 = vld [vmem:[#allocation3 + $0x4e] sm:$0x3]
        %v4625 = vld [vmem:[#allocation3 + $0x6e] sm:$0x3]
        %v4626 = vld [vmem:[#allocation3 + $0x8e] sm:$0x3]
        %v4627 = vld [vmem:[#allocation3 + $0xae] sm:$0x3]
        %v4628 = vld [vmem:[#allocation3 + $0xce] sm:$0x3]
        %v4629 = vld [vmem:[#allocation3 + $0xee] sm:$0x3]
        %v4630 = vld [vmem:[#allocation3 + $0x10e] sm:$0x3]
        %v4631 = vld [vmem:[#allocation3 + $0x12e] sm:$0x3]
        %v4632 = vld [vmem:[#allocation3 + $0x14e] sm:$0x3]
        %v4633 = vld [vmem:[#allocation3 + $0x16e] sm:$0x3]
        %v4634 = vld [vmem:[#allocation3 + $0x18e] sm:$0x3]
        %v4635 = vsel %vm3703, %v4622, -inf
        %v4636 = vrot.slane %v4635, 4
        %v4637 = vmax.f32 %v4635, %v4636
        %v4638 = vrot.slane %v4637, 2
        %v4639 = vmax.f32 %v4637, %v4638
        %v4640 = vrot.slane %v4639, 1
        %v4641 = vmax.f32 %v4639, %v4640
        %v4642 = vsel %vm3703, %v4623, -inf
        %v4643 = vrot.slane %v4642, 4
        %v4644 = vmax.f32 %v4642, %v4643
        %v4645 = vrot.slane %v4644, 2
        %v4646 = vmax.f32 %v4644, %v4645
        %v4647 = vrot.slane %v4646, 1
        %v4648 = vmax.f32 %v4646, %v4647
        %v4649 = vsel %vm3703, %v4624, -inf
        %v4650 = vrot.slane %v4649, 4
        %v4651 = vmax.f32 %v4649, %v4650
        %v4652 = vrot.slane %v4651, 2
        %v4653 = vmax.f32 %v4651, %v4652
        %v4654 = vrot.slane %v4653, 1
        %v4655 = vmax.f32 %v4653, %v4654
        %v4656 = vsel %vm3703, %v4625, -inf
        %v4657 = vrot.slane %v4656, 4
        %v4658 = vmax.f32 %v4656, %v4657
        %v4659 = vrot.slane %v4658, 2
        %v4660 = vmax.f32 %v4658, %v4659
        %v4661 = vrot.slane %v4660, 1
        %v4662 = vmax.f32 %v4660, %v4661
        %v4663 = vsel %vm3703, %v4626, -inf
        %v4664 = vrot.slane %v4663, 4
        %v4665 = vmax.f32 %v4663, %v4664
        %v4666 = vrot.slane %v4665, 2
        %v4667 = vmax.f32 %v4665, %v4666
        %v4668 = vrot.slane %v4667, 1
        %v4669 = vmax.f32 %v4667, %v4668
        %v4670 = vsel %vm3703, %v4627, -inf
        %v4671 = vrot.slane %v4670, 4
        %v4672 = vmax.f32 %v4670, %v4671
        %v4673 = vrot.slane %v4672, 2
        %v4674 = vmax.f32 %v4672, %v4673
        %v4675 = vrot.slane %v4674, 1
        %v4676 = vmax.f32 %v4674, %v4675
        %v4677 = vsel %vm3703, %v4628, -inf
        %v4678 = vrot.slane %v4677, 4
        %v4679 = vmax.f32 %v4677, %v4678
        %v4680 = vrot.slane %v4679, 2
        %v4681 = vmax.f32 %v4679, %v4680
        %v4682 = vrot.slane %v4681, 1
        %v4683 = vmax.f32 %v4681, %v4682
        %v4684 = vsel %vm3703, %v4629, -inf
        %v4685 = vrot.slane %v4684, 4
        %v4686 = vmax.f32 %v4684, %v4685
        %v4687 = vrot.slane %v4686, 2
        %v4688 = vmax.f32 %v4686, %v4687
        %v4689 = vrot.slane %v4688, 1
        %v4690 = vmax.f32 %v4688, %v4689
        %v4691 = vsel %vm3703, %v4630, -inf
        %v4692 = vrot.slane %v4691, 4
        %v4693 = vmax.f32 %v4691, %v4692
        %v4694 = vrot.slane %v4693, 2
        %v4695 = vmax.f32 %v4693, %v4694
        %v4696 = vrot.slane %v4695, 1
        %v4697 = vmax.f32 %v4695, %v4696
        %v4698 = vsel %vm3703, %v4631, -inf
        %v4699 = vrot.slane %v4698, 4
        %v4700 = vmax.f32 %v4698, %v4699
        %v4701 = vrot.slane %v4700, 2
        %v4702 = vmax.f32 %v4700, %v4701
        %v4703 = vrot.slane %v4702, 1
        %v4704 = vmax.f32 %v4702, %v4703
        %v4705 = vsel %vm3703, %v4632, -inf
        %v4706 = vrot.slane %v4705, 4
        %v4707 = vmax.f32 %v4705, %v4706
        %v4708 = vrot.slane %v4707, 2
        %v4709 = vmax.f32 %v4707, %v4708
        %v4710 = vrot.slane %v4709, 1
        %v4711 = vmax.f32 %v4709, %v4710
        %v4712 = vsel %vm3703, %v4633, -inf
        %v4713 = vrot.slane %v4712, 4
        %v4714 = vmax.f32 %v4712, %v4713
        %v4715 = vrot.slane %v4714, 2
        %v4716 = vmax.f32 %v4714, %v4715
        %v4717 = vrot.slane %v4716, 1
        %v4718 = vmax.f32 %v4716, %v4717
        %v4719 = vsel %vm3703, %v4634, -inf
        %v4720 = vrot.slane %v4719, 4
        %v4721 = vmax.f32 %v4719, %v4720
        %v4722 = vrot.slane %v4721, 2
        %v4723 = vmax.f32 %v4721, %v4722
        %v4724 = vrot.slane %v4723, 1
        %v4725 = vmax.f32 %v4723, %v4724
        %v4739 = vsel %vm3808, %v4648, %v4641
        %v4740 = vsel %vm3810, %v4655, %v4739
        %v4741 = vsel %vm3812, %v4662, %v4740
        %v4742 = vsel %vm3814, %v4669, %v4741
        %v4743 = vsel %vm3816, %v4676, %v4742
        %v4744 = vsel %vm3818, %v4683, %v4743
        %v4745 = vsel %vm3820, %v4690, %v4744
        %v4746 = vsel %vm3808, %v4704, %v4697
        %v4747 = vsel %vm3810, %v4711, %v4746
        %v4748 = vsel %vm3812, %v4718, %v4747
        %v4749 = vsel %vm3814, %v4725, %v4748
        %4752 = vst [vmem:[#allocation4 + $0x5b] sm:$0xff] %v4745
        %4753 = vst [vmem:[#allocation4 + $0x63] sm:$0x1f] %v4749
        %v4754 = vld [vmem:[#allocation3 + $0x10] sm:$0x3]
        %v4755 = vld [vmem:[#allocation3 + $0x30] sm:$0x3]
        %v4756 = vld [vmem:[#allocation3 + $0x50] sm:$0x3]
        %v4757 = vld [vmem:[#allocation3 + $0x70] sm:$0x3]
        %v4758 = vld [vmem:[#allocation3 + $0x90] sm:$0x3]
        %v4759 = vld [vmem:[#allocation3 + $0xb0] sm:$0x3]
        %v4760 = vld [vmem:[#allocation3 + $0xd0] sm:$0x3]
        %v4761 = vld [vmem:[#allocation3 + $0xf0] sm:$0x3]
        %v4762 = vld [vmem:[#allocation3 + $0x110] sm:$0x3]
        %v4763 = vld [vmem:[#allocation3 + $0x130] sm:$0x3]
        %v4764 = vld [vmem:[#allocation3 + $0x150] sm:$0x3]
        %v4765 = vld [vmem:[#allocation3 + $0x170] sm:$0x3]
        %v4766 = vld [vmem:[#allocation3 + $0x190] sm:$0x3]
        %v4767 = vsel %vm3703, %v4754, -inf
        %v4768 = vrot.slane %v4767, 4
        %v4769 = vmax.f32 %v4767, %v4768
        %v4770 = vrot.slane %v4769, 2
        %v4771 = vmax.f32 %v4769, %v4770
        %v4772 = vrot.slane %v4771, 1
        %v4773 = vmax.f32 %v4771, %v4772
        %v4774 = vsel %vm3703, %v4755, -inf
        %v4775 = vrot.slane %v4774, 4
        %v4776 = vmax.f32 %v4774, %v4775
        %v4777 = vrot.slane %v4776, 2
        %v4778 = vmax.f32 %v4776, %v4777
        %v4779 = vrot.slane %v4778, 1
        %v4780 = vmax.f32 %v4778, %v4779
        %v4781 = vsel %vm3703, %v4756, -inf
        %v4782 = vrot.slane %v4781, 4
        %v4783 = vmax.f32 %v4781, %v4782
        %v4784 = vrot.slane %v4783, 2
        %v4785 = vmax.f32 %v4783, %v4784
        %v4786 = vrot.slane %v4785, 1
        %v4787 = vmax.f32 %v4785, %v4786
        %v4788 = vsel %vm3703, %v4757, -inf
        %v4789 = vrot.slane %v4788, 4
        %v4790 = vmax.f32 %v4788, %v4789
        %v4791 = vrot.slane %v4790, 2
        %v4792 = vmax.f32 %v4790, %v4791
        %v4793 = vrot.slane %v4792, 1
        %v4794 = vmax.f32 %v4792, %v4793
        %v4795 = vsel %vm3703, %v4758, -inf
        %v4796 = vrot.slane %v4795, 4
        %v4797 = vmax.f32 %v4795, %v4796
        %v4798 = vrot.slane %v4797, 2
        %v4799 = vmax.f32 %v4797, %v4798
        %v4800 = vrot.slane %v4799, 1
        %v4801 = vmax.f32 %v4799, %v4800
        %v4802 = vsel %vm3703, %v4759, -inf
        %v4803 = vrot.slane %v4802, 4
        %v4804 = vmax.f32 %v4802, %v4803
        %v4805 = vrot.slane %v4804, 2
        %v4806 = vmax.f32 %v4804, %v4805
        %v4807 = vrot.slane %v4806, 1
        %v4808 = vmax.f32 %v4806, %v4807
        %v4809 = vsel %vm3703, %v4760, -inf
        %v4810 = vrot.slane %v4809, 4
        %v4811 = vmax.f32 %v4809, %v4810
        %v4812 = vrot.slane %v4811, 2
        %v4813 = vmax.f32 %v4811, %v4812
        %v4814 = vrot.slane %v4813, 1
        %v4815 = vmax.f32 %v4813, %v4814
        %v4816 = vsel %vm3703, %v4761, -inf
        %v4817 = vrot.slane %v4816, 4
        %v4818 = vmax.f32 %v4816, %v4817
        %v4819 = vrot.slane %v4818, 2
        %v4820 = vmax.f32 %v4818, %v4819
        %v4821 = vrot.slane %v4820, 1
        %v4822 = vmax.f32 %v4820, %v4821
        %v4823 = vsel %vm3703, %v4762, -inf
        %v4824 = vrot.slane %v4823, 4
        %v4825 = vmax.f32 %v4823, %v4824
        %v4826 = vrot.slane %v4825, 2
        %v4827 = vmax.f32 %v4825, %v4826
        %v4828 = vrot.slane %v4827, 1
        %v4829 = vmax.f32 %v4827, %v4828
        %v4830 = vsel %vm3703, %v4763, -inf
        %v4831 = vrot.slane %v4830, 4
        %v4832 = vmax.f32 %v4830, %v4831
        %v4833 = vrot.slane %v4832, 2
        %v4834 = vmax.f32 %v4832, %v4833
        %v4835 = vrot.slane %v4834, 1
        %v4836 = vmax.f32 %v4834, %v4835
        %v4837 = vsel %vm3703, %v4764, -inf
        %v4838 = vrot.slane %v4837, 4
        %v4839 = vmax.f32 %v4837, %v4838
        %v4840 = vrot.slane %v4839, 2
        %v4841 = vmax.f32 %v4839, %v4840
        %v4842 = vrot.slane %v4841, 1
        %v4843 = vmax.f32 %v4841, %v4842
        %v4844 = vsel %vm3703, %v4765, -inf
        %v4845 = vrot.slane %v4844, 4
        %v4846 = vmax.f32 %v4844, %v4845
        %v4847 = vrot.slane %v4846, 2
        %v4848 = vmax.f32 %v4846, %v4847
        %v4849 = vrot.slane %v4848, 1
        %v4850 = vmax.f32 %v4848, %v4849
        %v4851 = vsel %vm3703, %v4766, -inf
        %v4852 = vrot.slane %v4851, 4
        %v4853 = vmax.f32 %v4851, %v4852
        %v4854 = vrot.slane %v4853, 2
        %v4855 = vmax.f32 %v4853, %v4854
        %v4856 = vrot.slane %v4855, 1
        %v4857 = vmax.f32 %v4855, %v4856
        %v4871 = vsel %vm3808, %v4780, %v4773
        %v4872 = vsel %vm3810, %v4787, %v4871
        %v4873 = vsel %vm3812, %v4794, %v4872
        %v4874 = vsel %vm3814, %v4801, %v4873
        %v4875 = vsel %vm3816, %v4808, %v4874
        %v4876 = vsel %vm3818, %v4815, %v4875
        %v4877 = vsel %vm3820, %v4822, %v4876
        %v4878 = vsel %vm3808, %v4836, %v4829
        %v4879 = vsel %vm3810, %v4843, %v4878
        %v4880 = vsel %vm3812, %v4850, %v4879
        %v4881 = vsel %vm3814, %v4857, %v4880
        %4884 = vst [vmem:[#allocation4 + $0x68] sm:$0xff] %v4877
        %4885 = vst [vmem:[#allocation4 + $0x70] sm:$0x1f] %v4881
        %v4886 = vld [vmem:[#allocation3 + $0x12] sm:$0x3]
        %v4887 = vld [vmem:[#allocation3 + $0x32] sm:$0x3]
        %v4888 = vld [vmem:[#allocation3 + $0x52] sm:$0x3]
        %v4889 = vld [vmem:[#allocation3 + $0x72] sm:$0x3]
        %v4890 = vld [vmem:[#allocation3 + $0x92] sm:$0x3]
        %v4891 = vld [vmem:[#allocation3 + $0xb2] sm:$0x3]
        %v4892 = vld [vmem:[#allocation3 + $0xd2] sm:$0x3]
        %v4893 = vld [vmem:[#allocation3 + $0xf2] sm:$0x3]
        %v4894 = vld [vmem:[#allocation3 + $0x112] sm:$0x3]
        %v4895 = vld [vmem:[#allocation3 + $0x132] sm:$0x3]
        %v4896 = vld [vmem:[#allocation3 + $0x152] sm:$0x3]
        %v4897 = vld [vmem:[#allocation3 + $0x172] sm:$0x3]
        %v4898 = vld [vmem:[#allocation3 + $0x192] sm:$0x3]
        %v4899 = vsel %vm3703, %v4886, -inf
        %v4900 = vrot.slane %v4899, 4
        %v4901 = vmax.f32 %v4899, %v4900
        %v4902 = vrot.slane %v4901, 2
        %v4903 = vmax.f32 %v4901, %v4902
        %v4904 = vrot.slane %v4903, 1
        %v4905 = vmax.f32 %v4903, %v4904
        %v4906 = vsel %vm3703, %v4887, -inf
        %v4907 = vrot.slane %v4906, 4
        %v4908 = vmax.f32 %v4906, %v4907
        %v4909 = vrot.slane %v4908, 2
        %v4910 = vmax.f32 %v4908, %v4909
        %v4911 = vrot.slane %v4910, 1
        %v4912 = vmax.f32 %v4910, %v4911
        %v4913 = vsel %vm3703, %v4888, -inf
        %v4914 = vrot.slane %v4913, 4
        %v4915 = vmax.f32 %v4913, %v4914
        %v4916 = vrot.slane %v4915, 2
        %v4917 = vmax.f32 %v4915, %v4916
        %v4918 = vrot.slane %v4917, 1
        %v4919 = vmax.f32 %v4917, %v4918
        %v4920 = vsel %vm3703, %v4889, -inf
        %v4921 = vrot.slane %v4920, 4
        %v4922 = vmax.f32 %v4920, %v4921
        %v4923 = vrot.slane %v4922, 2
        %v4924 = vmax.f32 %v4922, %v4923
        %v4925 = vrot.slane %v4924, 1
        %v4926 = vmax.f32 %v4924, %v4925
        %v4927 = vsel %vm3703, %v4890, -inf
        %v4928 = vrot.slane %v4927, 4
        %v4929 = vmax.f32 %v4927, %v4928
        %v4930 = vrot.slane %v4929, 2
        %v4931 = vmax.f32 %v4929, %v4930
        %v4932 = vrot.slane %v4931, 1
        %v4933 = vmax.f32 %v4931, %v4932
        %v4934 = vsel %vm3703, %v4891, -inf
        %v4935 = vrot.slane %v4934, 4
        %v4936 = vmax.f32 %v4934, %v4935
        %v4937 = vrot.slane %v4936, 2
        %v4938 = vmax.f32 %v4936, %v4937
        %v4939 = vrot.slane %v4938, 1
        %v4940 = vmax.f32 %v4938, %v4939
        %v4941 = vsel %vm3703, %v4892, -inf
        %v4942 = vrot.slane %v4941, 4
        %v4943 = vmax.f32 %v4941, %v4942
        %v4944 = vrot.slane %v4943, 2
        %v4945 = vmax.f32 %v4943, %v4944
        %v4946 = vrot.slane %v4945, 1
        %v4947 = vmax.f32 %v4945, %v4946
        %v4948 = vsel %vm3703, %v4893, -inf
        %v4949 = vrot.slane %v4948, 4
        %v4950 = vmax.f32 %v4948, %v4949
        %v4951 = vrot.slane %v4950, 2
        %v4952 = vmax.f32 %v4950, %v4951
        %v4953 = vrot.slane %v4952, 1
        %v4954 = vmax.f32 %v4952, %v4953
        %v4955 = vsel %vm3703, %v4894, -inf
        %v4956 = vrot.slane %v4955, 4
        %v4957 = vmax.f32 %v4955, %v4956
        %v4958 = vrot.slane %v4957, 2
        %v4959 = vmax.f32 %v4957, %v4958
        %v4960 = vrot.slane %v4959, 1
        %v4961 = vmax.f32 %v4959, %v4960
        %v4962 = vsel %vm3703, %v4895, -inf
        %v4963 = vrot.slane %v4962, 4
        %v4964 = vmax.f32 %v4962, %v4963
        %v4965 = vrot.slane %v4964, 2
        %v4966 = vmax.f32 %v4964, %v4965
        %v4967 = vrot.slane %v4966, 1
        %v4968 = vmax.f32 %v4966, %v4967
        %v4969 = vsel %vm3703, %v4896, -inf
        %v4970 = vrot.slane %v4969, 4
        %v4971 = vmax.f32 %v4969, %v4970
        %v4972 = vrot.slane %v4971, 2
        %v4973 = vmax.f32 %v4971, %v4972
        %v4974 = vrot.slane %v4973, 1
        %v4975 = vmax.f32 %v4973, %v4974
        %v4976 = vsel %vm3703, %v4897, -inf
        %v4977 = vrot.slane %v4976, 4
        %v4978 = vmax.f32 %v4976, %v4977
        %v4979 = vrot.slane %v4978, 2
        %v4980 = vmax.f32 %v4978, %v4979
        %v4981 = vrot.slane %v4980, 1
        %v4982 = vmax.f32 %v4980, %v4981
        %v4983 = vsel %vm3703, %v4898, -inf
        %v4984 = vrot.slane %v4983, 4
        %v4985 = vmax.f32 %v4983, %v4984
        %v4986 = vrot.slane %v4985, 2
        %v4987 = vmax.f32 %v4985, %v4986
        %v4988 = vrot.slane %v4987, 1
        %v4989 = vmax.f32 %v4987, %v4988
        %v5003 = vsel %vm3808, %v4912, %v4905
        %v5004 = vsel %vm3810, %v4919, %v5003
        %v5005 = vsel %vm3812, %v4926, %v5004
        %v5006 = vsel %vm3814, %v4933, %v5005
        %v5007 = vsel %vm3816, %v4940, %v5006
        %v5008 = vsel %vm3818, %v4947, %v5007
        %v5009 = vsel %vm3820, %v4954, %v5008
        %v5010 = vsel %vm3808, %v4968, %v4961
        %v5011 = vsel %vm3810, %v4975, %v5010
        %v5012 = vsel %vm3812, %v4982, %v5011
        %v5013 = vsel %vm3814, %v4989, %v5012
        %5016 = vst [vmem:[#allocation4 + $0x75] sm:$0xff] %v5009
        %5017 = vst [vmem:[#allocation4 + $0x7d] sm:$0x1f] %v5013
        %v5018 = vld [vmem:[#allocation3 + $0x14] sm:$0x3]
        %v5019 = vld [vmem:[#allocation3 + $0x34] sm:$0x3]
        %v5020 = vld [vmem:[#allocation3 + $0x54] sm:$0x3]
        %v5021 = vld [vmem:[#allocation3 + $0x74] sm:$0x3]
        %v5022 = vld [vmem:[#allocation3 + $0x94] sm:$0x3]
        %v5023 = vld [vmem:[#allocation3 + $0xb4] sm:$0x3]
        %v5024 = vld [vmem:[#allocation3 + $0xd4] sm:$0x3]
        %v5025 = vld [vmem:[#allocation3 + $0xf4] sm:$0x3]
        %v5026 = vld [vmem:[#allocation3 + $0x114] sm:$0x3]
        %v5027 = vld [vmem:[#allocation3 + $0x134] sm:$0x3]
        %v5028 = vld [vmem:[#allocation3 + $0x154] sm:$0x3]
        %v5029 = vld [vmem:[#allocation3 + $0x174] sm:$0x3]
        %v5030 = vld [vmem:[#allocation3 + $0x194] sm:$0x3]
        %v5031 = vsel %vm3703, %v5018, -inf
        %v5032 = vrot.slane %v5031, 4
        %v5033 = vmax.f32 %v5031, %v5032
        %v5034 = vrot.slane %v5033, 2
        %v5035 = vmax.f32 %v5033, %v5034
        %v5036 = vrot.slane %v5035, 1
        %v5037 = vmax.f32 %v5035, %v5036
        %v5038 = vsel %vm3703, %v5019, -inf
        %v5039 = vrot.slane %v5038, 4
        %v5040 = vmax.f32 %v5038, %v5039
        %v5041 = vrot.slane %v5040, 2
        %v5042 = vmax.f32 %v5040, %v5041
        %v5043 = vrot.slane %v5042, 1
        %v5044 = vmax.f32 %v5042, %v5043
        %v5045 = vsel %vm3703, %v5020, -inf
        %v5046 = vrot.slane %v5045, 4
        %v5047 = vmax.f32 %v5045, %v5046
        %v5048 = vrot.slane %v5047, 2
        %v5049 = vmax.f32 %v5047, %v5048
        %v5050 = vrot.slane %v5049, 1
        %v5051 = vmax.f32 %v5049, %v5050
        %v5052 = vsel %vm3703, %v5021, -inf
        %v5053 = vrot.slane %v5052, 4
        %v5054 = vmax.f32 %v5052, %v5053
        %v5055 = vrot.slane %v5054, 2
        %v5056 = vmax.f32 %v5054, %v5055
        %v5057 = vrot.slane %v5056, 1
        %v5058 = vmax.f32 %v5056, %v5057
        %v5059 = vsel %vm3703, %v5022, -inf
        %v5060 = vrot.slane %v5059, 4
        %v5061 = vmax.f32 %v5059, %v5060
        %v5062 = vrot.slane %v5061, 2
        %v5063 = vmax.f32 %v5061, %v5062
        %v5064 = vrot.slane %v5063, 1
        %v5065 = vmax.f32 %v5063, %v5064
        %v5066 = vsel %vm3703, %v5023, -inf
        %v5067 = vrot.slane %v5066, 4
        %v5068 = vmax.f32 %v5066, %v5067
        %v5069 = vrot.slane %v5068, 2
        %v5070 = vmax.f32 %v5068, %v5069
        %v5071 = vrot.slane %v5070, 1
        %v5072 = vmax.f32 %v5070, %v5071
        %v5073 = vsel %vm3703, %v5024, -inf
        %v5074 = vrot.slane %v5073, 4
        %v5075 = vmax.f32 %v5073, %v5074
        %v5076 = vrot.slane %v5075, 2
        %v5077 = vmax.f32 %v5075, %v5076
        %v5078 = vrot.slane %v5077, 1
        %v5079 = vmax.f32 %v5077, %v5078
        %v5080 = vsel %vm3703, %v5025, -inf
        %v5081 = vrot.slane %v5080, 4
        %v5082 = vmax.f32 %v5080, %v5081
        %v5083 = vrot.slane %v5082, 2
        %v5084 = vmax.f32 %v5082, %v5083
        %v5085 = vrot.slane %v5084, 1
        %v5086 = vmax.f32 %v5084, %v5085
        %v5087 = vsel %vm3703, %v5026, -inf
        %v5088 = vrot.slane %v5087, 4
        %v5089 = vmax.f32 %v5087, %v5088
        %v5090 = vrot.slane %v5089, 2
        %v5091 = vmax.f32 %v5089, %v5090
        %v5092 = vrot.slane %v5091, 1
        %v5093 = vmax.f32 %v5091, %v5092
        %v5094 = vsel %vm3703, %v5027, -inf
        %v5095 = vrot.slane %v5094, 4
        %v5096 = vmax.f32 %v5094, %v5095
        %v5097 = vrot.slane %v5096, 2
        %v5098 = vmax.f32 %v5096, %v5097
        %v5099 = vrot.slane %v5098, 1
        %v5100 = vmax.f32 %v5098, %v5099
        %v5101 = vsel %vm3703, %v5028, -inf
        %v5102 = vrot.slane %v5101, 4
        %v5103 = vmax.f32 %v5101, %v5102
        %v5104 = vrot.slane %v5103, 2
        %v5105 = vmax.f32 %v5103, %v5104
        %v5106 = vrot.slane %v5105, 1
        %v5107 = vmax.f32 %v5105, %v5106
        %v5108 = vsel %vm3703, %v5029, -inf
        %v5109 = vrot.slane %v5108, 4
        %v5110 = vmax.f32 %v5108, %v5109
        %v5111 = vrot.slane %v5110, 2
        %v5112 = vmax.f32 %v5110, %v5111
        %v5113 = vrot.slane %v5112, 1
        %v5114 = vmax.f32 %v5112, %v5113
        %v5115 = vsel %vm3703, %v5030, -inf
        %v5116 = vrot.slane %v5115, 4
        %v5117 = vmax.f32 %v5115, %v5116
        %v5118 = vrot.slane %v5117, 2
        %v5119 = vmax.f32 %v5117, %v5118
        %v5120 = vrot.slane %v5119, 1
        %v5121 = vmax.f32 %v5119, %v5120
        %v5135 = vsel %vm3808, %v5044, %v5037
        %v5136 = vsel %vm3810, %v5051, %v5135
        %v5137 = vsel %vm3812, %v5058, %v5136
        %v5138 = vsel %vm3814, %v5065, %v5137
        %v5139 = vsel %vm3816, %v5072, %v5138
        %v5140 = vsel %vm3818, %v5079, %v5139
        %v5141 = vsel %vm3820, %v5086, %v5140
        %v5142 = vsel %vm3808, %v5100, %v5093
        %v5143 = vsel %vm3810, %v5107, %v5142
        %v5144 = vsel %vm3812, %v5114, %v5143
        %v5145 = vsel %vm3814, %v5121, %v5144
        %5148 = vst [vmem:[#allocation4 + $0x82] sm:$0xff] %v5141
        %5149 = vst [vmem:[#allocation4 + $0x8a] sm:$0x1f] %v5145
        %v5150 = vld [vmem:[#allocation3 + $0x16] sm:$0x3]
        %v5151 = vld [vmem:[#allocation3 + $0x36] sm:$0x3]
        %v5152 = vld [vmem:[#allocation3 + $0x56] sm:$0x3]
        %v5153 = vld [vmem:[#allocation3 + $0x76] sm:$0x3]
        %v5154 = vld [vmem:[#allocation3 + $0x96] sm:$0x3]
        %v5155 = vld [vmem:[#allocation3 + $0xb6] sm:$0x3]
        %v5156 = vld [vmem:[#allocation3 + $0xd6] sm:$0x3]
        %v5157 = vld [vmem:[#allocation3 + $0xf6] sm:$0x3]
        %v5158 = vld [vmem:[#allocation3 + $0x116] sm:$0x3]
        %v5159 = vld [vmem:[#allocation3 + $0x136] sm:$0x3]
        %v5160 = vld [vmem:[#allocation3 + $0x156] sm:$0x3]
        %v5161 = vld [vmem:[#allocation3 + $0x176] sm:$0x3]
        %v5162 = vld [vmem:[#allocation3 + $0x196] sm:$0x3]
        %v5163 = vsel %vm3703, %v5150, -inf
        %v5164 = vrot.slane %v5163, 4
        %v5165 = vmax.f32 %v5163, %v5164
        %v5166 = vrot.slane %v5165, 2
        %v5167 = vmax.f32 %v5165, %v5166
        %v5168 = vrot.slane %v5167, 1
        %v5169 = vmax.f32 %v5167, %v5168
        %v5170 = vsel %vm3703, %v5151, -inf
        %v5171 = vrot.slane %v5170, 4
        %v5172 = vmax.f32 %v5170, %v5171
        %v5173 = vrot.slane %v5172, 2
        %v5174 = vmax.f32 %v5172, %v5173
        %v5175 = vrot.slane %v5174, 1
        %v5176 = vmax.f32 %v5174, %v5175
        %v5177 = vsel %vm3703, %v5152, -inf
        %v5178 = vrot.slane %v5177, 4
        %v5179 = vmax.f32 %v5177, %v5178
        %v5180 = vrot.slane %v5179, 2
        %v5181 = vmax.f32 %v5179, %v5180
        %v5182 = vrot.slane %v5181, 1
        %v5183 = vmax.f32 %v5181, %v5182
        %v5184 = vsel %vm3703, %v5153, -inf
        %v5185 = vrot.slane %v5184, 4
        %v5186 = vmax.f32 %v5184, %v5185
        %v5187 = vrot.slane %v5186, 2
        %v5188 = vmax.f32 %v5186, %v5187
        %v5189 = vrot.slane %v5188, 1
        %v5190 = vmax.f32 %v5188, %v5189
        %v5191 = vsel %vm3703, %v5154, -inf
        %v5192 = vrot.slane %v5191, 4
        %v5193 = vmax.f32 %v5191, %v5192
        %v5194 = vrot.slane %v5193, 2
        %v5195 = vmax.f32 %v5193, %v5194
        %v5196 = vrot.slane %v5195, 1
        %v5197 = vmax.f32 %v5195, %v5196
        %v5198 = vsel %vm3703, %v5155, -inf
        %v5199 = vrot.slane %v5198, 4
        %v5200 = vmax.f32 %v5198, %v5199
        %v5201 = vrot.slane %v5200, 2
        %v5202 = vmax.f32 %v5200, %v5201
        %v5203 = vrot.slane %v5202, 1
        %v5204 = vmax.f32 %v5202, %v5203
        %v5205 = vsel %vm3703, %v5156, -inf
        %v5206 = vrot.slane %v5205, 4
        %v5207 = vmax.f32 %v5205, %v5206
        %v5208 = vrot.slane %v5207, 2
        %v5209 = vmax.f32 %v5207, %v5208
        %v5210 = vrot.slane %v5209, 1
        %v5211 = vmax.f32 %v5209, %v5210
        %v5212 = vsel %vm3703, %v5157, -inf
        %v5213 = vrot.slane %v5212, 4
        %v5214 = vmax.f32 %v5212, %v5213
        %v5215 = vrot.slane %v5214, 2
        %v5216 = vmax.f32 %v5214, %v5215
        %v5217 = vrot.slane %v5216, 1
        %v5218 = vmax.f32 %v5216, %v5217
        %v5219 = vsel %vm3703, %v5158, -inf
        %v5220 = vrot.slane %v5219, 4
        %v5221 = vmax.f32 %v5219, %v5220
        %v5222 = vrot.slane %v5221, 2
        %v5223 = vmax.f32 %v5221, %v5222
        %v5224 = vrot.slane %v5223, 1
        %v5225 = vmax.f32 %v5223, %v5224
        %v5226 = vsel %vm3703, %v5159, -inf
        %v5227 = vrot.slane %v5226, 4
        %v5228 = vmax.f32 %v5226, %v5227
        %v5229 = vrot.slane %v5228, 2
        %v5230 = vmax.f32 %v5228, %v5229
        %v5231 = vrot.slane %v5230, 1
        %v5232 = vmax.f32 %v5230, %v5231
        %v5233 = vsel %vm3703, %v5160, -inf
        %v5234 = vrot.slane %v5233, 4
        %v5235 = vmax.f32 %v5233, %v5234
        %v5236 = vrot.slane %v5235, 2
        %v5237 = vmax.f32 %v5235, %v5236
        %v5238 = vrot.slane %v5237, 1
        %v5239 = vmax.f32 %v5237, %v5238
        %v5240 = vsel %vm3703, %v5161, -inf
        %v5241 = vrot.slane %v5240, 4
        %v5242 = vmax.f32 %v5240, %v5241
        %v5243 = vrot.slane %v5242, 2
        %v5244 = vmax.f32 %v5242, %v5243
        %v5245 = vrot.slane %v5244, 1
        %v5246 = vmax.f32 %v5244, %v5245
        %v5247 = vsel %vm3703, %v5162, -inf
        %v5248 = vrot.slane %v5247, 4
        %v5249 = vmax.f32 %v5247, %v5248
        %v5250 = vrot.slane %v5249, 2
        %v5251 = vmax.f32 %v5249, %v5250
        %v5252 = vrot.slane %v5251, 1
        %v5253 = vmax.f32 %v5251, %v5252
        %v5267 = vsel %vm3808, %v5176, %v5169
        %v5268 = vsel %vm3810, %v5183, %v5267
        %v5269 = vsel %vm3812, %v5190, %v5268
        %v5270 = vsel %vm3814, %v5197, %v5269
        %v5271 = vsel %vm3816, %v5204, %v5270
        %v5272 = vsel %vm3818, %v5211, %v5271
        %v5273 = vsel %vm3820, %v5218, %v5272
        %v5274 = vsel %vm3808, %v5232, %v5225
        %v5275 = vsel %vm3810, %v5239, %v5274
        %v5276 = vsel %vm3812, %v5246, %v5275
        %v5277 = vsel %vm3814, %v5253, %v5276
        %5280 = vst [vmem:[#allocation4 + $0x8f] sm:$0xff] %v5273
        %5281 = vst [vmem:[#allocation4 + $0x97] sm:$0x1f] %v5277
        %v5282 = vld [vmem:[#allocation3 + $0x18] sm:$0x3]
        %v5283 = vld [vmem:[#allocation3 + $0x38] sm:$0x3]
        %v5284 = vld [vmem:[#allocation3 + $0x58] sm:$0x3]
        %v5285 = vld [vmem:[#allocation3 + $0x78] sm:$0x3]
        %v5286 = vld [vmem:[#allocation3 + $0x98] sm:$0x3]
        %v5287 = vld [vmem:[#allocation3 + $0xb8] sm:$0x3]
        %v5288 = vld [vmem:[#allocation3 + $0xd8] sm:$0x3]
        %v5289 = vld [vmem:[#allocation3 + $0xf8] sm:$0x3]
        %v5290 = vld [vmem:[#allocation3 + $0x118] sm:$0x3]
        %v5291 = vld [vmem:[#allocation3 + $0x138] sm:$0x3]
        %v5292 = vld [vmem:[#allocation3 + $0x158] sm:$0x3]
        %v5293 = vld [vmem:[#allocation3 + $0x178] sm:$0x3]
        %v5294 = vld [vmem:[#allocation3 + $0x198] sm:$0x3]
        %v5295 = vsel %vm3703, %v5282, -inf
        %v5296 = vrot.slane %v5295, 4
        %v5297 = vmax.f32 %v5295, %v5296
        %v5298 = vrot.slane %v5297, 2
        %v5299 = vmax.f32 %v5297, %v5298
        %v5300 = vrot.slane %v5299, 1
        %v5301 = vmax.f32 %v5299, %v5300
        %v5302 = vsel %vm3703, %v5283, -inf
        %v5303 = vrot.slane %v5302, 4
        %v5304 = vmax.f32 %v5302, %v5303
        %v5305 = vrot.slane %v5304, 2
        %v5306 = vmax.f32 %v5304, %v5305
        %v5307 = vrot.slane %v5306, 1
        %v5308 = vmax.f32 %v5306, %v5307
        %v5309 = vsel %vm3703, %v5284, -inf
        %v5310 = vrot.slane %v5309, 4
        %v5311 = vmax.f32 %v5309, %v5310
        %v5312 = vrot.slane %v5311, 2
        %v5313 = vmax.f32 %v5311, %v5312
        %v5314 = vrot.slane %v5313, 1
        %v5315 = vmax.f32 %v5313, %v5314
        %v5316 = vsel %vm3703, %v5285, -inf
        %v5317 = vrot.slane %v5316, 4
        %v5318 = vmax.f32 %v5316, %v5317
        %v5319 = vrot.slane %v5318, 2
        %v5320 = vmax.f32 %v5318, %v5319
        %v5321 = vrot.slane %v5320, 1
        %v5322 = vmax.f32 %v5320, %v5321
        %v5323 = vsel %vm3703, %v5286, -inf
        %v5324 = vrot.slane %v5323, 4
        %v5325 = vmax.f32 %v5323, %v5324
        %v5326 = vrot.slane %v5325, 2
        %v5327 = vmax.f32 %v5325, %v5326
        %v5328 = vrot.slane %v5327, 1
        %v5329 = vmax.f32 %v5327, %v5328
        %v5330 = vsel %vm3703, %v5287, -inf
        %v5331 = vrot.slane %v5330, 4
        %v5332 = vmax.f32 %v5330, %v5331
        %v5333 = vrot.slane %v5332, 2
        %v5334 = vmax.f32 %v5332, %v5333
        %v5335 = vrot.slane %v5334, 1
        %v5336 = vmax.f32 %v5334, %v5335
        %v5337 = vsel %vm3703, %v5288, -inf
        %v5338 = vrot.slane %v5337, 4
        %v5339 = vmax.f32 %v5337, %v5338
        %v5340 = vrot.slane %v5339, 2
        %v5341 = vmax.f32 %v5339, %v5340
        %v5342 = vrot.slane %v5341, 1
        %v5343 = vmax.f32 %v5341, %v5342
        %v5344 = vsel %vm3703, %v5289, -inf
        %v5345 = vrot.slane %v5344, 4
        %v5346 = vmax.f32 %v5344, %v5345
        %v5347 = vrot.slane %v5346, 2
        %v5348 = vmax.f32 %v5346, %v5347
        %v5349 = vrot.slane %v5348, 1
        %v5350 = vmax.f32 %v5348, %v5349
        %v5351 = vsel %vm3703, %v5290, -inf
        %v5352 = vrot.slane %v5351, 4
        %v5353 = vmax.f32 %v5351, %v5352
        %v5354 = vrot.slane %v5353, 2
        %v5355 = vmax.f32 %v5353, %v5354
        %v5356 = vrot.slane %v5355, 1
        %v5357 = vmax.f32 %v5355, %v5356
        %v5358 = vsel %vm3703, %v5291, -inf
        %v5359 = vrot.slane %v5358, 4
        %v5360 = vmax.f32 %v5358, %v5359
        %v5361 = vrot.slane %v5360, 2
        %v5362 = vmax.f32 %v5360, %v5361
        %v5363 = vrot.slane %v5362, 1
        %v5364 = vmax.f32 %v5362, %v5363
        %v5365 = vsel %vm3703, %v5292, -inf
        %v5366 = vrot.slane %v5365, 4
        %v5367 = vmax.f32 %v5365, %v5366
        %v5368 = vrot.slane %v5367, 2
        %v5369 = vmax.f32 %v5367, %v5368
        %v5370 = vrot.slane %v5369, 1
        %v5371 = vmax.f32 %v5369, %v5370
        %v5372 = vsel %vm3703, %v5293, -inf
        %v5373 = vrot.slane %v5372, 4
        %v5374 = vmax.f32 %v5372, %v5373
        %v5375 = vrot.slane %v5374, 2
        %v5376 = vmax.f32 %v5374, %v5375
        %v5377 = vrot.slane %v5376, 1
        %v5378 = vmax.f32 %v5376, %v5377
        %v5379 = vsel %vm3703, %v5294, -inf
        %v5380 = vrot.slane %v5379, 4
        %v5381 = vmax.f32 %v5379, %v5380
        %v5382 = vrot.slane %v5381, 2
        %v5383 = vmax.f32 %v5381, %v5382
        %v5384 = vrot.slane %v5383, 1
        %v5385 = vmax.f32 %v5383, %v5384
        %v5399 = vsel %vm3808, %v5308, %v5301
        %v5400 = vsel %vm3810, %v5315, %v5399
        %v5401 = vsel %vm3812, %v5322, %v5400
        %v5402 = vsel %vm3814, %v5329, %v5401
        %v5403 = vsel %vm3816, %v5336, %v5402
        %v5404 = vsel %vm3818, %v5343, %v5403
        %v5405 = vsel %vm3820, %v5350, %v5404
        %v5406 = vsel %vm3808, %v5364, %v5357
        %v5407 = vsel %vm3810, %v5371, %v5406
        %v5408 = vsel %vm3812, %v5378, %v5407
        %v5409 = vsel %vm3814, %v5385, %v5408
        %5412 = vst [vmem:[#allocation4 + $0x9c] sm:$0xff] %v5405
        %5413 = vst [vmem:[#allocation4 + $0xa4] sm:$0x1f] %v5409
        %5414 = vst [vmem:[#allocation5] sm:$0xff] 0.0
        %5415 = vst [vmem:[#allocation5 + $0x8] sm:$0xff] 0.0
        %5416 = vst [vmem:[#allocation5 + $0x10] sm:$0xff] 0.0
        %5417 = vst [vmem:[#allocation5 + $0x18] sm:$0xff] 0.0
        %5418 = vst [vmem:[#allocation5 + $0x20] sm:$0xff] 0.0
        %5419 = vst [vmem:[#allocation5 + $0x28] sm:$0xff] 0.0
        %5420 = vst [vmem:[#allocation5 + $0x30] sm:$0xff] 0.0
        %5421 = vst [vmem:[#allocation5 + $0x38] sm:$0xff] 0.0
        %5422 = vst [vmem:[#allocation5 + $0x40] sm:$0xff] 0.0
        %5423 = vst [vmem:[#allocation5 + $0x48] sm:$0xff] 0.0
        %5424 = vst [vmem:[#allocation5 + $0x50] sm:$0xff] 0.0
        %5425 = vst [vmem:[#allocation5 + $0x58] sm:$0xff] 0.0
        %5426 = vst [vmem:[#allocation5 + $0x60] sm:$0xff] 0.0
        %5427 = vst [vmem:[#allocation5 + $0x68] sm:$0xff] 0.0
        %5428 = vst [vmem:[#allocation5 + $0x70] sm:$0xff] 0.0
        %5429 = vst [vmem:[#allocation5 + $0x78] sm:$0xff] 0.0
        %5430 = vst [vmem:[#allocation5 + $0x80] sm:$0xff] 0.0
        %5431 = vst [vmem:[#allocation5 + $0x88] sm:$0xff] 0.0
        %5432 = vst [vmem:[#allocation5 + $0x90] sm:$0xff] 0.0
        %5433 = vst [vmem:[#allocation5 + $0x98] sm:$0xff] 0.0
        %5434 = vst [vmem:[#allocation5 + $0xa0] sm:$0xff] 0.0
        %5435 = vst [vmem:[#allocation5 + $0xa8] sm:$0xff] 0.0
        %5436 = vst [vmem:[#allocation5 + $0xb0] sm:$0xff] 0.0
        %5437 = vst [vmem:[#allocation5 + $0xb8] sm:$0xff] 0.0
        %5438 = vst [vmem:[#allocation5 + $0xc0] sm:$0xff] 0.0
        %5439 = vst [vmem:[#allocation5 + $0xc8] sm:$0xff] 0.0
        %5440 = vst [vmem:[#allocation5 + $0xd0] sm:$0xff] 0.0
        %5441 = vst [vmem:[#allocation5 + $0xd8] sm:$0xff] 0.0
        %5442 = vst [vmem:[#allocation5 + $0xe0] sm:$0xff] 0.0
        %5443 = vst [vmem:[#allocation5 + $0xe8] sm:$0xff] 0.0
        %5444 = vst [vmem:[#allocation5 + $0xf0] sm:$0xff] 0.0
        %5445 = vst [vmem:[#allocation5 + $0xf8] sm:$0xff] 0.0
        %5446 = vst [vmem:[#allocation5 + $0x100] sm:$0xff] 0.0
        %5447 = vst [vmem:[#allocation5 + $0x108] sm:$0xff] 0.0
        %5448 = vst [vmem:[#allocation5 + $0x110] sm:$0xff] 0.0
        %5449 = vst [vmem:[#allocation5 + $0x118] sm:$0xff] 0.0
        %v5450 = vld [vmem:[#allocation4] sm:$0xff]
        %v5451 = vld [vmem:[#allocation4 + $0x8] sm:$0xff]
        %v5452 = vld [vmem:[#allocation4 + $0x10] sm:$0xff]
        %v5453 = vld [vmem:[#allocation4 + $0x18] sm:$0xff]
        %v5454 = vld [vmem:[#allocation4 + $0x20] sm:$0xff]
        %v5455 = vld [vmem:[#allocation4 + $0x28] sm:$0xff]
        %v5456 = vld [vmem:[#allocation4 + $0x30] sm:$0xff]
        %v5457 = vld [vmem:[#allocation4 + $0x38] sm:$0xff]
        %v5458 = vld [vmem:[#allocation4 + $0x40] sm:$0xff]
        %v5459 = vld [vmem:[#allocation4 + $0x48] sm:$0xff]
        %v5460 = vld [vmem:[#allocation4 + $0x50] sm:$0xff]
        %v5461 = vld [vmem:[#allocation4 + $0x58] sm:$0xff]
        %v5462 = vld [vmem:[#allocation4 + $0x60] sm:$0xff]
        %v5463 = vld [vmem:[#allocation4 + $0x68] sm:$0xff]
        %v5464 = vld [vmem:[#allocation4 + $0x70] sm:$0xff]
        %v5465 = vld [vmem:[#allocation4 + $0x78] sm:$0xff]
        %v5466 = vld [vmem:[#allocation4 + $0x80] sm:$0xff]
        %v5467 = vld [vmem:[#allocation4 + $0x88] sm:$0xff]
        %v5468 = vld [vmem:[#allocation5] sm:$0xff]
        %v5469 = vld [vmem:[#allocation5 + $0x8] sm:$0xff]
        %v5470 = vld [vmem:[#allocation5 + $0x10] sm:$0xff]
        %v5471 = vld [vmem:[#allocation5 + $0x18] sm:$0xff]
        %v5472 = vld [vmem:[#allocation5 + $0x20] sm:$0xff]
        %v5473 = vld [vmem:[#allocation5 + $0x28] sm:$0xff]
        %v5474 = vld [vmem:[#allocation5 + $0x30] sm:$0xff]
        %v5475 = vld [vmem:[#allocation5 + $0x38] sm:$0xff]
        %v5476 = vld [vmem:[#allocation5 + $0x40] sm:$0xff]
        %v5477 = vld [vmem:[#allocation5 + $0x48] sm:$0xff]
        %v5478 = vld [vmem:[#allocation5 + $0x50] sm:$0xff]
        %v5479 = vld [vmem:[#allocation5 + $0x58] sm:$0xff]
        %v5480 = vld [vmem:[#allocation5 + $0x60] sm:$0xff]
        %v5481 = vld [vmem:[#allocation5 + $0x68] sm:$0xff]
        %v5482 = vld [vmem:[#allocation5 + $0x70] sm:$0xff]
        %v5483 = vld [vmem:[#allocation5 + $0x78] sm:$0xff]
        %v5484 = vld [vmem:[#allocation5 + $0x80] sm:$0xff]
        %v5485 = vld [vmem:[#allocation5 + $0x88] sm:$0xff]
        %v5486 = vld [vmem:[#allocation5 + $0x90] sm:$0xff]
        %v5487 = vld [vmem:[#allocation5 + $0x98] sm:$0xff]
        %v5488 = vld [vmem:[#allocation5 + $0xa0] sm:$0xff]
        %v5489 = vld [vmem:[#allocation5 + $0xa8] sm:$0xff]
        %v5490 = vld [vmem:[#allocation5 + $0xb0] sm:$0xff]
        %v5491 = vld [vmem:[#allocation5 + $0xb8] sm:$0xff]
        %v5492 = vld [vmem:[#allocation5 + $0xc0] sm:$0xff]
        %v5493 = vld [vmem:[#allocation5 + $0xc8] sm:$0xff]
        %v5494 = vld [vmem:[#allocation5 + $0xd0] sm:$0xff]
        %v5495 = vld [vmem:[#allocation5 + $0xd8] sm:$0xff]
        %v5496 = vld [vmem:[#allocation5 + $0xe0] sm:$0xff]
        %v5497 = vld [vmem:[#allocation5 + $0xe8] sm:$0xff]
        %v5498 = vld [vmem:[#allocation5 + $0xf0] sm:$0xff]
        %v5499 = vld [vmem:[#allocation5 + $0xf8] sm:$0xff]
        %v5500 = vld [vmem:[#allocation5 + $0x100] sm:$0xff]
        %v5501 = vld [vmem:[#allocation5 + $0x108] sm:$0xff]
        %v5502 = vld [vmem:[#allocation5 + $0x110] sm:$0xff]
        %v5503 = vld [vmem:[#allocation5 + $0x118] sm:$0xff]
        %v5504 = vld [vmem:[%s3] sm:$0xff]
        %v5505 = vld [vmem:[%s3 + $0x8] sm:$0xff]
        %v5506 = vld [vmem:[%s3 + $0x10] sm:$0xff]
        %v5507 = vld [vmem:[%s3 + $0x18] sm:$0xff]
        %v5508 = vld [vmem:[%s3 + $0x20] sm:$0xff]
        %v5509 = vld [vmem:[%s3 + $0x28] sm:$0xff]
        %v5510 = vld [vmem:[%s3 + $0x30] sm:$0xff]
        %v5511 = vld [vmem:[%s3 + $0x38] sm:$0xff]
        %v5512 = vld [vmem:[%s3 + $0x40] sm:$0xff]
        %v5513 = vld [vmem:[%s3 + $0x48] sm:$0xff]
        %v5514 = vld [vmem:[%s3 + $0x50] sm:$0xff]
        %v5515 = vld [vmem:[%s3 + $0x58] sm:$0xff]
        %v5516 = vld [vmem:[%s3 + $0x60] sm:$0xff]
        %v5517 = vld [vmem:[%s3 + $0x68] sm:$0xff]
        %v5518 = vld [vmem:[%s3 + $0x70] sm:$0xff]
        %v5519 = vld [vmem:[%s3 + $0x78] sm:$0xff]
        %v5520 = vld [vmem:[%s3 + $0x80] sm:$0xff]
        %v5521 = vld [vmem:[%s3 + $0x88] sm:$0xff]
        %v5522 = vld [vmem:[%s3 + $0x90] sm:$0xff]
        %v5523 = vld [vmem:[%s3 + $0x98] sm:$0xff]
        %v5524 = vld [vmem:[%s3 + $0xa0] sm:$0xff]
        %v5525 = vld [vmem:[%s3 + $0xa8] sm:$0xff]
        %v5526 = vld [vmem:[%s3 + $0xb0] sm:$0xff]
        %v5527 = vld [vmem:[%s3 + $0xb8] sm:$0xff]
        %v5528 = vld [vmem:[%s3 + $0xc0] sm:$0xff]
        %v5529 = vld [vmem:[%s3 + $0xc8] sm:$0xff]
        %v5530 = vld [vmem:[%s3 + $0xd0] sm:$0xff]
        %v5531 = vld [vmem:[%s3 + $0xd8] sm:$0xff]
        %v5532 = vld [vmem:[%s3 + $0xe0] sm:$0xff]
        %v5533 = vld [vmem:[%s3 + $0xe8] sm:$0xff]
        %v5534 = vld [vmem:[%s3 + $0xf0] sm:$0xff]
        %v5535 = vld [vmem:[%s3 + $0xf8] sm:$0xff]
        %5536 = vmatprep.subr.mxu0 %v5505
        %5537 = vmatpush1.msra.mxu0 %v5504
        %5538 = vmatprep.subr.mxu0 %v5507
        %5539 = vmatpush1.msra.mxu0 %v5506
        %5540 = vmatprep.subr.mxu0 %v5509
        %5541 = vmatpush1.msra.mxu0 %v5508
        %5542 = vmatprep.subr.mxu0 %v5511
        %5543 = vmatpush1.msra.mxu0 %v5510
        %5544 = vmatprep.subr.mxu0 %v5513
        %5545 = vmatpush1.msra.mxu0 %v5512
        %5546 = vmatprep.subr.mxu0 %v5515
        %5547 = vmatpush1.msra.mxu0 %v5514
        %5548 = vmatprep.subr.mxu0 %v5517
        %5549 = vmatpush1.msra.mxu0 %v5516
        %5550 = vmatprep.subr.mxu0 %v5519
        %5551 = vmatpush1.msra.mxu0 %v5518
        %5552 = vmatprep.subr.mxu0 %v5521
        %5553 = vmatpush1.msra.mxu0 %v5520
        %5554 = vmatprep.subr.mxu0 %v5523
        %5555 = vmatpush1.msra.mxu0 %v5522
        %5556 = vmatprep.subr.mxu0 %v5525
        %5557 = vmatpush1.msra.mxu0 %v5524
        %5558 = vmatprep.subr.mxu0 %v5527
        %5559 = vmatpush1.msra.mxu0 %v5526
        %5560 = vmatprep.subr.mxu0 %v5529
        %5561 = vmatpush1.msra.mxu0 %v5528
        %5562 = vmatprep.subr.mxu0 %v5531
        %5563 = vmatpush1.msra.mxu0 %v5530
        %5564 = vmatprep.subr.mxu0 %v5533
        %5565 = vmatpush1.msra.mxu0 %v5532
        %5566 = vmatprep.subr.mxu0 %v5535
        %5567 = vmatpush1.msra.mxu0 %v5534
        %5568 = vmatprep.subr.mxu0 0.0
        %5569 = vmatpush1.msra.mxu0 0.0
        %5570 = vmatprep.subr.mxu0 0.0
        %5571 = vmatpush1.msra.mxu0 0.0
        %5572 = vmatprep.subr.mxu0 0.0
        %5573 = vmatpush1.msra.mxu0 0.0
        %5574 = vmatprep.subr.mxu0 0.0
        %5575 = vmatpush1.msra.mxu0 0.0
        %5576 = vmatprep.subr.mxu0 0.0
        %5577 = vmatpush1.msra.mxu0 0.0
        %5578 = vmatprep.subr.mxu0 0.0
        %5579 = vmatpush1.msra.mxu0 0.0
        %5580 = vmatprep.subr.mxu0 0.0
        %5581 = vmatpush1.msra.mxu0 0.0
        %5582 = vmatprep.subr.mxu0 0.0
        %5583 = vmatpush1.msra.mxu0 0.0
        %5584 = vmatprep.subr.mxu0 0.0
        %5585 = vmatpush1.msra.mxu0 0.0
        %5586 = vmatprep.subr.mxu0 0.0
        %5587 = vmatpush1.msra.mxu0 0.0
        %5588 = vmatprep.subr.mxu0 0.0
        %5589 = vmatpush1.msra.mxu0 0.0
        %5590 = vmatprep.subr.mxu0 0.0
        %5591 = vmatpush1.msra.mxu0 0.0
        %5592 = vmatprep.subr.mxu0 0.0
        %5593 = vmatpush1.msra.mxu0 0.0
        %5594 = vmatprep.subr.mxu0 0.0
        %5595 = vmatpush1.msra.mxu0 0.0
        %5596 = vmatprep.subr.mxu0 0.0
        %5597 = vmatpush1.msra.mxu0 0.0
        %5598 = vmatprep.subr.mxu0 0.0
        %5599 = vmatpush1.msra.mxu0 0.0
        %5600 = vmatprep.mubr.f32.mxu0 0.0
        %5601 = vmatmul.mubr.f32.gmra.mrb[0].mxu0 %v5450
        %v5602 = vpop.f32.mrb[0].mxu0
        %v5603 = vadd.f32 0.0, %v5602
        %v5604 = vpop.f32.mrb[0].mxu0
        %v5605 = vadd.f32 0.0, %v5604
        %5606 = vmatprep.mubr.f32.mxu0 0.0
        %5607 = vmatmul.mubr.f32.gmra.mrb[0].mxu0 %v5451
        %v5608 = vpop.f32.mrb[0].mxu0
        %v5609 = vadd.f32 0.0, %v5608
        %v5610 = vpop.f32.mrb[0].mxu0
        %v5611 = vadd.f32 0.0, %v5610
        %5612 = vmatprep.mubr.f32.mxu0 0.0
        %5613 = vmatmul.mubr.f32.gmra.mrb[0].mxu0 %v5452
        %v5614 = vpop.f32.mrb[0].mxu0
        %v5615 = vadd.f32 0.0, %v5614
        %v5616 = vpop.f32.mrb[0].mxu0
        %v5617 = vadd.f32 0.0, %v5616
        %5618 = vmatprep.mubr.f32.mxu0 0.0
        %5619 = vmatmul.mubr.f32.gmra.mrb[0].mxu0 %v5453
        %v5620 = vpop.f32.mrb[0].mxu0
        %v5621 = vadd.f32 0.0, %v5620
        %v5622 = vpop.f32.mrb[0].mxu0
        %v5623 = vadd.f32 0.0, %v5622
        %5624 = vmatprep.mubr.f32.mxu0 0.0
        %5625 = vmatmul.mubr.f32.gmra.mrb[0].mxu0 %v5454
        %v5626 = vpop.f32.mrb[0].mxu0
        %v5627 = vadd.f32 0.0, %v5626
        %v5628 = vpop.f32.mrb[0].mxu0
        %v5629 = vadd.f32 0.0, %v5628
        %5630 = vmatprep.mubr.f32.mxu0 0.0
        %5631 = vmatmul.mubr.f32.gmra.mrb[0].mxu0 %v5455
        %v5632 = vpop.f32.mrb[0].mxu0
        %v5633 = vadd.f32 0.0, %v5632
        %v5634 = vpop.f32.mrb[0].mxu0
        %v5635 = vadd.f32 0.0, %v5634
        %5636 = vmatprep.mubr.f32.mxu0 0.0
        %5637 = vmatmul.mubr.f32.gmra.mrb[0].mxu0 %v5456
        %v5638 = vpop.f32.mrb[0].mxu0
        %v5639 = vadd.f32 0.0, %v5638
        %v5640 = vpop.f32.mrb[0].mxu0
        %v5641 = vadd.f32 0.0, %v5640
        %5642 = vmatprep.mubr.f32.mxu0 0.0
        %5643 = vmatmul.mubr.f32.gmra.mrb[0].mxu0 %v5457
        %v5644 = vpop.f32.mrb[0].mxu0
        %v5645 = vadd.f32 0.0, %v5644
        %v5646 = vpop.f32.mrb[0].mxu0
        %v5647 = vadd.f32 0.0, %v5646
        %5648 = vmatprep.mubr.f32.mxu0 0.0
        %5649 = vmatmul.mubr.f32.gmra.mrb[0].mxu0 %v5458
        %v5650 = vpop.f32.mrb[0].mxu0
        %v5651 = vadd.f32 0.0, %v5650
        %v5652 = vpop.f32.mrb[0].mxu0
        %v5653 = vadd.f32 0.0, %v5652
        %5654 = vmatprep.mubr.f32.mxu0 0.0
        %5655 = vmatmul.mubr.f32.gmra.mrb[0].mxu0 %v5459
        %v5656 = vpop.f32.mrb[0].mxu0
        %v5657 = vadd.f32 0.0, %v5656
        %v5658 = vpop.f32.mrb[0].mxu0
        %v5659 = vadd.f32 0.0, %v5658
        %5660 = vmatprep.mubr.f32.mxu0 0.0
        %5661 = vmatmul.mubr.f32.gmra.mrb[0].mxu0 %v5460
        %v5662 = vpop.f32.mrb[0].mxu0
        %v5663 = vadd.f32 0.0, %v5662
        %v5664 = vpop.f32.mrb[0].mxu0
        %v5665 = vadd.f32 0.0, %v5664
        %5666 = vmatprep.mubr.f32.mxu0 0.0
        %5667 = vmatmul.mubr.f32.gmra.mrb[0].mxu0 %v5461
        %v5668 = vpop.f32.mrb[0].mxu0
        %v5669 = vadd.f32 0.0, %v5668
        %v5670 = vpop.f32.mrb[0].mxu0
        %v5671 = vadd.f32 0.0, %v5670
        %5672 = vmatprep.mubr.f32.mxu0 0.0
        %5673 = vmatmul.mubr.f32.gmra.mrb[0].mxu0 %v5462
        %v5674 = vpop.f32.mrb[0].mxu0
        %v5675 = vadd.f32 0.0, %v5674
        %v5676 = vpop.f32.mrb[0].mxu0
        %v5677 = vadd.f32 0.0, %v5676
        %5678 = vmatprep.mubr.f32.mxu0 0.0
        %5679 = vmatmul.mubr.f32.gmra.mrb[0].mxu0 %v5463
        %v5680 = vpop.f32.mrb[0].mxu0
        %v5681 = vadd.f32 0.0, %v5680
        %v5682 = vpop.f32.mrb[0].mxu0
        %v5683 = vadd.f32 0.0, %v5682
        %5684 = vmatprep.mubr.f32.mxu0 0.0
        %5685 = vmatmul.mubr.f32.gmra.mrb[0].mxu0 %v5464
        %v5686 = vpop.f32.mrb[0].mxu0
        %v5687 = vadd.f32 0.0, %v5686
        %v5688 = vpop.f32.mrb[0].mxu0
        %v5689 = vadd.f32 0.0, %v5688
        %5690 = vmatprep.mubr.f32.mxu0 0.0
        %5691 = vmatmul.mubr.f32.gmra.mrb[0].mxu0 %v5465
        %v5692 = vpop.f32.mrb[0].mxu0
        %v5693 = vadd.f32 0.0, %v5692
        %v5694 = vpop.f32.mrb[0].mxu0
        %v5695 = vadd.f32 0.0, %v5694
        %5696 = vmatprep.mubr.f32.mxu0 0.0
        %5697 = vmatmul.mubr.f32.gmra.mrb[0].mxu0 %v5466
        %v5698 = vpop.f32.mrb[0].mxu0
        %v5699 = vadd.f32 0.0, %v5698
        %v5700 = vpop.f32.mrb[0].mxu0
        %v5701 = vadd.f32 0.0, %v5700
        %5702 = vmatprep.mubr.f32.mxu0 0.0
        %5703 = vmatmul.mubr.f32.gmra.mrb[0].mxu0 %v5467
        %v5704 = vpop.f32.mrb[0].mxu0
        %v5705 = vadd.f32 0.0, %v5704
        %v5706 = vpop.f32.mrb[0].mxu0
        %v5707 = vadd.f32 0.0, %v5706
        %5708 = vdwg.mxu0
        %v5709 = vadd.f32 %v5468, %v5603
        %v5710 = vadd.f32 %v5469, %v5605
        %v5711 = vadd.f32 %v5470, %v5609
        %v5712 = vadd.f32 %v5471, %v5611
        %v5713 = vadd.f32 %v5472, %v5615
        %v5714 = vadd.f32 %v5473, %v5617
        %v5715 = vadd.f32 %v5474, %v5621
        %v5716 = vadd.f32 %v5475, %v5623
        %v5717 = vadd.f32 %v5476, %v5627
        %v5718 = vadd.f32 %v5477, %v5629
        %v5719 = vadd.f32 %v5478, %v5633
        %v5720 = vadd.f32 %v5479, %v5635
        %v5721 = vadd.f32 %v5480, %v5639
        %v5722 = vadd.f32 %v5481, %v5641
        %v5723 = vadd.f32 %v5482, %v5645
        %v5724 = vadd.f32 %v5483, %v5647
        %v5725 = vadd.f32 %v5484, %v5651
        %v5726 = vadd.f32 %v5485, %v5653
        %v5727 = vadd.f32 %v5486, %v5657
        %v5728 = vadd.f32 %v5487, %v5659
        %v5729 = vadd.f32 %v5488, %v5663
        %v5730 = vadd.f32 %v5489, %v5665
        %v5731 = vadd.f32 %v5490, %v5669
        %v5732 = vadd.f32 %v5491, %v5671
        %v5733 = vadd.f32 %v5492, %v5675
        %v5734 = vadd.f32 %v5493, %v5677
        %v5735 = vadd.f32 %v5494, %v5681
        %v5736 = vadd.f32 %v5495, %v5683
        %v5737 = vadd.f32 %v5496, %v5687
        %v5738 = vadd.f32 %v5497, %v5689
        %v5739 = vadd.f32 %v5498, %v5693
        %v5740 = vadd.f32 %v5499, %v5695
        %v5741 = vadd.f32 %v5500, %v5699
        %v5742 = vadd.f32 %v5501, %v5701
        %v5743 = vadd.f32 %v5502, %v5705
        %v5744 = vadd.f32 %v5503, %v5707
        %5745 = vst [vmem:[#allocation5] sm:$0xff] %v5709
        %5746 = vst [vmem:[#allocation5 + $0x8] sm:$0xff] %v5710
        %5747 = vst [vmem:[#allocation5 + $0x10] sm:$0xff] %v5711
        %5748 = vst [vmem:[#allocation5 + $0x18] sm:$0xff] %v5712
        %5749 = vst [vmem:[#allocation5 + $0x20] sm:$0xff] %v5713
        %5750 = vst [vmem:[#allocation5 + $0x28] sm:$0xff] %v5714
        %5751 = vst [vmem:[#allocation5 + $0x30] sm:$0xff] %v5715
        %5752 = vst [vmem:[#allocation5 + $0x38] sm:$0xff] %v5716
        %5753 = vst [vmem:[#allocation5 + $0x40] sm:$0xff] %v5717
        %5754 = vst [vmem:[#allocation5 + $0x48] sm:$0xff] %v5718
        %5755 = vst [vmem:[#allocation5 + $0x50] sm:$0xff] %v5719
        %5756 = vst [vmem:[#allocation5 + $0x58] sm:$0xff] %v5720
        %5757 = vst [vmem:[#allocation5 + $0x60] sm:$0xff] %v5721
        %5758 = vst [vmem:[#allocation5 + $0x68] sm:$0xff] %v5722
        %5759 = vst [vmem:[#allocation5 + $0x70] sm:$0xff] %v5723
        %5760 = vst [vmem:[#allocation5 + $0x78] sm:$0xff] %v5724
        %5761 = vst [vmem:[#allocation5 + $0x80] sm:$0xff] %v5725
        %5762 = vst [vmem:[#allocation5 + $0x88] sm:$0xff] %v5726
        %5763 = vst [vmem:[#allocation5 + $0x90] sm:$0xff] %v5727
        %5764 = vst [vmem:[#allocation5 + $0x98] sm:$0xff] %v5728
        %5765 = vst [vmem:[#allocation5 + $0xa0] sm:$0xff] %v5729
        %5766 = vst [vmem:[#allocation5 + $0xa8] sm:$0xff] %v5730
        %5767 = vst [vmem:[#allocation5 + $0xb0] sm:$0xff] %v5731
        %5768 = vst [vmem:[#allocation5 + $0xb8] sm:$0xff] %v5732
        %5769 = vst [vmem:[#allocation5 + $0xc0] sm:$0xff] %v5733
        %5770 = vst [vmem:[#allocation5 + $0xc8] sm:$0xff] %v5734
        %5771 = vst [vmem:[#allocation5 + $0xd0] sm:$0xff] %v5735
        %5772 = vst [vmem:[#allocation5 + $0xd8] sm:$0xff] %v5736
        %5773 = vst [vmem:[#allocation5 + $0xe0] sm:$0xff] %v5737
        %5774 = vst [vmem:[#allocation5 + $0xe8] sm:$0xff] %v5738
        %5775 = vst [vmem:[#allocation5 + $0xf0] sm:$0xff] %v5739
        %5776 = vst [vmem:[#allocation5 + $0xf8] sm:$0xff] %v5740
        %5777 = vst [vmem:[#allocation5 + $0x100] sm:$0xff] %v5741
        %5778 = vst [vmem:[#allocation5 + $0x108] sm:$0xff] %v5742
        %5779 = vst [vmem:[#allocation5 + $0x110] sm:$0xff] %v5743
        %5780 = vst [vmem:[#allocation5 + $0x118] sm:$0xff] %v5744
        %v5781 = vld [vmem:[#allocation4 + $0x1] sm:$0xff]
        %v5782 = vld [vmem:[#allocation4 + $0x9] sm:$0xff]
        %v5783 = vld [vmem:[#allocation4 + $0x11] sm:$0xff]
        %v5784 = vld [vmem:[#allocation4 + $0x19] sm:$0xff]
        %v5785 = vld [vmem:[#allocation4 + $0x21] sm:$0xff]
        %v5786 = vld [vmem:[#allocation4 + $0x29] sm:$0xff]
        %v5787 = vld [vmem:[#allocation4 + $0x31] sm:$0xff]
        %v5788 = vld [vmem:[#allocation4 + $0x39] sm:$0xff]
        %v5789 = vld [vmem:[#allocation4 + $0x41] sm:$0xff]
        %v5790 = vld [vmem:[#allocation4 + $0x49] sm:$0xff]
        %v5791 = vld [vmem:[#allocation4 + $0x51] sm:$0xff]
        %v5792 = vld [vmem:[#allocation4 + $0x59] sm:$0xff]
        %v5793 = vld [vmem:[#allocation4 + $0x61] sm:$0xff]
        %v5794 = vld [vmem:[#allocation4 + $0x69] sm:$0xff]
        %v5795 = vld [vmem:[#allocation4 + $0x71] sm:$0xff]
        %v5796 = vld [vmem:[#allocation4 + $0x79] sm:$0xff]
        %v5797 = vld [vmem:[#allocation4 + $0x81] sm:$0xff]
        %v5798 = vld [vmem:[#allocation4 + $0x89] sm:$0xff]
        %v5799 = vld [vmem:[#allocation5] sm:$0xff]
        %v5800 = vld [vmem:[#allocation5 + $0x8] sm:$0xff]
        %v5801 = vld [vmem:[#allocation5 + $0x10] sm:$0xff]
        %v5802 = vld [vmem:[#allocation5 + $0x18] sm:$0xff]
        %v5803 = vld [vmem:[#allocation5 + $0x20] sm:$0xff]
        %v5804 = vld [vmem:[#allocation5 + $0x28] sm:$0xff]
        %v5805 = vld [vmem:[#allocation5 + $0x30] sm:$0xff]
        %v5806 = vld [vmem:[#allocation5 + $0x38] sm:$0xff]
        %v5807 = vld [vmem:[#allocation5 + $0x40] sm:$0xff]
        %v5808 = vld [vmem:[#allocation5 + $0x48] sm:$0xff]
        %v5809 = vld [vmem:[#allocation5 + $0x50] sm:$0xff]
        %v5810 = vld [vmem:[#allocation5 + $0x58] sm:$0xff]
        %v5811 = vld [vmem:[#allocation5 + $0x60] sm:$0xff]
        %v5812 = vld [vmem:[#allocation5 + $0x68] sm:$0xff]
        %v5813 = vld [vmem:[#allocation5 + $0x70] sm:$0xff]
        %v5814 = vld [vmem:[#allocation5 + $0x78] sm:$0xff]
        %v5815 = vld [vmem:[#allocation5 + $0x80] sm:$0xff]
        %v5816 = vld [vmem:[#allocation5 + $0x88] sm:$0xff]
        %v5817 = vld [vmem:[#allocation5 + $0x90] sm:$0xff]
        %v5818 = vld [vmem:[#allocation5 + $0x98] sm:$0xff]
        %v5819 = vld [vmem:[#allocation5 + $0xa0] sm:$0xff]
        %v5820 = vld [vmem:[#allocation5 + $0xa8] sm:$0xff]
        %v5821 = vld [vmem:[#allocation5 + $0xb0] sm:$0xff]
        %v5822 = vld [vmem:[#allocation5 + $0xb8] sm:$0xff]
        %v5823 = vld [vmem:[#allocation5 + $0xc0] sm:$0xff]
        %v5824 = vld [vmem:[#allocation5 + $0xc8] sm:$0xff]
        %v5825 = vld [vmem:[#allocation5 + $0xd0] sm:$0xff]
        %v5826 = vld [vmem:[#allocation5 + $0xd8] sm:$0xff]
        %v5827 = vld [vmem:[#allocation5 + $0xe0] sm:$0xff]
        %v5828 = vld [vmem:[#allocation5 + $0xe8] sm:$0xff]
        %v5829 = vld [vmem:[#allocation5 + $0xf0] sm:$0xff]
        %v5830 = vld [vmem:[#allocation5 + $0xf8] sm:$0xff]
        %v5831 = vld [vmem:[#allocation5 + $0x100] sm:$0xff]
        %v5832 = vld [vmem:[#allocation5 + $0x108] sm:$0xff]
        %v5833 = vld [vmem:[#allocation5 + $0x110] sm:$0xff]
        %v5834 = vld [vmem:[#allocation5 + $0x118] sm:$0xff]
        %s5835 = scalar_lea.vmem %s3, 256
        %v5836 = vld [vmem:[%s5835] sm:$0xff]
        %v5837 = vld [vmem:[%s5835 + $0x8] sm:$0xff]
        %v5838 = vld [vmem:[%s5835 + $0x10] sm:$0xff]
        %v5839 = vld [vmem:[%s5835 + $0x18] sm:$0xff]
        %v5840 = vld [vmem:[%s5835 + $0x20] sm:$0xff]
        %v5841 = vld [vmem:[%s5835 + $0x28] sm:$0xff]
        %v5842 = vld [vmem:[%s5835 + $0x30] sm:$0xff]
        %v5843 = vld [vmem:[%s5835 + $0x38] sm:$0xff]
        %v5844 = vld [vmem:[%s5835 + $0x40] sm:$0xff]
        %v5845 = vld [vmem:[%s5835 + $0x48] sm:$0xff]
        %v5846 = vld [vmem:[%s5835 + $0x50] sm:$0xff]
        %v5847 = vld [vmem:[%s5835 + $0x58] sm:$0xff]
        %v5848 = vld [vmem:[%s5835 + $0x60] sm:$0xff]
        %v5849 = vld [vmem:[%s5835 + $0x68] sm:$0xff]
        %v5850 = vld [vmem:[%s5835 + $0x70] sm:$0xff]
        %v5851 = vld [vmem:[%s5835 + $0x78] sm:$0xff]
        %v5852 = vld [vmem:[%s5835 + $0x80] sm:$0xff]
        %v5853 = vld [vmem:[%s5835 + $0x88] sm:$0xff]
        %v5854 = vld [vmem:[%s5835 + $0x90] sm:$0xff]
        %v5855 = vld [vmem:[%s5835 + $0x98] sm:$0xff]
        %v5856 = vld [vmem:[%s5835 + $0xa0] sm:$0xff]
        %v5857 = vld [vmem:[%s5835 + $0xa8] sm:$0xff]
        %v5858 = vld [vmem:[%s5835 + $0xb0] sm:$0xff]
        %v5859 = vld [vmem:[%s5835 + $0xb8] sm:$0xff]
        %v5860 = vld [vmem:[%s5835 + $0xc0] sm:$0xff]
        %v5861 = vld [vmem:[%s5835 + $0xc8] sm:$0xff]
        %v5862 = vld [vmem:[%s5835 + $0xd0] sm:$0xff]
        %v5863 = vld [vmem:[%s5835 + $0xd8] sm:$0xff]
        %v5864 = vld [vmem:[%s5835 + $0xe0] sm:$0xff]
        %v5865 = vld [vmem:[%s5835 + $0xe8] sm:$0xff]
        %v5866 = vld [vmem:[%s5835 + $0xf0] sm:$0xff]
        %v5867 = vld [vmem:[%s5835 + $0xf8] sm:$0xff]
        %5868 = vmatprep.subr.mxu0 %v5837
        %5869 = vmatpush1.msra.mxu0 %v5836
        %5870 = vmatprep.subr.mxu0 %v5839
        %5871 = vmatpush1.msra.mxu0 %v5838
        %5872 = vmatprep.subr.mxu0 %v5841
        %5873 = vmatpush1.msra.mxu0 %v5840
        %5874 = vmatprep.subr.mxu0 %v5843
        %5875 = vmatpush1.msra.mxu0 %v5842
        %5876 = vmatprep.subr.mxu0 %v5845
        %5877 = vmatpush1.msra.mxu0 %v5844
        %5878 = vmatprep.subr.mxu0 %v5847
        %5879 = vmatpush1.msra.mxu0 %v5846
        %5880 = vmatprep.subr.mxu0 %v5849
        %5881 = vmatpush1.msra.mxu0 %v5848
        %5882 = vmatprep.subr.mxu0 %v5851
        %5883 = vmatpush1.msra.mxu0 %v5850
        %5884 = vmatprep.subr.mxu0 %v5853
        %5885 = vmatpush1.msra.mxu0 %v5852
        %5886 = vmatprep.subr.mxu0 %v5855
        %5887 = vmatpush1.msra.mxu0 %v5854
        %5888 = vmatprep.subr.mxu0 %v5857
        %5889 = vmatpush1.msra.mxu0 %v5856
        %5890 = vmatprep.subr.mxu0 %v5859
        %5891 = vmatpush1.msra.mxu0 %v5858
        %5892 = vmatprep.subr.mxu0 %v5861
        %5893 = vmatpush1.msra.mxu0 %v5860
        %5894 = vmatprep.subr.mxu0 %v5863
        %5895 = vmatpush1.msra.mxu0 %v5862
        %5896 = vmatprep.subr.mxu0 %v5865
        %5897 = vmatpush1.msra.mxu0 %v5864
        %5898 = vmatprep.subr.mxu0 %v5867
        %5899 = vmatpush1.msra.mxu0 %v5866
        %5900 = vmatprep.subr.mxu0 0.0
        %5901 = vmatpush1.msra.mxu0 0.0
        %5902 = vmatprep.subr.mxu0 0.0
        %5903 = vmatpush1.msra.mxu0 0.0
        %5904 = vmatprep.subr.mxu0 0.0
        %5905 = vmatpush1.msra.mxu0 0.0
        %5906 = vmatprep.subr.mxu0 0.0
        %5907 = vmatpush1.msra.mxu0 0.0
        %5908 = vmatprep.subr.mxu0 0.0
        %5909 = vmatpush1.msra.mxu0 0.0
        %5910 = vmatprep.subr.mxu0 0.0
        %5911 = vmatpush1.msra.mxu0 0.0
        %5912 = vmatprep.subr.mxu0 0.0
        %5913 = vmatpush1.msra.mxu0 0.0
        %5914 = vmatprep.subr.mxu0 0.0
        %5915 = vmatpush1.msra.mxu0 0.0
        %5916 = vmatprep.subr.mxu0 0.0
        %5917 = vmatpush1.msra.mxu0 0.0
        %5918 = vmatprep.subr.mxu0 0.0
        %5919 = vmatpush1.msra.mxu0 0.0
        %5920 = vmatprep.subr.mxu0 0.0
        %5921 = vmatpush1.msra.mxu0 0.0
        %5922 = vmatprep.subr.mxu0 0.0
        %5923 = vmatpush1.msra.mxu0 0.0
        %5924 = vmatprep.subr.mxu0 0.0
        %5925 = vmatpush1.msra.mxu0 0.0
        %5926 = vmatprep.subr.mxu0 0.0
        %5927 = vmatpush1.msra.mxu0 0.0
        %5928 = vmatprep.subr.mxu0 0.0
        %5929 = vmatpush1.msra.mxu0 0.0
        %5930 = vmatprep.subr.mxu0 0.0
        %5931 = vmatpush1.msra.mxu0 0.0
        %5932 = vmatprep.mubr.f32.mxu0 0.0
        %5933 = vmatmul.mubr.f32.gmra.mrb[0].mxu0 %v5781
        %v5934 = vpop.f32.mrb[0].mxu0
        %v5935 = vadd.f32 0.0, %v5934
        %v5936 = vpop.f32.mrb[0].mxu0
        %v5937 = vadd.f32 0.0, %v5936
        %5938 = vmatprep.mubr.f32.mxu0 0.0
        %5939 = vmatmul.mubr.f32.gmra.mrb[0].mxu0 %v5782
        %v5940 = vpop.f32.mrb[0].mxu0
        %v5941 = vadd.f32 0.0, %v5940
        %v5942 = vpop.f32.mrb[0].mxu0
        %v5943 = vadd.f32 0.0, %v5942
        %5944 = vmatprep.mubr.f32.mxu0 0.0
        %5945 = vmatmul.mubr.f32.gmra.mrb[0].mxu0 %v5783
        %v5946 = vpop.f32.mrb[0].mxu0
        %v5947 = vadd.f32 0.0, %v5946
        %v5948 = vpop.f32.mrb[0].mxu0
        %v5949 = vadd.f32 0.0, %v5948
        %5950 = vmatprep.mubr.f32.mxu0 0.0
        %5951 = vmatmul.mubr.f32.gmra.mrb[0].mxu0 %v5784
        %v5952 = vpop.f32.mrb[0].mxu0
        %v5953 = vadd.f32 0.0, %v5952
        %v5954 = vpop.f32.mrb[0].mxu0
        %v5955 = vadd.f32 0.0, %v5954
        %5956 = vmatprep.mubr.f32.mxu0 0.0
        %5957 = vmatmul.mubr.f32.gmra.mrb[0].mxu0 %v5785
        %v5958 = vpop.f32.mrb[0].mxu0
        %v5959 = vadd.f32 0.0, %v5958
        %v5960 = vpop.f32.mrb[0].mxu0
        %v5961 = vadd.f32 0.0, %v5960
        %5962 = vmatprep.mubr.f32.mxu0 0.0
        %5963 = vmatmul.mubr.f32.gmra.mrb[0].mxu0 %v5786
        %v5964 = vpop.f32.mrb[0].mxu0
        %v5965 = vadd.f32 0.0, %v5964
        %v5966 = vpop.f32.mrb[0].mxu0
        %v5967 = vadd.f32 0.0, %v5966
        %5968 = vmatprep.mubr.f32.mxu0 0.0
        %5969 = vmatmul.mubr.f32.gmra.mrb[0].mxu0 %v5787
        %v5970 = vpop.f32.mrb[0].mxu0
        %v5971 = vadd.f32 0.0, %v5970
        %v5972 = vpop.f32.mrb[0].mxu0
        %v5973 = vadd.f32 0.0, %v5972
        %5974 = vmatprep.mubr.f32.mxu0 0.0
        %5975 = vmatmul.mubr.f32.gmra.mrb[0].mxu0 %v5788
        %v5976 = vpop.f32.mrb[0].mxu0
        %v5977 = vadd.f32 0.0, %v5976
        %v5978 = vpop.f32.mrb[0].mxu0
        %v5979 = vadd.f32 0.0, %v5978
        %5980 = vmatprep.mubr.f32.mxu0 0.0
        %5981 = vmatmul.mubr.f32.gmra.mrb[0].mxu0 %v5789
        %v5982 = vpop.f32.mrb[0].mxu0
        %v5983 = vadd.f32 0.0, %v5982
        %v5984 = vpop.f32.mrb[0].mxu0
        %v5985 = vadd.f32 0.0, %v5984
        %5986 = vmatprep.mubr.f32.mxu0 0.0
        %5987 = vmatmul.mubr.f32.gmra.mrb[0].mxu0 %v5790
        %v5988 = vpop.f32.mrb[0].mxu0
        %v5989 = vadd.f32 0.0, %v5988
        %v5990 = vpop.f32.mrb[0].mxu0
        %v5991 = vadd.f32 0.0, %v5990
        %5992 = vmatprep.mubr.f32.mxu0 0.0
        %5993 = vmatmul.mubr.f32.gmra.mrb[0].mxu0 %v5791
        %v5994 = vpop.f32.mrb[0].mxu0
        %v5995 = vadd.f32 0.0, %v5994
        %v5996 = vpop.f32.mrb[0].mxu0
        %v5997 = vadd.f32 0.0, %v5996
        %5998 = vmatprep.mubr.f32.mxu0 0.0
        %5999 = vmatmul.mubr.f32.gmra.mrb[0].mxu0 %v5792
        %v6000 = vpop.f32.mrb[0].mxu0
        %v6001 = vadd.f32 0.0, %v6000
        %v6002 = vpop.f32.mrb[0].mxu0
        %v6003 = vadd.f32 0.0, %v6002
        %6004 = vmatprep.mubr.f32.mxu0 0.0
        %6005 = vmatmul.mubr.f32.gmra.mrb[0].mxu0 %v5793
        %v6006 = vpop.f32.mrb[0].mxu0
        %v6007 = vadd.f32 0.0, %v6006
        %v6008 = vpop.f32.mrb[0].mxu0
        %v6009 = vadd.f32 0.0, %v6008
        %6010 = vmatprep.mubr.f32.mxu0 0.0
        %6011 = vmatmul.mubr.f32.gmra.mrb[0].mxu0 %v5794
        %v6012 = vpop.f32.mrb[0].mxu0
        %v6013 = vadd.f32 0.0, %v6012
        %v6014 = vpop.f32.mrb[0].mxu0
        %v6015 = vadd.f32 0.0, %v6014
        %6016 = vmatprep.mubr.f32.mxu0 0.0
        %6017 = vmatmul.mubr.f32.gmra.mrb[0].mxu0 %v5795
        %v6018 = vpop.f32.mrb[0].mxu0
        %v6019 = vadd.f32 0.0, %v6018
        %v6020 = vpop.f32.mrb[0].mxu0
        %v6021 = vadd.f32 0.0, %v6020
        %6022 = vmatprep.mubr.f32.mxu0 0.0
        %6023 = vmatmul.mubr.f32.gmra.mrb[0].mxu0 %v5796
        %v6024 = vpop.f32.mrb[0].mxu0
        %v6025 = vadd.f32 0.0, %v6024
        %v6026 = vpop.f32.mrb[0].mxu0
        %v6027 = vadd.f32 0.0, %v6026
        %6028 = vmatprep.mubr.f32.mxu0 0.0
        %6029 = vmatmul.mubr.f32.gmra.mrb[0].mxu0 %v5797
        %v6030 = vpop.f32.mrb[0].mxu0
        %v6031 = vadd.f32 0.0, %v6030
        %v6032 = vpop.f32.mrb[0].mxu0
        %v6033 = vadd.f32 0.0, %v6032
        %6034 = vmatprep.mubr.f32.mxu0 0.0
        %6035 = vmatmul.mubr.f32.gmra.mrb[0].mxu0 %v5798
        %v6036 = vpop.f32.mrb[0].mxu0
        %v6037 = vadd.f32 0.0, %v6036
        %v6038 = vpop.f32.mrb[0].mxu0
        %v6039 = vadd.f32 0.0, %v6038
        %6040 = vdwg.mxu0
        %v6041 = vadd.f32 %v5799, %v5935
        %v6042 = vadd.f32 %v5800, %v5937
        %v6043 = vadd.f32 %v5801, %v5941
        %v6044 = vadd.f32 %v5802, %v5943
        %v6045 = vadd.f32 %v5803, %v5947
        %v6046 = vadd.f32 %v5804, %v5949
        %v6047 = vadd.f32 %v5805, %v5953
        %v6048 = vadd.f32 %v5806, %v5955
        %v6049 = vadd.f32 %v5807, %v5959
        %v6050 = vadd.f32 %v5808, %v5961
        %v6051 = vadd.f32 %v5809, %v5965
        %v6052 = vadd.f32 %v5810, %v5967
        %v6053 = vadd.f32 %v5811, %v5971
        %v6054 = vadd.f32 %v5812, %v5973
        %v6055 = vadd.f32 %v5813, %v5977
        %v6056 = vadd.f32 %v5814, %v5979
        %v6057 = vadd.f32 %v5815, %v5983
        %v6058 = vadd.f32 %v5816, %v5985
        %v6059 = vadd.f32 %v5817, %v5989
        %v6060 = vadd.f32 %v5818, %v5991
        %v6061 = vadd.f32 %v5819, %v5995
        %v6062 = vadd.f32 %v5820, %v5997
        %v6063 = vadd.f32 %v5821, %v6001
        %v6064 = vadd.f32 %v5822, %v6003
        %v6065 = vadd.f32 %v5823, %v6007
        %v6066 = vadd.f32 %v5824, %v6009
        %v6067 = vadd.f32 %v5825, %v6013
        %v6068 = vadd.f32 %v5826, %v6015
        %v6069 = vadd.f32 %v5827, %v6019
        %v6070 = vadd.f32 %v5828, %v6021
        %v6071 = vadd.f32 %v5829, %v6025
        %v6072 = vadd.f32 %v5830, %v6027
        %v6073 = vadd.f32 %v5831, %v6031
        %v6074 = vadd.f32 %v5832, %v6033
        %v6075 = vadd.f32 %v5833, %v6037
        %v6076 = vadd.f32 %v5834, %v6039
        %6077 = vst [vmem:[#allocation5] sm:$0xff] %v6041
        %6078 = vst [vmem:[#allocation5 + $0x8] sm:$0xff] %v6042
        %6079 = vst [vmem:[#allocation5 + $0x10] sm:$0xff] %v6043
        %6080 = vst [vmem:[#allocation5 + $0x18] sm:$0xff] %v6044
        %6081 = vst [vmem:[#allocation5 + $0x20] sm:$0xff] %v6045
        %6082 = vst [vmem:[#allocation5 + $0x28] sm:$0xff] %v6046
        %6083 = vst [vmem:[#allocation5 + $0x30] sm:$0xff] %v6047
        %6084 = vst [vmem:[#allocation5 + $0x38] sm:$0xff] %v6048
        %6085 = vst [vmem:[#allocation5 + $0x40] sm:$0xff] %v6049
        %6086 = vst [vmem:[#allocation5 + $0x48] sm:$0xff] %v6050
        %6087 = vst [vmem:[#allocation5 + $0x50] sm:$0xff] %v6051
        %6088 = vst [vmem:[#allocation5 + $0x58] sm:$0xff] %v6052
        %6089 = vst [vmem:[#allocation5 + $0x60] sm:$0xff] %v6053
        %6090 = vst [vmem:[#allocation5 + $0x68] sm:$0xff] %v6054
        %6091 = vst [vmem:[#allocation5 + $0x70] sm:$0xff] %v6055
        %6092 = vst [vmem:[#allocation5 + $0x78] sm:$0xff] %v6056
        %6093 = vst [vmem:[#allocation5 + $0x80] sm:$0xff] %v6057
        %6094 = vst [vmem:[#allocation5 + $0x88] sm:$0xff] %v6058
        %6095 = vst [vmem:[#allocation5 + $0x90] sm:$0xff] %v6059
        %6096 = vst [vmem:[#allocation5 + $0x98] sm:$0xff] %v6060
        %6097 = vst [vmem:[#allocation5 + $0xa0] sm:$0xff] %v6061
        %6098 = vst [vmem:[#allocation5 + $0xa8] sm:$0xff] %v6062
        %6099 = vst [vmem:[#allocation5 + $0xb0] sm:$0xff] %v6063
        %6100 = vst [vmem:[#allocation5 + $0xb8] sm:$0xff] %v6064
        %6101 = vst [vmem:[#allocation5 + $0xc0] sm:$0xff] %v6065
        %6102 = vst [vmem:[#allocation5 + $0xc8] sm:$0xff] %v6066
        %6103 = vst [vmem:[#allocation5 + $0xd0] sm:$0xff] %v6067
        %6104 = vst [vmem:[#allocation5 + $0xd8] sm:$0xff] %v6068
        %6105 = vst [vmem:[#allocation5 + $0xe0] sm:$0xff] %v6069
        %6106 = vst [vmem:[#allocation5 + $0xe8] sm:$0xff] %v6070
        %6107 = vst [vmem:[#allocation5 + $0xf0] sm:$0xff] %v6071
        %6108 = vst [vmem:[#allocation5 + $0xf8] sm:$0xff] %v6072
        %6109 = vst [vmem:[#allocation5 + $0x100] sm:$0xff] %v6073
        %6110 = vst [vmem:[#allocation5 + $0x108] sm:$0xff] %v6074
        %6111 = vst [vmem:[#allocation5 + $0x110] sm:$0xff] %v6075
        %6112 = vst [vmem:[#allocation5 + $0x118] sm:$0xff] %v6076
        %v6113 = vld [vmem:[#allocation4 + $0x2] sm:$0xff]
        %v6114 = vld [vmem:[#allocation4 + $0xa] sm:$0xff]
        %v6115 = vld [vmem:[#allocation4 + $0x12] sm:$0xff]
        %v6116 = vld [vmem:[#allocation4 + $0x1a] sm:$0xff]
        %v6117 = vld [vmem:[#allocation4 + $0x22] sm:$0xff]
        %v6118 = vld [vmem:[#allocation4 + $0x2a] sm:$0xff]
        %v6119 = vld [vmem:[#allocation4 + $0x32] sm:$0xff]
        %v6120 = vld [vmem:[#allocation4 + $0x3a] sm:$0xff]
        %v6121 = vld [vmem:[#allocation4 + $0x42] sm:$0xff]
        %v6122 = vld [vmem:[#allocation4 + $0x4a] sm:$0xff]
        %v6123 = vld [vmem:[#allocation4 + $0x52] sm:$0xff]
        %v6124 = vld [vmem:[#allocation4 + $0x5a] sm:$0xff]
        %v6125 = vld [vmem:[#allocation4 + $0x62] sm:$0xff]
        %v6126 = vld [vmem:[#allocation4 + $0x6a] sm:$0xff]
        %v6127 = vld [vmem:[#allocation4 + $0x72] sm:$0xff]
        %v6128 = vld [vmem:[#allocation4 + $0x7a] sm:$0xff]
        %v6129 = vld [vmem:[#allocation4 + $0x82] sm:$0xff]
        %v6130 = vld [vmem:[#allocation4 + $0x8a] sm:$0xff]
        %v6131 = vld [vmem:[#allocation5] sm:$0xff]
        %v6132 = vld [vmem:[#allocation5 + $0x8] sm:$0xff]
        %v6133 = vld [vmem:[#allocation5 + $0x10] sm:$0xff]
        %v6134 = vld [vmem:[#allocation5 + $0x18] sm:$0xff]
        %v6135 = vld [vmem:[#allocation5 + $0x20] sm:$0xff]
        %v6136 = vld [vmem:[#allocation5 + $0x28] sm:$0xff]
        %v6137 = vld [vmem:[#allocation5 + $0x30] sm:$0xff]
        %v6138 = vld [vmem:[#allocation5 + $0x38] sm:$0xff]
        %v6139 = vld [vmem:[#allocation5 + $0x40] sm:$0xff]
        %v6140 = vld [vmem:[#allocation5 + $0x48] sm:$0xff]
        %v6141 = vld [vmem:[#allocation5 + $0x50] sm:$0xff]
        %v6142 = vld [vmem:[#allocation5 + $0x58] sm:$0xff]
        %v6143 = vld [vmem:[#allocation5 + $0x60] sm:$0xff]
        %v6144 = vld [vmem:[#allocation5 + $0x68] sm:$0xff]
        %v6145 = vld [vmem:[#allocation5 + $0x70] sm:$0xff]
        %v6146 = vld [vmem:[#allocation5 + $0x78] sm:$0xff]
        %v6147 = vld [vmem:[#allocation5 + $0x80] sm:$0xff]
        %v6148 = vld [vmem:[#allocation5 + $0x88] sm:$0xff]
        %v6149 = vld [vmem:[#allocation5 + $0x90] sm:$0xff]
        %v6150 = vld [vmem:[#allocation5 + $0x98] sm:$0xff]
        %v6151 = vld [vmem:[#allocation5 + $0xa0] sm:$0xff]
        %v6152 = vld [vmem:[#allocation5 + $0xa8] sm:$0xff]
        %v6153 = vld [vmem:[#allocation5 + $0xb0] sm:$0xff]
        %v6154 = vld [vmem:[#allocation5 + $0xb8] sm:$0xff]
        %v6155 = vld [vmem:[#allocation5 + $0xc0] sm:$0xff]
        %v6156 = vld [vmem:[#allocation5 + $0xc8] sm:$0xff]
        %v6157 = vld [vmem:[#allocation5 + $0xd0] sm:$0xff]
        %v6158 = vld [vmem:[#allocation5 + $0xd8] sm:$0xff]
        %v6159 = vld [vmem:[#allocation5 + $0xe0] sm:$0xff]
        %v6160 = vld [vmem:[#allocation5 + $0xe8] sm:$0xff]
        %v6161 = vld [vmem:[#allocation5 + $0xf0] sm:$0xff]
        %v6162 = vld [vmem:[#allocation5 + $0xf8] sm:$0xff]
        %v6163 = vld [vmem:[#allocation5 + $0x100] sm:$0xff]
        %v6164 = vld [vmem:[#allocation5 + $0x108] sm:$0xff]
        %v6165 = vld [vmem:[#allocation5 + $0x110] sm:$0xff]
        %v6166 = vld [vmem:[#allocation5 + $0x118] sm:$0xff]
        %s6167 = scalar_lea.vmem %s3, 512
        %v6168 = vld [vmem:[%s6167] sm:$0xff]
        %v6169 = vld [vmem:[%s6167 + $0x8] sm:$0xff]
        %v6170 = vld [vmem:[%s6167 + $0x10] sm:$0xff]
        %v6171 = vld [vmem:[%s6167 + $0x18] sm:$0xff]
        %v6172 = vld [vmem:[%s6167 + $0x20] sm:$0xff]
        %v6173 = vld [vmem:[%s6167 + $0x28] sm:$0xff]
        %v6174 = vld [vmem:[%s6167 + $0x30] sm:$0xff]
        %v6175 = vld [vmem:[%s6167 + $0x38] sm:$0xff]
        %v6176 = vld [vmem:[%s6167 + $0x40] sm:$0xff]
        %v6177 = vld [vmem:[%s6167 + $0x48] sm:$0xff]
        %v6178 = vld [vmem:[%s6167 + $0x50] sm:$0xff]
        %v6179 = vld [vmem:[%s6167 + $0x58] sm:$0xff]
        %v6180 = vld [vmem:[%s6167 + $0x60] sm:$0xff]
        %v6181 = vld [vmem:[%s6167 + $0x68] sm:$0xff]
        %v6182 = vld [vmem:[%s6167 + $0x70] sm:$0xff]
        %v6183 = vld [vmem:[%s6167 + $0x78] sm:$0xff]
        %v6184 = vld [vmem:[%s6167 + $0x80] sm:$0xff]
        %v6185 = vld [vmem:[%s6167 + $0x88] sm:$0xff]
        %v6186 = vld [vmem:[%s6167 + $0x90] sm:$0xff]
        %v6187 = vld [vmem:[%s6167 + $0x98] sm:$0xff]
        %v6188 = vld [vmem:[%s6167 + $0xa0] sm:$0xff]
        %v6189 = vld [vmem:[%s6167 + $0xa8] sm:$0xff]
        %v6190 = vld [vmem:[%s6167 + $0xb0] sm:$0xff]
        %v6191 = vld [vmem:[%s6167 + $0xb8] sm:$0xff]
        %v6192 = vld [vmem:[%s6167 + $0xc0] sm:$0xff]
        %v6193 = vld [vmem:[%s6167 + $0xc8] sm:$0xff]
        %v6194 = vld [vmem:[%s6167 + $0xd0] sm:$0xff]
        %v6195 = vld [vmem:[%s6167 + $0xd8] sm:$0xff]
        %v6196 = vld [vmem:[%s6167 + $0xe0] sm:$0xff]
        %v6197 = vld [vmem:[%s6167 + $0xe8] sm:$0xff]
        %v6198 = vld [vmem:[%s6167 + $0xf0] sm:$0xff]
        %v6199 = vld [vmem:[%s6167 + $0xf8] sm:$0xff]
        %6200 = vmatprep.subr.mxu0 %v6169
        %6201 = vmatpush1.msra.mxu0 %v6168
        %6202 = vmatprep.subr.mxu0 %v6171
        %6203 = vmatpush1.msra.mxu0 %v6170
        %6204 = vmatprep.subr.mxu0 %v6173
        %6205 = vmatpush1.msra.mxu0 %v6172
        %6206 = vmatprep.subr.mxu0 %v6175
        %6207 = vmatpush1.msra.mxu0 %v6174
        %6208 = vmatprep.subr.mxu0 %v6177
        %6209 = vmatpush1.msra.mxu0 %v6176
        %6210 = vmatprep.subr.mxu0 %v6179
        %6211 = vmatpush1.msra.mxu0 %v6178
        %6212 = vmatprep.subr.mxu0 %v6181
        %6213 = vmatpush1.msra.mxu0 %v6180
        %6214 = vmatprep.subr.mxu0 %v6183
        %6215 = vmatpush1.msra.mxu0 %v6182
        %6216 = vmatprep.subr.mxu0 %v6185
        %6217 = vmatpush1.msra.mxu0 %v6184
        %6218 = vmatprep.subr.mxu0 %v6187
        %6219 = vmatpush1.msra.mxu0 %v6186
        %6220 = vmatprep.subr.mxu0 %v6189
        %6221 = vmatpush1.msra.mxu0 %v6188
        %6222 = vmatprep.subr.mxu0 %v6191
        %6223 = vmatpush1.msra.mxu0 %v6190
        %6224 = vmatprep.subr.mxu0 %v6193
        %6225 = vmatpush1.msra.mxu0 %v6192
        %6226 = vmatprep.subr.mxu0 %v6195
        %6227 = vmatpush1.msra.mxu0 %v6194
        %6228 = vmatprep.subr.mxu0 %v6197
        %6229 = vmatpush1.msra.mxu0 %v6196
        %6230 = vmatprep.subr.mxu0 %v6199
        %6231 = vmatpush1.msra.mxu0 %v6198
        %6232 = vmatprep.subr.mxu0 0.0
        %6233 = vmatpush1.msra.mxu0 0.0
        %6234 = vmatprep.subr.mxu0 0.0
        %6235 = vmatpush1.msra.mxu0 0.0
        %6236 = vmatprep.subr.mxu0 0.0
        %6237 = vmatpush1.msra.mxu0 0.0
        %6238 = vmatprep.subr.mxu0 0.0
        %6239 = vmatpush1.msra.mxu0 0.0
        %6240 = vmatprep.subr.mxu0 0.0
        %6241 = vmatpush1.msra.mxu0 0.0
        %6242 = vmatprep.subr.mxu0 0.0
        %6243 = vmatpush1.msra.mxu0 0.0
        %6244 = vmatprep.subr.mxu0 0.0
        %6245 = vmatpush1.msra.mxu0 0.0
        %6246 = vmatprep.subr.mxu0 0.0
        %6247 = vmatpush1.msra.mxu0 0.0
        %6248 = vmatprep.subr.mxu0 0.0
        %6249 = vmatpush1.msra.mxu0 0.0
        %6250 = vmatprep.subr.mxu0 0.0
        %6251 = vmatpush1.msra.mxu0 0.0
        %6252 = vmatprep.subr.mxu0 0.0
        %6253 = vmatpush1.msra.mxu0 0.0
        %6254 = vmatprep.subr.mxu0 0.0
        %6255 = vmatpush1.msra.mxu0 0.0
        %6256 = vmatprep.subr.mxu0 0.0
        %6257 = vmatpush1.msra.mxu0 0.0
        %6258 = vmatprep.subr.mxu0 0.0
        %6259 = vmatpush1.msra.mxu0 0.0
        %6260 = vmatprep.subr.mxu0 0.0
        %6261 = vmatpush1.msra.mxu0 0.0
        %6262 = vmatprep.subr.mxu0 0.0
        %6263 = vmatpush1.msra.mxu0 0.0
        %6264 = vmatprep.mubr.f32.mxu0 0.0
        %6265 = vmatmul.mubr.f32.gmra.mrb[0].mxu0 %v6113
        %v6266 = vpop.f32.mrb[0].mxu0
        %v6267 = vadd.f32 0.0, %v6266
        %v6268 = vpop.f32.mrb[0].mxu0
        %v6269 = vadd.f32 0.0, %v6268
        %6270 = vmatprep.mubr.f32.mxu0 0.0
        %6271 = vmatmul.mubr.f32.gmra.mrb[0].mxu0 %v6114
        %v6272 = vpop.f32.mrb[0].mxu0
        %v6273 = vadd.f32 0.0, %v6272
        %v6274 = vpop.f32.mrb[0].mxu0
        %v6275 = vadd.f32 0.0, %v6274
        %6276 = vmatprep.mubr.f32.mxu0 0.0
        %6277 = vmatmul.mubr.f32.gmra.mrb[0].mxu0 %v6115
        %v6278 = vpop.f32.mrb[0].mxu0
        %v6279 = vadd.f32 0.0, %v6278
        %v6280 = vpop.f32.mrb[0].mxu0
        %v6281 = vadd.f32 0.0, %v6280
        %6282 = vmatprep.mubr.f32.mxu0 0.0
        %6283 = vmatmul.mubr.f32.gmra.mrb[0].mxu0 %v6116
        %v6284 = vpop.f32.mrb[0].mxu0
        %v6285 = vadd.f32 0.0, %v6284
        %v6286 = vpop.f32.mrb[0].mxu0
        %v6287 = vadd.f32 0.0, %v6286
        %6288 = vmatprep.mubr.f32.mxu0 0.0
        %6289 = vmatmul.mubr.f32.gmra.mrb[0].mxu0 %v6117
        %v6290 = vpop.f32.mrb[0].mxu0
        %v6291 = vadd.f32 0.0, %v6290
        %v6292 = vpop.f32.mrb[0].mxu0
        %v6293 = vadd.f32 0.0, %v6292
        %6294 = vmatprep.mubr.f32.mxu0 0.0
        %6295 = vmatmul.mubr.f32.gmra.mrb[0].mxu0 %v6118
        %v6296 = vpop.f32.mrb[0].mxu0
        %v6297 = vadd.f32 0.0, %v6296
        %v6298 = vpop.f32.mrb[0].mxu0
        %v6299 = vadd.f32 0.0, %v6298
        %6300 = vmatprep.mubr.f32.mxu0 0.0
        %6301 = vmatmul.mubr.f32.gmra.mrb[0].mxu0 %v6119
        %v6302 = vpop.f32.mrb[0].mxu0
        %v6303 = vadd.f32 0.0, %v6302
        %v6304 = vpop.f32.mrb[0].mxu0
        %v6305 = vadd.f32 0.0, %v6304
        %6306 = vmatprep.mubr.f32.mxu0 0.0
        %6307 = vmatmul.mubr.f32.gmra.mrb[0].mxu0 %v6120
        %v6308 = vpop.f32.mrb[0].mxu0
        %v6309 = vadd.f32 0.0, %v6308
        %v6310 = vpop.f32.mrb[0].mxu0
        %v6311 = vadd.f32 0.0, %v6310
        %6312 = vmatprep.mubr.f32.mxu0 0.0
        %6313 = vmatmul.mubr.f32.gmra.mrb[0].mxu0 %v6121
        %v6314 = vpop.f32.mrb[0].mxu0
        %v6315 = vadd.f32 0.0, %v6314
        %v6316 = vpop.f32.mrb[0].mxu0
        %v6317 = vadd.f32 0.0, %v6316
        %6318 = vmatprep.mubr.f32.mxu0 0.0
        %6319 = vmatmul.mubr.f32.gmra.mrb[0].mxu0 %v6122
        %v6320 = vpop.f32.mrb[0].mxu0
        %v6321 = vadd.f32 0.0, %v6320
        %v6322 = vpop.f32.mrb[0].mxu0
        %v6323 = vadd.f32 0.0, %v6322
        %6324 = vmatprep.mubr.f32.mxu0 0.0
        %6325 = vmatmul.mubr.f32.gmra.mrb[0].mxu0 %v6123
        %v6326 = vpop.f32.mrb[0].mxu0
        %v6327 = vadd.f32 0.0, %v6326
        %v6328 = vpop.f32.mrb[0].mxu0
        %v6329 = vadd.f32 0.0, %v6328
        %6330 = vmatprep.mubr.f32.mxu0 0.0
        %6331 = vmatmul.mubr.f32.gmra.mrb[0].mxu0 %v6124
        %v6332 = vpop.f32.mrb[0].mxu0
        %v6333 = vadd.f32 0.0, %v6332
        %v6334 = vpop.f32.mrb[0].mxu0
        %v6335 = vadd.f32 0.0, %v6334
        %6336 = vmatprep.mubr.f32.mxu0 0.0
        %6337 = vmatmul.mubr.f32.gmra.mrb[0].mxu0 %v6125
        %v6338 = vpop.f32.mrb[0].mxu0
        %v6339 = vadd.f32 0.0, %v6338
        %v6340 = vpop.f32.mrb[0].mxu0
        %v6341 = vadd.f32 0.0, %v6340
        %6342 = vmatprep.mubr.f32.mxu0 0.0
        %6343 = vmatmul.mubr.f32.gmra.mrb[0].mxu0 %v6126
        %v6344 = vpop.f32.mrb[0].mxu0
        %v6345 = vadd.f32 0.0, %v6344
        %v6346 = vpop.f32.mrb[0].mxu0
        %v6347 = vadd.f32 0.0, %v6346
        %6348 = vmatprep.mubr.f32.mxu0 0.0
        %6349 = vmatmul.mubr.f32.gmra.mrb[0].mxu0 %v6127
        %v6350 = vpop.f32.mrb[0].mxu0
        %v6351 = vadd.f32 0.0, %v6350
        %v6352 = vpop.f32.mrb[0].mxu0
        %v6353 = vadd.f32 0.0, %v6352
        %6354 = vmatprep.mubr.f32.mxu0 0.0
        %6355 = vmatmul.mubr.f32.gmra.mrb[0].mxu0 %v6128
        %v6356 = vpop.f32.mrb[0].mxu0
        %v6357 = vadd.f32 0.0, %v6356
        %v6358 = vpop.f32.mrb[0].mxu0
        %v6359 = vadd.f32 0.0, %v6358
        %6360 = vmatprep.mubr.f32.mxu0 0.0
        %6361 = vmatmul.mubr.f32.gmra.mrb[0].mxu0 %v6129
        %v6362 = vpop.f32.mrb[0].mxu0
        %v6363 = vadd.f32 0.0, %v6362
        %v6364 = vpop.f32.mrb[0].mxu0
        %v6365 = vadd.f32 0.0, %v6364
        %6366 = vmatprep.mubr.f32.mxu0 0.0
        %6367 = vmatmul.mubr.f32.gmra.mrb[0].mxu0 %v6130
        %v6368 = vpop.f32.mrb[0].mxu0
        %v6369 = vadd.f32 0.0, %v6368
        %v6370 = vpop.f32.mrb[0].mxu0
        %v6371 = vadd.f32 0.0, %v6370
        %6372 = vdwg.mxu0
        %v6373 = vadd.f32 %v6131, %v6267
        %v6374 = vadd.f32 %v6132, %v6269
        %v6375 = vadd.f32 %v6133, %v6273
        %v6376 = vadd.f32 %v6134, %v6275
        %v6377 = vadd.f32 %v6135, %v6279
        %v6378 = vadd.f32 %v6136, %v6281
        %v6379 = vadd.f32 %v6137, %v6285
        %v6380 = vadd.f32 %v6138, %v6287
        %v6381 = vadd.f32 %v6139, %v6291
        %v6382 = vadd.f32 %v6140, %v6293
        %v6383 = vadd.f32 %v6141, %v6297
        %v6384 = vadd.f32 %v6142, %v6299
        %v6385 = vadd.f32 %v6143, %v6303
        %v6386 = vadd.f32 %v6144, %v6305
        %v6387 = vadd.f32 %v6145, %v6309
        %v6388 = vadd.f32 %v6146, %v6311
        %v6389 = vadd.f32 %v6147, %v6315
        %v6390 = vadd.f32 %v6148, %v6317
        %v6391 = vadd.f32 %v6149, %v6321
        %v6392 = vadd.f32 %v6150, %v6323
        %v6393 = vadd.f32 %v6151, %v6327
        %v6394 = vadd.f32 %v6152, %v6329
        %v6395 = vadd.f32 %v6153, %v6333
        %v6396 = vadd.f32 %v6154, %v6335
        %v6397 = vadd.f32 %v6155, %v6339
        %v6398 = vadd.f32 %v6156, %v6341
        %v6399 = vadd.f32 %v6157, %v6345
        %v6400 = vadd.f32 %v6158, %v6347
        %v6401 = vadd.f32 %v6159, %v6351
        %v6402 = vadd.f32 %v6160, %v6353
        %v6403 = vadd.f32 %v6161, %v6357
        %v6404 = vadd.f32 %v6162, %v6359
        %v6405 = vadd.f32 %v6163, %v6363
        %v6406 = vadd.f32 %v6164, %v6365
        %v6407 = vadd.f32 %v6165, %v6369
        %v6408 = vadd.f32 %v6166, %v6371
        %6409 = vst [vmem:[#allocation5] sm:$0xff] %v6373
        %6410 = vst [vmem:[#allocation5 + $0x8] sm:$0xff] %v6374
        %6411 = vst [vmem:[#allocation5 + $0x10] sm:$0xff] %v6375
        %6412 = vst [vmem:[#allocation5 + $0x18] sm:$0xff] %v6376
        %6413 = vst [vmem:[#allocation5 + $0x20] sm:$0xff] %v6377
        %6414 = vst [vmem:[#allocation5 + $0x28] sm:$0xff] %v6378
        %6415 = vst [vmem:[#allocation5 + $0x30] sm:$0xff] %v6379
        %6416 = vst [vmem:[#allocation5 + $0x38] sm:$0xff] %v6380
        %6417 = vst [vmem:[#allocation5 + $0x40] sm:$0xff] %v6381
        %6418 = vst [vmem:[#allocation5 + $0x48] sm:$0xff] %v6382
        %6419 = vst [vmem:[#allocation5 + $0x50] sm:$0xff] %v6383
        %6420 = vst [vmem:[#allocation5 + $0x58] sm:$0xff] %v6384
        %6421 = vst [vmem:[#allocation5 + $0x60] sm:$0xff] %v6385
        %6422 = vst [vmem:[#allocation5 + $0x68] sm:$0xff] %v6386
        %6423 = vst [vmem:[#allocation5 + $0x70] sm:$0xff] %v6387
        %6424 = vst [vmem:[#allocation5 + $0x78] sm:$0xff] %v6388
        %6425 = vst [vmem:[#allocation5 + $0x80] sm:$0xff] %v6389
        %6426 = vst [vmem:[#allocation5 + $0x88] sm:$0xff] %v6390
        %6427 = vst [vmem:[#allocation5 + $0x90] sm:$0xff] %v6391
        %6428 = vst [vmem:[#allocation5 + $0x98] sm:$0xff] %v6392
        %6429 = vst [vmem:[#allocation5 + $0xa0] sm:$0xff] %v6393
        %6430 = vst [vmem:[#allocation5 + $0xa8] sm:$0xff] %v6394
        %6431 = vst [vmem:[#allocation5 + $0xb0] sm:$0xff] %v6395
        %6432 = vst [vmem:[#allocation5 + $0xb8] sm:$0xff] %v6396
        %6433 = vst [vmem:[#allocation5 + $0xc0] sm:$0xff] %v6397
        %6434 = vst [vmem:[#allocation5 + $0xc8] sm:$0xff] %v6398
        %6435 = vst [vmem:[#allocation5 + $0xd0] sm:$0xff] %v6399
        %6436 = vst [vmem:[#allocation5 + $0xd8] sm:$0xff] %v6400
        %6437 = vst [vmem:[#allocation5 + $0xe0] sm:$0xff] %v6401
        %6438 = vst [vmem:[#allocation5 + $0xe8] sm:$0xff] %v6402
        %6439 = vst [vmem:[#allocation5 + $0xf0] sm:$0xff] %v6403
        %6440 = vst [vmem:[#allocation5 + $0xf8] sm:$0xff] %v6404
        %6441 = vst [vmem:[#allocation5 + $0x100] sm:$0xff] %v6405
        %6442 = vst [vmem:[#allocation5 + $0x108] sm:$0xff] %v6406
        %6443 = vst [vmem:[#allocation5 + $0x110] sm:$0xff] %v6407
        %6444 = vst [vmem:[#allocation5 + $0x118] sm:$0xff] %v6408
        %v6445 = vld [vmem:[#allocation4 + $0xd] sm:$0xff]
        %v6446 = vld [vmem:[#allocation4 + $0x15] sm:$0xff]
        %v6447 = vld [vmem:[#allocation4 + $0x1d] sm:$0xff]
        %v6448 = vld [vmem:[#allocation4 + $0x25] sm:$0xff]
        %v6449 = vld [vmem:[#allocation4 + $0x2d] sm:$0xff]
        %v6450 = vld [vmem:[#allocation4 + $0x35] sm:$0xff]
        %v6451 = vld [vmem:[#allocation4 + $0x3d] sm:$0xff]
        %v6452 = vld [vmem:[#allocation4 + $0x45] sm:$0xff]
        %v6453 = vld [vmem:[#allocation4 + $0x4d] sm:$0xff]
        %v6454 = vld [vmem:[#allocation4 + $0x55] sm:$0xff]
        %v6455 = vld [vmem:[#allocation4 + $0x5d] sm:$0xff]
        %v6456 = vld [vmem:[#allocation4 + $0x65] sm:$0xff]
        %v6457 = vld [vmem:[#allocation4 + $0x6d] sm:$0xff]
        %v6458 = vld [vmem:[#allocation4 + $0x75] sm:$0xff]
        %v6459 = vld [vmem:[#allocation4 + $0x7d] sm:$0xff]
        %v6460 = vld [vmem:[#allocation4 + $0x85] sm:$0xff]
        %v6461 = vld [vmem:[#allocation4 + $0x8d] sm:$0xff]
        %v6462 = vld [vmem:[#allocation4 + $0x95] sm:$0xff]
        %v6463 = vld [vmem:[#allocation5] sm:$0xff]
        %v6464 = vld [vmem:[#allocation5 + $0x8] sm:$0xff]
        %v6465 = vld [vmem:[#allocation5 + $0x10] sm:$0xff]
        %v6466 = vld [vmem:[#allocation5 + $0x18] sm:$0xff]
        %v6467 = vld [vmem:[#allocation5 + $0x20] sm:$0xff]
        %v6468 = vld [vmem:[#allocation5 + $0x28] sm:$0xff]
        %v6469 = vld [vmem:[#allocation5 + $0x30] sm:$0xff]
        %v6470 = vld [vmem:[#allocation5 + $0x38] sm:$0xff]
        %v6471 = vld [vmem:[#allocation5 + $0x40] sm:$0xff]
        %v6472 = vld [vmem:[#allocation5 + $0x48] sm:$0xff]
        %v6473 = vld [vmem:[#allocation5 + $0x50] sm:$0xff]
        %v6474 = vld [vmem:[#allocation5 + $0x58] sm:$0xff]
        %v6475 = vld [vmem:[#allocation5 + $0x60] sm:$0xff]
        %v6476 = vld [vmem:[#allocation5 + $0x68] sm:$0xff]
        %v6477 = vld [vmem:[#allocation5 + $0x70] sm:$0xff]
        %v6478 = vld [vmem:[#allocation5 + $0x78] sm:$0xff]
        %v6479 = vld [vmem:[#allocation5 + $0x80] sm:$0xff]
        %v6480 = vld [vmem:[#allocation5 + $0x88] sm:$0xff]
        %v6481 = vld [vmem:[#allocation5 + $0x90] sm:$0xff]
        %v6482 = vld [vmem:[#allocation5 + $0x98] sm:$0xff]
        %v6483 = vld [vmem:[#allocation5 + $0xa0] sm:$0xff]
        %v6484 = vld [vmem:[#allocation5 + $0xa8] sm:$0xff]
        %v6485 = vld [vmem:[#allocation5 + $0xb0] sm:$0xff]
        %v6486 = vld [vmem:[#allocation5 + $0xb8] sm:$0xff]
        %v6487 = vld [vmem:[#allocation5 + $0xc0] sm:$0xff]
        %v6488 = vld [vmem:[#allocation5 + $0xc8] sm:$0xff]
        %v6489 = vld [vmem:[#allocation5 + $0xd0] sm:$0xff]
        %v6490 = vld [vmem:[#allocation5 + $0xd8] sm:$0xff]
        %v6491 = vld [vmem:[#allocation5 + $0xe0] sm:$0xff]
        %v6492 = vld [vmem:[#allocation5 + $0xe8] sm:$0xff]
        %v6493 = vld [vmem:[#allocation5 + $0xf0] sm:$0xff]
        %v6494 = vld [vmem:[#allocation5 + $0xf8] sm:$0xff]
        %v6495 = vld [vmem:[#allocation5 + $0x100] sm:$0xff]
        %v6496 = vld [vmem:[#allocation5 + $0x108] sm:$0xff]
        %v6497 = vld [vmem:[#allocation5 + $0x110] sm:$0xff]
        %v6498 = vld [vmem:[#allocation5 + $0x118] sm:$0xff]
        %s6499 = scalar_lea.vmem %s3, 768
        %v6500 = vld [vmem:[%s6499] sm:$0xff]
        %v6501 = vld [vmem:[%s6499 + $0x8] sm:$0xff]
        %v6502 = vld [vmem:[%s6499 + $0x10] sm:$0xff]
        %v6503 = vld [vmem:[%s6499 + $0x18] sm:$0xff]
        %v6504 = vld [vmem:[%s6499 + $0x20] sm:$0xff]
        %v6505 = vld [vmem:[%s6499 + $0x28] sm:$0xff]
        %v6506 = vld [vmem:[%s6499 + $0x30] sm:$0xff]
        %v6507 = vld [vmem:[%s6499 + $0x38] sm:$0xff]
        %v6508 = vld [vmem:[%s6499 + $0x40] sm:$0xff]
        %v6509 = vld [vmem:[%s6499 + $0x48] sm:$0xff]
        %v6510 = vld [vmem:[%s6499 + $0x50] sm:$0xff]
        %v6511 = vld [vmem:[%s6499 + $0x58] sm:$0xff]
        %v6512 = vld [vmem:[%s6499 + $0x60] sm:$0xff]
        %v6513 = vld [vmem:[%s6499 + $0x68] sm:$0xff]
        %v6514 = vld [vmem:[%s6499 + $0x70] sm:$0xff]
        %v6515 = vld [vmem:[%s6499 + $0x78] sm:$0xff]
        %v6516 = vld [vmem:[%s6499 + $0x80] sm:$0xff]
        %v6517 = vld [vmem:[%s6499 + $0x88] sm:$0xff]
        %v6518 = vld [vmem:[%s6499 + $0x90] sm:$0xff]
        %v6519 = vld [vmem:[%s6499 + $0x98] sm:$0xff]
        %v6520 = vld [vmem:[%s6499 + $0xa0] sm:$0xff]
        %v6521 = vld [vmem:[%s6499 + $0xa8] sm:$0xff]
        %v6522 = vld [vmem:[%s6499 + $0xb0] sm:$0xff]
        %v6523 = vld [vmem:[%s6499 + $0xb8] sm:$0xff]
        %v6524 = vld [vmem:[%s6499 + $0xc0] sm:$0xff]
        %v6525 = vld [vmem:[%s6499 + $0xc8] sm:$0xff]
        %v6526 = vld [vmem:[%s6499 + $0xd0] sm:$0xff]
        %v6527 = vld [vmem:[%s6499 + $0xd8] sm:$0xff]
        %v6528 = vld [vmem:[%s6499 + $0xe0] sm:$0xff]
        %v6529 = vld [vmem:[%s6499 + $0xe8] sm:$0xff]
        %v6530 = vld [vmem:[%s6499 + $0xf0] sm:$0xff]
        %v6531 = vld [vmem:[%s6499 + $0xf8] sm:$0xff]
        %6532 = vmatprep.subr.mxu0 %v6501
        %6533 = vmatpush1.msra.mxu0 %v6500
        %6534 = vmatprep.subr.mxu0 %v6503
        %6535 = vmatpush1.msra.mxu0 %v6502
        %6536 = vmatprep.subr.mxu0 %v6505
        %6537 = vmatpush1.msra.mxu0 %v6504
        %6538 = vmatprep.subr.mxu0 %v6507
        %6539 = vmatpush1.msra.mxu0 %v6506
        %6540 = vmatprep.subr.mxu0 %v6509
        %6541 = vmatpush1.msra.mxu0 %v6508
        %6542 = vmatprep.subr.mxu0 %v6511
        %6543 = vmatpush1.msra.mxu0 %v6510
        %6544 = vmatprep.subr.mxu0 %v6513
        %6545 = vmatpush1.msra.mxu0 %v6512
        %6546 = vmatprep.subr.mxu0 %v6515
        %6547 = vmatpush1.msra.mxu0 %v6514
        %6548 = vmatprep.subr.mxu0 %v6517
        %6549 = vmatpush1.msra.mxu0 %v6516
        %6550 = vmatprep.subr.mxu0 %v6519
        %6551 = vmatpush1.msra.mxu0 %v6518
        %6552 = vmatprep.subr.mxu0 %v6521
        %6553 = vmatpush1.msra.mxu0 %v6520
        %6554 = vmatprep.subr.mxu0 %v6523
        %6555 = vmatpush1.msra.mxu0 %v6522
        %6556 = vmatprep.subr.mxu0 %v6525
        %6557 = vmatpush1.msra.mxu0 %v6524
        %6558 = vmatprep.subr.mxu0 %v6527
        %6559 = vmatpush1.msra.mxu0 %v6526
        %6560 = vmatprep.subr.mxu0 %v6529
        %6561 = vmatpush1.msra.mxu0 %v6528
        %6562 = vmatprep.subr.mxu0 %v6531
        %6563 = vmatpush1.msra.mxu0 %v6530
        %6564 = vmatprep.subr.mxu0 0.0
        %6565 = vmatpush1.msra.mxu0 0.0
        %6566 = vmatprep.subr.mxu0 0.0
        %6567 = vmatpush1.msra.mxu0 0.0
        %6568 = vmatprep.subr.mxu0 0.0
        %6569 = vmatpush1.msra.mxu0 0.0
        %6570 = vmatprep.subr.mxu0 0.0
        %6571 = vmatpush1.msra.mxu0 0.0
        %6572 = vmatprep.subr.mxu0 0.0
        %6573 = vmatpush1.msra.mxu0 0.0
        %6574 = vmatprep.subr.mxu0 0.0
        %6575 = vmatpush1.msra.mxu0 0.0
        %6576 = vmatprep.subr.mxu0 0.0
        %6577 = vmatpush1.msra.mxu0 0.0
        %6578 = vmatprep.subr.mxu0 0.0
        %6579 = vmatpush1.msra.mxu0 0.0
        %6580 = vmatprep.subr.mxu0 0.0
        %6581 = vmatpush1.msra.mxu0 0.0
        %6582 = vmatprep.subr.mxu0 0.0
        %6583 = vmatpush1.msra.mxu0 0.0
        %6584 = vmatprep.subr.mxu0 0.0
        %6585 = vmatpush1.msra.mxu0 0.0
        %6586 = vmatprep.subr.mxu0 0.0
        %6587 = vmatpush1.msra.mxu0 0.0
        %6588 = vmatprep.subr.mxu0 0.0
        %6589 = vmatpush1.msra.mxu0 0.0
        %6590 = vmatprep.subr.mxu0 0.0
        %6591 = vmatpush1.msra.mxu0 0.0
        %6592 = vmatprep.subr.mxu0 0.0
        %6593 = vmatpush1.msra.mxu0 0.0
        %6594 = vmatprep.subr.mxu0 0.0
        %6595 = vmatpush1.msra.mxu0 0.0
        %6596 = vmatprep.mubr.f32.mxu0 0.0
        %6597 = vmatmul.mubr.f32.gmra.mrb[0].mxu0 %v6445
        %v6598 = vpop.f32.mrb[0].mxu0
        %v6599 = vadd.f32 0.0, %v6598
        %v6600 = vpop.f32.mrb[0].mxu0
        %v6601 = vadd.f32 0.0, %v6600
        %6602 = vmatprep.mubr.f32.mxu0 0.0
        %6603 = vmatmul.mubr.f32.gmra.mrb[0].mxu0 %v6446
        %v6604 = vpop.f32.mrb[0].mxu0
        %v6605 = vadd.f32 0.0, %v6604
        %v6606 = vpop.f32.mrb[0].mxu0
        %v6607 = vadd.f32 0.0, %v6606
        %6608 = vmatprep.mubr.f32.mxu0 0.0
        %6609 = vmatmul.mubr.f32.gmra.mrb[0].mxu0 %v6447
        %v6610 = vpop.f32.mrb[0].mxu0
        %v6611 = vadd.f32 0.0, %v6610
        %v6612 = vpop.f32.mrb[0].mxu0
        %v6613 = vadd.f32 0.0, %v6612
        %6614 = vmatprep.mubr.f32.mxu0 0.0
        %6615 = vmatmul.mubr.f32.gmra.mrb[0].mxu0 %v6448
        %v6616 = vpop.f32.mrb[0].mxu0
        %v6617 = vadd.f32 0.0, %v6616
        %v6618 = vpop.f32.mrb[0].mxu0
        %v6619 = vadd.f32 0.0, %v6618
        %6620 = vmatprep.mubr.f32.mxu0 0.0
        %6621 = vmatmul.mubr.f32.gmra.mrb[0].mxu0 %v6449
        %v6622 = vpop.f32.mrb[0].mxu0
        %v6623 = vadd.f32 0.0, %v6622
        %v6624 = vpop.f32.mrb[0].mxu0
        %v6625 = vadd.f32 0.0, %v6624
        %6626 = vmatprep.mubr.f32.mxu0 0.0
        %6627 = vmatmul.mubr.f32.gmra.mrb[0].mxu0 %v6450
        %v6628 = vpop.f32.mrb[0].mxu0
        %v6629 = vadd.f32 0.0, %v6628
        %v6630 = vpop.f32.mrb[0].mxu0
        %v6631 = vadd.f32 0.0, %v6630
        %6632 = vmatprep.mubr.f32.mxu0 0.0
        %6633 = vmatmul.mubr.f32.gmra.mrb[0].mxu0 %v6451
        %v6634 = vpop.f32.mrb[0].mxu0
        %v6635 = vadd.f32 0.0, %v6634
        %v6636 = vpop.f32.mrb[0].mxu0
        %v6637 = vadd.f32 0.0, %v6636
        %6638 = vmatprep.mubr.f32.mxu0 0.0
        %6639 = vmatmul.mubr.f32.gmra.mrb[0].mxu0 %v6452
        %v6640 = vpop.f32.mrb[0].mxu0
        %v6641 = vadd.f32 0.0, %v6640
        %v6642 = vpop.f32.mrb[0].mxu0
        %v6643 = vadd.f32 0.0, %v6642
        %6644 = vmatprep.mubr.f32.mxu0 0.0
        %6645 = vmatmul.mubr.f32.gmra.mrb[0].mxu0 %v6453
        %v6646 = vpop.f32.mrb[0].mxu0
        %v6647 = vadd.f32 0.0, %v6646
        %v6648 = vpop.f32.mrb[0].mxu0
        %v6649 = vadd.f32 0.0, %v6648
        %6650 = vmatprep.mubr.f32.mxu0 0.0
        %6651 = vmatmul.mubr.f32.gmra.mrb[0].mxu0 %v6454
        %v6652 = vpop.f32.mrb[0].mxu0
        %v6653 = vadd.f32 0.0, %v6652
        %v6654 = vpop.f32.mrb[0].mxu0
        %v6655 = vadd.f32 0.0, %v6654
        %6656 = vmatprep.mubr.f32.mxu0 0.0
        %6657 = vmatmul.mubr.f32.gmra.mrb[0].mxu0 %v6455
        %v6658 = vpop.f32.mrb[0].mxu0
        %v6659 = vadd.f32 0.0, %v6658
        %v6660 = vpop.f32.mrb[0].mxu0
        %v6661 = vadd.f32 0.0, %v6660
        %6662 = vmatprep.mubr.f32.mxu0 0.0
        %6663 = vmatmul.mubr.f32.gmra.mrb[0].mxu0 %v6456
        %v6664 = vpop.f32.mrb[0].mxu0
        %v6665 = vadd.f32 0.0, %v6664
        %v6666 = vpop.f32.mrb[0].mxu0
        %v6667 = vadd.f32 0.0, %v6666
        %6668 = vmatprep.mubr.f32.mxu0 0.0
        %6669 = vmatmul.mubr.f32.gmra.mrb[0].mxu0 %v6457
        %v6670 = vpop.f32.mrb[0].mxu0
        %v6671 = vadd.f32 0.0, %v6670
        %v6672 = vpop.f32.mrb[0].mxu0
        %v6673 = vadd.f32 0.0, %v6672
        %6674 = vmatprep.mubr.f32.mxu0 0.0
        %6675 = vmatmul.mubr.f32.gmra.mrb[0].mxu0 %v6458
        %v6676 = vpop.f32.mrb[0].mxu0
        %v6677 = vadd.f32 0.0, %v6676
        %v6678 = vpop.f32.mrb[0].mxu0
        %v6679 = vadd.f32 0.0, %v6678
        %6680 = vmatprep.mubr.f32.mxu0 0.0
        %6681 = vmatmul.mubr.f32.gmra.mrb[0].mxu0 %v6459
        %v6682 = vpop.f32.mrb[0].mxu0
        %v6683 = vadd.f32 0.0, %v6682
        %v6684 = vpop.f32.mrb[0].mxu0
        %v6685 = vadd.f32 0.0, %v6684
        %6686 = vmatprep.mubr.f32.mxu0 0.0
        %6687 = vmatmul.mubr.f32.gmra.mrb[0].mxu0 %v6460
        %v6688 = vpop.f32.mrb[0].mxu0
        %v6689 = vadd.f32 0.0, %v6688
        %v6690 = vpop.f32.mrb[0].mxu0
        %v6691 = vadd.f32 0.0, %v6690
        %6692 = vmatprep.mubr.f32.mxu0 0.0
        %6693 = vmatmul.mubr.f32.gmra.mrb[0].mxu0 %v6461
        %v6694 = vpop.f32.mrb[0].mxu0
        %v6695 = vadd.f32 0.0, %v6694
        %v6696 = vpop.f32.mrb[0].mxu0
        %v6697 = vadd.f32 0.0, %v6696
        %6698 = vmatprep.mubr.f32.mxu0 0.0
        %6699 = vmatmul.mubr.f32.gmra.mrb[0].mxu0 %v6462
        %v6700 = vpop.f32.mrb[0].mxu0
        %v6701 = vadd.f32 0.0, %v6700
        %v6702 = vpop.f32.mrb[0].mxu0
        %v6703 = vadd.f32 0.0, %v6702
        %6704 = vdwg.mxu0
        %v6705 = vadd.f32 %v6463, %v6599
        %v6706 = vadd.f32 %v6464, %v6601
        %v6707 = vadd.f32 %v6465, %v6605
        %v6708 = vadd.f32 %v6466, %v6607
        %v6709 = vadd.f32 %v6467, %v6611
        %v6710 = vadd.f32 %v6468, %v6613
        %v6711 = vadd.f32 %v6469, %v6617
        %v6712 = vadd.f32 %v6470, %v6619
        %v6713 = vadd.f32 %v6471, %v6623
        %v6714 = vadd.f32 %v6472, %v6625
        %v6715 = vadd.f32 %v6473, %v6629
        %v6716 = vadd.f32 %v6474, %v6631
        %v6717 = vadd.f32 %v6475, %v6635
        %v6718 = vadd.f32 %v6476, %v6637
        %v6719 = vadd.f32 %v6477, %v6641
        %v6720 = vadd.f32 %v6478, %v6643
        %v6721 = vadd.f32 %v6479, %v6647
        %v6722 = vadd.f32 %v6480, %v6649
        %v6723 = vadd.f32 %v6481, %v6653
        %v6724 = vadd.f32 %v6482, %v6655
        %v6725 = vadd.f32 %v6483, %v6659
        %v6726 = vadd.f32 %v6484, %v6661
        %v6727 = vadd.f32 %v6485, %v6665
        %v6728 = vadd.f32 %v6486, %v6667
        %v6729 = vadd.f32 %v6487, %v6671
        %v6730 = vadd.f32 %v6488, %v6673
        %v6731 = vadd.f32 %v6489, %v6677
        %v6732 = vadd.f32 %v6490, %v6679
        %v6733 = vadd.f32 %v6491, %v6683
        %v6734 = vadd.f32 %v6492, %v6685
        %v6735 = vadd.f32 %v6493, %v6689
        %v6736 = vadd.f32 %v6494, %v6691
        %v6737 = vadd.f32 %v6495, %v6695
        %v6738 = vadd.f32 %v6496, %v6697
        %v6739 = vadd.f32 %v6497, %v6701
        %v6740 = vadd.f32 %v6498, %v6703
        %6741 = vst [vmem:[#allocation5] sm:$0xff] %v6705
        %6742 = vst [vmem:[#allocation5 + $0x8] sm:$0xff] %v6706
        %6743 = vst [vmem:[#allocation5 + $0x10] sm:$0xff] %v6707
        %6744 = vst [vmem:[#allocation5 + $0x18] sm:$0xff] %v6708
        %6745 = vst [vmem:[#allocation5 + $0x20] sm:$0xff] %v6709
        %6746 = vst [vmem:[#allocation5 + $0x28] sm:$0xff] %v6710
        %6747 = vst [vmem:[#allocation5 + $0x30] sm:$0xff] %v6711
        %6748 = vst [vmem:[#allocation5 + $0x38] sm:$0xff] %v6712
        %6749 = vst [vmem:[#allocation5 + $0x40] sm:$0xff] %v6713
        %6750 = vst [vmem:[#allocation5 + $0x48] sm:$0xff] %v6714
        %6751 = vst [vmem:[#allocation5 + $0x50] sm:$0xff] %v6715
        %6752 = vst [vmem:[#allocation5 + $0x58] sm:$0xff] %v6716
        %6753 = vst [vmem:[#allocation5 + $0x60] sm:$0xff] %v6717
        %6754 = vst [vmem:[#allocation5 + $0x68] sm:$0xff] %v6718
        %6755 = vst [vmem:[#allocation5 + $0x70] sm:$0xff] %v6719
        %6756 = vst [vmem:[#allocation5 + $0x78] sm:$0xff] %v6720
        %6757 = vst [vmem:[#allocation5 + $0x80] sm:$0xff] %v6721
        %6758 = vst [vmem:[#allocation5 + $0x88] sm:$0xff] %v6722
        %6759 = vst [vmem:[#allocation5 + $0x90] sm:$0xff] %v6723
        %6760 = vst [vmem:[#allocation5 + $0x98] sm:$0xff] %v6724
        %6761 = vst [vmem:[#allocation5 + $0xa0] sm:$0xff] %v6725
        %6762 = vst [vmem:[#allocation5 + $0xa8] sm:$0xff] %v6726
        %6763 = vst [vmem:[#allocation5 + $0xb0] sm:$0xff] %v6727
        %6764 = vst [vmem:[#allocation5 + $0xb8] sm:$0xff] %v6728
        %6765 = vst [vmem:[#allocation5 + $0xc0] sm:$0xff] %v6729
        %6766 = vst [vmem:[#allocation5 + $0xc8] sm:$0xff] %v6730
        %6767 = vst [vmem:[#allocation5 + $0xd0] sm:$0xff] %v6731
        %6768 = vst [vmem:[#allocation5 + $0xd8] sm:$0xff] %v6732
        %6769 = vst [vmem:[#allocation5 + $0xe0] sm:$0xff] %v6733
        %6770 = vst [vmem:[#allocation5 + $0xe8] sm:$0xff] %v6734
        %6771 = vst [vmem:[#allocation5 + $0xf0] sm:$0xff] %v6735
        %6772 = vst [vmem:[#allocation5 + $0xf8] sm:$0xff] %v6736
        %6773 = vst [vmem:[#allocation5 + $0x100] sm:$0xff] %v6737
        %6774 = vst [vmem:[#allocation5 + $0x108] sm:$0xff] %v6738
        %6775 = vst [vmem:[#allocation5 + $0x110] sm:$0xff] %v6739
        %6776 = vst [vmem:[#allocation5 + $0x118] sm:$0xff] %v6740
        %v6777 = vld [vmem:[#allocation4 + $0xe] sm:$0xff]
        %v6778 = vld [vmem:[#allocation4 + $0x16] sm:$0xff]
        %v6779 = vld [vmem:[#allocation4 + $0x1e] sm:$0xff]
        %v6780 = vld [vmem:[#allocation4 + $0x26] sm:$0xff]
        %v6781 = vld [vmem:[#allocation4 + $0x2e] sm:$0xff]
        %v6782 = vld [vmem:[#allocation4 + $0x36] sm:$0xff]
        %v6783 = vld [vmem:[#allocation4 + $0x3e] sm:$0xff]
        %v6784 = vld [vmem:[#allocation4 + $0x46] sm:$0xff]
        %v6785 = vld [vmem:[#allocation4 + $0x4e] sm:$0xff]
        %v6786 = vld [vmem:[#allocation4 + $0x56] sm:$0xff]
        %v6787 = vld [vmem:[#allocation4 + $0x5e] sm:$0xff]
        %v6788 = vld [vmem:[#allocation4 + $0x66] sm:$0xff]
        %v6789 = vld [vmem:[#allocation4 + $0x6e] sm:$0xff]
        %v6790 = vld [vmem:[#allocation4 + $0x76] sm:$0xff]
        %v6791 = vld [vmem:[#allocation4 + $0x7e] sm:$0xff]
        %v6792 = vld [vmem:[#allocation4 + $0x86] sm:$0xff]
        %v6793 = vld [vmem:[#allocation4 + $0x8e] sm:$0xff]
        %v6794 = vld [vmem:[#allocation4 + $0x96] sm:$0xff]
        %v6795 = vld [vmem:[#allocation5] sm:$0xff]
        %v6796 = vld [vmem:[#allocation5 + $0x8] sm:$0xff]
        %v6797 = vld [vmem:[#allocation5 + $0x10] sm:$0xff]
        %v6798 = vld [vmem:[#allocation5 + $0x18] sm:$0xff]
        %v6799 = vld [vmem:[#allocation5 + $0x20] sm:$0xff]
        %v6800 = vld [vmem:[#allocation5 + $0x28] sm:$0xff]
        %v6801 = vld [vmem:[#allocation5 + $0x30] sm:$0xff]
        %v6802 = vld [vmem:[#allocation5 + $0x38] sm:$0xff]
        %v6803 = vld [vmem:[#allocation5 + $0x40] sm:$0xff]
        %v6804 = vld [vmem:[#allocation5 + $0x48] sm:$0xff]
        %v6805 = vld [vmem:[#allocation5 + $0x50] sm:$0xff]
        %v6806 = vld [vmem:[#allocation5 + $0x58] sm:$0xff]
        %v6807 = vld [vmem:[#allocation5 + $0x60] sm:$0xff]
        %v6808 = vld [vmem:[#allocation5 + $0x68] sm:$0xff]
        %v6809 = vld [vmem:[#allocation5 + $0x70] sm:$0xff]
        %v6810 = vld [vmem:[#allocation5 + $0x78] sm:$0xff]
        %v6811 = vld [vmem:[#allocation5 + $0x80] sm:$0xff]
        %v6812 = vld [vmem:[#allocation5 + $0x88] sm:$0xff]
        %v6813 = vld [vmem:[#allocation5 + $0x90] sm:$0xff]
        %v6814 = vld [vmem:[#allocation5 + $0x98] sm:$0xff]
        %v6815 = vld [vmem:[#allocation5 + $0xa0] sm:$0xff]
        %v6816 = vld [vmem:[#allocation5 + $0xa8] sm:$0xff]
        %v6817 = vld [vmem:[#allocation5 + $0xb0] sm:$0xff]
        %v6818 = vld [vmem:[#allocation5 + $0xb8] sm:$0xff]
        %v6819 = vld [vmem:[#allocation5 + $0xc0] sm:$0xff]
        %v6820 = vld [vmem:[#allocation5 + $0xc8] sm:$0xff]
        %v6821 = vld [vmem:[#allocation5 + $0xd0] sm:$0xff]
        %v6822 = vld [vmem:[#allocation5 + $0xd8] sm:$0xff]
        %v6823 = vld [vmem:[#allocation5 + $0xe0] sm:$0xff]
        %v6824 = vld [vmem:[#allocation5 + $0xe8] sm:$0xff]
        %v6825 = vld [vmem:[#allocation5 + $0xf0] sm:$0xff]
        %v6826 = vld [vmem:[#allocation5 + $0xf8] sm:$0xff]
        %v6827 = vld [vmem:[#allocation5 + $0x100] sm:$0xff]
        %v6828 = vld [vmem:[#allocation5 + $0x108] sm:$0xff]
        %v6829 = vld [vmem:[#allocation5 + $0x110] sm:$0xff]
        %v6830 = vld [vmem:[#allocation5 + $0x118] sm:$0xff]
        %s6831 = scalar_lea.vmem %s3, 1024
        %v6832 = vld [vmem:[%s6831] sm:$0xff]
        %v6833 = vld [vmem:[%s6831 + $0x8] sm:$0xff]
        %v6834 = vld [vmem:[%s6831 + $0x10] sm:$0xff]
        %v6835 = vld [vmem:[%s6831 + $0x18] sm:$0xff]
        %v6836 = vld [vmem:[%s6831 + $0x20] sm:$0xff]
        %v6837 = vld [vmem:[%s6831 + $0x28] sm:$0xff]
        %v6838 = vld [vmem:[%s6831 + $0x30] sm:$0xff]
        %v6839 = vld [vmem:[%s6831 + $0x38] sm:$0xff]
        %v6840 = vld [vmem:[%s6831 + $0x40] sm:$0xff]
        %v6841 = vld [vmem:[%s6831 + $0x48] sm:$0xff]
        %v6842 = vld [vmem:[%s6831 + $0x50] sm:$0xff]
        %v6843 = vld [vmem:[%s6831 + $0x58] sm:$0xff]
        %v6844 = vld [vmem:[%s6831 + $0x60] sm:$0xff]
        %v6845 = vld [vmem:[%s6831 + $0x68] sm:$0xff]
        %v6846 = vld [vmem:[%s6831 + $0x70] sm:$0xff]
        %v6847 = vld [vmem:[%s6831 + $0x78] sm:$0xff]
        %v6848 = vld [vmem:[%s6831 + $0x80] sm:$0xff]
        %v6849 = vld [vmem:[%s6831 + $0x88] sm:$0xff]
        %v6850 = vld [vmem:[%s6831 + $0x90] sm:$0xff]
        %v6851 = vld [vmem:[%s6831 + $0x98] sm:$0xff]
        %v6852 = vld [vmem:[%s6831 + $0xa0] sm:$0xff]
        %v6853 = vld [vmem:[%s6831 + $0xa8] sm:$0xff]
        %v6854 = vld [vmem:[%s6831 + $0xb0] sm:$0xff]
        %v6855 = vld [vmem:[%s6831 + $0xb8] sm:$0xff]
        %v6856 = vld [vmem:[%s6831 + $0xc0] sm:$0xff]
        %v6857 = vld [vmem:[%s6831 + $0xc8] sm:$0xff]
        %v6858 = vld [vmem:[%s6831 + $0xd0] sm:$0xff]
        %v6859 = vld [vmem:[%s6831 + $0xd8] sm:$0xff]
        %v6860 = vld [vmem:[%s6831 + $0xe0] sm:$0xff]
        %v6861 = vld [vmem:[%s6831 + $0xe8] sm:$0xff]
        %v6862 = vld [vmem:[%s6831 + $0xf0] sm:$0xff]
        %v6863 = vld [vmem:[%s6831 + $0xf8] sm:$0xff]
        %6864 = vmatprep.subr.mxu0 %v6833
        %6865 = vmatpush1.msra.mxu0 %v6832
        %6866 = vmatprep.subr.mxu0 %v6835
        %6867 = vmatpush1.msra.mxu0 %v6834
        %6868 = vmatprep.subr.mxu0 %v6837
        %6869 = vmatpush1.msra.mxu0 %v6836
        %6870 = vmatprep.subr.mxu0 %v6839
        %6871 = vmatpush1.msra.mxu0 %v6838
        %6872 = vmatprep.subr.mxu0 %v6841
        %6873 = vmatpush1.msra.mxu0 %v6840
        %6874 = vmatprep.subr.mxu0 %v6843
        %6875 = vmatpush1.msra.mxu0 %v6842
        %6876 = vmatprep.subr.mxu0 %v6845
        %6877 = vmatpush1.msra.mxu0 %v6844
        %6878 = vmatprep.subr.mxu0 %v6847
        %6879 = vmatpush1.msra.mxu0 %v6846
        %6880 = vmatprep.subr.mxu0 %v6849
        %6881 = vmatpush1.msra.mxu0 %v6848
        %6882 = vmatprep.subr.mxu0 %v6851
        %6883 = vmatpush1.msra.mxu0 %v6850
        %6884 = vmatprep.subr.mxu0 %v6853
        %6885 = vmatpush1.msra.mxu0 %v6852
        %6886 = vmatprep.subr.mxu0 %v6855
        %6887 = vmatpush1.msra.mxu0 %v6854
        %6888 = vmatprep.subr.mxu0 %v6857
        %6889 = vmatpush1.msra.mxu0 %v6856
        %6890 = vmatprep.subr.mxu0 %v6859
        %6891 = vmatpush1.msra.mxu0 %v6858
        %6892 = vmatprep.subr.mxu0 %v6861
        %6893 = vmatpush1.msra.mxu0 %v6860
        %6894 = vmatprep.subr.mxu0 %v6863
        %6895 = vmatpush1.msra.mxu0 %v6862
        %6896 = vmatprep.subr.mxu0 0.0
        %6897 = vmatpush1.msra.mxu0 0.0
        %6898 = vmatprep.subr.mxu0 0.0
        %6899 = vmatpush1.msra.mxu0 0.0
        %6900 = vmatprep.subr.mxu0 0.0
        %6901 = vmatpush1.msra.mxu0 0.0
        %6902 = vmatprep.subr.mxu0 0.0
        %6903 = vmatpush1.msra.mxu0 0.0
        %6904 = vmatprep.subr.mxu0 0.0
        %6905 = vmatpush1.msra.mxu0 0.0
        %6906 = vmatprep.subr.mxu0 0.0
        %6907 = vmatpush1.msra.mxu0 0.0
        %6908 = vmatprep.subr.mxu0 0.0
        %6909 = vmatpush1.msra.mxu0 0.0
        %6910 = vmatprep.subr.mxu0 0.0
        %6911 = vmatpush1.msra.mxu0 0.0
        %6912 = vmatprep.subr.mxu0 0.0
        %6913 = vmatpush1.msra.mxu0 0.0
        %6914 = vmatprep.subr.mxu0 0.0
        %6915 = vmatpush1.msra.mxu0 0.0
        %6916 = vmatprep.subr.mxu0 0.0
        %6917 = vmatpush1.msra.mxu0 0.0
        %6918 = vmatprep.subr.mxu0 0.0
        %6919 = vmatpush1.msra.mxu0 0.0
        %6920 = vmatprep.subr.mxu0 0.0
        %6921 = vmatpush1.msra.mxu0 0.0
        %6922 = vmatprep.subr.mxu0 0.0
        %6923 = vmatpush1.msra.mxu0 0.0
        %6924 = vmatprep.subr.mxu0 0.0
        %6925 = vmatpush1.msra.mxu0 0.0
        %6926 = vmatprep.subr.mxu0 0.0
        %6927 = vmatpush1.msra.mxu0 0.0
        %6928 = vmatprep.mubr.f32.mxu0 0.0
        %6929 = vmatmul.mubr.f32.gmra.mrb[0].mxu0 %v6777
        %v6930 = vpop.f32.mrb[0].mxu0
        %v6931 = vadd.f32 0.0, %v6930
        %v6932 = vpop.f32.mrb[0].mxu0
        %v6933 = vadd.f32 0.0, %v6932
        %6934 = vmatprep.mubr.f32.mxu0 0.0
        %6935 = vmatmul.mubr.f32.gmra.mrb[0].mxu0 %v6778
        %v6936 = vpop.f32.mrb[0].mxu0
        %v6937 = vadd.f32 0.0, %v6936
        %v6938 = vpop.f32.mrb[0].mxu0
        %v6939 = vadd.f32 0.0, %v6938
        %6940 = vmatprep.mubr.f32.mxu0 0.0
        %6941 = vmatmul.mubr.f32.gmra.mrb[0].mxu0 %v6779
        %v6942 = vpop.f32.mrb[0].mxu0
        %v6943 = vadd.f32 0.0, %v6942
        %v6944 = vpop.f32.mrb[0].mxu0
        %v6945 = vadd.f32 0.0, %v6944
        %6946 = vmatprep.mubr.f32.mxu0 0.0
        %6947 = vmatmul.mubr.f32.gmra.mrb[0].mxu0 %v6780
        %v6948 = vpop.f32.mrb[0].mxu0
        %v6949 = vadd.f32 0.0, %v6948
        %v6950 = vpop.f32.mrb[0].mxu0
        %v6951 = vadd.f32 0.0, %v6950
        %6952 = vmatprep.mubr.f32.mxu0 0.0
        %6953 = vmatmul.mubr.f32.gmra.mrb[0].mxu0 %v6781
        %v6954 = vpop.f32.mrb[0].mxu0
        %v6955 = vadd.f32 0.0, %v6954
        %v6956 = vpop.f32.mrb[0].mxu0
        %v6957 = vadd.f32 0.0, %v6956
        %6958 = vmatprep.mubr.f32.mxu0 0.0
        %6959 = vmatmul.mubr.f32.gmra.mrb[0].mxu0 %v6782
        %v6960 = vpop.f32.mrb[0].mxu0
        %v6961 = vadd.f32 0.0, %v6960
        %v6962 = vpop.f32.mrb[0].mxu0
        %v6963 = vadd.f32 0.0, %v6962
        %6964 = vmatprep.mubr.f32.mxu0 0.0
        %6965 = vmatmul.mubr.f32.gmra.mrb[0].mxu0 %v6783
        %v6966 = vpop.f32.mrb[0].mxu0
        %v6967 = vadd.f32 0.0, %v6966
        %v6968 = vpop.f32.mrb[0].mxu0
        %v6969 = vadd.f32 0.0, %v6968
        %6970 = vmatprep.mubr.f32.mxu0 0.0
        %6971 = vmatmul.mubr.f32.gmra.mrb[0].mxu0 %v6784
        %v6972 = vpop.f32.mrb[0].mxu0
        %v6973 = vadd.f32 0.0, %v6972
        %v6974 = vpop.f32.mrb[0].mxu0
        %v6975 = vadd.f32 0.0, %v6974
        %6976 = vmatprep.mubr.f32.mxu0 0.0
        %6977 = vmatmul.mubr.f32.gmra.mrb[0].mxu0 %v6785
        %v6978 = vpop.f32.mrb[0].mxu0
        %v6979 = vadd.f32 0.0, %v6978
        %v6980 = vpop.f32.mrb[0].mxu0
        %v6981 = vadd.f32 0.0, %v6980
        %6982 = vmatprep.mubr.f32.mxu0 0.0
        %6983 = vmatmul.mubr.f32.gmra.mrb[0].mxu0 %v6786
        %v6984 = vpop.f32.mrb[0].mxu0
        %v6985 = vadd.f32 0.0, %v6984
        %v6986 = vpop.f32.mrb[0].mxu0
        %v6987 = vadd.f32 0.0, %v6986
        %6988 = vmatprep.mubr.f32.mxu0 0.0
        %6989 = vmatmul.mubr.f32.gmra.mrb[0].mxu0 %v6787
        %v6990 = vpop.f32.mrb[0].mxu0
        %v6991 = vadd.f32 0.0, %v6990
        %v6992 = vpop.f32.mrb[0].mxu0
        %v6993 = vadd.f32 0.0, %v6992
        %6994 = vmatprep.mubr.f32.mxu0 0.0
        %6995 = vmatmul.mubr.f32.gmra.mrb[0].mxu0 %v6788
        %v6996 = vpop.f32.mrb[0].mxu0
        %v6997 = vadd.f32 0.0, %v6996
        %v6998 = vpop.f32.mrb[0].mxu0
        %v6999 = vadd.f32 0.0, %v6998
        %7000 = vmatprep.mubr.f32.mxu0 0.0
        %7001 = vmatmul.mubr.f32.gmra.mrb[0].mxu0 %v6789
        %v7002 = vpop.f32.mrb[0].mxu0
        %v7003 = vadd.f32 0.0, %v7002
        %v7004 = vpop.f32.mrb[0].mxu0
        %v7005 = vadd.f32 0.0, %v7004
        %7006 = vmatprep.mubr.f32.mxu0 0.0
        %7007 = vmatmul.mubr.f32.gmra.mrb[0].mxu0 %v6790
        %v7008 = vpop.f32.mrb[0].mxu0
        %v7009 = vadd.f32 0.0, %v7008
        %v7010 = vpop.f32.mrb[0].mxu0
        %v7011 = vadd.f32 0.0, %v7010
        %7012 = vmatprep.mubr.f32.mxu0 0.0
        %7013 = vmatmul.mubr.f32.gmra.mrb[0].mxu0 %v6791
        %v7014 = vpop.f32.mrb[0].mxu0
        %v7015 = vadd.f32 0.0, %v7014
        %v7016 = vpop.f32.mrb[0].mxu0
        %v7017 = vadd.f32 0.0, %v7016
        %7018 = vmatprep.mubr.f32.mxu0 0.0
        %7019 = vmatmul.mubr.f32.gmra.mrb[0].mxu0 %v6792
        %v7020 = vpop.f32.mrb[0].mxu0
        %v7021 = vadd.f32 0.0, %v7020
        %v7022 = vpop.f32.mrb[0].mxu0
        %v7023 = vadd.f32 0.0, %v7022
        %7024 = vmatprep.mubr.f32.mxu0 0.0
        %7025 = vmatmul.mubr.f32.gmra.mrb[0].mxu0 %v6793
        %v7026 = vpop.f32.mrb[0].mxu0
        %v7027 = vadd.f32 0.0, %v7026
        %v7028 = vpop.f32.mrb[0].mxu0
        %v7029 = vadd.f32 0.0, %v7028
        %7030 = vmatprep.mubr.f32.mxu0 0.0
        %7031 = vmatmul.mubr.f32.gmra.mrb[0].mxu0 %v6794
        %v7032 = vpop.f32.mrb[0].mxu0
        %v7033 = vadd.f32 0.0, %v7032
        %v7034 = vpop.f32.mrb[0].mxu0
        %v7035 = vadd.f32 0.0, %v7034
        %7036 = vdwg.mxu0
        %v7037 = vadd.f32 %v6795, %v6931
        %v7038 = vadd.f32 %v6796, %v6933
        %v7039 = vadd.f32 %v6797, %v6937
        %v7040 = vadd.f32 %v6798, %v6939
        %v7041 = vadd.f32 %v6799, %v6943
        %v7042 = vadd.f32 %v6800, %v6945
        %v7043 = vadd.f32 %v6801, %v6949
        %v7044 = vadd.f32 %v6802, %v6951
        %v7045 = vadd.f32 %v6803, %v6955
        %v7046 = vadd.f32 %v6804, %v6957
        %v7047 = vadd.f32 %v6805, %v6961
        %v7048 = vadd.f32 %v6806, %v6963
        %v7049 = vadd.f32 %v6807, %v6967
        %v7050 = vadd.f32 %v6808, %v6969
        %v7051 = vadd.f32 %v6809, %v6973
        %v7052 = vadd.f32 %v6810, %v6975
        %v7053 = vadd.f32 %v6811, %v6979
        %v7054 = vadd.f32 %v6812, %v6981
        %v7055 = vadd.f32 %v6813, %v6985
        %v7056 = vadd.f32 %v6814, %v6987
        %v7057 = vadd.f32 %v6815, %v6991
        %v7058 = vadd.f32 %v6816, %v6993
        %v7059 = vadd.f32 %v6817, %v6997
        %v7060 = vadd.f32 %v6818, %v6999
        %v7061 = vadd.f32 %v6819, %v7003
        %v7062 = vadd.f32 %v6820, %v7005
        %v7063 = vadd.f32 %v6821, %v7009
        %v7064 = vadd.f32 %v6822, %v7011
        %v7065 = vadd.f32 %v6823, %v7015
        %v7066 = vadd.f32 %v6824, %v7017
        %v7067 = vadd.f32 %v6825, %v7021
        %v7068 = vadd.f32 %v6826, %v7023
        %v7069 = vadd.f32 %v6827, %v7027
        %v7070 = vadd.f32 %v6828, %v7029
        %v7071 = vadd.f32 %v6829, %v7033
        %v7072 = vadd.f32 %v6830, %v7035
        %7073 = vst [vmem:[#allocation5] sm:$0xff] %v7037
        %7074 = vst [vmem:[#allocation5 + $0x8] sm:$0xff] %v7038
        %7075 = vst [vmem:[#allocation5 + $0x10] sm:$0xff] %v7039
        %7076 = vst [vmem:[#allocation5 + $0x18] sm:$0xff] %v7040
        %7077 = vst [vmem:[#allocation5 + $0x20] sm:$0xff] %v7041
        %7078 = vst [vmem:[#allocation5 + $0x28] sm:$0xff] %v7042
        %7079 = vst [vmem:[#allocation5 + $0x30] sm:$0xff] %v7043
        %7080 = vst [vmem:[#allocation5 + $0x38] sm:$0xff] %v7044
        %7081 = vst [vmem:[#allocation5 + $0x40] sm:$0xff] %v7045
        %7082 = vst [vmem:[#allocation5 + $0x48] sm:$0xff] %v7046
        %7083 = vst [vmem:[#allocation5 + $0x50] sm:$0xff] %v7047
        %7084 = vst [vmem:[#allocation5 + $0x58] sm:$0xff] %v7048
        %7085 = vst [vmem:[#allocation5 + $0x60] sm:$0xff] %v7049
        %7086 = vst [vmem:[#allocation5 + $0x68] sm:$0xff] %v7050
        %7087 = vst [vmem:[#allocation5 + $0x70] sm:$0xff] %v7051
        %7088 = vst [vmem:[#allocation5 + $0x78] sm:$0xff] %v7052
        %7089 = vst [vmem:[#allocation5 + $0x80] sm:$0xff] %v7053
        %7090 = vst [vmem:[#allocation5 + $0x88] sm:$0xff] %v7054
        %7091 = vst [vmem:[#allocation5 + $0x90] sm:$0xff] %v7055
        %7092 = vst [vmem:[#allocation5 + $0x98] sm:$0xff] %v7056
        %7093 = vst [vmem:[#allocation5 + $0xa0] sm:$0xff] %v7057
        %7094 = vst [vmem:[#allocation5 + $0xa8] sm:$0xff] %v7058
        %7095 = vst [vmem:[#allocation5 + $0xb0] sm:$0xff] %v7059
        %7096 = vst [vmem:[#allocation5 + $0xb8] sm:$0xff] %v7060
        %7097 = vst [vmem:[#allocation5 + $0xc0] sm:$0xff] %v7061
        %7098 = vst [vmem:[#allocation5 + $0xc8] sm:$0xff] %v7062
        %7099 = vst [vmem:[#allocation5 + $0xd0] sm:$0xff] %v7063
        %7100 = vst [vmem:[#allocation5 + $0xd8] sm:$0xff] %v7064
        %7101 = vst [vmem:[#allocation5 + $0xe0] sm:$0xff] %v7065
        %7102 = vst [vmem:[#allocation5 + $0xe8] sm:$0xff] %v7066
        %7103 = vst [vmem:[#allocation5 + $0xf0] sm:$0xff] %v7067
        %7104 = vst [vmem:[#allocation5 + $0xf8] sm:$0xff] %v7068
        %7105 = vst [vmem:[#allocation5 + $0x100] sm:$0xff] %v7069
        %7106 = vst [vmem:[#allocation5 + $0x108] sm:$0xff] %v7070
        %7107 = vst [vmem:[#allocation5 + $0x110] sm:$0xff] %v7071
        %7108 = vst [vmem:[#allocation5 + $0x118] sm:$0xff] %v7072
        %v7109 = vld [vmem:[#allocation4 + $0xf] sm:$0xff]
        %v7110 = vld [vmem:[#allocation4 + $0x17] sm:$0xff]
        %v7111 = vld [vmem:[#allocation4 + $0x1f] sm:$0xff]
        %v7112 = vld [vmem:[#allocation4 + $0x27] sm:$0xff]
        %v7113 = vld [vmem:[#allocation4 + $0x2f] sm:$0xff]
        %v7114 = vld [vmem:[#allocation4 + $0x37] sm:$0xff]
        %v7115 = vld [vmem:[#allocation4 + $0x3f] sm:$0xff]
        %v7116 = vld [vmem:[#allocation4 + $0x47] sm:$0xff]
        %v7117 = vld [vmem:[#allocation4 + $0x4f] sm:$0xff]
        %v7118 = vld [vmem:[#allocation4 + $0x57] sm:$0xff]
        %v7119 = vld [vmem:[#allocation4 + $0x5f] sm:$0xff]
        %v7120 = vld [vmem:[#allocation4 + $0x67] sm:$0xff]
        %v7121 = vld [vmem:[#allocation4 + $0x6f] sm:$0xff]
        %v7122 = vld [vmem:[#allocation4 + $0x77] sm:$0xff]
        %v7123 = vld [vmem:[#allocation4 + $0x7f] sm:$0xff]
        %v7124 = vld [vmem:[#allocation4 + $0x87] sm:$0xff]
        %v7125 = vld [vmem:[#allocation4 + $0x8f] sm:$0xff]
        %v7126 = vld [vmem:[#allocation4 + $0x97] sm:$0xff]
        %v7127 = vld [vmem:[#allocation5] sm:$0xff]
        %v7128 = vld [vmem:[#allocation5 + $0x8] sm:$0xff]
        %v7129 = vld [vmem:[#allocation5 + $0x10] sm:$0xff]
        %v7130 = vld [vmem:[#allocation5 + $0x18] sm:$0xff]
        %v7131 = vld [vmem:[#allocation5 + $0x20] sm:$0xff]
        %v7132 = vld [vmem:[#allocation5 + $0x28] sm:$0xff]
        %v7133 = vld [vmem:[#allocation5 + $0x30] sm:$0xff]
        %v7134 = vld [vmem:[#allocation5 + $0x38] sm:$0xff]
        %v7135 = vld [vmem:[#allocation5 + $0x40] sm:$0xff]
        %v7136 = vld [vmem:[#allocation5 + $0x48] sm:$0xff]
        %v7137 = vld [vmem:[#allocation5 + $0x50] sm:$0xff]
        %v7138 = vld [vmem:[#allocation5 + $0x58] sm:$0xff]
        %v7139 = vld [vmem:[#allocation5 + $0x60] sm:$0xff]
        %v7140 = vld [vmem:[#allocation5 + $0x68] sm:$0xff]
        %v7141 = vld [vmem:[#allocation5 + $0x70] sm:$0xff]
        %v7142 = vld [vmem:[#allocation5 + $0x78] sm:$0xff]
        %v7143 = vld [vmem:[#allocation5 + $0x80] sm:$0xff]
        %v7144 = vld [vmem:[#allocation5 + $0x88] sm:$0xff]
        %v7145 = vld [vmem:[#allocation5 + $0x90] sm:$0xff]
        %v7146 = vld [vmem:[#allocation5 + $0x98] sm:$0xff]
        %v7147 = vld [vmem:[#allocation5 + $0xa0] sm:$0xff]
        %v7148 = vld [vmem:[#allocation5 + $0xa8] sm:$0xff]
        %v7149 = vld [vmem:[#allocation5 + $0xb0] sm:$0xff]
        %v7150 = vld [vmem:[#allocation5 + $0xb8] sm:$0xff]
        %v7151 = vld [vmem:[#allocation5 + $0xc0] sm:$0xff]
        %v7152 = vld [vmem:[#allocation5 + $0xc8] sm:$0xff]
        %v7153 = vld [vmem:[#allocation5 + $0xd0] sm:$0xff]
        %v7154 = vld [vmem:[#allocation5 + $0xd8] sm:$0xff]
        %v7155 = vld [vmem:[#allocation5 + $0xe0] sm:$0xff]
        %v7156 = vld [vmem:[#allocation5 + $0xe8] sm:$0xff]
        %v7157 = vld [vmem:[#allocation5 + $0xf0] sm:$0xff]
        %v7158 = vld [vmem:[#allocation5 + $0xf8] sm:$0xff]
        %v7159 = vld [vmem:[#allocation5 + $0x100] sm:$0xff]
        %v7160 = vld [vmem:[#allocation5 + $0x108] sm:$0xff]
        %v7161 = vld [vmem:[#allocation5 + $0x110] sm:$0xff]
        %v7162 = vld [vmem:[#allocation5 + $0x118] sm:$0xff]
        %s7163 = scalar_lea.vmem %s3, 1280
        %v7164 = vld [vmem:[%s7163] sm:$0xff]
        %v7165 = vld [vmem:[%s7163 + $0x8] sm:$0xff]
        %v7166 = vld [vmem:[%s7163 + $0x10] sm:$0xff]
        %v7167 = vld [vmem:[%s7163 + $0x18] sm:$0xff]
        %v7168 = vld [vmem:[%s7163 + $0x20] sm:$0xff]
        %v7169 = vld [vmem:[%s7163 + $0x28] sm:$0xff]
        %v7170 = vld [vmem:[%s7163 + $0x30] sm:$0xff]
        %v7171 = vld [vmem:[%s7163 + $0x38] sm:$0xff]
        %v7172 = vld [vmem:[%s7163 + $0x40] sm:$0xff]
        %v7173 = vld [vmem:[%s7163 + $0x48] sm:$0xff]
        %v7174 = vld [vmem:[%s7163 + $0x50] sm:$0xff]
        %v7175 = vld [vmem:[%s7163 + $0x58] sm:$0xff]
        %v7176 = vld [vmem:[%s7163 + $0x60] sm:$0xff]
        %v7177 = vld [vmem:[%s7163 + $0x68] sm:$0xff]
        %v7178 = vld [vmem:[%s7163 + $0x70] sm:$0xff]
        %v7179 = vld [vmem:[%s7163 + $0x78] sm:$0xff]
        %v7180 = vld [vmem:[%s7163 + $0x80] sm:$0xff]
        %v7181 = vld [vmem:[%s7163 + $0x88] sm:$0xff]
        %v7182 = vld [vmem:[%s7163 + $0x90] sm:$0xff]
        %v7183 = vld [vmem:[%s7163 + $0x98] sm:$0xff]
        %v7184 = vld [vmem:[%s7163 + $0xa0] sm:$0xff]
        %v7185 = vld [vmem:[%s7163 + $0xa8] sm:$0xff]
        %v7186 = vld [vmem:[%s7163 + $0xb0] sm:$0xff]
        %v7187 = vld [vmem:[%s7163 + $0xb8] sm:$0xff]
        %v7188 = vld [vmem:[%s7163 + $0xc0] sm:$0xff]
        %v7189 = vld [vmem:[%s7163 + $0xc8] sm:$0xff]
        %v7190 = vld [vmem:[%s7163 + $0xd0] sm:$0xff]
        %v7191 = vld [vmem:[%s7163 + $0xd8] sm:$0xff]
        %v7192 = vld [vmem:[%s7163 + $0xe0] sm:$0xff]
        %v7193 = vld [vmem:[%s7163 + $0xe8] sm:$0xff]
        %v7194 = vld [vmem:[%s7163 + $0xf0] sm:$0xff]
        %v7195 = vld [vmem:[%s7163 + $0xf8] sm:$0xff]
        %7196 = vmatprep.subr.mxu0 %v7165
        %7197 = vmatpush1.msra.mxu0 %v7164
        %7198 = vmatprep.subr.mxu0 %v7167
        %7199 = vmatpush1.msra.mxu0 %v7166
        %7200 = vmatprep.subr.mxu0 %v7169
        %7201 = vmatpush1.msra.mxu0 %v7168
        %7202 = vmatprep.subr.mxu0 %v7171
        %7203 = vmatpush1.msra.mxu0 %v7170
        %7204 = vmatprep.subr.mxu0 %v7173
        %7205 = vmatpush1.msra.mxu0 %v7172
        %7206 = vmatprep.subr.mxu0 %v7175
        %7207 = vmatpush1.msra.mxu0 %v7174
        %7208 = vmatprep.subr.mxu0 %v7177
        %7209 = vmatpush1.msra.mxu0 %v7176
        %7210 = vmatprep.subr.mxu0 %v7179
        %7211 = vmatpush1.msra.mxu0 %v7178
        %7212 = vmatprep.subr.mxu0 %v7181
        %7213 = vmatpush1.msra.mxu0 %v7180
        %7214 = vmatprep.subr.mxu0 %v7183
        %7215 = vmatpush1.msra.mxu0 %v7182
        %7216 = vmatprep.subr.mxu0 %v7185
        %7217 = vmatpush1.msra.mxu0 %v7184
        %7218 = vmatprep.subr.mxu0 %v7187
        %7219 = vmatpush1.msra.mxu0 %v7186
        %7220 = vmatprep.subr.mxu0 %v7189
        %7221 = vmatpush1.msra.mxu0 %v7188
        %7222 = vmatprep.subr.mxu0 %v7191
        %7223 = vmatpush1.msra.mxu0 %v7190
        %7224 = vmatprep.subr.mxu0 %v7193
        %7225 = vmatpush1.msra.mxu0 %v7192
        %7226 = vmatprep.subr.mxu0 %v7195
        %7227 = vmatpush1.msra.mxu0 %v7194
        %7228 = vmatprep.subr.mxu0 0.0
        %7229 = vmatpush1.msra.mxu0 0.0
        %7230 = vmatprep.subr.mxu0 0.0
        %7231 = vmatpush1.msra.mxu0 0.0
        %7232 = vmatprep.subr.mxu0 0.0
        %7233 = vmatpush1.msra.mxu0 0.0
        %7234 = vmatprep.subr.mxu0 0.0
        %7235 = vmatpush1.msra.mxu0 0.0
        %7236 = vmatprep.subr.mxu0 0.0
        %7237 = vmatpush1.msra.mxu0 0.0
        %7238 = vmatprep.subr.mxu0 0.0
        %7239 = vmatpush1.msra.mxu0 0.0
        %7240 = vmatprep.subr.mxu0 0.0
        %7241 = vmatpush1.msra.mxu0 0.0
        %7242 = vmatprep.subr.mxu0 0.0
        %7243 = vmatpush1.msra.mxu0 0.0
        %7244 = vmatprep.subr.mxu0 0.0
        %7245 = vmatpush1.msra.mxu0 0.0
        %7246 = vmatprep.subr.mxu0 0.0
        %7247 = vmatpush1.msra.mxu0 0.0
        %7248 = vmatprep.subr.mxu0 0.0
        %7249 = vmatpush1.msra.mxu0 0.0
        %7250 = vmatprep.subr.mxu0 0.0
        %7251 = vmatpush1.msra.mxu0 0.0
        %7252 = vmatprep.subr.mxu0 0.0
        %7253 = vmatpush1.msra.mxu0 0.0
        %7254 = vmatprep.subr.mxu0 0.0
        %7255 = vmatpush1.msra.mxu0 0.0
        %7256 = vmatprep.subr.mxu0 0.0
        %7257 = vmatpush1.msra.mxu0 0.0
        %7258 = vmatprep.subr.mxu0 0.0
        %7259 = vmatpush1.msra.mxu0 0.0
        %7260 = vmatprep.mubr.f32.mxu0 0.0
        %7261 = vmatmul.mubr.f32.gmra.mrb[0].mxu0 %v7109
        %v7262 = vpop.f32.mrb[0].mxu0
        %v7263 = vadd.f32 0.0, %v7262
        %v7264 = vpop.f32.mrb[0].mxu0
        %v7265 = vadd.f32 0.0, %v7264
        %7266 = vmatprep.mubr.f32.mxu0 0.0
        %7267 = vmatmul.mubr.f32.gmra.mrb[0].mxu0 %v7110
        %v7268 = vpop.f32.mrb[0].mxu0
        %v7269 = vadd.f32 0.0, %v7268
        %v7270 = vpop.f32.mrb[0].mxu0
        %v7271 = vadd.f32 0.0, %v7270
        %7272 = vmatprep.mubr.f32.mxu0 0.0
        %7273 = vmatmul.mubr.f32.gmra.mrb[0].mxu0 %v7111
        %v7274 = vpop.f32.mrb[0].mxu0
        %v7275 = vadd.f32 0.0, %v7274
        %v7276 = vpop.f32.mrb[0].mxu0
        %v7277 = vadd.f32 0.0, %v7276
        %7278 = vmatprep.mubr.f32.mxu0 0.0
        %7279 = vmatmul.mubr.f32.gmra.mrb[0].mxu0 %v7112
        %v7280 = vpop.f32.mrb[0].mxu0
        %v7281 = vadd.f32 0.0, %v7280
        %v7282 = vpop.f32.mrb[0].mxu0
        %v7283 = vadd.f32 0.0, %v7282
        %7284 = vmatprep.mubr.f32.mxu0 0.0
        %7285 = vmatmul.mubr.f32.gmra.mrb[0].mxu0 %v7113
        %v7286 = vpop.f32.mrb[0].mxu0
        %v7287 = vadd.f32 0.0, %v7286
        %v7288 = vpop.f32.mrb[0].mxu0
        %v7289 = vadd.f32 0.0, %v7288
        %7290 = vmatprep.mubr.f32.mxu0 0.0
        %7291 = vmatmul.mubr.f32.gmra.mrb[0].mxu0 %v7114
        %v7292 = vpop.f32.mrb[0].mxu0
        %v7293 = vadd.f32 0.0, %v7292
        %v7294 = vpop.f32.mrb[0].mxu0
        %v7295 = vadd.f32 0.0, %v7294
        %7296 = vmatprep.mubr.f32.mxu0 0.0
        %7297 = vmatmul.mubr.f32.gmra.mrb[0].mxu0 %v7115
        %v7298 = vpop.f32.mrb[0].mxu0
        %v7299 = vadd.f32 0.0, %v7298
        %v7300 = vpop.f32.mrb[0].mxu0
        %v7301 = vadd.f32 0.0, %v7300
        %7302 = vmatprep.mubr.f32.mxu0 0.0
        %7303 = vmatmul.mubr.f32.gmra.mrb[0].mxu0 %v7116
        %v7304 = vpop.f32.mrb[0].mxu0
        %v7305 = vadd.f32 0.0, %v7304
        %v7306 = vpop.f32.mrb[0].mxu0
        %v7307 = vadd.f32 0.0, %v7306
        %7308 = vmatprep.mubr.f32.mxu0 0.0
        %7309 = vmatmul.mubr.f32.gmra.mrb[0].mxu0 %v7117
        %v7310 = vpop.f32.mrb[0].mxu0
        %v7311 = vadd.f32 0.0, %v7310
        %v7312 = vpop.f32.mrb[0].mxu0
        %v7313 = vadd.f32 0.0, %v7312
        %7314 = vmatprep.mubr.f32.mxu0 0.0
        %7315 = vmatmul.mubr.f32.gmra.mrb[0].mxu0 %v7118
        %v7316 = vpop.f32.mrb[0].mxu0
        %v7317 = vadd.f32 0.0, %v7316
        %v7318 = vpop.f32.mrb[0].mxu0
        %v7319 = vadd.f32 0.0, %v7318
        %7320 = vmatprep.mubr.f32.mxu0 0.0
        %7321 = vmatmul.mubr.f32.gmra.mrb[0].mxu0 %v7119
        %v7322 = vpop.f32.mrb[0].mxu0
        %v7323 = vadd.f32 0.0, %v7322
        %v7324 = vpop.f32.mrb[0].mxu0
        %v7325 = vadd.f32 0.0, %v7324
        %7326 = vmatprep.mubr.f32.mxu0 0.0
        %7327 = vmatmul.mubr.f32.gmra.mrb[0].mxu0 %v7120
        %v7328 = vpop.f32.mrb[0].mxu0
        %v7329 = vadd.f32 0.0, %v7328
        %v7330 = vpop.f32.mrb[0].mxu0
        %v7331 = vadd.f32 0.0, %v7330
        %7332 = vmatprep.mubr.f32.mxu0 0.0
        %7333 = vmatmul.mubr.f32.gmra.mrb[0].mxu0 %v7121
        %v7334 = vpop.f32.mrb[0].mxu0
        %v7335 = vadd.f32 0.0, %v7334
        %v7336 = vpop.f32.mrb[0].mxu0
        %v7337 = vadd.f32 0.0, %v7336
        %7338 = vmatprep.mubr.f32.mxu0 0.0
        %7339 = vmatmul.mubr.f32.gmra.mrb[0].mxu0 %v7122
        %v7340 = vpop.f32.mrb[0].mxu0
        %v7341 = vadd.f32 0.0, %v7340
        %v7342 = vpop.f32.mrb[0].mxu0
        %v7343 = vadd.f32 0.0, %v7342
        %7344 = vmatprep.mubr.f32.mxu0 0.0
        %7345 = vmatmul.mubr.f32.gmra.mrb[0].mxu0 %v7123
        %v7346 = vpop.f32.mrb[0].mxu0
        %v7347 = vadd.f32 0.0, %v7346
        %v7348 = vpop.f32.mrb[0].mxu0
        %v7349 = vadd.f32 0.0, %v7348
        %7350 = vmatprep.mubr.f32.mxu0 0.0
        %7351 = vmatmul.mubr.f32.gmra.mrb[0].mxu0 %v7124
        %v7352 = vpop.f32.mrb[0].mxu0
        %v7353 = vadd.f32 0.0, %v7352
        %v7354 = vpop.f32.mrb[0].mxu0
        %v7355 = vadd.f32 0.0, %v7354
        %7356 = vmatprep.mubr.f32.mxu0 0.0
        %7357 = vmatmul.mubr.f32.gmra.mrb[0].mxu0 %v7125
        %v7358 = vpop.f32.mrb[0].mxu0
        %v7359 = vadd.f32 0.0, %v7358
        %v7360 = vpop.f32.mrb[0].mxu0
        %v7361 = vadd.f32 0.0, %v7360
        %7362 = vmatprep.mubr.f32.mxu0 0.0
        %7363 = vmatmul.mubr.f32.gmra.mrb[0].mxu0 %v7126
        %v7364 = vpop.f32.mrb[0].mxu0
        %v7365 = vadd.f32 0.0, %v7364
        %v7366 = vpop.f32.mrb[0].mxu0
        %v7367 = vadd.f32 0.0, %v7366
        %7368 = vdwg.mxu0
        %v7369 = vadd.f32 %v7127, %v7263
        %v7370 = vadd.f32 %v7128, %v7265
        %v7371 = vadd.f32 %v7129, %v7269
        %v7372 = vadd.f32 %v7130, %v7271
        %v7373 = vadd.f32 %v7131, %v7275
        %v7374 = vadd.f32 %v7132, %v7277
        %v7375 = vadd.f32 %v7133, %v7281
        %v7376 = vadd.f32 %v7134, %v7283
        %v7377 = vadd.f32 %v7135, %v7287
        %v7378 = vadd.f32 %v7136, %v7289
        %v7379 = vadd.f32 %v7137, %v7293
        %v7380 = vadd.f32 %v7138, %v7295
        %v7381 = vadd.f32 %v7139, %v7299
        %v7382 = vadd.f32 %v7140, %v7301
        %v7383 = vadd.f32 %v7141, %v7305
        %v7384 = vadd.f32 %v7142, %v7307
        %v7385 = vadd.f32 %v7143, %v7311
        %v7386 = vadd.f32 %v7144, %v7313
        %v7387 = vadd.f32 %v7145, %v7317
        %v7388 = vadd.f32 %v7146, %v7319
        %v7389 = vadd.f32 %v7147, %v7323
        %v7390 = vadd.f32 %v7148, %v7325
        %v7391 = vadd.f32 %v7149, %v7329
        %v7392 = vadd.f32 %v7150, %v7331
        %v7393 = vadd.f32 %v7151, %v7335
        %v7394 = vadd.f32 %v7152, %v7337
        %v7395 = vadd.f32 %v7153, %v7341
        %v7396 = vadd.f32 %v7154, %v7343
        %v7397 = vadd.f32 %v7155, %v7347
        %v7398 = vadd.f32 %v7156, %v7349
        %v7399 = vadd.f32 %v7157, %v7353
        %v7400 = vadd.f32 %v7158, %v7355
        %v7401 = vadd.f32 %v7159, %v7359
        %v7402 = vadd.f32 %v7160, %v7361
        %v7403 = vadd.f32 %v7161, %v7365
        %v7404 = vadd.f32 %v7162, %v7367
        %7405 = vst [vmem:[#allocation5] sm:$0xff] %v7369
        %7406 = vst [vmem:[#allocation5 + $0x8] sm:$0xff] %v7370
        %7407 = vst [vmem:[#allocation5 + $0x10] sm:$0xff] %v7371
        %7408 = vst [vmem:[#allocation5 + $0x18] sm:$0xff] %v7372
        %7409 = vst [vmem:[#allocation5 + $0x20] sm:$0xff] %v7373
        %7410 = vst [vmem:[#allocation5 + $0x28] sm:$0xff] %v7374
        %7411 = vst [vmem:[#allocation5 + $0x30] sm:$0xff] %v7375
        %7412 = vst [vmem:[#allocation5 + $0x38] sm:$0xff] %v7376
        %7413 = vst [vmem:[#allocation5 + $0x40] sm:$0xff] %v7377
        %7414 = vst [vmem:[#allocation5 + $0x48] sm:$0xff] %v7378
        %7415 = vst [vmem:[#allocation5 + $0x50] sm:$0xff] %v7379
        %7416 = vst [vmem:[#allocation5 + $0x58] sm:$0xff] %v7380
        %7417 = vst [vmem:[#allocation5 + $0x60] sm:$0xff] %v7381
        %7418 = vst [vmem:[#allocation5 + $0x68] sm:$0xff] %v7382
        %7419 = vst [vmem:[#allocation5 + $0x70] sm:$0xff] %v7383
        %7420 = vst [vmem:[#allocation5 + $0x78] sm:$0xff] %v7384
        %7421 = vst [vmem:[#allocation5 + $0x80] sm:$0xff] %v7385
        %7422 = vst [vmem:[#allocation5 + $0x88] sm:$0xff] %v7386
        %7423 = vst [vmem:[#allocation5 + $0x90] sm:$0xff] %v7387
        %7424 = vst [vmem:[#allocation5 + $0x98] sm:$0xff] %v7388
        %7425 = vst [vmem:[#allocation5 + $0xa0] sm:$0xff] %v7389
        %7426 = vst [vmem:[#allocation5 + $0xa8] sm:$0xff] %v7390
        %7427 = vst [vmem:[#allocation5 + $0xb0] sm:$0xff] %v7391
        %7428 = vst [vmem:[#allocation5 + $0xb8] sm:$0xff] %v7392
        %7429 = vst [vmem:[#allocation5 + $0xc0] sm:$0xff] %v7393
        %7430 = vst [vmem:[#allocation5 + $0xc8] sm:$0xff] %v7394
        %7431 = vst [vmem:[#allocation5 + $0xd0] sm:$0xff] %v7395
        %7432 = vst [vmem:[#allocation5 + $0xd8] sm:$0xff] %v7396
        %7433 = vst [vmem:[#allocation5 + $0xe0] sm:$0xff] %v7397
        %7434 = vst [vmem:[#allocation5 + $0xe8] sm:$0xff] %v7398
        %7435 = vst [vmem:[#allocation5 + $0xf0] sm:$0xff] %v7399
        %7436 = vst [vmem:[#allocation5 + $0xf8] sm:$0xff] %v7400
        %7437 = vst [vmem:[#allocation5 + $0x100] sm:$0xff] %v7401
        %7438 = vst [vmem:[#allocation5 + $0x108] sm:$0xff] %v7402
        %7439 = vst [vmem:[#allocation5 + $0x110] sm:$0xff] %v7403
        %7440 = vst [vmem:[#allocation5 + $0x118] sm:$0xff] %v7404
        %v7441 = vld [vmem:[#allocation4 + $0x1a] sm:$0xff]
        %v7442 = vld [vmem:[#allocation4 + $0x22] sm:$0xff]
        %v7443 = vld [vmem:[#allocation4 + $0x2a] sm:$0xff]
        %v7444 = vld [vmem:[#allocation4 + $0x32] sm:$0xff]
        %v7445 = vld [vmem:[#allocation4 + $0x3a] sm:$0xff]
        %v7446 = vld [vmem:[#allocation4 + $0x42] sm:$0xff]
        %v7447 = vld [vmem:[#allocation4 + $0x4a] sm:$0xff]
        %v7448 = vld [vmem:[#allocation4 + $0x52] sm:$0xff]
        %v7449 = vld [vmem:[#allocation4 + $0x5a] sm:$0xff]
        %v7450 = vld [vmem:[#allocation4 + $0x62] sm:$0xff]
        %v7451 = vld [vmem:[#allocation4 + $0x6a] sm:$0xff]
        %v7452 = vld [vmem:[#allocation4 + $0x72] sm:$0xff]
        %v7453 = vld [vmem:[#allocation4 + $0x7a] sm:$0xff]
        %v7454 = vld [vmem:[#allocation4 + $0x82] sm:$0xff]
        %v7455 = vld [vmem:[#allocation4 + $0x8a] sm:$0xff]
        %v7456 = vld [vmem:[#allocation4 + $0x92] sm:$0xff]
        %v7457 = vld [vmem:[#allocation4 + $0x9a] sm:$0xff]
        %v7458 = vld [vmem:[#allocation4 + $0xa2] sm:$0xff]
        %v7459 = vld [vmem:[#allocation5] sm:$0xff]
        %v7460 = vld [vmem:[#allocation5 + $0x8] sm:$0xff]
        %v7461 = vld [vmem:[#allocation5 + $0x10] sm:$0xff]
        %v7462 = vld [vmem:[#allocation5 + $0x18] sm:$0xff]
        %v7463 = vld [vmem:[#allocation5 + $0x20] sm:$0xff]
        %v7464 = vld [vmem:[#allocation5 + $0x28] sm:$0xff]
        %v7465 = vld [vmem:[#allocation5 + $0x30] sm:$0xff]
        %v7466 = vld [vmem:[#allocation5 + $0x38] sm:$0xff]
        %v7467 = vld [vmem:[#allocation5 + $0x40] sm:$0xff]
        %v7468 = vld [vmem:[#allocation5 + $0x48] sm:$0xff]
        %v7469 = vld [vmem:[#allocation5 + $0x50] sm:$0xff]
        %v7470 = vld [vmem:[#allocation5 + $0x58] sm:$0xff]
        %v7471 = vld [vmem:[#allocation5 + $0x60] sm:$0xff]
        %v7472 = vld [vmem:[#allocation5 + $0x68] sm:$0xff]
        %v7473 = vld [vmem:[#allocation5 + $0x70] sm:$0xff]
        %v7474 = vld [vmem:[#allocation5 + $0x78] sm:$0xff]
        %v7475 = vld [vmem:[#allocation5 + $0x80] sm:$0xff]
        %v7476 = vld [vmem:[#allocation5 + $0x88] sm:$0xff]
        %v7477 = vld [vmem:[#allocation5 + $0x90] sm:$0xff]
        %v7478 = vld [vmem:[#allocation5 + $0x98] sm:$0xff]
        %v7479 = vld [vmem:[#allocation5 + $0xa0] sm:$0xff]
        %v7480 = vld [vmem:[#allocation5 + $0xa8] sm:$0xff]
        %v7481 = vld [vmem:[#allocation5 + $0xb0] sm:$0xff]
        %v7482 = vld [vmem:[#allocation5 + $0xb8] sm:$0xff]
        %v7483 = vld [vmem:[#allocation5 + $0xc0] sm:$0xff]
        %v7484 = vld [vmem:[#allocation5 + $0xc8] sm:$0xff]
        %v7485 = vld [vmem:[#allocation5 + $0xd0] sm:$0xff]
        %v7486 = vld [vmem:[#allocation5 + $0xd8] sm:$0xff]
        %v7487 = vld [vmem:[#allocation5 + $0xe0] sm:$0xff]
        %v7488 = vld [vmem:[#allocation5 + $0xe8] sm:$0xff]
        %v7489 = vld [vmem:[#allocation5 + $0xf0] sm:$0xff]
        %v7490 = vld [vmem:[#allocation5 + $0xf8] sm:$0xff]
        %v7491 = vld [vmem:[#allocation5 + $0x100] sm:$0xff]
        %v7492 = vld [vmem:[#allocation5 + $0x108] sm:$0xff]
        %v7493 = vld [vmem:[#allocation5 + $0x110] sm:$0xff]
        %v7494 = vld [vmem:[#allocation5 + $0x118] sm:$0xff]
        %s7495 = scalar_lea.vmem %s3, 1536
        %v7496 = vld [vmem:[%s7495] sm:$0xff]
        %v7497 = vld [vmem:[%s7495 + $0x8] sm:$0xff]
        %v7498 = vld [vmem:[%s7495 + $0x10] sm:$0xff]
        %v7499 = vld [vmem:[%s7495 + $0x18] sm:$0xff]
        %v7500 = vld [vmem:[%s7495 + $0x20] sm:$0xff]
        %v7501 = vld [vmem:[%s7495 + $0x28] sm:$0xff]
        %v7502 = vld [vmem:[%s7495 + $0x30] sm:$0xff]
        %v7503 = vld [vmem:[%s7495 + $0x38] sm:$0xff]
        %v7504 = vld [vmem:[%s7495 + $0x40] sm:$0xff]
        %v7505 = vld [vmem:[%s7495 + $0x48] sm:$0xff]
        %v7506 = vld [vmem:[%s7495 + $0x50] sm:$0xff]
        %v7507 = vld [vmem:[%s7495 + $0x58] sm:$0xff]
        %v7508 = vld [vmem:[%s7495 + $0x60] sm:$0xff]
        %v7509 = vld [vmem:[%s7495 + $0x68] sm:$0xff]
        %v7510 = vld [vmem:[%s7495 + $0x70] sm:$0xff]
        %v7511 = vld [vmem:[%s7495 + $0x78] sm:$0xff]
        %v7512 = vld [vmem:[%s7495 + $0x80] sm:$0xff]
        %v7513 = vld [vmem:[%s7495 + $0x88] sm:$0xff]
        %v7514 = vld [vmem:[%s7495 + $0x90] sm:$0xff]
        %v7515 = vld [vmem:[%s7495 + $0x98] sm:$0xff]
        %v7516 = vld [vmem:[%s7495 + $0xa0] sm:$0xff]
        %v7517 = vld [vmem:[%s7495 + $0xa8] sm:$0xff]
        %v7518 = vld [vmem:[%s7495 + $0xb0] sm:$0xff]
        %v7519 = vld [vmem:[%s7495 + $0xb8] sm:$0xff]
        %v7520 = vld [vmem:[%s7495 + $0xc0] sm:$0xff]
        %v7521 = vld [vmem:[%s7495 + $0xc8] sm:$0xff]
        %v7522 = vld [vmem:[%s7495 + $0xd0] sm:$0xff]
        %v7523 = vld [vmem:[%s7495 + $0xd8] sm:$0xff]
        %v7524 = vld [vmem:[%s7495 + $0xe0] sm:$0xff]
        %v7525 = vld [vmem:[%s7495 + $0xe8] sm:$0xff]
        %v7526 = vld [vmem:[%s7495 + $0xf0] sm:$0xff]
        %v7527 = vld [vmem:[%s7495 + $0xf8] sm:$0xff]
        %7528 = vmatprep.subr.mxu0 %v7497
        %7529 = vmatpush1.msra.mxu0 %v7496
        %7530 = vmatprep.subr.mxu0 %v7499
        %7531 = vmatpush1.msra.mxu0 %v7498
        %7532 = vmatprep.subr.mxu0 %v7501
        %7533 = vmatpush1.msra.mxu0 %v7500
        %7534 = vmatprep.subr.mxu0 %v7503
        %7535 = vmatpush1.msra.mxu0 %v7502
        %7536 = vmatprep.subr.mxu0 %v7505
        %7537 = vmatpush1.msra.mxu0 %v7504
        %7538 = vmatprep.subr.mxu0 %v7507
        %7539 = vmatpush1.msra.mxu0 %v7506
        %7540 = vmatprep.subr.mxu0 %v7509
        %7541 = vmatpush1.msra.mxu0 %v7508
        %7542 = vmatprep.subr.mxu0 %v7511
        %7543 = vmatpush1.msra.mxu0 %v7510
        %7544 = vmatprep.subr.mxu0 %v7513
        %7545 = vmatpush1.msra.mxu0 %v7512
        %7546 = vmatprep.subr.mxu0 %v7515
        %7547 = vmatpush1.msra.mxu0 %v7514
        %7548 = vmatprep.subr.mxu0 %v7517
        %7549 = vmatpush1.msra.mxu0 %v7516
        %7550 = vmatprep.subr.mxu0 %v7519
        %7551 = vmatpush1.msra.mxu0 %v7518
        %7552 = vmatprep.subr.mxu0 %v7521
        %7553 = vmatpush1.msra.mxu0 %v7520
        %7554 = vmatprep.subr.mxu0 %v7523
        %7555 = vmatpush1.msra.mxu0 %v7522
        %7556 = vmatprep.subr.mxu0 %v7525
        %7557 = vmatpush1.msra.mxu0 %v7524
        %7558 = vmatprep.subr.mxu0 %v7527
        %7559 = vmatpush1.msra.mxu0 %v7526
        %7560 = vmatprep.subr.mxu0 0.0
        %7561 = vmatpush1.msra.mxu0 0.0
        %7562 = vmatprep.subr.mxu0 0.0
        %7563 = vmatpush1.msra.mxu0 0.0
        %7564 = vmatprep.subr.mxu0 0.0
        %7565 = vmatpush1.msra.mxu0 0.0
        %7566 = vmatprep.subr.mxu0 0.0
        %7567 = vmatpush1.msra.mxu0 0.0
        %7568 = vmatprep.subr.mxu0 0.0
        %7569 = vmatpush1.msra.mxu0 0.0
        %7570 = vmatprep.subr.mxu0 0.0
        %7571 = vmatpush1.msra.mxu0 0.0
        %7572 = vmatprep.subr.mxu0 0.0
        %7573 = vmatpush1.msra.mxu0 0.0
        %7574 = vmatprep.subr.mxu0 0.0
        %7575 = vmatpush1.msra.mxu0 0.0
        %7576 = vmatprep.subr.mxu0 0.0
        %7577 = vmatpush1.msra.mxu0 0.0
        %7578 = vmatprep.subr.mxu0 0.0
        %7579 = vmatpush1.msra.mxu0 0.0
        %7580 = vmatprep.subr.mxu0 0.0
        %7581 = vmatpush1.msra.mxu0 0.0
        %7582 = vmatprep.subr.mxu0 0.0
        %7583 = vmatpush1.msra.mxu0 0.0
        %7584 = vmatprep.subr.mxu0 0.0
        %7585 = vmatpush1.msra.mxu0 0.0
        %7586 = vmatprep.subr.mxu0 0.0
        %7587 = vmatpush1.msra.mxu0 0.0
        %7588 = vmatprep.subr.mxu0 0.0
        %7589 = vmatpush1.msra.mxu0 0.0
        %7590 = vmatprep.subr.mxu0 0.0
        %7591 = vmatpush1.msra.mxu0 0.0
        %7592 = vmatprep.mubr.f32.mxu0 0.0
        %7593 = vmatmul.mubr.f32.gmra.mrb[0].mxu0 %v7441
        %v7594 = vpop.f32.mrb[0].mxu0
        %v7595 = vadd.f32 0.0, %v7594
        %v7596 = vpop.f32.mrb[0].mxu0
        %v7597 = vadd.f32 0.0, %v7596
        %7598 = vmatprep.mubr.f32.mxu0 0.0
        %7599 = vmatmul.mubr.f32.gmra.mrb[0].mxu0 %v7442
        %v7600 = vpop.f32.mrb[0].mxu0
        %v7601 = vadd.f32 0.0, %v7600
        %v7602 = vpop.f32.mrb[0].mxu0
        %v7603 = vadd.f32 0.0, %v7602
        %7604 = vmatprep.mubr.f32.mxu0 0.0
        %7605 = vmatmul.mubr.f32.gmra.mrb[0].mxu0 %v7443
        %v7606 = vpop.f32.mrb[0].mxu0
        %v7607 = vadd.f32 0.0, %v7606
        %v7608 = vpop.f32.mrb[0].mxu0
        %v7609 = vadd.f32 0.0, %v7608
        %7610 = vmatprep.mubr.f32.mxu0 0.0
        %7611 = vmatmul.mubr.f32.gmra.mrb[0].mxu0 %v7444
        %v7612 = vpop.f32.mrb[0].mxu0
        %v7613 = vadd.f32 0.0, %v7612
        %v7614 = vpop.f32.mrb[0].mxu0
        %v7615 = vadd.f32 0.0, %v7614
        %7616 = vmatprep.mubr.f32.mxu0 0.0
        %7617 = vmatmul.mubr.f32.gmra.mrb[0].mxu0 %v7445
        %v7618 = vpop.f32.mrb[0].mxu0
        %v7619 = vadd.f32 0.0, %v7618
        %v7620 = vpop.f32.mrb[0].mxu0
        %v7621 = vadd.f32 0.0, %v7620
        %7622 = vmatprep.mubr.f32.mxu0 0.0
        %7623 = vmatmul.mubr.f32.gmra.mrb[0].mxu0 %v7446
        %v7624 = vpop.f32.mrb[0].mxu0
        %v7625 = vadd.f32 0.0, %v7624
        %v7626 = vpop.f32.mrb[0].mxu0
        %v7627 = vadd.f32 0.0, %v7626
        %7628 = vmatprep.mubr.f32.mxu0 0.0
        %7629 = vmatmul.mubr.f32.gmra.mrb[0].mxu0 %v7447
        %v7630 = vpop.f32.mrb[0].mxu0
        %v7631 = vadd.f32 0.0, %v7630
        %v7632 = vpop.f32.mrb[0].mxu0
        %v7633 = vadd.f32 0.0, %v7632
        %7634 = vmatprep.mubr.f32.mxu0 0.0
        %7635 = vmatmul.mubr.f32.gmra.mrb[0].mxu0 %v7448
        %v7636 = vpop.f32.mrb[0].mxu0
        %v7637 = vadd.f32 0.0, %v7636
        %v7638 = vpop.f32.mrb[0].mxu0
        %v7639 = vadd.f32 0.0, %v7638
        %7640 = vmatprep.mubr.f32.mxu0 0.0
        %7641 = vmatmul.mubr.f32.gmra.mrb[0].mxu0 %v7449
        %v7642 = vpop.f32.mrb[0].mxu0
        %v7643 = vadd.f32 0.0, %v7642
        %v7644 = vpop.f32.mrb[0].mxu0
        %v7645 = vadd.f32 0.0, %v7644
        %7646 = vmatprep.mubr.f32.mxu0 0.0
        %7647 = vmatmul.mubr.f32.gmra.mrb[0].mxu0 %v7450
        %v7648 = vpop.f32.mrb[0].mxu0
        %v7649 = vadd.f32 0.0, %v7648
        %v7650 = vpop.f32.mrb[0].mxu0
        %v7651 = vadd.f32 0.0, %v7650
        %7652 = vmatprep.mubr.f32.mxu0 0.0
        %7653 = vmatmul.mubr.f32.gmra.mrb[0].mxu0 %v7451
        %v7654 = vpop.f32.mrb[0].mxu0
        %v7655 = vadd.f32 0.0, %v7654
        %v7656 = vpop.f32.mrb[0].mxu0
        %v7657 = vadd.f32 0.0, %v7656
        %7658 = vmatprep.mubr.f32.mxu0 0.0
        %7659 = vmatmul.mubr.f32.gmra.mrb[0].mxu0 %v7452
        %v7660 = vpop.f32.mrb[0].mxu0
        %v7661 = vadd.f32 0.0, %v7660
        %v7662 = vpop.f32.mrb[0].mxu0
        %v7663 = vadd.f32 0.0, %v7662
        %7664 = vmatprep.mubr.f32.mxu0 0.0
        %7665 = vmatmul.mubr.f32.gmra.mrb[0].mxu0 %v7453
        %v7666 = vpop.f32.mrb[0].mxu0
        %v7667 = vadd.f32 0.0, %v7666
        %v7668 = vpop.f32.mrb[0].mxu0
        %v7669 = vadd.f32 0.0, %v7668
        %7670 = vmatprep.mubr.f32.mxu0 0.0
        %7671 = vmatmul.mubr.f32.gmra.mrb[0].mxu0 %v7454
        %v7672 = vpop.f32.mrb[0].mxu0
        %v7673 = vadd.f32 0.0, %v7672
        %v7674 = vpop.f32.mrb[0].mxu0
        %v7675 = vadd.f32 0.0, %v7674
        %7676 = vmatprep.mubr.f32.mxu0 0.0
        %7677 = vmatmul.mubr.f32.gmra.mrb[0].mxu0 %v7455
        %v7678 = vpop.f32.mrb[0].mxu0
        %v7679 = vadd.f32 0.0, %v7678
        %v7680 = vpop.f32.mrb[0].mxu0
        %v7681 = vadd.f32 0.0, %v7680
        %7682 = vmatprep.mubr.f32.mxu0 0.0
        %7683 = vmatmul.mubr.f32.gmra.mrb[0].mxu0 %v7456
        %v7684 = vpop.f32.mrb[0].mxu0
        %v7685 = vadd.f32 0.0, %v7684
        %v7686 = vpop.f32.mrb[0].mxu0
        %v7687 = vadd.f32 0.0, %v7686
        %7688 = vmatprep.mubr.f32.mxu0 0.0
        %7689 = vmatmul.mubr.f32.gmra.mrb[0].mxu0 %v7457
        %v7690 = vpop.f32.mrb[0].mxu0
        %v7691 = vadd.f32 0.0, %v7690
        %v7692 = vpop.f32.mrb[0].mxu0
        %v7693 = vadd.f32 0.0, %v7692
        %7694 = vmatprep.mubr.f32.mxu0 0.0
        %7695 = vmatmul.mubr.f32.gmra.mrb[0].mxu0 %v7458
        %v7696 = vpop.f32.mrb[0].mxu0
        %v7697 = vadd.f32 0.0, %v7696
        %v7698 = vpop.f32.mrb[0].mxu0
        %v7699 = vadd.f32 0.0, %v7698
        %7700 = vdwg.mxu0
        %v7701 = vadd.f32 %v7459, %v7595
        %v7702 = vadd.f32 %v7460, %v7597
        %v7703 = vadd.f32 %v7461, %v7601
        %v7704 = vadd.f32 %v7462, %v7603
        %v7705 = vadd.f32 %v7463, %v7607
        %v7706 = vadd.f32 %v7464, %v7609
        %v7707 = vadd.f32 %v7465, %v7613
        %v7708 = vadd.f32 %v7466, %v7615
        %v7709 = vadd.f32 %v7467, %v7619
        %v7710 = vadd.f32 %v7468, %v7621
        %v7711 = vadd.f32 %v7469, %v7625
        %v7712 = vadd.f32 %v7470, %v7627
        %v7713 = vadd.f32 %v7471, %v7631
        %v7714 = vadd.f32 %v7472, %v7633
        %v7715 = vadd.f32 %v7473, %v7637
        %v7716 = vadd.f32 %v7474, %v7639
        %v7717 = vadd.f32 %v7475, %v7643
        %v7718 = vadd.f32 %v7476, %v7645
        %v7719 = vadd.f32 %v7477, %v7649
        %v7720 = vadd.f32 %v7478, %v7651
        %v7721 = vadd.f32 %v7479, %v7655
        %v7722 = vadd.f32 %v7480, %v7657
        %v7723 = vadd.f32 %v7481, %v7661
        %v7724 = vadd.f32 %v7482, %v7663
        %v7725 = vadd.f32 %v7483, %v7667
        %v7726 = vadd.f32 %v7484, %v7669
        %v7727 = vadd.f32 %v7485, %v7673
        %v7728 = vadd.f32 %v7486, %v7675
        %v7729 = vadd.f32 %v7487, %v7679
        %v7730 = vadd.f32 %v7488, %v7681
        %v7731 = vadd.f32 %v7489, %v7685
        %v7732 = vadd.f32 %v7490, %v7687
        %v7733 = vadd.f32 %v7491, %v7691
        %v7734 = vadd.f32 %v7492, %v7693
        %v7735 = vadd.f32 %v7493, %v7697
        %v7736 = vadd.f32 %v7494, %v7699
        %7737 = vst [vmem:[#allocation5] sm:$0xff] %v7701
        %7738 = vst [vmem:[#allocation5 + $0x8] sm:$0xff] %v7702
        %7739 = vst [vmem:[#allocation5 + $0x10] sm:$0xff] %v7703
        %7740 = vst [vmem:[#allocation5 + $0x18] sm:$0xff] %v7704
        %7741 = vst [vmem:[#allocation5 + $0x20] sm:$0xff] %v7705
        %7742 = vst [vmem:[#allocation5 + $0x28] sm:$0xff] %v7706
        %7743 = vst [vmem:[#allocation5 + $0x30] sm:$0xff] %v7707
        %7744 = vst [vmem:[#allocation5 + $0x38] sm:$0xff] %v7708
        %7745 = vst [vmem:[#allocation5 + $0x40] sm:$0xff] %v7709
        %7746 = vst [vmem:[#allocation5 + $0x48] sm:$0xff] %v7710
        %7747 = vst [vmem:[#allocation5 + $0x50] sm:$0xff] %v7711
        %7748 = vst [vmem:[#allocation5 + $0x58] sm:$0xff] %v7712
        %7749 = vst [vmem:[#allocation5 + $0x60] sm:$0xff] %v7713
        %7750 = vst [vmem:[#allocation5 + $0x68] sm:$0xff] %v7714
        %7751 = vst [vmem:[#allocation5 + $0x70] sm:$0xff] %v7715
        %7752 = vst [vmem:[#allocation5 + $0x78] sm:$0xff] %v7716
        %7753 = vst [vmem:[#allocation5 + $0x80] sm:$0xff] %v7717
        %7754 = vst [vmem:[#allocation5 + $0x88] sm:$0xff] %v7718
        %7755 = vst [vmem:[#allocation5 + $0x90] sm:$0xff] %v7719
        %7756 = vst [vmem:[#allocation5 + $0x98] sm:$0xff] %v7720
        %7757 = vst [vmem:[#allocation5 + $0xa0] sm:$0xff] %v7721
        %7758 = vst [vmem:[#allocation5 + $0xa8] sm:$0xff] %v7722
        %7759 = vst [vmem:[#allocation5 + $0xb0] sm:$0xff] %v7723
        %7760 = vst [vmem:[#allocation5 + $0xb8] sm:$0xff] %v7724
        %7761 = vst [vmem:[#allocation5 + $0xc0] sm:$0xff] %v7725
        %7762 = vst [vmem:[#allocation5 + $0xc8] sm:$0xff] %v7726
        %7763 = vst [vmem:[#allocation5 + $0xd0] sm:$0xff] %v7727
        %7764 = vst [vmem:[#allocation5 + $0xd8] sm:$0xff] %v7728
        %7765 = vst [vmem:[#allocation5 + $0xe0] sm:$0xff] %v7729
        %7766 = vst [vmem:[#allocation5 + $0xe8] sm:$0xff] %v7730
        %7767 = vst [vmem:[#allocation5 + $0xf0] sm:$0xff] %v7731
        %7768 = vst [vmem:[#allocation5 + $0xf8] sm:$0xff] %v7732
        %7769 = vst [vmem:[#allocation5 + $0x100] sm:$0xff] %v7733
        %7770 = vst [vmem:[#allocation5 + $0x108] sm:$0xff] %v7734
        %7771 = vst [vmem:[#allocation5 + $0x110] sm:$0xff] %v7735
        %7772 = vst [vmem:[#allocation5 + $0x118] sm:$0xff] %v7736
        %v7773 = vld [vmem:[#allocation4 + $0x1b] sm:$0xff]
        %v7774 = vld [vmem:[#allocation4 + $0x23] sm:$0xff]
        %v7775 = vld [vmem:[#allocation4 + $0x2b] sm:$0xff]
        %v7776 = vld [vmem:[#allocation4 + $0x33] sm:$0xff]
        %v7777 = vld [vmem:[#allocation4 + $0x3b] sm:$0xff]
        %v7778 = vld [vmem:[#allocation4 + $0x43] sm:$0xff]
        %v7779 = vld [vmem:[#allocation4 + $0x4b] sm:$0xff]
        %v7780 = vld [vmem:[#allocation4 + $0x53] sm:$0xff]
        %v7781 = vld [vmem:[#allocation4 + $0x5b] sm:$0xff]
        %v7782 = vld [vmem:[#allocation4 + $0x63] sm:$0xff]
        %v7783 = vld [vmem:[#allocation4 + $0x6b] sm:$0xff]
        %v7784 = vld [vmem:[#allocation4 + $0x73] sm:$0xff]
        %v7785 = vld [vmem:[#allocation4 + $0x7b] sm:$0xff]
        %v7786 = vld [vmem:[#allocation4 + $0x83] sm:$0xff]
        %v7787 = vld [vmem:[#allocation4 + $0x8b] sm:$0xff]
        %v7788 = vld [vmem:[#allocation4 + $0x93] sm:$0xff]
        %v7789 = vld [vmem:[#allocation4 + $0x9b] sm:$0xff]
        %v7790 = vld [vmem:[#allocation4 + $0xa3] sm:$0xff]
        %v7791 = vld [vmem:[#allocation5] sm:$0xff]
        %v7792 = vld [vmem:[#allocation5 + $0x8] sm:$0xff]
        %v7793 = vld [vmem:[#allocation5 + $0x10] sm:$0xff]
        %v7794 = vld [vmem:[#allocation5 + $0x18] sm:$0xff]
        %v7795 = vld [vmem:[#allocation5 + $0x20] sm:$0xff]
        %v7796 = vld [vmem:[#allocation5 + $0x28] sm:$0xff]
        %v7797 = vld [vmem:[#allocation5 + $0x30] sm:$0xff]
        %v7798 = vld [vmem:[#allocation5 + $0x38] sm:$0xff]
        %v7799 = vld [vmem:[#allocation5 + $0x40] sm:$0xff]
        %v7800 = vld [vmem:[#allocation5 + $0x48] sm:$0xff]
        %v7801 = vld [vmem:[#allocation5 + $0x50] sm:$0xff]
        %v7802 = vld [vmem:[#allocation5 + $0x58] sm:$0xff]
        %v7803 = vld [vmem:[#allocation5 + $0x60] sm:$0xff]
        %v7804 = vld [vmem:[#allocation5 + $0x68] sm:$0xff]
        %v7805 = vld [vmem:[#allocation5 + $0x70] sm:$0xff]
        %v7806 = vld [vmem:[#allocation5 + $0x78] sm:$0xff]
        %v7807 = vld [vmem:[#allocation5 + $0x80] sm:$0xff]
        %v7808 = vld [vmem:[#allocation5 + $0x88] sm:$0xff]
        %v7809 = vld [vmem:[#allocation5 + $0x90] sm:$0xff]
        %v7810 = vld [vmem:[#allocation5 + $0x98] sm:$0xff]
        %v7811 = vld [vmem:[#allocation5 + $0xa0] sm:$0xff]
        %v7812 = vld [vmem:[#allocation5 + $0xa8] sm:$0xff]
        %v7813 = vld [vmem:[#allocation5 + $0xb0] sm:$0xff]
        %v7814 = vld [vmem:[#allocation5 + $0xb8] sm:$0xff]
        %v7815 = vld [vmem:[#allocation5 + $0xc0] sm:$0xff]
        %v7816 = vld [vmem:[#allocation5 + $0xc8] sm:$0xff]
        %v7817 = vld [vmem:[#allocation5 + $0xd0] sm:$0xff]
        %v7818 = vld [vmem:[#allocation5 + $0xd8] sm:$0xff]
        %v7819 = vld [vmem:[#allocation5 + $0xe0] sm:$0xff]
        %v7820 = vld [vmem:[#allocation5 + $0xe8] sm:$0xff]
        %v7821 = vld [vmem:[#allocation5 + $0xf0] sm:$0xff]
        %v7822 = vld [vmem:[#allocation5 + $0xf8] sm:$0xff]
        %v7823 = vld [vmem:[#allocation5 + $0x100] sm:$0xff]
        %v7824 = vld [vmem:[#allocation5 + $0x108] sm:$0xff]
        %v7825 = vld [vmem:[#allocation5 + $0x110] sm:$0xff]
        %v7826 = vld [vmem:[#allocation5 + $0x118] sm:$0xff]
        %s7827 = scalar_lea.vmem %s3, 1792
        %v7828 = vld [vmem:[%s7827] sm:$0xff]
        %v7829 = vld [vmem:[%s7827 + $0x8] sm:$0xff]
        %v7830 = vld [vmem:[%s7827 + $0x10] sm:$0xff]
        %v7831 = vld [vmem:[%s7827 + $0x18] sm:$0xff]
        %v7832 = vld [vmem:[%s7827 + $0x20] sm:$0xff]
        %v7833 = vld [vmem:[%s7827 + $0x28] sm:$0xff]
        %v7834 = vld [vmem:[%s7827 + $0x30] sm:$0xff]
        %v7835 = vld [vmem:[%s7827 + $0x38] sm:$0xff]
        %v7836 = vld [vmem:[%s7827 + $0x40] sm:$0xff]
        %v7837 = vld [vmem:[%s7827 + $0x48] sm:$0xff]
        %v7838 = vld [vmem:[%s7827 + $0x50] sm:$0xff]
        %v7839 = vld [vmem:[%s7827 + $0x58] sm:$0xff]
        %v7840 = vld [vmem:[%s7827 + $0x60] sm:$0xff]
        %v7841 = vld [vmem:[%s7827 + $0x68] sm:$0xff]
        %v7842 = vld [vmem:[%s7827 + $0x70] sm:$0xff]
        %v7843 = vld [vmem:[%s7827 + $0x78] sm:$0xff]
        %v7844 = vld [vmem:[%s7827 + $0x80] sm:$0xff]
        %v7845 = vld [vmem:[%s7827 + $0x88] sm:$0xff]
        %v7846 = vld [vmem:[%s7827 + $0x90] sm:$0xff]
        %v7847 = vld [vmem:[%s7827 + $0x98] sm:$0xff]
        %v7848 = vld [vmem:[%s7827 + $0xa0] sm:$0xff]
        %v7849 = vld [vmem:[%s7827 + $0xa8] sm:$0xff]
        %v7850 = vld [vmem:[%s7827 + $0xb0] sm:$0xff]
        %v7851 = vld [vmem:[%s7827 + $0xb8] sm:$0xff]
        %v7852 = vld [vmem:[%s7827 + $0xc0] sm:$0xff]
        %v7853 = vld [vmem:[%s7827 + $0xc8] sm:$0xff]
        %v7854 = vld [vmem:[%s7827 + $0xd0] sm:$0xff]
        %v7855 = vld [vmem:[%s7827 + $0xd8] sm:$0xff]
        %v7856 = vld [vmem:[%s7827 + $0xe0] sm:$0xff]
        %v7857 = vld [vmem:[%s7827 + $0xe8] sm:$0xff]
        %v7858 = vld [vmem:[%s7827 + $0xf0] sm:$0xff]
        %v7859 = vld [vmem:[%s7827 + $0xf8] sm:$0xff]
        %7860 = vmatprep.subr.mxu0 %v7829
        %7861 = vmatpush1.msra.mxu0 %v7828
        %7862 = vmatprep.subr.mxu0 %v7831
        %7863 = vmatpush1.msra.mxu0 %v7830
        %7864 = vmatprep.subr.mxu0 %v7833
        %7865 = vmatpush1.msra.mxu0 %v7832
        %7866 = vmatprep.subr.mxu0 %v7835
        %7867 = vmatpush1.msra.mxu0 %v7834
        %7868 = vmatprep.subr.mxu0 %v7837
        %7869 = vmatpush1.msra.mxu0 %v7836
        %7870 = vmatprep.subr.mxu0 %v7839
        %7871 = vmatpush1.msra.mxu0 %v7838
        %7872 = vmatprep.subr.mxu0 %v7841
        %7873 = vmatpush1.msra.mxu0 %v7840
        %7874 = vmatprep.subr.mxu0 %v7843
        %7875 = vmatpush1.msra.mxu0 %v7842
        %7876 = vmatprep.subr.mxu0 %v7845
        %7877 = vmatpush1.msra.mxu0 %v7844
        %7878 = vmatprep.subr.mxu0 %v7847
        %7879 = vmatpush1.msra.mxu0 %v7846
        %7880 = vmatprep.subr.mxu0 %v7849
        %7881 = vmatpush1.msra.mxu0 %v7848
        %7882 = vmatprep.subr.mxu0 %v7851
        %7883 = vmatpush1.msra.mxu0 %v7850
        %7884 = vmatprep.subr.mxu0 %v7853
        %7885 = vmatpush1.msra.mxu0 %v7852
        %7886 = vmatprep.subr.mxu0 %v7855
        %7887 = vmatpush1.msra.mxu0 %v7854
        %7888 = vmatprep.subr.mxu0 %v7857
        %7889 = vmatpush1.msra.mxu0 %v7856
        %7890 = vmatprep.subr.mxu0 %v7859
        %7891 = vmatpush1.msra.mxu0 %v7858
        %7892 = vmatprep.subr.mxu0 0.0
        %7893 = vmatpush1.msra.mxu0 0.0
        %7894 = vmatprep.subr.mxu0 0.0
        %7895 = vmatpush1.msra.mxu0 0.0
        %7896 = vmatprep.subr.mxu0 0.0
        %7897 = vmatpush1.msra.mxu0 0.0
        %7898 = vmatprep.subr.mxu0 0.0
        %7899 = vmatpush1.msra.mxu0 0.0
        %7900 = vmatprep.subr.mxu0 0.0
        %7901 = vmatpush1.msra.mxu0 0.0
        %7902 = vmatprep.subr.mxu0 0.0
        %7903 = vmatpush1.msra.mxu0 0.0
        %7904 = vmatprep.subr.mxu0 0.0
        %7905 = vmatpush1.msra.mxu0 0.0
        %7906 = vmatprep.subr.mxu0 0.0
        %7907 = vmatpush1.msra.mxu0 0.0
        %7908 = vmatprep.subr.mxu0 0.0
        %7909 = vmatpush1.msra.mxu0 0.0
        %7910 = vmatprep.subr.mxu0 0.0
        %7911 = vmatpush1.msra.mxu0 0.0
        %7912 = vmatprep.subr.mxu0 0.0
        %7913 = vmatpush1.msra.mxu0 0.0
        %7914 = vmatprep.subr.mxu0 0.0
        %7915 = vmatpush1.msra.mxu0 0.0
        %7916 = vmatprep.subr.mxu0 0.0
        %7917 = vmatpush1.msra.mxu0 0.0
        %7918 = vmatprep.subr.mxu0 0.0
        %7919 = vmatpush1.msra.mxu0 0.0
        %7920 = vmatprep.subr.mxu0 0.0
        %7921 = vmatpush1.msra.mxu0 0.0
        %7922 = vmatprep.subr.mxu0 0.0
        %7923 = vmatpush1.msra.mxu0 0.0
        %7924 = vmatprep.mubr.f32.mxu0 0.0
        %7925 = vmatmul.mubr.f32.gmra.mrb[0].mxu0 %v7773
        %v7926 = vpop.f32.mrb[0].mxu0
        %v7927 = vadd.f32 0.0, %v7926
        %v7928 = vpop.f32.mrb[0].mxu0
        %v7929 = vadd.f32 0.0, %v7928
        %7930 = vmatprep.mubr.f32.mxu0 0.0
        %7931 = vmatmul.mubr.f32.gmra.mrb[0].mxu0 %v7774
        %v7932 = vpop.f32.mrb[0].mxu0
        %v7933 = vadd.f32 0.0, %v7932
        %v7934 = vpop.f32.mrb[0].mxu0
        %v7935 = vadd.f32 0.0, %v7934
        %7936 = vmatprep.mubr.f32.mxu0 0.0
        %7937 = vmatmul.mubr.f32.gmra.mrb[0].mxu0 %v7775
        %v7938 = vpop.f32.mrb[0].mxu0
        %v7939 = vadd.f32 0.0, %v7938
        %v7940 = vpop.f32.mrb[0].mxu0
        %v7941 = vadd.f32 0.0, %v7940
        %7942 = vmatprep.mubr.f32.mxu0 0.0
        %7943 = vmatmul.mubr.f32.gmra.mrb[0].mxu0 %v7776
        %v7944 = vpop.f32.mrb[0].mxu0
        %v7945 = vadd.f32 0.0, %v7944
        %v7946 = vpop.f32.mrb[0].mxu0
        %v7947 = vadd.f32 0.0, %v7946
        %7948 = vmatprep.mubr.f32.mxu0 0.0
        %7949 = vmatmul.mubr.f32.gmra.mrb[0].mxu0 %v7777
        %v7950 = vpop.f32.mrb[0].mxu0
        %v7951 = vadd.f32 0.0, %v7950
        %v7952 = vpop.f32.mrb[0].mxu0
        %v7953 = vadd.f32 0.0, %v7952
        %7954 = vmatprep.mubr.f32.mxu0 0.0
        %7955 = vmatmul.mubr.f32.gmra.mrb[0].mxu0 %v7778
        %v7956 = vpop.f32.mrb[0].mxu0
        %v7957 = vadd.f32 0.0, %v7956
        %v7958 = vpop.f32.mrb[0].mxu0
        %v7959 = vadd.f32 0.0, %v7958
        %7960 = vmatprep.mubr.f32.mxu0 0.0
        %7961 = vmatmul.mubr.f32.gmra.mrb[0].mxu0 %v7779
        %v7962 = vpop.f32.mrb[0].mxu0
        %v7963 = vadd.f32 0.0, %v7962
        %v7964 = vpop.f32.mrb[0].mxu0
        %v7965 = vadd.f32 0.0, %v7964
        %7966 = vmatprep.mubr.f32.mxu0 0.0
        %7967 = vmatmul.mubr.f32.gmra.mrb[0].mxu0 %v7780
        %v7968 = vpop.f32.mrb[0].mxu0
        %v7969 = vadd.f32 0.0, %v7968
        %v7970 = vpop.f32.mrb[0].mxu0
        %v7971 = vadd.f32 0.0, %v7970
        %7972 = vmatprep.mubr.f32.mxu0 0.0
        %7973 = vmatmul.mubr.f32.gmra.mrb[0].mxu0 %v7781
        %v7974 = vpop.f32.mrb[0].mxu0
        %v7975 = vadd.f32 0.0, %v7974
        %v7976 = vpop.f32.mrb[0].mxu0
        %v7977 = vadd.f32 0.0, %v7976
        %7978 = vmatprep.mubr.f32.mxu0 0.0
        %7979 = vmatmul.mubr.f32.gmra.mrb[0].mxu0 %v7782
        %v7980 = vpop.f32.mrb[0].mxu0
        %v7981 = vadd.f32 0.0, %v7980
        %v7982 = vpop.f32.mrb[0].mxu0
        %v7983 = vadd.f32 0.0, %v7982
        %7984 = vmatprep.mubr.f32.mxu0 0.0
        %7985 = vmatmul.mubr.f32.gmra.mrb[0].mxu0 %v7783
        %v7986 = vpop.f32.mrb[0].mxu0
        %v7987 = vadd.f32 0.0, %v7986
        %v7988 = vpop.f32.mrb[0].mxu0
        %v7989 = vadd.f32 0.0, %v7988
        %7990 = vmatprep.mubr.f32.mxu0 0.0
        %7991 = vmatmul.mubr.f32.gmra.mrb[0].mxu0 %v7784
        %v7992 = vpop.f32.mrb[0].mxu0
        %v7993 = vadd.f32 0.0, %v7992
        %v7994 = vpop.f32.mrb[0].mxu0
        %v7995 = vadd.f32 0.0, %v7994
        %7996 = vmatprep.mubr.f32.mxu0 0.0
        %7997 = vmatmul.mubr.f32.gmra.mrb[0].mxu0 %v7785
        %v7998 = vpop.f32.mrb[0].mxu0
        %v7999 = vadd.f32 0.0, %v7998
        %v8000 = vpop.f32.mrb[0].mxu0
        %v8001 = vadd.f32 0.0, %v8000
        %8002 = vmatprep.mubr.f32.mxu0 0.0
        %8003 = vmatmul.mubr.f32.gmra.mrb[0].mxu0 %v7786
        %v8004 = vpop.f32.mrb[0].mxu0
        %v8005 = vadd.f32 0.0, %v8004
        %v8006 = vpop.f32.mrb[0].mxu0
        %v8007 = vadd.f32 0.0, %v8006
        %8008 = vmatprep.mubr.f32.mxu0 0.0
        %8009 = vmatmul.mubr.f32.gmra.mrb[0].mxu0 %v7787
        %v8010 = vpop.f32.mrb[0].mxu0
        %v8011 = vadd.f32 0.0, %v8010
        %v8012 = vpop.f32.mrb[0].mxu0
        %v8013 = vadd.f32 0.0, %v8012
        %8014 = vmatprep.mubr.f32.mxu0 0.0
        %8015 = vmatmul.mubr.f32.gmra.mrb[0].mxu0 %v7788
        %v8016 = vpop.f32.mrb[0].mxu0
        %v8017 = vadd.f32 0.0, %v8016
        %v8018 = vpop.f32.mrb[0].mxu0
        %v8019 = vadd.f32 0.0, %v8018
        %8020 = vmatprep.mubr.f32.mxu0 0.0
        %8021 = vmatmul.mubr.f32.gmra.mrb[0].mxu0 %v7789
        %v8022 = vpop.f32.mrb[0].mxu0
        %v8023 = vadd.f32 0.0, %v8022
        %v8024 = vpop.f32.mrb[0].mxu0
        %v8025 = vadd.f32 0.0, %v8024
        %8026 = vmatprep.mubr.f32.mxu0 0.0
        %8027 = vmatmul.mubr.f32.gmra.mrb[0].mxu0 %v7790
        %v8028 = vpop.f32.mrb[0].mxu0
        %v8029 = vadd.f32 0.0, %v8028
        %v8030 = vpop.f32.mrb[0].mxu0
        %v8031 = vadd.f32 0.0, %v8030
        %8032 = vdwg.mxu0
        %v8033 = vadd.f32 %v7791, %v7927
        %v8034 = vadd.f32 %v7792, %v7929
        %v8035 = vadd.f32 %v7793, %v7933
        %v8036 = vadd.f32 %v7794, %v7935
        %v8037 = vadd.f32 %v7795, %v7939
        %v8038 = vadd.f32 %v7796, %v7941
        %v8039 = vadd.f32 %v7797, %v7945
        %v8040 = vadd.f32 %v7798, %v7947
        %v8041 = vadd.f32 %v7799, %v7951
        %v8042 = vadd.f32 %v7800, %v7953
        %v8043 = vadd.f32 %v7801, %v7957
        %v8044 = vadd.f32 %v7802, %v7959
        %v8045 = vadd.f32 %v7803, %v7963
        %v8046 = vadd.f32 %v7804, %v7965
        %v8047 = vadd.f32 %v7805, %v7969
        %v8048 = vadd.f32 %v7806, %v7971
        %v8049 = vadd.f32 %v7807, %v7975
        %v8050 = vadd.f32 %v7808, %v7977
        %v8051 = vadd.f32 %v7809, %v7981
        %v8052 = vadd.f32 %v7810, %v7983
        %v8053 = vadd.f32 %v7811, %v7987
        %v8054 = vadd.f32 %v7812, %v7989
        %v8055 = vadd.f32 %v7813, %v7993
        %v8056 = vadd.f32 %v7814, %v7995
        %v8057 = vadd.f32 %v7815, %v7999
        %v8058 = vadd.f32 %v7816, %v8001
        %v8059 = vadd.f32 %v7817, %v8005
        %v8060 = vadd.f32 %v7818, %v8007
        %v8061 = vadd.f32 %v7819, %v8011
        %v8062 = vadd.f32 %v7820, %v8013
        %v8063 = vadd.f32 %v7821, %v8017
        %v8064 = vadd.f32 %v7822, %v8019
        %v8065 = vadd.f32 %v7823, %v8023
        %v8066 = vadd.f32 %v7824, %v8025
        %v8067 = vadd.f32 %v7825, %v8029
        %v8068 = vadd.f32 %v7826, %v8031
        %8069 = vst [vmem:[#allocation5] sm:$0xff] %v8033
        %8070 = vst [vmem:[#allocation5 + $0x8] sm:$0xff] %v8034
        %8071 = vst [vmem:[#allocation5 + $0x10] sm:$0xff] %v8035
        %8072 = vst [vmem:[#allocation5 + $0x18] sm:$0xff] %v8036
        %8073 = vst [vmem:[#allocation5 + $0x20] sm:$0xff] %v8037
        %8074 = vst [vmem:[#allocation5 + $0x28] sm:$0xff] %v8038
        %8075 = vst [vmem:[#allocation5 + $0x30] sm:$0xff] %v8039
        %8076 = vst [vmem:[#allocation5 + $0x38] sm:$0xff] %v8040
        %8077 = vst [vmem:[#allocation5 + $0x40] sm:$0xff] %v8041
        %8078 = vst [vmem:[#allocation5 + $0x48] sm:$0xff] %v8042
        %8079 = vst [vmem:[#allocation5 + $0x50] sm:$0xff] %v8043
        %8080 = vst [vmem:[#allocation5 + $0x58] sm:$0xff] %v8044
        %8081 = vst [vmem:[#allocation5 + $0x60] sm:$0xff] %v8045
        %8082 = vst [vmem:[#allocation5 + $0x68] sm:$0xff] %v8046
        %8083 = vst [vmem:[#allocation5 + $0x70] sm:$0xff] %v8047
        %8084 = vst [vmem:[#allocation5 + $0x78] sm:$0xff] %v8048
        %8085 = vst [vmem:[#allocation5 + $0x80] sm:$0xff] %v8049
        %8086 = vst [vmem:[#allocation5 + $0x88] sm:$0xff] %v8050
        %8087 = vst [vmem:[#allocation5 + $0x90] sm:$0xff] %v8051
        %8088 = vst [vmem:[#allocation5 + $0x98] sm:$0xff] %v8052
        %8089 = vst [vmem:[#allocation5 + $0xa0] sm:$0xff] %v8053
        %8090 = vst [vmem:[#allocation5 + $0xa8] sm:$0xff] %v8054
        %8091 = vst [vmem:[#allocation5 + $0xb0] sm:$0xff] %v8055
        %8092 = vst [vmem:[#allocation5 + $0xb8] sm:$0xff] %v8056
        %8093 = vst [vmem:[#allocation5 + $0xc0] sm:$0xff] %v8057
        %8094 = vst [vmem:[#allocation5 + $0xc8] sm:$0xff] %v8058
        %8095 = vst [vmem:[#allocation5 + $0xd0] sm:$0xff] %v8059
        %8096 = vst [vmem:[#allocation5 + $0xd8] sm:$0xff] %v8060
        %8097 = vst [vmem:[#allocation5 + $0xe0] sm:$0xff] %v8061
        %8098 = vst [vmem:[#allocation5 + $0xe8] sm:$0xff] %v8062
        %8099 = vst [vmem:[#allocation5 + $0xf0] sm:$0xff] %v8063
        %8100 = vst [vmem:[#allocation5 + $0xf8] sm:$0xff] %v8064
        %8101 = vst [vmem:[#allocation5 + $0x100] sm:$0xff] %v8065
        %8102 = vst [vmem:[#allocation5 + $0x108] sm:$0xff] %v8066
        %8103 = vst [vmem:[#allocation5 + $0x110] sm:$0xff] %v8067
        %8104 = vst [vmem:[#allocation5 + $0x118] sm:$0xff] %v8068
        %v8105 = vld [vmem:[#allocation4 + $0x1c] sm:$0xff]
        %v8106 = vld [vmem:[#allocation4 + $0x24] sm:$0xff]
        %v8107 = vld [vmem:[#allocation4 + $0x2c] sm:$0xff]
        %v8108 = vld [vmem:[#allocation4 + $0x34] sm:$0xff]
        %v8109 = vld [vmem:[#allocation4 + $0x3c] sm:$0xff]
        %v8110 = vld [vmem:[#allocation4 + $0x44] sm:$0xff]
        %v8111 = vld [vmem:[#allocation4 + $0x4c] sm:$0xff]
        %v8112 = vld [vmem:[#allocation4 + $0x54] sm:$0xff]
        %v8113 = vld [vmem:[#allocation4 + $0x5c] sm:$0xff]
        %v8114 = vld [vmem:[#allocation4 + $0x64] sm:$0xff]
        %v8115 = vld [vmem:[#allocation4 + $0x6c] sm:$0xff]
        %v8116 = vld [vmem:[#allocation4 + $0x74] sm:$0xff]
        %v8117 = vld [vmem:[#allocation4 + $0x7c] sm:$0xff]
        %v8118 = vld [vmem:[#allocation4 + $0x84] sm:$0xff]
        %v8119 = vld [vmem:[#allocation4 + $0x8c] sm:$0xff]
        %v8120 = vld [vmem:[#allocation4 + $0x94] sm:$0xff]
        %v8121 = vld [vmem:[#allocation4 + $0x9c] sm:$0xff]
        %v8122 = vld [vmem:[#allocation4 + $0xa4] sm:$0xff]
        %v8123 = vld [vmem:[#allocation5] sm:$0xff]
        %v8124 = vld [vmem:[#allocation5 + $0x8] sm:$0xff]
        %v8125 = vld [vmem:[#allocation5 + $0x10] sm:$0xff]
        %v8126 = vld [vmem:[#allocation5 + $0x18] sm:$0xff]
        %v8127 = vld [vmem:[#allocation5 + $0x20] sm:$0xff]
        %v8128 = vld [vmem:[#allocation5 + $0x28] sm:$0xff]
        %v8129 = vld [vmem:[#allocation5 + $0x30] sm:$0xff]
        %v8130 = vld [vmem:[#allocation5 + $0x38] sm:$0xff]
        %v8131 = vld [vmem:[#allocation5 + $0x40] sm:$0xff]
        %v8132 = vld [vmem:[#allocation5 + $0x48] sm:$0xff]
        %v8133 = vld [vmem:[#allocation5 + $0x50] sm:$0xff]
        %v8134 = vld [vmem:[#allocation5 + $0x58] sm:$0xff]
        %v8135 = vld [vmem:[#allocation5 + $0x60] sm:$0xff]
        %v8136 = vld [vmem:[#allocation5 + $0x68] sm:$0xff]
        %v8137 = vld [vmem:[#allocation5 + $0x70] sm:$0xff]
        %v8138 = vld [vmem:[#allocation5 + $0x78] sm:$0xff]
        %v8139 = vld [vmem:[#allocation5 + $0x80] sm:$0xff]
        %v8140 = vld [vmem:[#allocation5 + $0x88] sm:$0xff]
        %v8141 = vld [vmem:[#allocation5 + $0x90] sm:$0xff]
        %v8142 = vld [vmem:[#allocation5 + $0x98] sm:$0xff]
        %v8143 = vld [vmem:[#allocation5 + $0xa0] sm:$0xff]
        %v8144 = vld [vmem:[#allocation5 + $0xa8] sm:$0xff]
        %v8145 = vld [vmem:[#allocation5 + $0xb0] sm:$0xff]
        %v8146 = vld [vmem:[#allocation5 + $0xb8] sm:$0xff]
        %v8147 = vld [vmem:[#allocation5 + $0xc0] sm:$0xff]
        %v8148 = vld [vmem:[#allocation5 + $0xc8] sm:$0xff]
        %v8149 = vld [vmem:[#allocation5 + $0xd0] sm:$0xff]
        %v8150 = vld [vmem:[#allocation5 + $0xd8] sm:$0xff]
        %v8151 = vld [vmem:[#allocation5 + $0xe0] sm:$0xff]
        %v8152 = vld [vmem:[#allocation5 + $0xe8] sm:$0xff]
        %v8153 = vld [vmem:[#allocation5 + $0xf0] sm:$0xff]
        %v8154 = vld [vmem:[#allocation5 + $0xf8] sm:$0xff]
        %v8155 = vld [vmem:[#allocation5 + $0x100] sm:$0xff]
        %v8156 = vld [vmem:[#allocation5 + $0x108] sm:$0xff]
        %v8157 = vld [vmem:[#allocation5 + $0x110] sm:$0xff]
        %v8158 = vld [vmem:[#allocation5 + $0x118] sm:$0xff]
        %s8159 = scalar_lea.vmem %s3, 2048
        %v8160 = vld [vmem:[%s8159] sm:$0xff]
        %v8161 = vld [vmem:[%s8159 + $0x8] sm:$0xff]
        %v8162 = vld [vmem:[%s8159 + $0x10] sm:$0xff]
        %v8163 = vld [vmem:[%s8159 + $0x18] sm:$0xff]
        %v8164 = vld [vmem:[%s8159 + $0x20] sm:$0xff]
        %v8165 = vld [vmem:[%s8159 + $0x28] sm:$0xff]
        %v8166 = vld [vmem:[%s8159 + $0x30] sm:$0xff]
        %v8167 = vld [vmem:[%s8159 + $0x38] sm:$0xff]
        %v8168 = vld [vmem:[%s8159 + $0x40] sm:$0xff]
        %v8169 = vld [vmem:[%s8159 + $0x48] sm:$0xff]
        %v8170 = vld [vmem:[%s8159 + $0x50] sm:$0xff]
        %v8171 = vld [vmem:[%s8159 + $0x58] sm:$0xff]
        %v8172 = vld [vmem:[%s8159 + $0x60] sm:$0xff]
        %v8173 = vld [vmem:[%s8159 + $0x68] sm:$0xff]
        %v8174 = vld [vmem:[%s8159 + $0x70] sm:$0xff]
        %v8175 = vld [vmem:[%s8159 + $0x78] sm:$0xff]
        %v8176 = vld [vmem:[%s8159 + $0x80] sm:$0xff]
        %v8177 = vld [vmem:[%s8159 + $0x88] sm:$0xff]
        %v8178 = vld [vmem:[%s8159 + $0x90] sm:$0xff]
        %v8179 = vld [vmem:[%s8159 + $0x98] sm:$0xff]
        %v8180 = vld [vmem:[%s8159 + $0xa0] sm:$0xff]
        %v8181 = vld [vmem:[%s8159 + $0xa8] sm:$0xff]
        %v8182 = vld [vmem:[%s8159 + $0xb0] sm:$0xff]
        %v8183 = vld [vmem:[%s8159 + $0xb8] sm:$0xff]
        %v8184 = vld [vmem:[%s8159 + $0xc0] sm:$0xff]
        %v8185 = vld [vmem:[%s8159 + $0xc8] sm:$0xff]
        %v8186 = vld [vmem:[%s8159 + $0xd0] sm:$0xff]
        %v8187 = vld [vmem:[%s8159 + $0xd8] sm:$0xff]
        %v8188 = vld [vmem:[%s8159 + $0xe0] sm:$0xff]
        %v8189 = vld [vmem:[%s8159 + $0xe8] sm:$0xff]
        %v8190 = vld [vmem:[%s8159 + $0xf0] sm:$0xff]
        %v8191 = vld [vmem:[%s8159 + $0xf8] sm:$0xff]
        %8192 = vmatprep.subr.mxu0 %v8161
        %8193 = vmatpush1.msra.mxu0 %v8160
        %8194 = vmatprep.subr.mxu0 %v8163
        %8195 = vmatpush1.msra.mxu0 %v8162
        %8196 = vmatprep.subr.mxu0 %v8165
        %8197 = vmatpush1.msra.mxu0 %v8164
        %8198 = vmatprep.subr.mxu0 %v8167
        %8199 = vmatpush1.msra.mxu0 %v8166
        %8200 = vmatprep.subr.mxu0 %v8169
        %8201 = vmatpush1.msra.mxu0 %v8168
        %8202 = vmatprep.subr.mxu0 %v8171
        %8203 = vmatpush1.msra.mxu0 %v8170
        %8204 = vmatprep.subr.mxu0 %v8173
        %8205 = vmatpush1.msra.mxu0 %v8172
        %8206 = vmatprep.subr.mxu0 %v8175
        %8207 = vmatpush1.msra.mxu0 %v8174
        %8208 = vmatprep.subr.mxu0 %v8177
        %8209 = vmatpush1.msra.mxu0 %v8176
        %8210 = vmatprep.subr.mxu0 %v8179
        %8211 = vmatpush1.msra.mxu0 %v8178
        %8212 = vmatprep.subr.mxu0 %v8181
        %8213 = vmatpush1.msra.mxu0 %v8180
        %8214 = vmatprep.subr.mxu0 %v8183
        %8215 = vmatpush1.msra.mxu0 %v8182
        %8216 = vmatprep.subr.mxu0 %v8185
        %8217 = vmatpush1.msra.mxu0 %v8184
        %8218 = vmatprep.subr.mxu0 %v8187
        %8219 = vmatpush1.msra.mxu0 %v8186
        %8220 = vmatprep.subr.mxu0 %v8189
        %8221 = vmatpush1.msra.mxu0 %v8188
        %8222 = vmatprep.subr.mxu0 %v8191
        %8223 = vmatpush1.msra.mxu0 %v8190
        %8224 = vmatprep.subr.mxu0 0.0
        %8225 = vmatpush1.msra.mxu0 0.0
        %8226 = vmatprep.subr.mxu0 0.0
        %8227 = vmatpush1.msra.mxu0 0.0
        %8228 = vmatprep.subr.mxu0 0.0
        %8229 = vmatpush1.msra.mxu0 0.0
        %8230 = vmatprep.subr.mxu0 0.0
        %8231 = vmatpush1.msra.mxu0 0.0
        %8232 = vmatprep.subr.mxu0 0.0
        %8233 = vmatpush1.msra.mxu0 0.0
        %8234 = vmatprep.subr.mxu0 0.0
        %8235 = vmatpush1.msra.mxu0 0.0
        %8236 = vmatprep.subr.mxu0 0.0
        %8237 = vmatpush1.msra.mxu0 0.0
        %8238 = vmatprep.subr.mxu0 0.0
        %8239 = vmatpush1.msra.mxu0 0.0
        %8240 = vmatprep.subr.mxu0 0.0
        %8241 = vmatpush1.msra.mxu0 0.0
        %8242 = vmatprep.subr.mxu0 0.0
        %8243 = vmatpush1.msra.mxu0 0.0
        %8244 = vmatprep.subr.mxu0 0.0
        %8245 = vmatpush1.msra.mxu0 0.0
        %8246 = vmatprep.subr.mxu0 0.0
        %8247 = vmatpush1.msra.mxu0 0.0
        %8248 = vmatprep.subr.mxu0 0.0
        %8249 = vmatpush1.msra.mxu0 0.0
        %8250 = vmatprep.subr.mxu0 0.0
        %8251 = vmatpush1.msra.mxu0 0.0
        %8252 = vmatprep.subr.mxu0 0.0
        %8253 = vmatpush1.msra.mxu0 0.0
        %8254 = vmatprep.subr.mxu0 0.0
        %8255 = vmatpush1.msra.mxu0 0.0
        %8256 = vmatprep.mubr.f32.mxu0 0.0
        %8257 = vmatmul.mubr.f32.gmra.mrb[0].mxu0 %v8105
        %v8258 = vpop.f32.mrb[0].mxu0
        %v8259 = vadd.f32 0.0, %v8258
        %v8260 = vpop.f32.mrb[0].mxu0
        %v8261 = vadd.f32 0.0, %v8260
        %8262 = vmatprep.mubr.f32.mxu0 0.0
        %8263 = vmatmul.mubr.f32.gmra.mrb[0].mxu0 %v8106
        %v8264 = vpop.f32.mrb[0].mxu0
        %v8265 = vadd.f32 0.0, %v8264
        %v8266 = vpop.f32.mrb[0].mxu0
        %v8267 = vadd.f32 0.0, %v8266
        %8268 = vmatprep.mubr.f32.mxu0 0.0
        %8269 = vmatmul.mubr.f32.gmra.mrb[0].mxu0 %v8107
        %v8270 = vpop.f32.mrb[0].mxu0
        %v8271 = vadd.f32 0.0, %v8270
        %v8272 = vpop.f32.mrb[0].mxu0
        %v8273 = vadd.f32 0.0, %v8272
        %8274 = vmatprep.mubr.f32.mxu0 0.0
        %8275 = vmatmul.mubr.f32.gmra.mrb[0].mxu0 %v8108
        %v8276 = vpop.f32.mrb[0].mxu0
        %v8277 = vadd.f32 0.0, %v8276
        %v8278 = vpop.f32.mrb[0].mxu0
        %v8279 = vadd.f32 0.0, %v8278
        %8280 = vmatprep.mubr.f32.mxu0 0.0
        %8281 = vmatmul.mubr.f32.gmra.mrb[0].mxu0 %v8109
        %v8282 = vpop.f32.mrb[0].mxu0
        %v8283 = vadd.f32 0.0, %v8282
        %v8284 = vpop.f32.mrb[0].mxu0
        %v8285 = vadd.f32 0.0, %v8284
        %8286 = vmatprep.mubr.f32.mxu0 0.0
        %8287 = vmatmul.mubr.f32.gmra.mrb[0].mxu0 %v8110
        %v8288 = vpop.f32.mrb[0].mxu0
        %v8289 = vadd.f32 0.0, %v8288
        %v8290 = vpop.f32.mrb[0].mxu0
        %v8291 = vadd.f32 0.0, %v8290
        %8292 = vmatprep.mubr.f32.mxu0 0.0
        %8293 = vmatmul.mubr.f32.gmra.mrb[0].mxu0 %v8111
        %v8294 = vpop.f32.mrb[0].mxu0
        %v8295 = vadd.f32 0.0, %v8294
        %v8296 = vpop.f32.mrb[0].mxu0
        %v8297 = vadd.f32 0.0, %v8296
        %8298 = vmatprep.mubr.f32.mxu0 0.0
        %8299 = vmatmul.mubr.f32.gmra.mrb[0].mxu0 %v8112
        %v8300 = vpop.f32.mrb[0].mxu0
        %v8301 = vadd.f32 0.0, %v8300
        %v8302 = vpop.f32.mrb[0].mxu0
        %v8303 = vadd.f32 0.0, %v8302
        %8304 = vmatprep.mubr.f32.mxu0 0.0
        %8305 = vmatmul.mubr.f32.gmra.mrb[0].mxu0 %v8113
        %v8306 = vpop.f32.mrb[0].mxu0
        %v8307 = vadd.f32 0.0, %v8306
        %v8308 = vpop.f32.mrb[0].mxu0
        %v8309 = vadd.f32 0.0, %v8308
        %8310 = vmatprep.mubr.f32.mxu0 0.0
        %8311 = vmatmul.mubr.f32.gmra.mrb[0].mxu0 %v8114
        %v8312 = vpop.f32.mrb[0].mxu0
        %v8313 = vadd.f32 0.0, %v8312
        %v8314 = vpop.f32.mrb[0].mxu0
        %v8315 = vadd.f32 0.0, %v8314
        %8316 = vmatprep.mubr.f32.mxu0 0.0
        %8317 = vmatmul.mubr.f32.gmra.mrb[0].mxu0 %v8115
        %v8318 = vpop.f32.mrb[0].mxu0
        %v8319 = vadd.f32 0.0, %v8318
        %v8320 = vpop.f32.mrb[0].mxu0
        %v8321 = vadd.f32 0.0, %v8320
        %8322 = vmatprep.mubr.f32.mxu0 0.0
        %8323 = vmatmul.mubr.f32.gmra.mrb[0].mxu0 %v8116
        %v8324 = vpop.f32.mrb[0].mxu0
        %v8325 = vadd.f32 0.0, %v8324
        %v8326 = vpop.f32.mrb[0].mxu0
        %v8327 = vadd.f32 0.0, %v8326
        %8328 = vmatprep.mubr.f32.mxu0 0.0
        %8329 = vmatmul.mubr.f32.gmra.mrb[0].mxu0 %v8117
        %v8330 = vpop.f32.mrb[0].mxu0
        %v8331 = vadd.f32 0.0, %v8330
        %v8332 = vpop.f32.mrb[0].mxu0
        %v8333 = vadd.f32 0.0, %v8332
        %8334 = vmatprep.mubr.f32.mxu0 0.0
        %8335 = vmatmul.mubr.f32.gmra.mrb[0].mxu0 %v8118
        %v8336 = vpop.f32.mrb[0].mxu0
        %v8337 = vadd.f32 0.0, %v8336
        %v8338 = vpop.f32.mrb[0].mxu0
        %v8339 = vadd.f32 0.0, %v8338
        %8340 = vmatprep.mubr.f32.mxu0 0.0
        %8341 = vmatmul.mubr.f32.gmra.mrb[0].mxu0 %v8119
        %v8342 = vpop.f32.mrb[0].mxu0
        %v8343 = vadd.f32 0.0, %v8342
        %v8344 = vpop.f32.mrb[0].mxu0
        %v8345 = vadd.f32 0.0, %v8344
        %8346 = vmatprep.mubr.f32.mxu0 0.0
        %8347 = vmatmul.mubr.f32.gmra.mrb[0].mxu0 %v8120
        %v8348 = vpop.f32.mrb[0].mxu0
        %v8349 = vadd.f32 0.0, %v8348
        %v8350 = vpop.f32.mrb[0].mxu0
        %v8351 = vadd.f32 0.0, %v8350
        %8352 = vmatprep.mubr.f32.mxu0 0.0
        %8353 = vmatmul.mubr.f32.gmra.mrb[0].mxu0 %v8121
        %v8354 = vpop.f32.mrb[0].mxu0
        %v8355 = vadd.f32 0.0, %v8354
        %v8356 = vpop.f32.mrb[0].mxu0
        %v8357 = vadd.f32 0.0, %v8356
        %8358 = vmatprep.mubr.f32.mxu0 0.0
        %8359 = vmatmul.mubr.f32.gmra.mrb[0].mxu0 %v8122
        %v8360 = vpop.f32.mrb[0].mxu0
        %v8361 = vadd.f32 0.0, %v8360
        %v8362 = vpop.f32.mrb[0].mxu0
        %v8363 = vadd.f32 0.0, %v8362
        %8364 = vdwg.mxu0
        %v8365 = vadd.f32 %v8123, %v8259
        %v8366 = vadd.f32 %v8124, %v8261
        %v8367 = vadd.f32 %v8125, %v8265
        %v8368 = vadd.f32 %v8126, %v8267
        %v8369 = vadd.f32 %v8127, %v8271
        %v8370 = vadd.f32 %v8128, %v8273
        %v8371 = vadd.f32 %v8129, %v8277
        %v8372 = vadd.f32 %v8130, %v8279
        %v8373 = vadd.f32 %v8131, %v8283
        %v8374 = vadd.f32 %v8132, %v8285
        %v8375 = vadd.f32 %v8133, %v8289
        %v8376 = vadd.f32 %v8134, %v8291
        %v8377 = vadd.f32 %v8135, %v8295
        %v8378 = vadd.f32 %v8136, %v8297
        %v8379 = vadd.f32 %v8137, %v8301
        %v8380 = vadd.f32 %v8138, %v8303
        %v8381 = vadd.f32 %v8139, %v8307
        %v8382 = vadd.f32 %v8140, %v8309
        %v8383 = vadd.f32 %v8141, %v8313
        %v8384 = vadd.f32 %v8142, %v8315
        %v8385 = vadd.f32 %v8143, %v8319
        %v8386 = vadd.f32 %v8144, %v8321
        %v8387 = vadd.f32 %v8145, %v8325
        %v8388 = vadd.f32 %v8146, %v8327
        %v8389 = vadd.f32 %v8147, %v8331
        %v8390 = vadd.f32 %v8148, %v8333
        %v8391 = vadd.f32 %v8149, %v8337
        %v8392 = vadd.f32 %v8150, %v8339
        %v8393 = vadd.f32 %v8151, %v8343
        %v8394 = vadd.f32 %v8152, %v8345
        %v8395 = vadd.f32 %v8153, %v8349
        %v8396 = vadd.f32 %v8154, %v8351
        %v8397 = vadd.f32 %v8155, %v8355
        %v8398 = vadd.f32 %v8156, %v8357
        %v8399 = vadd.f32 %v8157, %v8361
        %v8400 = vadd.f32 %v8158, %v8363
        %8401 = vst [vmem:[#allocation5] sm:$0xff] %v8365
        %8402 = vst [vmem:[#allocation5 + $0x8] sm:$0xff] %v8366
        %8403 = vst [vmem:[#allocation5 + $0x10] sm:$0xff] %v8367
        %8404 = vst [vmem:[#allocation5 + $0x18] sm:$0xff] %v8368
        %8405 = vst [vmem:[#allocation5 + $0x20] sm:$0xff] %v8369
        %8406 = vst [vmem:[#allocation5 + $0x28] sm:$0xff] %v8370
        %8407 = vst [vmem:[#allocation5 + $0x30] sm:$0xff] %v8371
        %8408 = vst [vmem:[#allocation5 + $0x38] sm:$0xff] %v8372
        %8409 = vst [vmem:[#allocation5 + $0x40] sm:$0xff] %v8373
        %8410 = vst [vmem:[#allocation5 + $0x48] sm:$0xff] %v8374
        %8411 = vst [vmem:[#allocation5 + $0x50] sm:$0xff] %v8375
        %8412 = vst [vmem:[#allocation5 + $0x58] sm:$0xff] %v8376
        %8413 = vst [vmem:[#allocation5 + $0x60] sm:$0xff] %v8377
        %8414 = vst [vmem:[#allocation5 + $0x68] sm:$0xff] %v8378
        %8415 = vst [vmem:[#allocation5 + $0x70] sm:$0xff] %v8379
        %8416 = vst [vmem:[#allocation5 + $0x78] sm:$0xff] %v8380
        %8417 = vst [vmem:[#allocation5 + $0x80] sm:$0xff] %v8381
        %8418 = vst [vmem:[#allocation5 + $0x88] sm:$0xff] %v8382
        %8419 = vst [vmem:[#allocation5 + $0x90] sm:$0xff] %v8383
        %8420 = vst [vmem:[#allocation5 + $0x98] sm:$0xff] %v8384
        %8421 = vst [vmem:[#allocation5 + $0xa0] sm:$0xff] %v8385
        %8422 = vst [vmem:[#allocation5 + $0xa8] sm:$0xff] %v8386
        %8423 = vst [vmem:[#allocation5 + $0xb0] sm:$0xff] %v8387
        %8424 = vst [vmem:[#allocation5 + $0xb8] sm:$0xff] %v8388
        %8425 = vst [vmem:[#allocation5 + $0xc0] sm:$0xff] %v8389
        %8426 = vst [vmem:[#allocation5 + $0xc8] sm:$0xff] %v8390
        %8427 = vst [vmem:[#allocation5 + $0xd0] sm:$0xff] %v8391
        %8428 = vst [vmem:[#allocation5 + $0xd8] sm:$0xff] %v8392
        %8429 = vst [vmem:[#allocation5 + $0xe0] sm:$0xff] %v8393
        %8430 = vst [vmem:[#allocation5 + $0xe8] sm:$0xff] %v8394
        %8431 = vst [vmem:[#allocation5 + $0xf0] sm:$0xff] %v8395
        %8432 = vst [vmem:[#allocation5 + $0xf8] sm:$0xff] %v8396
        %8433 = vst [vmem:[#allocation5 + $0x100] sm:$0xff] %v8397
        %8434 = vst [vmem:[#allocation5 + $0x108] sm:$0xff] %v8398
        %8435 = vst [vmem:[#allocation5 + $0x110] sm:$0xff] %v8399
        %8436 = vst [vmem:[#allocation5 + $0x118] sm:$0xff] %v8400
        %v8437 = vld [vmem:[#allocation5] sm:$0xff]
        %v8438 = vld [vmem:[#allocation5 + $0x8] sm:$0xff]
        %v8439 = vld [vmem:[#allocation5 + $0x10] sm:$0xff]
        %v8440 = vld [vmem:[#allocation5 + $0x18] sm:$0xff]
        %v8441 = vld [vmem:[#allocation5 + $0x20] sm:$0xff]
        %v8442 = vld [vmem:[#allocation5 + $0x28] sm:$0xff]
        %v8443 = vld [vmem:[#allocation5 + $0x30] sm:$0xff]
        %v8444 = vld [vmem:[#allocation5 + $0x38] sm:$0xff]
        %v8445 = vld [vmem:[#allocation5 + $0x40] sm:$0xff]
        %v8446 = vld [vmem:[#allocation5 + $0x48] sm:$0xff]
        %v8447 = vld [vmem:[#allocation5 + $0x50] sm:$0xff]
        %v8448 = vld [vmem:[#allocation5 + $0x58] sm:$0xff]
        %v8449 = vld [vmem:[#allocation5 + $0x60] sm:$0xff]
        %v8450 = vld [vmem:[#allocation5 + $0x68] sm:$0xff]
        %v8451 = vld [vmem:[#allocation5 + $0x70] sm:$0xff]
        %v8452 = vld [vmem:[#allocation5 + $0x78] sm:$0xff]
        %v8453 = vld [vmem:[#allocation5 + $0x80] sm:$0xff]
        %v8454 = vld [vmem:[#allocation5 + $0x88] sm:$0xff]
        %v8455 = vld [vmem:[#allocation5 + $0x90] sm:$0xff]
        %v8456 = vld [vmem:[#allocation5 + $0x98] sm:$0xff]
        %v8457 = vld [vmem:[#allocation5 + $0xa0] sm:$0xff]
        %v8458 = vld [vmem:[#allocation5 + $0xa8] sm:$0xff]
        %v8459 = vld [vmem:[#allocation5 + $0xb0] sm:$0xff]
        %v8460 = vld [vmem:[#allocation5 + $0xb8] sm:$0xff]
        %v8461 = vld [vmem:[#allocation5 + $0xc0] sm:$0xff]
        %v8462 = vld [vmem:[#allocation5 + $0xc8] sm:$0xff]
        %v8463 = vld [vmem:[#allocation5 + $0xd0] sm:$0xff]
        %v8464 = vld [vmem:[#allocation5 + $0xd8] sm:$0xff]
        %v8465 = vld [vmem:[#allocation5 + $0xe0] sm:$0xff]
        %v8466 = vld [vmem:[#allocation5 + $0xe8] sm:$0xff]
        %v8467 = vld [vmem:[#allocation5 + $0xf0] sm:$0xff]
        %v8468 = vld [vmem:[#allocation5 + $0xf8] sm:$0xff]
        %v8469 = vld [vmem:[#allocation5 + $0x100] sm:$0xff]
        %v8470 = vld [vmem:[#allocation5 + $0x108] sm:$0xff]
        %v8471 = vld [vmem:[#allocation5 + $0x110] sm:$0xff]
        %v8472 = vld [vmem:[#allocation5 + $0x118] sm:$0xff]
        %v8473 = vld [vmem:[%s4] sm:$0x3]
        %v8475 = vlaneseq
        %v8476 = vshrl.u32 %v8475, 7
        %v8477 = vsub.s32 0, %v8476
        %v8478 = vrot.slane %v8473, %v8477
        %v8479 = vlaneseq
        %v8480 = vshrl.u32 %v8479, 7
        %v8481 = vsub.s32 1, %v8480
        %v8482 = vrot.slane %v8473, %v8481
        %v8485 = vadd.f32 %v8437, %v8478
        %v8486 = vadd.f32 %v8438, %v8482
        %v8487 = vadd.f32 %v8439, %v8478
        %v8488 = vadd.f32 %v8440, %v8482
        %v8489 = vadd.f32 %v8441, %v8478
        %v8490 = vadd.f32 %v8442, %v8482
        %v8491 = vadd.f32 %v8443, %v8478
        %v8492 = vadd.f32 %v8444, %v8482
        %v8493 = vadd.f32 %v8445, %v8478
        %v8494 = vadd.f32 %v8446, %v8482
        %v8495 = vadd.f32 %v8447, %v8478
        %v8496 = vadd.f32 %v8448, %v8482
        %v8497 = vadd.f32 %v8449, %v8478
        %v8498 = vadd.f32 %v8450, %v8482
        %v8499 = vadd.f32 %v8451, %v8478
        %v8500 = vadd.f32 %v8452, %v8482
        %v8501 = vadd.f32 %v8453, %v8478
        %v8502 = vadd.f32 %v8454, %v8482
        %v8503 = vadd.f32 %v8455, %v8478
        %v8504 = vadd.f32 %v8456, %v8482
        %v8505 = vadd.f32 %v8457, %v8478
        %v8506 = vadd.f32 %v8458, %v8482
        %v8507 = vadd.f32 %v8459, %v8478
        %v8508 = vadd.f32 %v8460, %v8482
        %v8509 = vadd.f32 %v8461, %v8478
        %v8510 = vadd.f32 %v8462, %v8482
        %v8511 = vadd.f32 %v8463, %v8478
        %v8512 = vadd.f32 %v8464, %v8482
        %v8513 = vadd.f32 %v8465, %v8478
        %v8514 = vadd.f32 %v8466, %v8482
        %v8515 = vadd.f32 %v8467, %v8478
        %v8516 = vadd.f32 %v8468, %v8482
        %v8517 = vadd.f32 %v8469, %v8478
        %v8518 = vadd.f32 %v8470, %v8482
        %v8519 = vadd.f32 %v8471, %v8478
        %v8520 = vadd.f32 %v8472, %v8482
        %v8521 = vmax.f32 %v8485, 0.0
        %v8522 = vmax.f32 %v8486, 0.0
        %v8523 = vmax.f32 %v8487, 0.0
        %v8524 = vmax.f32 %v8488, 0.0
        %v8525 = vmax.f32 %v8489, 0.0
        %v8526 = vmax.f32 %v8490, 0.0
        %v8527 = vmax.f32 %v8491, 0.0
        %v8528 = vmax.f32 %v8492, 0.0
        %v8529 = vmax.f32 %v8493, 0.0
        %v8530 = vmax.f32 %v8494, 0.0
        %v8531 = vmax.f32 %v8495, 0.0
        %v8532 = vmax.f32 %v8496, 0.0
        %v8533 = vmax.f32 %v8497, 0.0
        %v8534 = vmax.f32 %v8498, 0.0
        %v8535 = vmax.f32 %v8499, 0.0
        %v8536 = vmax.f32 %v8500, 0.0
        %v8537 = vmax.f32 %v8501, 0.0
        %v8538 = vmax.f32 %v8502, 0.0
        %v8539 = vmax.f32 %v8503, 0.0
        %v8540 = vmax.f32 %v8504, 0.0
        %v8541 = vmax.f32 %v8505, 0.0
        %v8542 = vmax.f32 %v8506, 0.0
        %v8543 = vmax.f32 %v8507, 0.0
        %v8544 = vmax.f32 %v8508, 0.0
        %v8545 = vmax.f32 %v8509, 0.0
        %v8546 = vmax.f32 %v8510, 0.0
        %v8547 = vmax.f32 %v8511, 0.0
        %v8548 = vmax.f32 %v8512, 0.0
        %v8549 = vmax.f32 %v8513, 0.0
        %v8550 = vmax.f32 %v8514, 0.0
        %v8551 = vmax.f32 %v8515, 0.0
        %v8552 = vmax.f32 %v8516, 0.0
        %v8553 = vmax.f32 %v8517, 0.0
        %v8554 = vmax.f32 %v8518, 0.0
        %v8555 = vmax.f32 %v8519, 0.0
        %v8556 = vmax.f32 %v8520, 0.0
        %8557 = vst [vmem:[%s217] sm:$0xff] %v8521
        %8558 = vst [vmem:[%s217 + $0x8] sm:$0xff] %v8522
        %8559 = vst [vmem:[%s217 + $0x10] sm:$0xff] %v8523
        %8560 = vst [vmem:[%s217 + $0x18] sm:$0xff] %v8524
        %8561 = vst [vmem:[%s217 + $0x20] sm:$0xff] %v8525
        %8562 = vst [vmem:[%s217 + $0x28] sm:$0xff] %v8526
        %8563 = vst [vmem:[%s217 + $0x30] sm:$0xff] %v8527
        %8564 = vst [vmem:[%s217 + $0x38] sm:$0xff] %v8528
        %8565 = vst [vmem:[%s217 + $0x40] sm:$0xff] %v8529
        %8566 = vst [vmem:[%s217 + $0x48] sm:$0xff] %v8530
        %8567 = vst [vmem:[%s217 + $0x50] sm:$0xff] %v8531
        %8568 = vst [vmem:[%s217 + $0x58] sm:$0xff] %v8532
        %8569 = vst [vmem:[%s217 + $0x60] sm:$0xff] %v8533
        %8570 = vst [vmem:[%s217 + $0x68] sm:$0xff] %v8534
        %8571 = vst [vmem:[%s217 + $0x70] sm:$0xff] %v8535
        %8572 = vst [vmem:[%s217 + $0x78] sm:$0xff] %v8536
        %8573 = vst [vmem:[%s217 + $0x80] sm:$0xff] %v8537
        %8574 = vst [vmem:[%s217 + $0x88] sm:$0xff] %v8538
        %8575 = vst [vmem:[%s217 + $0x90] sm:$0xff] %v8539
        %8576 = vst [vmem:[%s217 + $0x98] sm:$0xff] %v8540
        %8577 = vst [vmem:[%s217 + $0xa0] sm:$0xff] %v8541
        %8578 = vst [vmem:[%s217 + $0xa8] sm:$0xff] %v8542
        %8579 = vst [vmem:[%s217 + $0xb0] sm:$0xff] %v8543
        %8580 = vst [vmem:[%s217 + $0xb8] sm:$0xff] %v8544
        %8581 = vst [vmem:[%s217 + $0xc0] sm:$0xff] %v8545
        %8582 = vst [vmem:[%s217 + $0xc8] sm:$0xff] %v8546
        %8583 = vst [vmem:[%s217 + $0xd0] sm:$0xff] %v8547
        %8584 = vst [vmem:[%s217 + $0xd8] sm:$0xff] %v8548
        %8585 = vst [vmem:[%s217 + $0xe0] sm:$0xff] %v8549
        %8586 = vst [vmem:[%s217 + $0xe8] sm:$0xff] %v8550
        %8587 = vst [vmem:[%s217 + $0xf0] sm:$0xff] %v8551
        %8588 = vst [vmem:[%s217 + $0xf8] sm:$0xff] %v8552
        %8589 = vst [vmem:[%s217 + $0x100] sm:$0xff] %v8553
        %8590 = vst [vmem:[%s217 + $0x108] sm:$0xff] %v8554
        %8591 = vst [vmem:[%s217 + $0x110] sm:$0xff] %v8555
        %8592 = vst [vmem:[%s217 + $0x118] sm:$0xff] %v8556
        %s8593 = sand.u32 %s137, 1
        %s8594 = scalar_lea.sflag [#allocation7], %s8593
        %s8595 = sand.u32 %s137, 1
        %s8596 = smul.addr %s8595, 288
        %s8597 = scalar_lea.vmem [#allocation6], %s8596
        // Predicated region
        $region41: #{tpu_custom_call.1} parent=39 // pred_check
          %p8598 = pneg %p147
        $region42: #{tpu_custom_call.1} parent=39 // pred_check_branch
          %8600 = sbr.rel (%p8598) target = $region44
        $region43: #{tpu_custom_call.1} parent=39 // pred_region
          %s8602 = ssub.s32 4608, 4608
          %8603 = vsyncadd %s8594, %s8602
          %s8604 = smul.addr %s19, 36
          %s8605 = smul.addr %s8604, 128
          %s8606 = scalar_lea.hbm %s5, %s8605
          %s8607 = sshll.u32 %s8597, 4
          %s8608 = int_to_ptr.vmem [resolvable:$true] %s8607
          %8613 = dma.vmem_to_hbm [thread:$0]  %s8608, 4608, %s8606, %s8594, 256, 256, 16
        $region44: #{tpu_custom_call.1} parent=39 // pred_fallthru
          _
      $region40: #{tpu_custom_call.1} parent=5 // pred_fallthru
        _
      %p8614 = scmp.le.s32.totalorder 2, %s14
      // Predicated region
      $region45: #{tpu_custom_call.1} parent=5 // pred_check
        %p8615 = pneg %p8614
      $region46: #{tpu_custom_call.1} parent=5 // pred_check_branch
        %8617 = sbr.rel (%p8615) target = $region48
      $region47: #{tpu_custom_call.1} parent=5 // pred_region
        %s8618 = ssub.s32 %s14, 2
        // Predicated region
        $region49: #{tpu_custom_call.1} parent=47 // pred_check
          %p8619 = pneg %p153
        $region50: #{tpu_custom_call.1} parent=47 // pred_check_branch
          %8621 = sbr.rel (%p8619) target = $region52
        $region51: #{tpu_custom_call.1} parent=47 // pred_region
          %s8622 = sand.u32 %s138, 1
          %s8623 = scalar_lea.sflag [#allocation7], %s8622
          %s8624 = sand.u32 %s138, 1
          %s8625 = smul.addr %s8624, 288
          %s8626 = scalar_lea.vmem [#allocation6], %s8625
          %8627 = dma.done %s8623, 4608
        $region52: #{tpu_custom_call.1} parent=47 // pred_fallthru
          _
      $region48: #{tpu_custom_call.1} parent=5 // pred_fallthru
        _
    $region6: #{tpu_custom_call.1} parent=1 // loop_footer
      %s18 = sadd.s32 1, %s14
    $region7: #{tpu_custom_call.1} parent=1 // loop_footer_branch
      %13 = sbr.rel target = $region3
    $region8: #{tpu_custom_call.1} parent=1 // loop_exit
      _
    %8628 = vsyncpa [#allocation7], 1
    %s8629 = scalar_lea.sflag [#allocation7], 1
    %8630 = vsyncpa %s8629, 1

</llo_original>
